<compile_context>
chip_gen: v7x
topology: tpu7x:2x2x1
jax: 0.10.0
libtpu: 0.0.40
codegen_flags: <defaults>
</compile_context>

<pallas_src>
import functools

import jax
import jax.numpy as jnp
from jax.experimental import pallas as pl
from jax.experimental.pallas import tpu as pltpu


def _ceil_to(x, m):
    return ((x + m - 1) // m) * m


@functools.lru_cache(maxsize=None)
def _chip_tuning():
    """Per-generation tile / VMEM / pipelining knobs.

    v7x         : 64 MiB VMEM per core, 2 TensorCores -> modest tiles, keep
                  >= 4 parallel grid steps so both cores get work.
    v5e         : 128 MiB VMEM, 1 TC, lowest HBM BW   -> biggest tiles, 3-deep
                  pipelining on the streamed patches operand.
    v6e/default : 128 MiB VMEM, 1 TC                  -> biggest tiles.
    """
    kind = ""
    try:
        kind = jax.devices()[0].device_kind.lower()
    except Exception:  # defensive: fall back to conservative defaults
        pass
    is_v7 = ("v7" in kind) or ("7x" in kind)
    is_v5e = ("v5 lite" in kind) or ("v5lite" in kind) or ("v5e" in kind)
    if is_v7:
        return dict(vmem_limit=48 * 1024 * 1024, min_parallel=4,
                    tm_cands=(1024, 512, 256, 128), patch_buffers=2)
    return dict(vmem_limit=96 * 1024 * 1024, min_parallel=1,
                tm_cands=(2048, 1024, 512, 256, 128),
                patch_buffers=3 if is_v5e else 2)


def _pick_tm(Mp, cfg):
    """Output-pixel (lane) tile: as large as possible; only on v7x keep
    >= cfg['min_parallel'] grid steps so both TensorCores stay busy."""
    cands = cfg["tm_cands"]
    if Mp >= 512 and cfg["min_parallel"] > 1:
        for cand in cands:
            if Mp % cand == 0 and Mp // cand >= cfg["min_parallel"]:
                return cand
    for cand in cands:
        if Mp % cand == 0:
            return cand
    return Mp          # tiny / ragged M: single full-extent block


def _pick_tk(K, max_tk=2048):
    """Contraction tile: full K when it fits (-> accumulator-free kernel with a
    resident weight), otherwise a 128-multiple divisor so the K grid axis plus
    the f32 accumulator stays within the per-generation VMEM budget."""
    if K <= max_tk:
        return K
    for cand in (2048, 1024, 512, 256, 128):
        if K % cand == 0:
            return cand
    return K


def _patches_spec(block_shape, index_map, nbuf):
    """BlockSpec for the streamed patches operand; deeper pipelining when the
    generation asks for it (v5e)."""
    if nbuf != 2:
        try:
            return pl.BlockSpec(block_shape, index_map,
                                pipeline_mode=pl.Buffered(nbuf))
        except (TypeError, AttributeError):   # older BlockSpec signature
            pass
    return pl.BlockSpec(block_shape, index_map)


# ----------------------------------------------------------------------------
# Pallas kernel 1a: conv-as-matmul, single K step.
#   Weight block is constant across the grid (-> resident, loaded once), no f32
#   scratch round trip: dot -> LeakyReLU -> bf16 store.
#   W:(Cout, K) bf16   patches:(K, tm) bf16   out:(Cout, tm) bf16
# ----------------------------------------------------------------------------
def _conv_mm_kernel_1k(w_ref, p_ref, o_ref, *, slope):
    acc = jnp.dot(w_ref[...], p_ref[...], preferred_element_type=jnp.float32)
    if slope is not None:
        acc = jnp.where(acc >= 0.0, acc, jnp.float32(slope) * acc)
    o_ref[...] = acc.astype(o_ref.dtype)


# ----------------------------------------------------------------------------
# Pallas kernel 1b: conv-as-matmul, K-tiled f32 VMEM accumulator (big-K layers).
# ----------------------------------------------------------------------------
def _conv_mm_kernel_acc(w_ref, p_ref, o_ref, acc_ref, *, slope):
    @pl.when(pl.program_id(1) == 0)
    def _():
        acc_ref[...] = jnp.zeros_like(acc_ref)

    acc_ref[...] += jnp.dot(w_ref[...], p_ref[...],
                            preferred_element_type=jnp.float32)

    @pl.when(pl.program_id(1) == pl.num_programs(1) - 1)
    def _():
        acc = acc_ref[...]
        if slope is not None:
            acc = jnp.where(acc >= 0.0, acc, jnp.float32(slope) * acc)
        o_ref[...] = acc.astype(o_ref.dtype)


def conv_matmul_cmajor(w_mat, patches, slope=None):
    """act(W @ patches): W (Cout, K) bf16, patches (K, M) bf16 -> (Cout, M) bf16."""
    cout, K = w_mat.shape
    K2, M = patches.shape
    assert K == K2 and cout % 16 == 0 and K % 128 == 0
    cfg = _chip_tuning()

    # Rare fallback (never hit for power-of-two shapes): pad M so the lane
    # dimension tiles cleanly.
    Mp = M
    if M > 128 and M % 128 != 0:
        Mp = _ceil_to(M, 128)
        patches = jnp.pad(patches, ((0, 0), (0, Mp - M)))

    tm = _pick_tm(Mp, cfg)
    tk = _pick_tk(K)
    nk = K // tk

    if nk == 1:
        out = pl.pallas_call(
            functools.partial(_conv_mm_kernel_1k, slope=slope),
            out_shape=jax.ShapeDtypeStruct((cout, Mp), jnp.bfloat16),
            grid=(Mp // tm,),
            in_specs=[
                pl.BlockSpec((cout, K), lambda i: (0, 0)),       # resident weight
                _patches_spec((K, tm), lambda i: (0, i), cfg["patch_buffers"]),
            ],
            out_specs=pl.BlockSpec((cout, tm), lambda i: (0, i)),
            compiler_params=pltpu.CompilerParams(
                dimension_semantics=("parallel",),
                vmem_limit_bytes=cfg["vmem_limit"]),
            cost_estimate=pl.CostEstimate(
                flops=2 * cout * K * Mp,
                transcendentals=0,
                bytes_accessed=2 * (cout * K + K * Mp + cout * Mp)),
        )(w_mat, patches)
    else:
        out = pl.pallas_call(
            functools.partial(_conv_mm_kernel_acc, slope=slope),
            out_shape=jax.ShapeDtypeStruct((cout, Mp), jnp.bfloat16),
            grid=(Mp // tm, nk),
            in_specs=[
                pl.BlockSpec((cout, tk), lambda i, k: (0, k)),
                _patches_spec((tk, tm), lambda i, k: (k, i), cfg["patch_buffers"]),
            ],
            out_specs=pl.BlockSpec((cout, tm), lambda i, k: (0, i)),
            scratch_shapes=[pltpu.VMEM((cout, tm), jnp.float32)],
            compiler_params=pltpu.CompilerParams(
                dimension_semantics=("parallel", "arbitrary"),
                vmem_limit_bytes=cfg["vmem_limit"]),
            cost_estimate=pl.CostEstimate(
                flops=2 * cout * K * Mp,
                transcendentals=0,
                # weight blocks are re-fetched for every M tile (i outer, k inner)
                bytes_accessed=2 * (cout * K * (Mp // tm) + K * Mp + cout * Mp)),
        )(w_mat, patches)

    if Mp != M:
        out = out[:, :M]
    return out


# ----------------------------------------------------------------------------
# Pallas kernel 2: M-major conv matmul for the tiny-M late layers.
#   patches:(M, K) bf16   Wt:(K, Cout) bf16   out:(M, Cout) bf16 (lanes = Cout)
# ----------------------------------------------------------------------------
def _conv_mm_nmajor_kernel(p_ref, w_ref, o_ref, *, slope):
    acc = jnp.dot(p_ref[...], w_ref[...], preferred_element_type=jnp.float32)
    if slope is not None:
        acc = jnp.where(acc >= 0.0, acc, jnp.float32(slope) * acc)
    o_ref[...] = acc.astype(o_ref.dtype)


def conv_matmul_nmajor(patches, w_matT, slope=None):
    M, K = patches.shape
    K2, cout = w_matT.shape
    assert K == K2
    cfg = _chip_tuning()
    return pl.pallas_call(
        functools.partial(_conv_mm_nmajor_kernel, slope=slope),
        out_shape=jax.ShapeDtypeStruct((M, cout), jnp.bfloat16),
        compiler_params=pltpu.CompilerParams(vmem_limit_bytes=cfg["vmem_limit"]),
        cost_estimate=pl.CostEstimate(
            flops=2 * M * K * cout, transcendentals=0,
            bytes_accessed=2 * (M * K + K * cout + M * cout)),
    )(patches, w_matT)


# ----------------------------------------------------------------------------
# Pallas kernel 3: fused conv7 (4x4 valid conv == matmul) + classifier head.
#   p7:(B, K7) bf16   W7t:(K7, ndf_pad) bf16   Wh:(ndf_pad, 128) f32  bh:(1,128) f32
#   out:(B, 128) f32: softmax over the first nb_label lanes, sigmoid at lane
#   nb_label, padding lanes masked.
# ----------------------------------------------------------------------------
def _tail_kernel(p_ref, w7_ref, wh_ref, bh_ref, o_ref, *, nb_label):
    feat = jnp.dot(p_ref[...], w7_ref[...],
                   preferred_element_type=jnp.float32)            # conv7 (no act)
    logits = jnp.dot(feat, wh_ref[...],
                     preferred_element_type=jnp.float32) + bh_ref[...]
    lane = jax.lax.broadcasted_iota(jnp.int32, logits.shape, 1)
    aux = jnp.where(lane < nb_label, logits, jnp.float32(-1e30))
    m = jnp.max(aux, axis=-1, keepdims=True)
    e = jnp.exp(aux - m)
    probs = e / jnp.sum(e, axis=-1, keepdims=True)                # softmax(dim=1)
    sig = 1.0 / (1.0 + jnp.exp(-logits))                          # sigmoid
    o_ref[...] = jnp.where(lane == nb_label, sig, probs)


def tail_head(p7, w7T, w_head, b_head, nb_label):
    B = p7.shape[0]
    cfg = _chip_tuning()
    out = pl.pallas_call(
        functools.partial(_tail_kernel, nb_label=nb_label),
        out_shape=jax.ShapeDtypeStruct((B, w_head.shape[1]), jnp.float32),
        compiler_params=pltpu.CompilerParams(vmem_limit_bytes=cfg["vmem_limit"]),
    )(p7, w7T, w_head, b_head)
    realfake = out[:, nb_label:nb_label + 1]          # sigmoid(disc_linear)
    classes = out[:, :nb_label]                       # softmax(aux_linear)
    return realfake, classes


# ----------------------------------------------------------------------------
# Plain-JAX glue: im2col (both layouts), spectral norm, conv layer wrappers
# ----------------------------------------------------------------------------
def im2col_cmajor(x, ksize, stride, pad):
    """x: (C, N, H, W) -> patches (k*k*C, N*Ho*Wo); row = (kh*k + kw)*C + c."""
    C, N, H, W = x.shape
    if pad:
        x = jnp.pad(x, ((0, 0), (0, 0), (pad, pad), (pad, pad)))
    Ho = (H + 2 * pad - ksize) // stride + 1
    Wo = (W + 2 * pad - ksize) // stride + 1
    taps = []
    for kh in range(ksize):
        for kw in range(ksize):
            taps.append(x[:, :, kh:kh + stride * Ho:stride,
                          kw:kw + stride * Wo:stride])            # (C, N, Ho, Wo)
    patches = jnp.stack(taps, axis=0)                             # (k*k, C, N, Ho, Wo)
    return patches.reshape(ksize * ksize * C, N * Ho * Wo), (N, Ho, Wo)


def im2col_nmajor(x, ksize, stride, pad):
    """x: (N, H, W, C) -> patches (N*Ho*Wo, k*k*C); col = (kh*k + kw)*C + c."""
    N, H, W, C = x.shape
    if pad:
        x = jnp.pad(x, ((0, 0), (pad, pad), (pad, pad), (0, 0)))
    Ho = (H + 2 * pad - ksize) // stride + 1
    Wo = (W + 2 * pad - ksize) // stride + 1
    taps = []
    for kh in range(ksize):
        for kw in range(ksize):
            taps.append(x[:, kh:kh + stride * Ho:stride,
                          kw:kw + stride * Wo:stride, :])         # (N, Ho, Wo, C)
    patches = jnp.stack(taps, axis=3)                             # (N, Ho, Wo, k*k, C)
    return patches.reshape(N * Ho * Wo, ksize * ksize * C), (N, Ho, Wo)


def conv2d_cmajor(x, w_mat, *, ksize, stride, pad, slope):
    """SpectralNorm(Conv2d(bias=False)) (+ LeakyReLU), C-major layout (lanes = M)."""
    assert w_mat.shape[1] == ksize * ksize * x.shape[0]
    patches, (N, Ho, Wo) = im2col_cmajor(x, ksize, stride, pad)
    y = conv_matmul_cmajor(w_mat, patches, slope=slope)           # (Cout, N*Ho*Wo)
    return y.reshape(w_mat.shape[0], N, Ho, Wo)


def conv2d_nmajor(x, w_matT, *, ksize, stride, pad, slope):
    """Same conv in NHWC / M-major orientation (lanes = Cout); used once the
    output-pixel count collapses below 128 (tiny late layers)."""
    assert w_matT.shape[0] == ksize * ksize * x.shape[3]
    patches, (N, Ho, Wo) = im2col_nmajor(x, ksize, stride, pad)
    y = conv_matmul_nmajor(patches, w_matT, slope=slope)          # (M, Cout)
    return y.reshape(N, Ho, Wo, w_matT.shape[1])


def spectral_norm(w, key, n_iter=1, eps=1e-12):
    """W / sigma, sigma from one power iteration on W reshaped to (Cout, -1).
    Note: torch.nn.utils.spectral_norm keeps a persistent u buffer across
    forwards; here the iteration runs once at parameter setup (stateless fwd)."""
    cout = w.shape[0]
    w_mat = w.reshape(cout, -1)
    u = jax.random.normal(key, (cout,), dtype=jnp.float32)
    u = u / (jnp.linalg.norm(u) + eps)
    v = None
    for _ in range(n_iter):
        v = w_mat.T @ u
        v = v / (jnp.linalg.norm(v) + eps)
        u = w_mat @ v
        u = u / (jnp.linalg.norm(u) + eps)
    sigma = u @ (w_mat @ v)
    return w / sigma


# ----------------------------------------------------------------------------
# Parameters (all layout work hoisted here) and forward pass
# ----------------------------------------------------------------------------
def make_params(key, ndf, nc, nb_label):
    assert nb_label + 1 <= 128
    ks = jax.random.split(key, 18)
    conv_shapes = [
        (ndf, nc), (ndf * 2, ndf), (ndf * 4, ndf * 2), (ndf * 8, ndf * 4),
        (ndf * 8, ndf * 8), (ndf * 8, ndf * 8), (ndf * 1, ndf * 8),
    ]
    w_mats, w_matsT, cin_pads, cout_pads = [], [], [], []
    prev_cout_pad = _ceil_to(nc, 16)
    for i, (co, ci) in enumerate(conv_shapes):
        w = 0.02 * jax.random.normal(ks[i], (co, ci, 4, 4), dtype=jnp.float32)
        w = spectral_norm(w, ks[7 + i])                      # SpectralNorm wrapper
        ci_pad, co_pad = prev_cout_pad, _ceil_to(co, 16)     # bf16 (16,128) tiling
        # One-time layout work: zero-pad cin/cout, reorder to (cout, kh, kw, cin),
        # flatten to (cout, 16*cin_pad), cast bf16, plus the transposed copy used
        # by the M-major late layers / fused tail.  Padded channels carry zeros
        # through every layer, so results are unchanged.
        w_p = jnp.zeros((co_pad, ci_pad, 4, 4), jnp.float32).at[:co, :ci].set(w)
        w_mat = jnp.transpose(w_p, (0, 2, 3, 1)).reshape(co_pad, 16 * ci_pad)
        w_mat = w_mat.astype(jnp.bfloat16)
        w_mats.append(w_mat)
        w_matsT.append(w_mat.T)
        cin_pads.append(ci_pad)
        cout_pads.append(co_pad)
        prev_cout_pad = co_pad

    # Fused classifier head: aux (nb_label) + disc (1) in one (ndf_pad, 128) matrix.
    ndf_pad = cout_pads[-1]
    w_aux = 0.1 * jax.random.normal(ks[14], (nb_label, ndf), dtype=jnp.float32)
    b_aux = 0.1 * jax.random.normal(ks[15], (nb_label,), dtype=jnp.float32)
    w_disc = 0.1 * jax.random.normal(ks[16], (1, ndf), dtype=jnp.float32)
    b_disc = 0.1 * jax.random.normal(ks[17], (1,), dtype=jnp.float32)
    w_head = jnp.zeros((ndf_pad, 128), jnp.float32)
    w_head = w_head.at[:ndf, :nb_label].set(w_aux.T)
    w_head = w_head.at[:ndf, nb_label].set(w_disc[0])
    b_head = jnp.zeros((1, 128), jnp.float32)
    b_head = b_head.at[0, :nb_label].set(b_aux)
    b_head = b_head.at[0, nb_label].set(b_disc[0])
    return dict(w_mats=w_mats, w_matsT=w_matsT, cin_pads=cin_pads,
                cout_pads=cout_pads, w_head=w_head, b_head=b_head,
                ndf=ndf, nb_label=nb_label)


def netD_forward(params, x_nchw):
    # NCHW (PyTorch convention) -> C-major (C, N, H, W), bf16, channels padded
    # once to the multiple-of-16 width the pre-padded conv1 weight expects.
    x = jnp.transpose(x_nchw, (1, 0, 2, 3)).astype(jnp.bfloat16)
    cin0 = params["cin_pads"][0]
    if x.shape[0] != cin0:
        x = jnp.pad(x, ((0, cin0 - x.shape[0]), (0, 0), (0, 0), (0, 0)))

    ws, wsT = params["w_mats"], params["w_matsT"]
    cmajor = True
    for i in range(6):               # conv1..conv6: k=4, s=2, p=1, LeakyReLU(0.2)
        if cmajor:
            _, N, H, W = x.shape
        else:
            N, H, W, _ = x.shape
        m_out = N * (H // 2) * (W // 2)
        # Once the output-pixel count collapses below a vreg lane width (128),
        # flip to NHWC / M-major so the matmul lanes are Cout instead of M.
        if cmajor and m_out < 128:
            x = jnp.transpose(x, (1, 2, 3, 0))                # (N, H, W, C)
            cmajor = False
        if cmajor:
            x = conv2d_cmajor(x, ws[i], ksize=4, stride=2, pad=1, slope=0.2)
        else:
            x = conv2d_nmajor(x, wsT[i], ksize=4, stride=2, pad=1, slope=0.2)

    # conv7 (k=4, s=1, p=0 on a 4x4 map == one matmul) fused with the head.
    if cmajor:
        x = jnp.transpose(x, (1, 2, 3, 0))                    # (N, 4, 4, C)
    assert x.shape[1] == 4 and x.shape[2] == 4, "netD expects 256x256 inputs"
    p7 = x.reshape(x.shape[0], -1)                            # (N, 16*cin_pad) bf16
    return tail_head(p7, wsT[6], params["w_head"], params["b_head"],
                     params["nb_label"])


if __name__ == "__main__":
    key = jax.random.PRNGKey(0)
    k_param, k_input = jax.random.split(key)

    # 7 convs (6x stride-2 k4p1 + one 4x4 valid) need 256x256 input to end at 1x1;
    # keep batch/channels small.
    ndf, nc, nb_label, batch = 8, 3, 10, 2
    params = make_params(k_param, ndf, nc, nb_label)
    x = jax.random.normal(k_input, (batch, nc, 256, 256), dtype=jnp.float32)

    fwd = jax.jit(functools.partial(netD_forward, params))
    realfake, classes = fwd(x)
    jax.block_until_ready((realfake, classes))

    assert realfake.shape == (batch, 1)
    assert classes.shape == (batch, nb_label)
    # softmax rows sum to 1, sigmoid strictly in (0, 1)
    assert bool(jnp.all(jnp.abs(jnp.sum(classes, axis=-1) - 1.0) < 1e-4))
    assert bool(jnp.all((realfake > 0.0) & (realfake < 1.0)))
    print("KERNEL_OK")
</pallas_src>

<mosaic_0001>
module attributes {stable_mosaic.version = 11 : i64} {
  func.func @_conv_mm_kernel_1k(%arg0: i32, %arg1: memref<16x256xbf16, #tpu.memory_space<vmem>>, %arg2: memref<256x2048xbf16, #tpu.memory_space<vmem>>, %arg3: memref<16x2048xbf16, #tpu.memory_space<vmem>>) attributes {dimension_semantics = [#tpu.dimension_semantics<parallel>], iteration_bounds = array<i64: 16>, scalar_prefetch = 0 : i64, scratch_operands = 0 : i64, tpu.core_type = #tpu.core_type<tc>, window_params = [{pipeline_mode = #tpu.pipeline_mode<synchronous>, transform_indices = @transform_0, window_bounds = array<i64: 16, 256>}, {transform_indices = @transform_1, window_bounds = array<i64: 256, 2048>}, {transform_indices = @transform_2, window_bounds = array<i64: 16, 2048>}]} {
    %c0 = arith.constant 0 : index
    %c0_0 = arith.constant 0 : index
    %0 = vector.load %arg1[%c0, %c0_0] : memref<16x256xbf16, #tpu.memory_space<vmem>>, vector<16x256xbf16>
    %c0_1 = arith.constant 0 : index
    %c0_2 = arith.constant 0 : index
    %1 = vector.load %arg2[%c0_1, %c0_2] : memref<256x2048xbf16, #tpu.memory_space<vmem>>, vector<256x2048xbf16>
    %cst = arith.constant dense<0.000000e+00> : vector<16x2048xf32>
    %2 = tpu.matmul %0, %1, %cst {dimension_numbers = #tpu.dot_dimension_numbers<[1], [0], [0], [1], [0, 0, 1, 1], [], []>} : vector<16x256xbf16>, vector<256x2048xbf16>, vector<16x2048xf32> -> vector<16x2048xf32>
    %cst_3 = arith.constant 0.000000e+00 : f32
    %3 = vector.broadcast %cst_3 : f32 to vector<16x2048xf32>
    %4 = arith.cmpf oge, %2, %3 : vector<16x2048xf32>
    %cst_4 = arith.constant 2.000000e-01 : f32
    %5 = vector.broadcast %cst_4 : f32 to vector<16x2048xf32>
    %6 = arith.mulf %5, %2 : vector<16x2048xf32>
    %7 = arith.select %4, %2, %6 : vector<16x2048xi1>, vector<16x2048xf32>
    %8 = arith.truncf %7 : vector<16x2048xf32> to vector<16x2048xbf16>
    %c0_5 = arith.constant 0 : index
    %c0_6 = arith.constant 0 : index
    %9 = vector.load %arg3[%c0_5, %c0_6] : memref<16x2048xbf16, #tpu.memory_space<vmem>>, vector<16x2048xbf16>
    tpu.vector_store %arg3[%c0_5, %c0_6], %8 {strides = array<i32>} : memref<16x2048xbf16, #tpu.memory_space<vmem>>, vector<16x2048xbf16>,
    return
  }
  func.func @transform_0(%arg0: i32) -> (i32, i32) {
    %c0_i32 = arith.constant 0 : i32
    %c0_i32_0 = arith.constant 0 : i32
    %c0_i32_1 = arith.constant 0 : i32
    return %c0_i32, %c0_i32_0 : i32, i32
  }
  func.func @transform_1(%arg0: i32) -> (i32, i32) {
    %c0_i32 = arith.constant 0 : i32
    %c0_i32_0 = arith.constant 0 : i32
    return %c0_i32, %arg0 : i32, i32
  }
  func.func @transform_2(%arg0: i32) -> (i32, i32) {
    %c0_i32 = arith.constant 0 : i32
    %c0_i32_0 = arith.constant 0 : i32
    return %c0_i32, %arg0 : i32, i32
  }
}

module attributes {stable_mosaic.version = 11 : i64} {
  func.func @_conv_mm_kernel_1k(%arg0: i32, %arg1: memref<16x256xbf16, #tpu.memory_space<vmem>>, %arg2: memref<256x2048xbf16, #tpu.memory_space<vmem>>, %arg3: memref<16x2048xbf16, #tpu.memory_space<vmem>>) attributes {dimension_semantics = [#tpu.dimension_semantics<parallel>], iteration_bounds = array<i64: 4>, scalar_prefetch = 0 : i64, scratch_operands = 0 : i64, tpu.core_type = #tpu.core_type<tc>, window_params = [{pipeline_mode = #tpu.pipeline_mode<synchronous>, transform_indices = @transform_0, window_bounds = array<i64: 16, 256>}, {transform_indices = @transform_1, window_bounds = array<i64: 256, 2048>}, {transform_indices = @transform_2, window_bounds = array<i64: 16, 2048>}]} {
    %c0 = arith.constant 0 : index
    %c0_0 = arith.constant 0 : index
    %0 = vector.load %arg1[%c0, %c0_0] : memref<16x256xbf16, #tpu.memory_space<vmem>>, vector<16x256xbf16>
    %c0_1 = arith.constant 0 : index
    %c0_2 = arith.constant 0 : index
    %1 = vector.load %arg2[%c0_1, %c0_2] : memref<256x2048xbf16, #tpu.memory_space<vmem>>, vector<256x2048xbf16>
    %cst = arith.constant dense<0.000000e+00> : vector<16x2048xf32>
    %2 = tpu.matmul %0, %1, %cst {dimension_numbers = #tpu.dot_dimension_numbers<[1], [0], [0], [1], [0, 0, 1, 1], [], []>} : vector<16x256xbf16>, vector<256x2048xbf16>, vector<16x2048xf32> -> vector<16x2048xf32>
    %cst_3 = arith.constant 0.000000e+00 : f32
    %3 = vector.broadcast %cst_3 : f32 to vector<16x2048xf32>
    %4 = arith.cmpf oge, %2, %3 : vector<16x2048xf32>
    %cst_4 = arith.constant 2.000000e-01 : f32
    %5 = vector.broadcast %cst_4 : f32 to vector<16x2048xf32>
    %6 = arith.mulf %5, %2 : vector<16x2048xf32>
    %7 = arith.select %4, %2, %6 : vector<16x2048xi1>, vector<16x2048xf32>
    %8 = arith.truncf %7 : vector<16x2048xf32> to vector<16x2048xbf16>
    %c0_5 = arith.constant 0 : index
    %c0_6 = arith.constant 0 : index
    %9 = vector.load %arg3[%c0_5, %c0_6] : memref<16x2048xbf16, #tpu.memory_space<vmem>>, vector<16x2048xbf16>
    tpu.vector_store %arg3[%c0_5, %c0_6], %8 {strides = array<i32>} : memref<16x2048xbf16, #tpu.memory_space<vmem>>, vector<16x2048xbf16>,
    return
  }
  func.func @transform_0(%arg0: i32) -> (i32, i32) {
    %c0_i32 = arith.constant 0 : i32
    %c0_i32_0 = arith.constant 0 : i32
    %c0_i32_1 = arith.constant 0 : i32
    return %c0_i32, %c0_i32_0 : i32, i32
  }
  func.func @transform_1(%arg0: i32) -> (i32, i32) {
    %c0_i32 = arith.constant 0 : i32
    %c0_i32_0 = arith.constant 0 : i32
    return %c0_i32, %arg0 : i32, i32
  }
  func.func @transform_2(%arg0: i32) -> (i32, i32) {
    %c0_i32 = arith.constant 0 : i32
    %c0_i32_0 = arith.constant 0 : i32
    return %c0_i32, %arg0 : i32, i32
  }
}

module attributes {stable_mosaic.version = 11 : i64} {
  func.func @_conv_mm_kernel_1k(%arg0: i32, %arg1: memref<32x256xbf16, #tpu.memory_space<vmem>>, %arg2: memref<256x2048xbf16, #tpu.memory_space<vmem>>, %arg3: memref<32x2048xbf16, #tpu.memory_space<vmem>>) attributes {dimension_semantics = [#tpu.dimension_semantics<parallel>], iteration_bounds = array<i64: 1>, scalar_prefetch = 0 : i64, scratch_operands = 0 : i64, tpu.core_type = #tpu.core_type<tc>, window_params = [{pipeline_mode = #tpu.pipeline_mode<synchronous>, transform_indices = @transform_0, window_bounds = array<i64: 32, 256>}, {transform_indices = @transform_1, window_bounds = array<i64: 256, 2048>}, {transform_indices = @transform_2, window_bounds = array<i64: 32, 2048>}]} {
    %c0 = arith.constant 0 : index
    %c0_0 = arith.constant 0 : index
    %0 = vector.load %arg1[%c0, %c0_0] : memref<32x256xbf16, #tpu.memory_space<vmem>>, vector<32x256xbf16>
    %c0_1 = arith.constant 0 : index
    %c0_2 = arith.constant 0 : index
    %1 = vector.load %arg2[%c0_1, %c0_2] : memref<256x2048xbf16, #tpu.memory_space<vmem>>, vector<256x2048xbf16>
    %cst = arith.constant dense<0.000000e+00> : vector<32x2048xf32>
    %2 = tpu.matmul %0, %1, %cst {dimension_numbers = #tpu.dot_dimension_numbers<[1], [0], [0], [1], [0, 0, 1, 1], [], []>} : vector<32x256xbf16>, vector<256x2048xbf16>, vector<32x2048xf32> -> vector<32x2048xf32>
    %cst_3 = arith.constant 0.000000e+00 : f32
    %3 = vector.broadcast %cst_3 : f32 to vector<32x2048xf32>
    %4 = arith.cmpf oge, %2, %3 : vector<32x2048xf32>
    %cst_4 = arith.constant 2.000000e-01 : f32
    %5 = vector.broadcast %cst_4 : f32 to vector<32x2048xf32>
    %6 = arith.mulf %5, %2 : vector<32x2048xf32>
    %7 = arith.select %4, %2, %6 : vector<32x2048xi1>, vector<32x2048xf32>
    %8 = arith.truncf %7 : vector<32x2048xf32> to vector<32x2048xbf16>
    %c0_5 = arith.constant 0 : index
    %c0_6 = arith.constant 0 : index
    %9 = vector.load %arg3[%c0_5, %c0_6] : memref<32x2048xbf16, #tpu.memory_space<vmem>>, vector<32x2048xbf16>
    tpu.vector_store %arg3[%c0_5, %c0_6], %8 {strides = array<i32>} : memref<32x2048xbf16, #tpu.memory_space<vmem>>, vector<32x2048xbf16>,
    return
  }
  func.func @transform_0(%arg0: i32) -> (i32, i32) {
    %c0_i32 = arith.constant 0 : i32
    %c0_i32_0 = arith.constant 0 : i32
    %c0_i32_1 = arith.constant 0 : i32
    return %c0_i32, %c0_i32_0 : i32, i32
  }
  func.func @transform_1(%arg0: i32) -> (i32, i32) {
    %c0_i32 = arith.constant 0 : i32
    %c0_i32_0 = arith.constant 0 : i32
    return %c0_i32, %arg0 : i32, i32
  }
  func.func @transform_2(%arg0: i32) -> (i32, i32) {
    %c0_i32 = arith.constant 0 : i32
    %c0_i32_0 = arith.constant 0 : i32
    return %c0_i32, %arg0 : i32, i32
  }
}

module attributes {stable_mosaic.version = 11 : i64} {
  func.func @_conv_mm_kernel_1k(%arg0: i32, %arg1: memref<64x512xbf16, #tpu.memory_space<vmem>>, %arg2: memref<512x512xbf16, #tpu.memory_space<vmem>>, %arg3: memref<64x512xbf16, #tpu.memory_space<vmem>>) attributes {dimension_semantics = [#tpu.dimension_semantics<parallel>], iteration_bounds = array<i64: 1>, scalar_prefetch = 0 : i64, scratch_operands = 0 : i64, tpu.core_type = #tpu.core_type<tc>, window_params = [{pipeline_mode = #tpu.pipeline_mode<synchronous>, transform_indices = @transform_0, window_bounds = array<i64: 64, 512>}, {transform_indices = @transform_1, window_bounds = array<i64: 512, 512>}, {transform_indices = @transform_2, window_bounds = array<i64: 64, 512>}]} {
    %c0 = arith.constant 0 : index
    %c0_0 = arith.constant 0 : index
    %0 = vector.load %arg1[%c0, %c0_0] : memref<64x512xbf16, #tpu.memory_space<vmem>>, vector<64x512xbf16>
    %c0_1 = arith.constant 0 : index
    %c0_2 = arith.constant 0 : index
    %1 = vector.load %arg2[%c0_1, %c0_2] : memref<512x512xbf16, #tpu.memory_space<vmem>>, vector<512x512xbf16>
    %cst = arith.constant dense<0.000000e+00> : vector<64x512xf32>
    %2 = tpu.matmul %0, %1, %cst {dimension_numbers = #tpu.dot_dimension_numbers<[1], [0], [0], [1], [0, 0, 1, 1], [], []>} : vector<64x512xbf16>, vector<512x512xbf16>, vector<64x512xf32> -> vector<64x512xf32>
    %cst_3 = arith.constant 0.000000e+00 : f32
    %3 = vector.broadcast %cst_3 : f32 to vector<64x512xf32>
    %4 = arith.cmpf oge, %2, %3 : vector<64x512xf32>
    %cst_4 = arith.constant 2.000000e-01 : f32
    %5 = vector.broadcast %cst_4 : f32 to vector<64x512xf32>
    %6 = arith.mulf %5, %2 : vector<64x512xf32>
    %7 = arith.select %4, %2, %6 : vector<64x512xi1>, vector<64x512xf32>
    %8 = arith.truncf %7 : vector<64x512xf32> to vector<64x512xbf16>
    %c0_5 = arith.constant 0 : index
    %c0_6 = arith.constant 0 : index
    %9 = vector.load %arg3[%c0_5, %c0_6] : memref<64x512xbf16, #tpu.memory_space<vmem>>, vector<64x512xbf16>
    tpu.vector_store %arg3[%c0_5, %c0_6], %8 {strides = array<i32>} : memref<64x512xbf16, #tpu.memory_space<vmem>>, vector<64x512xbf16>,
    return
  }
  func.func @transform_0(%arg0: i32) -> (i32, i32) {
    %c0_i32 = arith.constant 0 : i32
    %c0_i32_0 = arith.constant 0 : i32
    %c0_i32_1 = arith.constant 0 : i32
    return %c0_i32, %c0_i32_0 : i32, i32
  }
  func.func @transform_1(%arg0: i32) -> (i32, i32) {
    %c0_i32 = arith.constant 0 : i32
    %c0_i32_0 = arith.constant 0 : i32
    return %c0_i32, %arg0 : i32, i32
  }
  func.func @transform_2(%arg0: i32) -> (i32, i32) {
    %c0_i32 = arith.constant 0 : i32
    %c0_i32_0 = arith.constant 0 : i32
    return %c0_i32, %arg0 : i32, i32
  }
}

module attributes {stable_mosaic.version = 11 : i64} {
  func.func @_conv_mm_kernel_1k(%arg0: i32, %arg1: memref<64x1024xbf16, #tpu.memory_space<vmem>>, %arg2: memref<1024x128xbf16, #tpu.memory_space<vmem>>, %arg3: memref<64x128xbf16, #tpu.memory_space<vmem>>) attributes {dimension_semantics = [#tpu.dimension_semantics<parallel>], iteration_bounds = array<i64: 1>, scalar_prefetch = 0 : i64, scratch_operands = 0 : i64, tpu.core_type = #tpu.core_type<tc>, window_params = [{pipeline_mode = #tpu.pipeline_mode<synchronous>, transform_indices = @transform_0, window_bounds = array<i64: 64, 1024>}, {transform_indices = @transform_1, window_bounds = array<i64: 1024, 128>}, {transform_indices = @transform_2, window_bounds = array<i64: 64, 128>}]} {
    %c0 = arith.constant 0 : index
    %c0_0 = arith.constant 0 : index
    %0 = vector.load %arg1[%c0, %c0_0] : memref<64x1024xbf16, #tpu.memory_space<vmem>>, vector<64x1024xbf16>
    %c0_1 = arith.constant 0 : index
    %c0_2 = arith.constant 0 : index
    %1 = vector.load %arg2[%c0_1, %c0_2] : memref<1024x128xbf16, #tpu.memory_space<vmem>>, vector<1024x128xbf16>
    %cst = arith.constant dense<0.000000e+00> : vector<64x128xf32>
    %2 = tpu.matmul %0, %1, %cst {dimension_numbers = #tpu.dot_dimension_numbers<[1], [0], [0], [1], [0, 0, 1, 1], [], []>} : vector<64x1024xbf16>, vector<1024x128xbf16>, vector<64x128xf32> -> vector<64x128xf32>
    %cst_3 = arith.constant 0.000000e+00 : f32
    %3 = vector.broadcast %cst_3 : f32 to vector<64x128xf32>
    %4 = arith.cmpf oge, %2, %3 : vector<64x128xf32>
    %cst_4 = arith.constant 2.000000e-01 : f32
    %5 = vector.broadcast %cst_4 : f32 to vector<64x128xf32>
    %6 = arith.mulf %5, %2 : vector<64x128xf32>
    %7 = arith.select %4, %2, %6 : vector<64x128xi1>, vector<64x128xf32>
    %8 = arith.truncf %7 : vector<64x128xf32> to vector<64x128xbf16>
    %c0_5 = arith.constant 0 : index
    %c0_6 = arith.constant 0 : index
    %9 = vector.load %arg3[%c0_5, %c0_6] : memref<64x128xbf16, #tpu.memory_space<vmem>>, vector<64x128xbf16>
    tpu.vector_store %arg3[%c0_5, %c0_6], %8 {strides = array<i32>} : memref<64x128xbf16, #tpu.memory_space<vmem>>, vector<64x128xbf16>,
    return
  }
  func.func @transform_0(%arg0: i32) -> (i32, i32) {
    %c0_i32 = arith.constant 0 : i32
    %c0_i32_0 = arith.constant 0 : i32
    %c0_i32_1 = arith.constant 0 : i32
    return %c0_i32, %c0_i32_0 : i32, i32
  }
  func.func @transform_1(%arg0: i32) -> (i32, i32) {
    %c0_i32 = arith.constant 0 : i32
    %c0_i32_0 = arith.constant 0 : i32
    return %c0_i32, %arg0 : i32, i32
  }
  func.func @transform_2(%arg0: i32) -> (i32, i32) {
    %c0_i32 = arith.constant 0 : i32
    %c0_i32_0 = arith.constant 0 : i32
    return %c0_i32, %arg0 : i32, i32
  }
}

module attributes {stable_mosaic.version = 11 : i64} {
  func.func @_conv_mm_nmajor_kernel(%arg0: memref<32x1024xbf16, #tpu.memory_space<vmem>>, %arg1: memref<1024x64xbf16, #tpu.memory_space<vmem>>, %arg2: memref<32x64xbf16, #tpu.memory_space<vmem>>) attributes {dimension_semantics = [], scalar_prefetch = 0 : i64, scratch_operands = 0 : i64, tpu.core_type = #tpu.core_type<tc>} {
    %c0 = arith.constant 0 : index
    %c0_0 = arith.constant 0 : index
    %0 = vector.load %arg0[%c0, %c0_0] : memref<32x1024xbf16, #tpu.memory_space<vmem>>, vector<32x1024xbf16>
    %c0_1 = arith.constant 0 : index
    %c0_2 = arith.constant 0 : index
    %1 = vector.load %arg1[%c0_1, %c0_2] : memref<1024x64xbf16, #tpu.memory_space<vmem>>, vector<1024x64xbf16>
    %cst = arith.constant dense<0.000000e+00> : vector<32x64xf32>
    %2 = tpu.matmul %0, %1, %cst {dimension_numbers = #tpu.dot_dimension_numbers<[1], [0], [0], [1], [0, 0, 1, 1], [], []>} : vector<32x1024xbf16>, vector<1024x64xbf16>, vector<32x64xf32> -> vector<32x64xf32>
    %cst_3 = arith.constant 0.000000e+00 : f32
    %3 = vector.broadcast %cst_3 : f32 to vector<32x64xf32>
    %4 = arith.cmpf oge, %2, %3 : vector<32x64xf32>
    %cst_4 = arith.constant 2.000000e-01 : f32
    %5 = vector.broadcast %cst_4 : f32 to vector<32x64xf32>
    %6 = arith.mulf %5, %2 : vector<32x64xf32>
    %7 = arith.select %4, %2, %6 : vector<32x64xi1>, vector<32x64xf32>
    %8 = arith.truncf %7 : vector<32x64xf32> to vector<32x64xbf16>
    %c0_5 = arith.constant 0 : index
    %c0_6 = arith.constant 0 : index
    %9 = vector.load %arg2[%c0_5, %c0_6] : memref<32x64xbf16, #tpu.memory_space<vmem>>, vector<32x64xbf16>
    tpu.vector_store %arg2[%c0_5, %c0_6], %8 {strides = array<i32>} : memref<32x64xbf16, #tpu.memory_space<vmem>>, vector<32x64xbf16>,
    return
  }
}

module attributes {stable_mosaic.version = 11 : i64} {
  func.func @_tail_kernel(%arg0: memref<2x1024xbf16, #tpu.memory_space<vmem>>, %arg1: memref<1024x16xbf16, #tpu.memory_space<vmem>>, %arg2: memref<16x128xf32, #tpu.memory_space<vmem>>, %arg3: memref<1x128xf32, #tpu.memory_space<vmem>>, %arg4: memref<2x128xf32, #tpu.memory_space<vmem>>) attributes {dimension_semantics = [], scalar_prefetch = 0 : i64, scratch_operands = 0 : i64, tpu.core_type = #tpu.core_type<tc>} {
    %c0 = arith.constant 0 : index
    %c0_0 = arith.constant 0 : index
    %0 = vector.load %arg0[%c0, %c0_0] : memref<2x1024xbf16, #tpu.memory_space<vmem>>, vector<2x1024xbf16>
    %c0_1 = arith.constant 0 : index
    %c0_2 = arith.constant 0 : index
    %1 = vector.load %arg1[%c0_1, %c0_2] : memref<1024x16xbf16, #tpu.memory_space<vmem>>, vector<1024x16xbf16>
    %cst = arith.constant dense<0.000000e+00> : vector<2x16xf32>
    %2 = tpu.matmul %0, %1, %cst {dimension_numbers = #tpu.dot_dimension_numbers<[1], [0], [0], [1], [0, 0, 1, 1], [], []>} : vector<2x1024xbf16>, vector<1024x16xbf16>, vector<2x16xf32> -> vector<2x16xf32>
    %c0_3 = arith.constant 0 : index
    %c0_4 = arith.constant 0 : index
    %3 = vector.load %arg2[%c0_3, %c0_4] : memref<16x128xf32, #tpu.memory_space<vmem>>, vector<16x128xf32>
    %cst_5 = arith.constant dense<0.000000e+00> : vector<2x128xf32>
    %4 = tpu.matmul %2, %3, %cst_5 {dimension_numbers = #tpu.dot_dimension_numbers<[1], [0], [0], [1], [0, 0, 1, 1], [], []>} : vector<2x16xf32>, vector<16x128xf32>, vector<2x128xf32> -> vector<2x128xf32>
    %c0_6 = arith.constant 0 : index
    %c0_7 = arith.constant 0 : index
    %5 = vector.load %arg3[%c0_6, %c0_7] : memref<1x128xf32, #tpu.memory_space<vmem>>, vector<1x128xf32>
    %6 = vector.broadcast %5 : vector<1x128xf32> to vector<2x128xf32>
    %7 = arith.addf %4, %6 : vector<2x128xf32>
    %8 = tpu.iota {dimensions = array<i32: 1>} : vector<2x128xi32>
    %c10_i32 = arith.constant 10 : i32
    %9 = vector.broadcast %c10_i32 : i32 to vector<2x128xi32>
    %10 = arith.cmpi slt, %8, %9 : vector<2x128xi32>
    %cst_8 = arith.constant -1.000000e+30 : f32
    %11 = vector.broadcast %cst_8 : f32 to vector<2x128xf32>
    %12 = arith.select %10, %7, %11 : vector<2x128xi1>, vector<2x128xf32>
    %cst_9 = arith.constant dense<0xFF800000> : vector<2xf32>
    %13 = vector.multi_reduction <maximumf>, %12, %cst_9 [1] : vector<2x128xf32> to vector<2xf32>
    %14 = vector.shape_cast %13 : vector<2xf32> to vector<2x1xf32>
    %15 = vector.broadcast %14 : vector<2x1xf32> to vector<2x128xf32>
    %16 = arith.subf %12, %15 : vector<2x128xf32>
    %17 = math.exp %16 : vector<2x128xf32>
    %cst_10 = arith.constant dense<0.000000e+00> : vector<2xf32>
    %18 = vector.multi_reduction <add>, %17, %cst_10 [1] : vector<2x128xf32> to vector<2xf32>
    %19 = vector.shape_cast %18 : vector<2xf32> to vector<2x1xf32>
    %20 = vector.broadcast %19 : vector<2x1xf32> to vector<2x128xf32>
    %21 = arith.divf %17, %20 : vector<2x128xf32>
    %cst_11 = arith.constant 0.000000e+00 : f32
    %22 = vector.broadcast %cst_11 : f32 to vector<2x128xf32>
    %23 = arith.subf %22, %7 : vector<2x128xf32>
    %24 = math.exp %23 : vector<2x128xf32>
    %cst_12 = arith.constant 1.000000e+00 : f32
    %25 = vector.broadcast %cst_12 : f32 to vector<2x128xf32>
    %26 = arith.addf %25, %24 : vector<2x128xf32>
    %cst_13 = arith.constant 1.000000e+00 : f32
    %27 = vector.broadcast %cst_13 : f32 to vector<2x128xf32>
    %28 = arith.divf %27, %26 : vector<2x128xf32>
    %c10_i32_14 = arith.constant 10 : i32
    %29 = vector.broadcast %c10_i32_14 : i32 to vector<2x128xi32>
    %30 = arith.cmpi eq, %8, %29 : vector<2x128xi32>
    %31 = arith.select %30, %28, %21 : vector<2x128xi1>, vector<2x128xf32>
    %c0_15 = arith.constant 0 : index
    %c0_16 = arith.constant 0 : index
    %32 = vector.load %arg4[%c0_15, %c0_16] : memref<2x128xf32, #tpu.memory_space<vmem>>, vector<2x128xf32>
    tpu.vector_store %arg4[%c0_15, %c0_16], %31 {strides = array<i32>} : memref<2x128xf32, #tpu.memory_space<vmem>>, vector<2x128xf32>,
    return
  }
}

</mosaic_0001>

<llo_original>
// kernel: netD_forward.7
$region0: #{netD_forward.7}
  #allocation0 [shape = 'u32[]', space=smem, size = 0x4, offset = 0x4, fixed_abs, tag = 'smem constant byte address 0x4 - core index']
  #allocation1 [shape = 'u32[144,128]{1,0:T(1,128)}', space=vmem, size = 0x12000, scoped, tag = 'internal scratch']
  %s0 = inlined_call_operand.hbm [shape: bf16[16,256], index: 0, kind: input, shape index: {}]
  %s1 = inlined_call_operand.hbm [shape: bf16[256,32768], index: 1, kind: input, shape index: {}]
  %s2 = inlined_call_operand.hbm [shape: bf16[16,32768], index: 2, kind: output, shape index: {}]
  %s3 = sld [smem:[#allocation0]]
  $region49: #{netD_forward.7} parent=0
    _
  %s5 = ssub.s32 1, %s3
  %s6 = scalar_select 0, %s5, %s3
  $region1: #{netD_forward.7} parent=0
    #allocation2 [shape = 'u8[8192]{0}', space=vmem, size = 0x2000, scoped, tag = 'input window, operand 0, single buffered']
    #allocation3 [shape = 's32[2]{0}', space=sflag, size = 0x8, scoped, tag = 'scoped memory for netD_forward.7']
    #allocation4 [shape = 's32[2]{0}', space=sflag, size = 0x8, scoped, tag = 'scoped memory for netD_forward.7']
    #allocation5 [shape = 'u8[2097152]{0}', space=vmem, size = 0x200000, scoped, tag = 'input window, operand 1']
    #allocation6 [shape = 's32[2]{0}', space=sflag, size = 0x8, scoped, tag = 'scoped memory for netD_forward.7']
    #allocation7 [shape = 'u8[131072]{0}', space=vmem, size = 0x20000, scoped, tag = 'output window, operand 0']
    %7 = vsyncpa [#allocation3], 0
    %8 = vsyncpa [#allocation6], 0
    %s9 = scalar_lea.sflag [#allocation6], 1
    %10 = vsyncpa %s9, 0
    %11 = vsyncpa [#allocation4], 0
    %s12 = scalar_lea.sflag [#allocation4], 1
    %13 = vsyncpa %s12, 0
    loop: start=0, step=1, limit=18
    $region2: #{netD_forward.7} parent=1 // loop_pre_header
      _
    $region3: #{netD_forward.7} parent=1 // loop_header
      %s15 = sphi 0, %s19
      %p16 = scmp.ge.s32.totalorder %s15, 18
      %s23 = sphi 0, %s23
      %s25 = sphi 0, %s23
      %s26 = sphi 0, %s25
      %s40 = sphi 0, %s26
      %s46 = sphi 0, %s48
      %s49 = sphi 0, %s46
      %s50 = sphi 0, %s49
      %s66 = sphi 0, %s50
      %s72 = sphi 0, %s74
      %s75 = sphi 0, %s72
      %s76 = sphi 0, %s75
      %s92 = sphi 0, %s76
    $region4: #{netD_forward.7} parent=1 // loop_header_branch
      %18 = sbr.rel (%p16) target = $region8
    $region5: #{netD_forward.7} parent=1 // loop_body
      %s20 = ssub.s32 %s15, 1
      %s21 = ssub.s32 %s15, 2
      %s22 = sadd.s32 %s15, 1
      %s24 = sadd.s32 %s23, 1
      %p27 = scmp.eq.s32.totalorder %s15, 15
      %p28 = scmp.ne.s32.totalorder %s23, %s25
      %p29 = scmp.eq.s32.totalorder %s15, 0
      %p30 = por %p28, %p29
      %p31 = scmp.ne.s32.totalorder %s23, %s25
      %p32 = scmp.eq.s32.totalorder %s20, 15
      %p33 = por %p31, %p32
      %p34 = scmp.ne.s32.totalorder %s25, %s26
      %p35 = scmp.eq.s32.totalorder %s20, 0
      %p36 = por %p34, %p35
      %p37 = scmp.ne.s32.totalorder %s25, %s26
      %p38 = scmp.eq.s32.totalorder %s21, 15
      %p39 = por %p37, %p38
      %p41 = scmp.ne.s32.totalorder %s26, %s40
      %p42 = scmp.eq.s32.totalorder %s21, 0
      %p43 = por %p41, %p42
      %s44 = ssub.s32 %s15, %s22
      %p45 = scmp.eq.s32.totalorder %s44, 0
      %s47 = sadd.s32 %s46, 1
      %s48 = scalar_select %p45, %s46, %s47
      %p51 = pneg %p45
      %p52 = scmp.eq.s32.totalorder %s15, 15
      %p53 = por %p51, %p52
      %p54 = scmp.ne.s32.totalorder %s46, %s49
      %p55 = scmp.eq.s32.totalorder %s15, 0
      %p56 = por %p54, %p55
      %p57 = scmp.ne.s32.totalorder %s46, %s49
      %p58 = scmp.eq.s32.totalorder %s20, 15
      %p59 = por %p57, %p58
      %p60 = scmp.ne.s32.totalorder %s49, %s50
      %p61 = scmp.eq.s32.totalorder %s20, 0
      %p62 = por %p60, %p61
      %p63 = scmp.ne.s32.totalorder %s49, %s50
      %p64 = scmp.eq.s32.totalorder %s21, 15
      %p65 = por %p63, %p64
      %p67 = scmp.ne.s32.totalorder %s50, %s66
      %p68 = scmp.eq.s32.totalorder %s21, 0
      %p69 = por %p67, %p68
      %s70 = ssub.s32 %s15, %s22
      %p71 = scmp.eq.s32.totalorder %s70, 0
      %s73 = sadd.s32 %s72, 1
      %s74 = scalar_select %p71, %s72, %s73
      %p77 = pneg %p71
      %p78 = scmp.eq.s32.totalorder %s15, 15
      %p79 = por %p77, %p78
      %p80 = scmp.ne.s32.totalorder %s72, %s75
      %p81 = scmp.eq.s32.totalorder %s15, 0
      %p82 = por %p80, %p81
      %p83 = scmp.ne.s32.totalorder %s72, %s75
      %p84 = scmp.eq.s32.totalorder %s20, 15
      %p85 = por %p83, %p84
      %p86 = scmp.ne.s32.totalorder %s75, %s76
      %p87 = scmp.eq.s32.totalorder %s20, 0
      %p88 = por %p86, %p87
      %p89 = scmp.ne.s32.totalorder %s75, %s76
      %p90 = scmp.eq.s32.totalorder %s21, 15
      %p91 = por %p89, %p90
      %p93 = scmp.ne.s32.totalorder %s76, %s92
      %p94 = scmp.eq.s32.totalorder %s21, 0
      %p95 = por %p93, %p94
      %p96 = scmp.le.s32.totalorder 1, %s15
      %p97 = scmp.lt.s32.totalorder %s15, 17
      %p98 = pnand %p96, %p97
      %p99 = pneg %p98
      // Predicated region
      $region9: #{netD_forward.7} parent=5 // pred_check
        _
      $region10: #{netD_forward.7} parent=5 // pred_check_branch
        %101 = sbr.rel (%p98) target = $region12
      $region11: #{netD_forward.7} parent=5 // pred_region
        %s102 = ssub.s32 %s15, 1
        // Predicated region
        $region13: #{netD_forward.7} parent=11 // pred_check
          %p103 = pneg %p36
        $region14: #{netD_forward.7} parent=11 // pred_check_branch
          %105 = sbr.rel (%p103) target = $region16
        $region15: #{netD_forward.7} parent=11 // pred_region
          %s107 = ssub.s32 256, 256
          %108 = vsyncadd [#allocation3], %s107
          %s109 = sshll.u32 [#allocation2], 4
          %s110 = int_to_ptr.vmem [resolvable:$true] %s109
          %115 = dma.hbm_to_vmem [thread:$0]  %s0, 256, %s110, [#allocation3], 128, 128, 8
        $region16: #{netD_forward.7} parent=11 // pred_fallthru
          _
      $region12: #{netD_forward.7} parent=5 // pred_fallthru
        _
      %p116 = scmp.lt.s32.totalorder %s15, 16
      // Predicated region
      $region17: #{netD_forward.7} parent=5 // pred_check
        %p117 = pneg %p116
      $region18: #{netD_forward.7} parent=5 // pred_check_branch
        %119 = sbr.rel (%p117) target = $region20
      $region19: #{netD_forward.7} parent=5 // pred_region
        // Predicated region
        $region21: #{netD_forward.7} parent=19 // pred_check
          %p120 = pneg %p56
        $region22: #{netD_forward.7} parent=19 // pred_check_branch
          %122 = sbr.rel (%p120) target = $region24
        $region23: #{netD_forward.7} parent=19 // pred_region
          %s123 = sand.u32 %s46, 1
          %s124 = scalar_lea.sflag [#allocation6], %s123
          %s125 = sand.u32 %s46, 1
          %s126 = smul.addr %s125, 2048
          %s127 = scalar_lea.vmem [#allocation5], %s126
          %s128 = smul.u32 16, %s15
          %s130 = ssub.s32 32768, 32768
          %131 = vsyncadd %s124, %s130
          %s132 = smul.addr %s128, 64
          %s133 = scalar_lea.hbm %s1, %s132
          %s134 = sshll.u32 %s127, 4
          %s135 = int_to_ptr.vmem [resolvable:$true] %s134
          %140 = dma.hbm_to_vmem [thread:$0]  %s133, 32768, %s135, %s124, 16384, 1024, 64
        $region24: #{netD_forward.7} parent=19 // pred_fallthru
          _
      $region20: #{netD_forward.7} parent=5 // pred_fallthru
        _
      %p141 = scmp.le.s32.totalorder 1, %s15
      %p142 = scmp.lt.s32.totalorder %s15, 17
      %p143 = pnand %p141, %p142
      %p144 = pneg %p143
      // Predicated region
      $region25: #{netD_forward.7} parent=5 // pred_check
        _
      $region26: #{netD_forward.7} parent=5 // pred_check_branch
        %146 = sbr.rel (%p143) target = $region28
      $region27: #{netD_forward.7} parent=5 // pred_region
        %s147 = ssub.s32 %s15, 1
        // Predicated region
        $region29: #{netD_forward.7} parent=27 // pred_check
          %p148 = pneg %p36
        $region30: #{netD_forward.7} parent=27 // pred_check_branch
          %150 = sbr.rel (%p148) target = $region32
        $region31: #{netD_forward.7} parent=27 // pred_region
          %151 = dma.done [#allocation3], 256
        $region32: #{netD_forward.7} parent=27 // pred_fallthru
          _
        %s152 = sand.u32 %s49, 1
        %s153 = scalar_lea.sflag [#allocation6], %s152
        %s154 = sand.u32 %s49, 1
        %s155 = smul.addr %s154, 2048
        %s156 = scalar_lea.vmem [#allocation5], %s155
        // Predicated region
        $region33: #{netD_forward.7} parent=27 // pred_check
          %p157 = pneg %p62
        $region34: #{netD_forward.7} parent=27 // pred_check_branch
          %159 = sbr.rel (%p157) target = $region36
        $region35: #{netD_forward.7} parent=27 // pred_region
          %160 = dma.done %s153, 32768
        $region36: #{netD_forward.7} parent=27 // pred_fallthru
          _
        %p161 = pneg %p36
        %p162 = pneg %p33
        %s163 = sand.u32 %s49, 1
        %s164 = scalar_lea.sflag [#allocation6], %s163
        %s165 = sand.u32 %s49, 1
        %s166 = smul.addr %s165, 2048
        %s167 = scalar_lea.vmem [#allocation5], %s166
        %p168 = pneg %p62
        %p169 = pneg %p59
        %p170 = pneg %p88
        %p171 = pneg %p85
        %s172 = sand.u32 %s75, 1
        %s173 = scalar_lea.sflag [#allocation4], %s172
        %s174 = sand.u32 %s75, 1
        %s175 = smul.addr %s174, 128
        %s176 = scalar_lea.vmem [#allocation7], %s175
        %s177 = smul.u32 16, %s20
        %s178 = smul.u32 16, %s20
        %v179 = vld [vmem:[#allocation2] sm:$0xff]
        %v180 = vld [vmem:[#allocation2 + $0x8] sm:$0xff]
        %v181 = vld [vmem:[%s156] sm:$0xff]
        %v182 = vld [vmem:[%s156 + $0x8] sm:$0xff]
        %v183 = vld [vmem:[%s156 + $0x10] sm:$0xff]
        %v184 = vld [vmem:[%s156 + $0x18] sm:$0xff]
        %v185 = vld [vmem:[%s156 + $0x20] sm:$0xff]
        %v186 = vld [vmem:[%s156 + $0x28] sm:$0xff]
        %v187 = vld [vmem:[%s156 + $0x30] sm:$0xff]
        %v188 = vld [vmem:[%s156 + $0x38] sm:$0xff]
        %v189 = vld [vmem:[%s156 + $0x40] sm:$0xff]
        %v190 = vld [vmem:[%s156 + $0x48] sm:$0xff]
        %v191 = vld [vmem:[%s156 + $0x50] sm:$0xff]
        %v192 = vld [vmem:[%s156 + $0x58] sm:$0xff]
        %v193 = vld [vmem:[%s156 + $0x60] sm:$0xff]
        %v194 = vld [vmem:[%s156 + $0x68] sm:$0xff]
        %v195 = vld [vmem:[%s156 + $0x70] sm:$0xff]
        %v196 = vld [vmem:[%s156 + $0x78] sm:$0xff]
        %v197 = vld [vmem:[%s156 + $0x80] sm:$0xff]
        %v198 = vld [vmem:[%s156 + $0x88] sm:$0xff]
        %v199 = vld [vmem:[%s156 + $0x90] sm:$0xff]
        %v200 = vld [vmem:[%s156 + $0x98] sm:$0xff]
        %v201 = vld [vmem:[%s156 + $0xa0] sm:$0xff]
        %v202 = vld [vmem:[%s156 + $0xa8] sm:$0xff]
        %v203 = vld [vmem:[%s156 + $0xb0] sm:$0xff]
        %v204 = vld [vmem:[%s156 + $0xb8] sm:$0xff]
        %v205 = vld [vmem:[%s156 + $0xc0] sm:$0xff]
        %v206 = vld [vmem:[%s156 + $0xc8] sm:$0xff]
        %v207 = vld [vmem:[%s156 + $0xd0] sm:$0xff]
        %v208 = vld [vmem:[%s156 + $0xd8] sm:$0xff]
        %v209 = vld [vmem:[%s156 + $0xe0] sm:$0xff]
        %v210 = vld [vmem:[%s156 + $0xe8] sm:$0xff]
        %v211 = vld [vmem:[%s156 + $0xf0] sm:$0xff]
        %v212 = vld [vmem:[%s156 + $0xf8] sm:$0xff]
        %v213 = vld [vmem:[%s156 + $0x100] sm:$0xff]
        %v214 = vld [vmem:[%s156 + $0x108] sm:$0xff]
        %v215 = vld [vmem:[%s156 + $0x110] sm:$0xff]
        %v216 = vld [vmem:[%s156 + $0x118] sm:$0xff]
        %v217 = vld [vmem:[%s156 + $0x120] sm:$0xff]
        %v218 = vld [vmem:[%s156 + $0x128] sm:$0xff]
        %v219 = vld [vmem:[%s156 + $0x130] sm:$0xff]
        %v220 = vld [vmem:[%s156 + $0x138] sm:$0xff]
        %v221 = vld [vmem:[%s156 + $0x140] sm:$0xff]
        %v222 = vld [vmem:[%s156 + $0x148] sm:$0xff]
        %v223 = vld [vmem:[%s156 + $0x150] sm:$0xff]
        %v224 = vld [vmem:[%s156 + $0x158] sm:$0xff]
        %v225 = vld [vmem:[%s156 + $0x160] sm:$0xff]
        %v226 = vld [vmem:[%s156 + $0x168] sm:$0xff]
        %v227 = vld [vmem:[%s156 + $0x170] sm:$0xff]
        %v228 = vld [vmem:[%s156 + $0x178] sm:$0xff]
        %v229 = vld [vmem:[%s156 + $0x180] sm:$0xff]
        %v230 = vld [vmem:[%s156 + $0x188] sm:$0xff]
        %v231 = vld [vmem:[%s156 + $0x190] sm:$0xff]
        %v232 = vld [vmem:[%s156 + $0x198] sm:$0xff]
        %v233 = vld [vmem:[%s156 + $0x1a0] sm:$0xff]
        %v234 = vld [vmem:[%s156 + $0x1a8] sm:$0xff]
        %v235 = vld [vmem:[%s156 + $0x1b0] sm:$0xff]
        %v236 = vld [vmem:[%s156 + $0x1b8] sm:$0xff]
        %v237 = vld [vmem:[%s156 + $0x1c0] sm:$0xff]
        %v238 = vld [vmem:[%s156 + $0x1c8] sm:$0xff]
        %v239 = vld [vmem:[%s156 + $0x1d0] sm:$0xff]
        %v240 = vld [vmem:[%s156 + $0x1d8] sm:$0xff]
        %v241 = vld [vmem:[%s156 + $0x1e0] sm:$0xff]
        %v242 = vld [vmem:[%s156 + $0x1e8] sm:$0xff]
        %v243 = vld [vmem:[%s156 + $0x1f0] sm:$0xff]
        %v244 = vld [vmem:[%s156 + $0x1f8] sm:$0xff]
        %v245 = vld [vmem:[%s156 + $0x200] sm:$0xff]
        %v246 = vld [vmem:[%s156 + $0x208] sm:$0xff]
        %v247 = vld [vmem:[%s156 + $0x210] sm:$0xff]
        %v248 = vld [vmem:[%s156 + $0x218] sm:$0xff]
        %v249 = vld [vmem:[%s156 + $0x220] sm:$0xff]
        %v250 = vld [vmem:[%s156 + $0x228] sm:$0xff]
        %v251 = vld [vmem:[%s156 + $0x230] sm:$0xff]
        %v252 = vld [vmem:[%s156 + $0x238] sm:$0xff]
        %v253 = vld [vmem:[%s156 + $0x240] sm:$0xff]
        %v254 = vld [vmem:[%s156 + $0x248] sm:$0xff]
        %v255 = vld [vmem:[%s156 + $0x250] sm:$0xff]
        %v256 = vld [vmem:[%s156 + $0x258] sm:$0xff]
        %v257 = vld [vmem:[%s156 + $0x260] sm:$0xff]
        %v258 = vld [vmem:[%s156 + $0x268] sm:$0xff]
        %v259 = vld [vmem:[%s156 + $0x270] sm:$0xff]
        %v260 = vld [vmem:[%s156 + $0x278] sm:$0xff]
        %v261 = vld [vmem:[%s156 + $0x280] sm:$0xff]
        %v262 = vld [vmem:[%s156 + $0x288] sm:$0xff]
        %v263 = vld [vmem:[%s156 + $0x290] sm:$0xff]
        %v264 = vld [vmem:[%s156 + $0x298] sm:$0xff]
        %v265 = vld [vmem:[%s156 + $0x2a0] sm:$0xff]
        %v266 = vld [vmem:[%s156 + $0x2a8] sm:$0xff]
        %v267 = vld [vmem:[%s156 + $0x2b0] sm:$0xff]
        %v268 = vld [vmem:[%s156 + $0x2b8] sm:$0xff]
        %v269 = vld [vmem:[%s156 + $0x2c0] sm:$0xff]
        %v270 = vld [vmem:[%s156 + $0x2c8] sm:$0xff]
        %v271 = vld [vmem:[%s156 + $0x2d0] sm:$0xff]
        %v272 = vld [vmem:[%s156 + $0x2d8] sm:$0xff]
        %v273 = vld [vmem:[%s156 + $0x2e0] sm:$0xff]
        %v274 = vld [vmem:[%s156 + $0x2e8] sm:$0xff]
        %v275 = vld [vmem:[%s156 + $0x2f0] sm:$0xff]
        %v276 = vld [vmem:[%s156 + $0x2f8] sm:$0xff]
        %v277 = vld [vmem:[%s156 + $0x300] sm:$0xff]
        %v278 = vld [vmem:[%s156 + $0x308] sm:$0xff]
        %v279 = vld [vmem:[%s156 + $0x310] sm:$0xff]
        %v280 = vld [vmem:[%s156 + $0x318] sm:$0xff]
        %v281 = vld [vmem:[%s156 + $0x320] sm:$0xff]
        %v282 = vld [vmem:[%s156 + $0x328] sm:$0xff]
        %v283 = vld [vmem:[%s156 + $0x330] sm:$0xff]
        %v284 = vld [vmem:[%s156 + $0x338] sm:$0xff]
        %v285 = vld [vmem:[%s156 + $0x340] sm:$0xff]
        %v286 = vld [vmem:[%s156 + $0x348] sm:$0xff]
        %v287 = vld [vmem:[%s156 + $0x350] sm:$0xff]
        %v288 = vld [vmem:[%s156 + $0x358] sm:$0xff]
        %v289 = vld [vmem:[%s156 + $0x360] sm:$0xff]
        %v290 = vld [vmem:[%s156 + $0x368] sm:$0xff]
        %v291 = vld [vmem:[%s156 + $0x370] sm:$0xff]
        %v292 = vld [vmem:[%s156 + $0x378] sm:$0xff]
        %v293 = vld [vmem:[%s156 + $0x380] sm:$0xff]
        %v294 = vld [vmem:[%s156 + $0x388] sm:$0xff]
        %v295 = vld [vmem:[%s156 + $0x390] sm:$0xff]
        %v296 = vld [vmem:[%s156 + $0x398] sm:$0xff]
        %v297 = vld [vmem:[%s156 + $0x3a0] sm:$0xff]
        %v298 = vld [vmem:[%s156 + $0x3a8] sm:$0xff]
        %v299 = vld [vmem:[%s156 + $0x3b0] sm:$0xff]
        %v300 = vld [vmem:[%s156 + $0x3b8] sm:$0xff]
        %v301 = vld [vmem:[%s156 + $0x3c0] sm:$0xff]
        %v302 = vld [vmem:[%s156 + $0x3c8] sm:$0xff]
        %v303 = vld [vmem:[%s156 + $0x3d0] sm:$0xff]
        %v304 = vld [vmem:[%s156 + $0x3d8] sm:$0xff]
        %v305 = vld [vmem:[%s156 + $0x3e0] sm:$0xff]
        %v306 = vld [vmem:[%s156 + $0x3e8] sm:$0xff]
        %v307 = vld [vmem:[%s156 + $0x3f0] sm:$0xff]
        %v308 = vld [vmem:[%s156 + $0x3f8] sm:$0xff]
        %v309 = vld [vmem:[%s156 + $0x400] sm:$0xff]
        %v310 = vld [vmem:[%s156 + $0x408] sm:$0xff]
        %v311 = vld [vmem:[%s156 + $0x410] sm:$0xff]
        %v312 = vld [vmem:[%s156 + $0x418] sm:$0xff]
        %v313 = vld [vmem:[%s156 + $0x420] sm:$0xff]
        %v314 = vld [vmem:[%s156 + $0x428] sm:$0xff]
        %v315 = vld [vmem:[%s156 + $0x430] sm:$0xff]
        %v316 = vld [vmem:[%s156 + $0x438] sm:$0xff]
        %v317 = vld [vmem:[%s156 + $0x440] sm:$0xff]
        %v318 = vld [vmem:[%s156 + $0x448] sm:$0xff]
        %v319 = vld [vmem:[%s156 + $0x450] sm:$0xff]
        %v320 = vld [vmem:[%s156 + $0x458] sm:$0xff]
        %v321 = vld [vmem:[%s156 + $0x460] sm:$0xff]
        %v322 = vld [vmem:[%s156 + $0x468] sm:$0xff]
        %v323 = vld [vmem:[%s156 + $0x470] sm:$0xff]
        %v324 = vld [vmem:[%s156 + $0x478] sm:$0xff]
        %v325 = vld [vmem:[%s156 + $0x480] sm:$0xff]
        %v326 = vld [vmem:[%s156 + $0x488] sm:$0xff]
        %v327 = vld [vmem:[%s156 + $0x490] sm:$0xff]
        %v328 = vld [vmem:[%s156 + $0x498] sm:$0xff]
        %v329 = vld [vmem:[%s156 + $0x4a0] sm:$0xff]
        %v330 = vld [vmem:[%s156 + $0x4a8] sm:$0xff]
        %v331 = vld [vmem:[%s156 + $0x4b0] sm:$0xff]
        %v332 = vld [vmem:[%s156 + $0x4b8] sm:$0xff]
        %v333 = vld [vmem:[%s156 + $0x4c0] sm:$0xff]
        %v334 = vld [vmem:[%s156 + $0x4c8] sm:$0xff]
        %v335 = vld [vmem:[%s156 + $0x4d0] sm:$0xff]
        %v336 = vld [vmem:[%s156 + $0x4d8] sm:$0xff]
        %v337 = vld [vmem:[%s156 + $0x4e0] sm:$0xff]
        %v338 = vld [vmem:[%s156 + $0x4e8] sm:$0xff]
        %v339 = vld [vmem:[%s156 + $0x4f0] sm:$0xff]
        %v340 = vld [vmem:[%s156 + $0x4f8] sm:$0xff]
        %v341 = vld [vmem:[%s156 + $0x500] sm:$0xff]
        %v342 = vld [vmem:[%s156 + $0x508] sm:$0xff]
        %v343 = vld [vmem:[%s156 + $0x510] sm:$0xff]
        %v344 = vld [vmem:[%s156 + $0x518] sm:$0xff]
        %v345 = vld [vmem:[%s156 + $0x520] sm:$0xff]
        %v346 = vld [vmem:[%s156 + $0x528] sm:$0xff]
        %v347 = vld [vmem:[%s156 + $0x530] sm:$0xff]
        %v348 = vld [vmem:[%s156 + $0x538] sm:$0xff]
        %v349 = vld [vmem:[%s156 + $0x540] sm:$0xff]
        %v350 = vld [vmem:[%s156 + $0x548] sm:$0xff]
        %v351 = vld [vmem:[%s156 + $0x550] sm:$0xff]
        %v352 = vld [vmem:[%s156 + $0x558] sm:$0xff]
        %v353 = vld [vmem:[%s156 + $0x560] sm:$0xff]
        %v354 = vld [vmem:[%s156 + $0x568] sm:$0xff]
        %v355 = vld [vmem:[%s156 + $0x570] sm:$0xff]
        %v356 = vld [vmem:[%s156 + $0x578] sm:$0xff]
        %v357 = vld [vmem:[%s156 + $0x580] sm:$0xff]
        %v358 = vld [vmem:[%s156 + $0x588] sm:$0xff]
        %v359 = vld [vmem:[%s156 + $0x590] sm:$0xff]
        %v360 = vld [vmem:[%s156 + $0x598] sm:$0xff]
        %v361 = vld [vmem:[%s156 + $0x5a0] sm:$0xff]
        %v362 = vld [vmem:[%s156 + $0x5a8] sm:$0xff]
        %v363 = vld [vmem:[%s156 + $0x5b0] sm:$0xff]
        %v364 = vld [vmem:[%s156 + $0x5b8] sm:$0xff]
        %v365 = vld [vmem:[%s156 + $0x5c0] sm:$0xff]
        %v366 = vld [vmem:[%s156 + $0x5c8] sm:$0xff]
        %v367 = vld [vmem:[%s156 + $0x5d0] sm:$0xff]
        %v368 = vld [vmem:[%s156 + $0x5d8] sm:$0xff]
        %v369 = vld [vmem:[%s156 + $0x5e0] sm:$0xff]
        %v370 = vld [vmem:[%s156 + $0x5e8] sm:$0xff]
        %v371 = vld [vmem:[%s156 + $0x5f0] sm:$0xff]
        %v372 = vld [vmem:[%s156 + $0x5f8] sm:$0xff]
        %v373 = vld [vmem:[%s156 + $0x600] sm:$0xff]
        %v374 = vld [vmem:[%s156 + $0x608] sm:$0xff]
        %v375 = vld [vmem:[%s156 + $0x610] sm:$0xff]
        %v376 = vld [vmem:[%s156 + $0x618] sm:$0xff]
        %v377 = vld [vmem:[%s156 + $0x620] sm:$0xff]
        %v378 = vld [vmem:[%s156 + $0x628] sm:$0xff]
        %v379 = vld [vmem:[%s156 + $0x630] sm:$0xff]
        %v380 = vld [vmem:[%s156 + $0x638] sm:$0xff]
        %v381 = vld [vmem:[%s156 + $0x640] sm:$0xff]
        %v382 = vld [vmem:[%s156 + $0x648] sm:$0xff]
        %v383 = vld [vmem:[%s156 + $0x650] sm:$0xff]
        %v384 = vld [vmem:[%s156 + $0x658] sm:$0xff]
        %v385 = vld [vmem:[%s156 + $0x660] sm:$0xff]
        %v386 = vld [vmem:[%s156 + $0x668] sm:$0xff]
        %v387 = vld [vmem:[%s156 + $0x670] sm:$0xff]
        %v388 = vld [vmem:[%s156 + $0x678] sm:$0xff]
        %v389 = vld [vmem:[%s156 + $0x680] sm:$0xff]
        %v390 = vld [vmem:[%s156 + $0x688] sm:$0xff]
        %v391 = vld [vmem:[%s156 + $0x690] sm:$0xff]
        %v392 = vld [vmem:[%s156 + $0x698] sm:$0xff]
        %v393 = vld [vmem:[%s156 + $0x6a0] sm:$0xff]
        %v394 = vld [vmem:[%s156 + $0x6a8] sm:$0xff]
        %v395 = vld [vmem:[%s156 + $0x6b0] sm:$0xff]
        %v396 = vld [vmem:[%s156 + $0x6b8] sm:$0xff]
        %v397 = vld [vmem:[%s156 + $0x6c0] sm:$0xff]
        %v398 = vld [vmem:[%s156 + $0x6c8] sm:$0xff]
        %v399 = vld [vmem:[%s156 + $0x6d0] sm:$0xff]
        %v400 = vld [vmem:[%s156 + $0x6d8] sm:$0xff]
        %v401 = vld [vmem:[%s156 + $0x6e0] sm:$0xff]
        %v402 = vld [vmem:[%s156 + $0x6e8] sm:$0xff]
        %v403 = vld [vmem:[%s156 + $0x6f0] sm:$0xff]
        %v404 = vld [vmem:[%s156 + $0x6f8] sm:$0xff]
        %v405 = vld [vmem:[%s156 + $0x700] sm:$0xff]
        %v406 = vld [vmem:[%s156 + $0x708] sm:$0xff]
        %v407 = vld [vmem:[%s156 + $0x710] sm:$0xff]
        %v408 = vld [vmem:[%s156 + $0x718] sm:$0xff]
        %v409 = vld [vmem:[%s156 + $0x720] sm:$0xff]
        %v410 = vld [vmem:[%s156 + $0x728] sm:$0xff]
        %v411 = vld [vmem:[%s156 + $0x730] sm:$0xff]
        %v412 = vld [vmem:[%s156 + $0x738] sm:$0xff]
        %v413 = vld [vmem:[%s156 + $0x740] sm:$0xff]
        %v414 = vld [vmem:[%s156 + $0x748] sm:$0xff]
        %v415 = vld [vmem:[%s156 + $0x750] sm:$0xff]
        %v416 = vld [vmem:[%s156 + $0x758] sm:$0xff]
        %v417 = vld [vmem:[%s156 + $0x760] sm:$0xff]
        %v418 = vld [vmem:[%s156 + $0x768] sm:$0xff]
        %v419 = vld [vmem:[%s156 + $0x770] sm:$0xff]
        %v420 = vld [vmem:[%s156 + $0x778] sm:$0xff]
        %v421 = vld [vmem:[%s156 + $0x780] sm:$0xff]
        %v422 = vld [vmem:[%s156 + $0x788] sm:$0xff]
        %v423 = vld [vmem:[%s156 + $0x790] sm:$0xff]
        %v424 = vld [vmem:[%s156 + $0x798] sm:$0xff]
        %v425 = vld [vmem:[%s156 + $0x7a0] sm:$0xff]
        %v426 = vld [vmem:[%s156 + $0x7a8] sm:$0xff]
        %v427 = vld [vmem:[%s156 + $0x7b0] sm:$0xff]
        %v428 = vld [vmem:[%s156 + $0x7b8] sm:$0xff]
        %v429 = vld [vmem:[%s156 + $0x7c0] sm:$0xff]
        %v430 = vld [vmem:[%s156 + $0x7c8] sm:$0xff]
        %v431 = vld [vmem:[%s156 + $0x7d0] sm:$0xff]
        %v432 = vld [vmem:[%s156 + $0x7d8] sm:$0xff]
        %v433 = vld [vmem:[%s156 + $0x7e0] sm:$0xff]
        %v434 = vld [vmem:[%s156 + $0x7e8] sm:$0xff]
        %v435 = vld [vmem:[%s156 + $0x7f0] sm:$0xff]
        %v436 = vld [vmem:[%s156 + $0x7f8] sm:$0xff]
        %v439 = vunpack.c.l.b16 %v179
        %v440 = vunpack.c.h.b16 %v179
        %v441 = vunpack.c.l.b16 %v180
        %v442 = vunpack.c.h.b16 %v180
        %v443 = vpack.c.b16 %v441, %v439
        %v444 = vpack.c.b16 %v442, %v440
        %v703 = vunpack.c.l.b16 %v181
        %v704 = vunpack.c.h.b16 %v181
        %v705 = vunpack.c.l.b16 %v182
        %v706 = vunpack.c.h.b16 %v182
        %v707 = vunpack.c.l.b16 %v183
        %v708 = vunpack.c.h.b16 %v183
        %v709 = vunpack.c.l.b16 %v184
        %v710 = vunpack.c.h.b16 %v184
        %v711 = vunpack.c.l.b16 %v185
        %v712 = vunpack.c.h.b16 %v185
        %v713 = vunpack.c.l.b16 %v186
        %v714 = vunpack.c.h.b16 %v186
        %v715 = vunpack.c.l.b16 %v187
        %v716 = vunpack.c.h.b16 %v187
        %v717 = vunpack.c.l.b16 %v188
        %v718 = vunpack.c.h.b16 %v188
        %v719 = vunpack.c.l.b16 %v189
        %v720 = vunpack.c.h.b16 %v189
        %v721 = vunpack.c.l.b16 %v190
        %v722 = vunpack.c.h.b16 %v190
        %v723 = vunpack.c.l.b16 %v191
        %v724 = vunpack.c.h.b16 %v191
        %v725 = vunpack.c.l.b16 %v192
        %v726 = vunpack.c.h.b16 %v192
        %v727 = vunpack.c.l.b16 %v193
        %v728 = vunpack.c.h.b16 %v193
        %v729 = vunpack.c.l.b16 %v194
        %v730 = vunpack.c.h.b16 %v194
        %v731 = vunpack.c.l.b16 %v195
        %v732 = vunpack.c.h.b16 %v195
        %v733 = vunpack.c.l.b16 %v196
        %v734 = vunpack.c.h.b16 %v196
        %v735 = vunpack.c.l.b16 %v197
        %v736 = vunpack.c.h.b16 %v197
        %v737 = vunpack.c.l.b16 %v198
        %v738 = vunpack.c.h.b16 %v198
        %v739 = vunpack.c.l.b16 %v199
        %v740 = vunpack.c.h.b16 %v199
        %v741 = vunpack.c.l.b16 %v200
        %v742 = vunpack.c.h.b16 %v200
        %v743 = vunpack.c.l.b16 %v201
        %v744 = vunpack.c.h.b16 %v201
        %v745 = vunpack.c.l.b16 %v202
        %v746 = vunpack.c.h.b16 %v202
        %v747 = vunpack.c.l.b16 %v203
        %v748 = vunpack.c.h.b16 %v203
        %v749 = vunpack.c.l.b16 %v204
        %v750 = vunpack.c.h.b16 %v204
        %v751 = vunpack.c.l.b16 %v205
        %v752 = vunpack.c.h.b16 %v205
        %v753 = vunpack.c.l.b16 %v206
        %v754 = vunpack.c.h.b16 %v206
        %v755 = vunpack.c.l.b16 %v207
        %v756 = vunpack.c.h.b16 %v207
        %v757 = vunpack.c.l.b16 %v208
        %v758 = vunpack.c.h.b16 %v208
        %v759 = vunpack.c.l.b16 %v209
        %v760 = vunpack.c.h.b16 %v209
        %v761 = vunpack.c.l.b16 %v210
        %v762 = vunpack.c.h.b16 %v210
        %v763 = vunpack.c.l.b16 %v211
        %v764 = vunpack.c.h.b16 %v211
        %v765 = vunpack.c.l.b16 %v212
        %v766 = vunpack.c.h.b16 %v212
        %v767 = vunpack.c.l.b16 %v213
        %v768 = vunpack.c.h.b16 %v213
        %v769 = vunpack.c.l.b16 %v214
        %v770 = vunpack.c.h.b16 %v214
        %v771 = vunpack.c.l.b16 %v215
        %v772 = vunpack.c.h.b16 %v215
        %v773 = vunpack.c.l.b16 %v216
        %v774 = vunpack.c.h.b16 %v216
        %v775 = vunpack.c.l.b16 %v217
        %v776 = vunpack.c.h.b16 %v217
        %v777 = vunpack.c.l.b16 %v218
        %v778 = vunpack.c.h.b16 %v218
        %v779 = vunpack.c.l.b16 %v219
        %v780 = vunpack.c.h.b16 %v219
        %v781 = vunpack.c.l.b16 %v220
        %v782 = vunpack.c.h.b16 %v220
        %v783 = vunpack.c.l.b16 %v221
        %v784 = vunpack.c.h.b16 %v221
        %v785 = vunpack.c.l.b16 %v222
        %v786 = vunpack.c.h.b16 %v222
        %v787 = vunpack.c.l.b16 %v223
        %v788 = vunpack.c.h.b16 %v223
        %v789 = vunpack.c.l.b16 %v224
        %v790 = vunpack.c.h.b16 %v224
        %v791 = vunpack.c.l.b16 %v225
        %v792 = vunpack.c.h.b16 %v225
        %v793 = vunpack.c.l.b16 %v226
        %v794 = vunpack.c.h.b16 %v226
        %v795 = vunpack.c.l.b16 %v227
        %v796 = vunpack.c.h.b16 %v227
        %v797 = vunpack.c.l.b16 %v228
        %v798 = vunpack.c.h.b16 %v228
        %v799 = vunpack.c.l.b16 %v229
        %v800 = vunpack.c.h.b16 %v229
        %v801 = vunpack.c.l.b16 %v230
        %v802 = vunpack.c.h.b16 %v230
        %v803 = vunpack.c.l.b16 %v231
        %v804 = vunpack.c.h.b16 %v231
        %v805 = vunpack.c.l.b16 %v232
        %v806 = vunpack.c.h.b16 %v232
        %v807 = vunpack.c.l.b16 %v233
        %v808 = vunpack.c.h.b16 %v233
        %v809 = vunpack.c.l.b16 %v234
        %v810 = vunpack.c.h.b16 %v234
        %v811 = vunpack.c.l.b16 %v235
        %v812 = vunpack.c.h.b16 %v235
        %v813 = vunpack.c.l.b16 %v236
        %v814 = vunpack.c.h.b16 %v236
        %v815 = vunpack.c.l.b16 %v237
        %v816 = vunpack.c.h.b16 %v237
        %v817 = vunpack.c.l.b16 %v238
        %v818 = vunpack.c.h.b16 %v238
        %v819 = vunpack.c.l.b16 %v239
        %v820 = vunpack.c.h.b16 %v239
        %v821 = vunpack.c.l.b16 %v240
        %v822 = vunpack.c.h.b16 %v240
        %v823 = vunpack.c.l.b16 %v241
        %v824 = vunpack.c.h.b16 %v241
        %v825 = vunpack.c.l.b16 %v242
        %v826 = vunpack.c.h.b16 %v242
        %v827 = vunpack.c.l.b16 %v243
        %v828 = vunpack.c.h.b16 %v243
        %v829 = vunpack.c.l.b16 %v244
        %v830 = vunpack.c.h.b16 %v244
        %v831 = vunpack.c.l.b16 %v245
        %v832 = vunpack.c.h.b16 %v245
        %v833 = vunpack.c.l.b16 %v246
        %v834 = vunpack.c.h.b16 %v246
        %v835 = vunpack.c.l.b16 %v247
        %v836 = vunpack.c.h.b16 %v247
        %v837 = vunpack.c.l.b16 %v248
        %v838 = vunpack.c.h.b16 %v248
        %v839 = vunpack.c.l.b16 %v249
        %v840 = vunpack.c.h.b16 %v249
        %v841 = vunpack.c.l.b16 %v250
        %v842 = vunpack.c.h.b16 %v250
        %v843 = vunpack.c.l.b16 %v251
        %v844 = vunpack.c.h.b16 %v251
        %v845 = vunpack.c.l.b16 %v252
        %v846 = vunpack.c.h.b16 %v252
        %v847 = vunpack.c.l.b16 %v253
        %v848 = vunpack.c.h.b16 %v253
        %v849 = vunpack.c.l.b16 %v254
        %v850 = vunpack.c.h.b16 %v254
        %v851 = vunpack.c.l.b16 %v255
        %v852 = vunpack.c.h.b16 %v255
        %v853 = vunpack.c.l.b16 %v256
        %v854 = vunpack.c.h.b16 %v256
        %v855 = vunpack.c.l.b16 %v257
        %v856 = vunpack.c.h.b16 %v257
        %v857 = vunpack.c.l.b16 %v258
        %v858 = vunpack.c.h.b16 %v258
        %v859 = vunpack.c.l.b16 %v259
        %v860 = vunpack.c.h.b16 %v259
        %v861 = vunpack.c.l.b16 %v260
        %v862 = vunpack.c.h.b16 %v260
        %v863 = vunpack.c.l.b16 %v261
        %v864 = vunpack.c.h.b16 %v261
        %v865 = vunpack.c.l.b16 %v262
        %v866 = vunpack.c.h.b16 %v262
        %v867 = vunpack.c.l.b16 %v263
        %v868 = vunpack.c.h.b16 %v263
        %v869 = vunpack.c.l.b16 %v264
        %v870 = vunpack.c.h.b16 %v264
        %v871 = vunpack.c.l.b16 %v265
        %v872 = vunpack.c.h.b16 %v265
        %v873 = vunpack.c.l.b16 %v266
        %v874 = vunpack.c.h.b16 %v266
        %v875 = vunpack.c.l.b16 %v267
        %v876 = vunpack.c.h.b16 %v267
        %v877 = vunpack.c.l.b16 %v268
        %v878 = vunpack.c.h.b16 %v268
        %v879 = vunpack.c.l.b16 %v269
        %v880 = vunpack.c.h.b16 %v269
        %v881 = vunpack.c.l.b16 %v270
        %v882 = vunpack.c.h.b16 %v270
        %v883 = vunpack.c.l.b16 %v271
        %v884 = vunpack.c.h.b16 %v271
        %v885 = vunpack.c.l.b16 %v272
        %v886 = vunpack.c.h.b16 %v272
        %v887 = vunpack.c.l.b16 %v273
        %v888 = vunpack.c.h.b16 %v273
        %v889 = vunpack.c.l.b16 %v274
        %v890 = vunpack.c.h.b16 %v274
        %v891 = vunpack.c.l.b16 %v275
        %v892 = vunpack.c.h.b16 %v275
        %v893 = vunpack.c.l.b16 %v276
        %v894 = vunpack.c.h.b16 %v276
        %v895 = vunpack.c.l.b16 %v277
        %v896 = vunpack.c.h.b16 %v277
        %v897 = vunpack.c.l.b16 %v278
        %v898 = vunpack.c.h.b16 %v278
        %v899 = vunpack.c.l.b16 %v279
        %v900 = vunpack.c.h.b16 %v279
        %v901 = vunpack.c.l.b16 %v280
        %v902 = vunpack.c.h.b16 %v280
        %v903 = vunpack.c.l.b16 %v281
        %v904 = vunpack.c.h.b16 %v281
        %v905 = vunpack.c.l.b16 %v282
        %v906 = vunpack.c.h.b16 %v282
        %v907 = vunpack.c.l.b16 %v283
        %v908 = vunpack.c.h.b16 %v283
        %v909 = vunpack.c.l.b16 %v284
        %v910 = vunpack.c.h.b16 %v284
        %v911 = vunpack.c.l.b16 %v285
        %v912 = vunpack.c.h.b16 %v285
        %v913 = vunpack.c.l.b16 %v286
        %v914 = vunpack.c.h.b16 %v286
        %v915 = vunpack.c.l.b16 %v287
        %v916 = vunpack.c.h.b16 %v287
        %v917 = vunpack.c.l.b16 %v288
        %v918 = vunpack.c.h.b16 %v288
        %v919 = vunpack.c.l.b16 %v289
        %v920 = vunpack.c.h.b16 %v289
        %v921 = vunpack.c.l.b16 %v290
        %v922 = vunpack.c.h.b16 %v290
        %v923 = vunpack.c.l.b16 %v291
        %v924 = vunpack.c.h.b16 %v291
        %v925 = vunpack.c.l.b16 %v292
        %v926 = vunpack.c.h.b16 %v292
        %v927 = vunpack.c.l.b16 %v293
        %v928 = vunpack.c.h.b16 %v293
        %v929 = vunpack.c.l.b16 %v294
        %v930 = vunpack.c.h.b16 %v294
        %v931 = vunpack.c.l.b16 %v295
        %v932 = vunpack.c.h.b16 %v295
        %v933 = vunpack.c.l.b16 %v296
        %v934 = vunpack.c.h.b16 %v296
        %v935 = vunpack.c.l.b16 %v297
        %v936 = vunpack.c.h.b16 %v297
        %v937 = vunpack.c.l.b16 %v298
        %v938 = vunpack.c.h.b16 %v298
        %v939 = vunpack.c.l.b16 %v299
        %v940 = vunpack.c.h.b16 %v299
        %v941 = vunpack.c.l.b16 %v300
        %v942 = vunpack.c.h.b16 %v300
        %v943 = vunpack.c.l.b16 %v301
        %v944 = vunpack.c.h.b16 %v301
        %v945 = vunpack.c.l.b16 %v302
        %v946 = vunpack.c.h.b16 %v302
        %v947 = vunpack.c.l.b16 %v303
        %v948 = vunpack.c.h.b16 %v303
        %v949 = vunpack.c.l.b16 %v304
        %v950 = vunpack.c.h.b16 %v304
        %v951 = vunpack.c.l.b16 %v305
        %v952 = vunpack.c.h.b16 %v305
        %v953 = vunpack.c.l.b16 %v306
        %v954 = vunpack.c.h.b16 %v306
        %v955 = vunpack.c.l.b16 %v307
        %v956 = vunpack.c.h.b16 %v307
        %v957 = vunpack.c.l.b16 %v308
        %v958 = vunpack.c.h.b16 %v308
        %v959 = vunpack.c.l.b16 %v309
        %v960 = vunpack.c.h.b16 %v309
        %v961 = vunpack.c.l.b16 %v310
        %v962 = vunpack.c.h.b16 %v310
        %v963 = vunpack.c.l.b16 %v311
        %v964 = vunpack.c.h.b16 %v311
        %v965 = vunpack.c.l.b16 %v312
        %v966 = vunpack.c.h.b16 %v312
        %v967 = vunpack.c.l.b16 %v313
        %v968 = vunpack.c.h.b16 %v313
        %v969 = vunpack.c.l.b16 %v314
        %v970 = vunpack.c.h.b16 %v314
        %v971 = vunpack.c.l.b16 %v315
        %v972 = vunpack.c.h.b16 %v315
        %v973 = vunpack.c.l.b16 %v316
        %v974 = vunpack.c.h.b16 %v316
        %v975 = vunpack.c.l.b16 %v317
        %v976 = vunpack.c.h.b16 %v317
        %v977 = vunpack.c.l.b16 %v318
        %v978 = vunpack.c.h.b16 %v318
        %v979 = vunpack.c.l.b16 %v319
        %v980 = vunpack.c.h.b16 %v319
        %v981 = vunpack.c.l.b16 %v320
        %v982 = vunpack.c.h.b16 %v320
        %v983 = vunpack.c.l.b16 %v321
        %v984 = vunpack.c.h.b16 %v321
        %v985 = vunpack.c.l.b16 %v322
        %v986 = vunpack.c.h.b16 %v322
        %v987 = vunpack.c.l.b16 %v323
        %v988 = vunpack.c.h.b16 %v323
        %v989 = vunpack.c.l.b16 %v324
        %v990 = vunpack.c.h.b16 %v324
        %v991 = vunpack.c.l.b16 %v325
        %v992 = vunpack.c.h.b16 %v325
        %v993 = vunpack.c.l.b16 %v326
        %v994 = vunpack.c.h.b16 %v326
        %v995 = vunpack.c.l.b16 %v327
        %v996 = vunpack.c.h.b16 %v327
        %v997 = vunpack.c.l.b16 %v328
        %v998 = vunpack.c.h.b16 %v328
        %v999 = vunpack.c.l.b16 %v329
        %v1000 = vunpack.c.h.b16 %v329
        %v1001 = vunpack.c.l.b16 %v330
        %v1002 = vunpack.c.h.b16 %v330
        %v1003 = vunpack.c.l.b16 %v331
        %v1004 = vunpack.c.h.b16 %v331
        %v1005 = vunpack.c.l.b16 %v332
        %v1006 = vunpack.c.h.b16 %v332
        %v1007 = vunpack.c.l.b16 %v333
        %v1008 = vunpack.c.h.b16 %v333
        %v1009 = vunpack.c.l.b16 %v334
        %v1010 = vunpack.c.h.b16 %v334
        %v1011 = vunpack.c.l.b16 %v335
        %v1012 = vunpack.c.h.b16 %v335
        %v1013 = vunpack.c.l.b16 %v336
        %v1014 = vunpack.c.h.b16 %v336
        %v1015 = vunpack.c.l.b16 %v337
        %v1016 = vunpack.c.h.b16 %v337
        %v1017 = vunpack.c.l.b16 %v338
        %v1018 = vunpack.c.h.b16 %v338
        %v1019 = vunpack.c.l.b16 %v339
        %v1020 = vunpack.c.h.b16 %v339
        %v1021 = vunpack.c.l.b16 %v340
        %v1022 = vunpack.c.h.b16 %v340
        %v1023 = vunpack.c.l.b16 %v341
        %v1024 = vunpack.c.h.b16 %v341
        %v1025 = vunpack.c.l.b16 %v342
        %v1026 = vunpack.c.h.b16 %v342
        %v1027 = vunpack.c.l.b16 %v343
        %v1028 = vunpack.c.h.b16 %v343
        %v1029 = vunpack.c.l.b16 %v344
        %v1030 = vunpack.c.h.b16 %v344
        %v1031 = vunpack.c.l.b16 %v345
        %v1032 = vunpack.c.h.b16 %v345
        %v1033 = vunpack.c.l.b16 %v346
        %v1034 = vunpack.c.h.b16 %v346
        %v1035 = vunpack.c.l.b16 %v347
        %v1036 = vunpack.c.h.b16 %v347
        %v1037 = vunpack.c.l.b16 %v348
        %v1038 = vunpack.c.h.b16 %v348
        %v1039 = vunpack.c.l.b16 %v349
        %v1040 = vunpack.c.h.b16 %v349
        %v1041 = vunpack.c.l.b16 %v350
        %v1042 = vunpack.c.h.b16 %v350
        %v1043 = vunpack.c.l.b16 %v351
        %v1044 = vunpack.c.h.b16 %v351
        %v1045 = vunpack.c.l.b16 %v352
        %v1046 = vunpack.c.h.b16 %v352
        %v1047 = vunpack.c.l.b16 %v353
        %v1048 = vunpack.c.h.b16 %v353
        %v1049 = vunpack.c.l.b16 %v354
        %v1050 = vunpack.c.h.b16 %v354
        %v1051 = vunpack.c.l.b16 %v355
        %v1052 = vunpack.c.h.b16 %v355
        %v1053 = vunpack.c.l.b16 %v356
        %v1054 = vunpack.c.h.b16 %v356
        %v1055 = vunpack.c.l.b16 %v357
        %v1056 = vunpack.c.h.b16 %v357
        %v1057 = vunpack.c.l.b16 %v358
        %v1058 = vunpack.c.h.b16 %v358
        %v1059 = vunpack.c.l.b16 %v359
        %v1060 = vunpack.c.h.b16 %v359
        %v1061 = vunpack.c.l.b16 %v360
        %v1062 = vunpack.c.h.b16 %v360
        %v1063 = vunpack.c.l.b16 %v361
        %v1064 = vunpack.c.h.b16 %v361
        %v1065 = vunpack.c.l.b16 %v362
        %v1066 = vunpack.c.h.b16 %v362
        %v1067 = vunpack.c.l.b16 %v363
        %v1068 = vunpack.c.h.b16 %v363
        %v1069 = vunpack.c.l.b16 %v364
        %v1070 = vunpack.c.h.b16 %v364
        %v1071 = vunpack.c.l.b16 %v365
        %v1072 = vunpack.c.h.b16 %v365
        %v1073 = vunpack.c.l.b16 %v366
        %v1074 = vunpack.c.h.b16 %v366
        %v1075 = vunpack.c.l.b16 %v367
        %v1076 = vunpack.c.h.b16 %v367
        %v1077 = vunpack.c.l.b16 %v368
        %v1078 = vunpack.c.h.b16 %v368
        %v1079 = vunpack.c.l.b16 %v369
        %v1080 = vunpack.c.h.b16 %v369
        %v1081 = vunpack.c.l.b16 %v370
        %v1082 = vunpack.c.h.b16 %v370
        %v1083 = vunpack.c.l.b16 %v371
        %v1084 = vunpack.c.h.b16 %v371
        %v1085 = vunpack.c.l.b16 %v372
        %v1086 = vunpack.c.h.b16 %v372
        %v1087 = vunpack.c.l.b16 %v373
        %v1088 = vunpack.c.h.b16 %v373
        %v1089 = vunpack.c.l.b16 %v374
        %v1090 = vunpack.c.h.b16 %v374
        %v1091 = vunpack.c.l.b16 %v375
        %v1092 = vunpack.c.h.b16 %v375
        %v1093 = vunpack.c.l.b16 %v376
        %v1094 = vunpack.c.h.b16 %v376
        %v1095 = vunpack.c.l.b16 %v377
        %v1096 = vunpack.c.h.b16 %v377
        %v1097 = vunpack.c.l.b16 %v378
        %v1098 = vunpack.c.h.b16 %v378
        %v1099 = vunpack.c.l.b16 %v379
        %v1100 = vunpack.c.h.b16 %v379
        %v1101 = vunpack.c.l.b16 %v380
        %v1102 = vunpack.c.h.b16 %v380
        %v1103 = vunpack.c.l.b16 %v381
        %v1104 = vunpack.c.h.b16 %v381
        %v1105 = vunpack.c.l.b16 %v382
        %v1106 = vunpack.c.h.b16 %v382
        %v1107 = vunpack.c.l.b16 %v383
        %v1108 = vunpack.c.h.b16 %v383
        %v1109 = vunpack.c.l.b16 %v384
        %v1110 = vunpack.c.h.b16 %v384
        %v1111 = vunpack.c.l.b16 %v385
        %v1112 = vunpack.c.h.b16 %v385
        %v1113 = vunpack.c.l.b16 %v386
        %v1114 = vunpack.c.h.b16 %v386
        %v1115 = vunpack.c.l.b16 %v387
        %v1116 = vunpack.c.h.b16 %v387
        %v1117 = vunpack.c.l.b16 %v388
        %v1118 = vunpack.c.h.b16 %v388
        %v1119 = vunpack.c.l.b16 %v389
        %v1120 = vunpack.c.h.b16 %v389
        %v1121 = vunpack.c.l.b16 %v390
        %v1122 = vunpack.c.h.b16 %v390
        %v1123 = vunpack.c.l.b16 %v391
        %v1124 = vunpack.c.h.b16 %v391
        %v1125 = vunpack.c.l.b16 %v392
        %v1126 = vunpack.c.h.b16 %v392
        %v1127 = vunpack.c.l.b16 %v393
        %v1128 = vunpack.c.h.b16 %v393
        %v1129 = vunpack.c.l.b16 %v394
        %v1130 = vunpack.c.h.b16 %v394
        %v1131 = vunpack.c.l.b16 %v395
        %v1132 = vunpack.c.h.b16 %v395
        %v1133 = vunpack.c.l.b16 %v396
        %v1134 = vunpack.c.h.b16 %v396
        %v1135 = vunpack.c.l.b16 %v397
        %v1136 = vunpack.c.h.b16 %v397
        %v1137 = vunpack.c.l.b16 %v398
        %v1138 = vunpack.c.h.b16 %v398
        %v1139 = vunpack.c.l.b16 %v399
        %v1140 = vunpack.c.h.b16 %v399
        %v1141 = vunpack.c.l.b16 %v400
        %v1142 = vunpack.c.h.b16 %v400
        %v1143 = vunpack.c.l.b16 %v401
        %v1144 = vunpack.c.h.b16 %v401
        %v1145 = vunpack.c.l.b16 %v402
        %v1146 = vunpack.c.h.b16 %v402
        %v1147 = vunpack.c.l.b16 %v403
        %v1148 = vunpack.c.h.b16 %v403
        %v1149 = vunpack.c.l.b16 %v404
        %v1150 = vunpack.c.h.b16 %v404
        %v1151 = vunpack.c.l.b16 %v405
        %v1152 = vunpack.c.h.b16 %v405
        %v1153 = vunpack.c.l.b16 %v406
        %v1154 = vunpack.c.h.b16 %v406
        %v1155 = vunpack.c.l.b16 %v407
        %v1156 = vunpack.c.h.b16 %v407
        %v1157 = vunpack.c.l.b16 %v408
        %v1158 = vunpack.c.h.b16 %v408
        %v1159 = vunpack.c.l.b16 %v409
        %v1160 = vunpack.c.h.b16 %v409
        %v1161 = vunpack.c.l.b16 %v410
        %v1162 = vunpack.c.h.b16 %v410
        %v1163 = vunpack.c.l.b16 %v411
        %v1164 = vunpack.c.h.b16 %v411
        %v1165 = vunpack.c.l.b16 %v412
        %v1166 = vunpack.c.h.b16 %v412
        %v1167 = vunpack.c.l.b16 %v413
        %v1168 = vunpack.c.h.b16 %v413
        %v1169 = vunpack.c.l.b16 %v414
        %v1170 = vunpack.c.h.b16 %v414
        %v1171 = vunpack.c.l.b16 %v415
        %v1172 = vunpack.c.h.b16 %v415
        %v1173 = vunpack.c.l.b16 %v416
        %v1174 = vunpack.c.h.b16 %v416
        %v1175 = vunpack.c.l.b16 %v417
        %v1176 = vunpack.c.h.b16 %v417
        %v1177 = vunpack.c.l.b16 %v418
        %v1178 = vunpack.c.h.b16 %v418
        %v1179 = vunpack.c.l.b16 %v419
        %v1180 = vunpack.c.h.b16 %v419
        %v1181 = vunpack.c.l.b16 %v420
        %v1182 = vunpack.c.h.b16 %v420
        %v1183 = vunpack.c.l.b16 %v421
        %v1184 = vunpack.c.h.b16 %v421
        %v1185 = vunpack.c.l.b16 %v422
        %v1186 = vunpack.c.h.b16 %v422
        %v1187 = vunpack.c.l.b16 %v423
        %v1188 = vunpack.c.h.b16 %v423
        %v1189 = vunpack.c.l.b16 %v424
        %v1190 = vunpack.c.h.b16 %v424
        %v1191 = vunpack.c.l.b16 %v425
        %v1192 = vunpack.c.h.b16 %v425
        %v1193 = vunpack.c.l.b16 %v426
        %v1194 = vunpack.c.h.b16 %v426
        %v1195 = vunpack.c.l.b16 %v427
        %v1196 = vunpack.c.h.b16 %v427
        %v1197 = vunpack.c.l.b16 %v428
        %v1198 = vunpack.c.h.b16 %v428
        %v1199 = vunpack.c.l.b16 %v429
        %v1200 = vunpack.c.h.b16 %v429
        %v1201 = vunpack.c.l.b16 %v430
        %v1202 = vunpack.c.h.b16 %v430
        %v1203 = vunpack.c.l.b16 %v431
        %v1204 = vunpack.c.h.b16 %v431
        %v1205 = vunpack.c.l.b16 %v432
        %v1206 = vunpack.c.h.b16 %v432
        %v1207 = vunpack.c.l.b16 %v433
        %v1208 = vunpack.c.h.b16 %v433
        %v1209 = vunpack.c.l.b16 %v434
        %v1210 = vunpack.c.h.b16 %v434
        %v1211 = vunpack.c.l.b16 %v435
        %v1212 = vunpack.c.h.b16 %v435
        %v1213 = vunpack.c.l.b16 %v436
        %v1214 = vunpack.c.h.b16 %v436
        %v1215 = vpack.c.b16 %v719, %v703
        %v1216 = vpack.c.b16 %v720, %v704
        %v1217 = vpack.c.b16 %v721, %v705
        %v1218 = vpack.c.b16 %v722, %v706
        %v1219 = vpack.c.b16 %v723, %v707
        %v1220 = vpack.c.b16 %v724, %v708
        %v1221 = vpack.c.b16 %v725, %v709
        %v1222 = vpack.c.b16 %v726, %v710
        %v1223 = vpack.c.b16 %v727, %v711
        %v1224 = vpack.c.b16 %v728, %v712
        %v1225 = vpack.c.b16 %v729, %v713
        %v1226 = vpack.c.b16 %v730, %v714
        %v1227 = vpack.c.b16 %v731, %v715
        %v1228 = vpack.c.b16 %v732, %v716
        %v1229 = vpack.c.b16 %v733, %v717
        %v1230 = vpack.c.b16 %v734, %v718
        %v1231 = vpack.c.b16 %v751, %v735
        %v1232 = vpack.c.b16 %v752, %v736
        %v1233 = vpack.c.b16 %v753, %v737
        %v1234 = vpack.c.b16 %v754, %v738
        %v1235 = vpack.c.b16 %v755, %v739
        %v1236 = vpack.c.b16 %v756, %v740
        %v1237 = vpack.c.b16 %v757, %v741
        %v1238 = vpack.c.b16 %v758, %v742
        %v1239 = vpack.c.b16 %v759, %v743
        %v1240 = vpack.c.b16 %v760, %v744
        %v1241 = vpack.c.b16 %v761, %v745
        %v1242 = vpack.c.b16 %v762, %v746
        %v1243 = vpack.c.b16 %v763, %v747
        %v1244 = vpack.c.b16 %v764, %v748
        %v1245 = vpack.c.b16 %v765, %v749
        %v1246 = vpack.c.b16 %v766, %v750
        %v1247 = vpack.c.b16 %v783, %v767
        %v1248 = vpack.c.b16 %v784, %v768
        %v1249 = vpack.c.b16 %v785, %v769
        %v1250 = vpack.c.b16 %v786, %v770
        %v1251 = vpack.c.b16 %v787, %v771
        %v1252 = vpack.c.b16 %v788, %v772
        %v1253 = vpack.c.b16 %v789, %v773
        %v1254 = vpack.c.b16 %v790, %v774
        %v1255 = vpack.c.b16 %v791, %v775
        %v1256 = vpack.c.b16 %v792, %v776
        %v1257 = vpack.c.b16 %v793, %v777
        %v1258 = vpack.c.b16 %v794, %v778
        %v1259 = vpack.c.b16 %v795, %v779
        %v1260 = vpack.c.b16 %v796, %v780
        %v1261 = vpack.c.b16 %v797, %v781
        %v1262 = vpack.c.b16 %v798, %v782
        %v1263 = vpack.c.b16 %v815, %v799
        %v1264 = vpack.c.b16 %v816, %v800
        %v1265 = vpack.c.b16 %v817, %v801
        %v1266 = vpack.c.b16 %v818, %v802
        %v1267 = vpack.c.b16 %v819, %v803
        %v1268 = vpack.c.b16 %v820, %v804
        %v1269 = vpack.c.b16 %v821, %v805
        %v1270 = vpack.c.b16 %v822, %v806
        %v1271 = vpack.c.b16 %v823, %v807
        %v1272 = vpack.c.b16 %v824, %v808
        %v1273 = vpack.c.b16 %v825, %v809
        %v1274 = vpack.c.b16 %v826, %v810
        %v1275 = vpack.c.b16 %v827, %v811
        %v1276 = vpack.c.b16 %v828, %v812
        %v1277 = vpack.c.b16 %v829, %v813
        %v1278 = vpack.c.b16 %v830, %v814
        %v1279 = vpack.c.b16 %v847, %v831
        %v1280 = vpack.c.b16 %v848, %v832
        %v1281 = vpack.c.b16 %v849, %v833
        %v1282 = vpack.c.b16 %v850, %v834
        %v1283 = vpack.c.b16 %v851, %v835
        %v1284 = vpack.c.b16 %v852, %v836
        %v1285 = vpack.c.b16 %v853, %v837
        %v1286 = vpack.c.b16 %v854, %v838
        %v1287 = vpack.c.b16 %v855, %v839
        %v1288 = vpack.c.b16 %v856, %v840
        %v1289 = vpack.c.b16 %v857, %v841
        %v1290 = vpack.c.b16 %v858, %v842
        %v1291 = vpack.c.b16 %v859, %v843
        %v1292 = vpack.c.b16 %v860, %v844
        %v1293 = vpack.c.b16 %v861, %v845
        %v1294 = vpack.c.b16 %v862, %v846
        %v1295 = vpack.c.b16 %v879, %v863
        %v1296 = vpack.c.b16 %v880, %v864
        %v1297 = vpack.c.b16 %v881, %v865
        %v1298 = vpack.c.b16 %v882, %v866
        %v1299 = vpack.c.b16 %v883, %v867
        %v1300 = vpack.c.b16 %v884, %v868
        %v1301 = vpack.c.b16 %v885, %v869
        %v1302 = vpack.c.b16 %v886, %v870
        %v1303 = vpack.c.b16 %v887, %v871
        %v1304 = vpack.c.b16 %v888, %v872
        %v1305 = vpack.c.b16 %v889, %v873
        %v1306 = vpack.c.b16 %v890, %v874
        %v1307 = vpack.c.b16 %v891, %v875
        %v1308 = vpack.c.b16 %v892, %v876
        %v1309 = vpack.c.b16 %v893, %v877
        %v1310 = vpack.c.b16 %v894, %v878
        %v1311 = vpack.c.b16 %v911, %v895
        %v1312 = vpack.c.b16 %v912, %v896
        %v1313 = vpack.c.b16 %v913, %v897
        %v1314 = vpack.c.b16 %v914, %v898
        %v1315 = vpack.c.b16 %v915, %v899
        %v1316 = vpack.c.b16 %v916, %v900
        %v1317 = vpack.c.b16 %v917, %v901
        %v1318 = vpack.c.b16 %v918, %v902
        %v1319 = vpack.c.b16 %v919, %v903
        %v1320 = vpack.c.b16 %v920, %v904
        %v1321 = vpack.c.b16 %v921, %v905
        %v1322 = vpack.c.b16 %v922, %v906
        %v1323 = vpack.c.b16 %v923, %v907
        %v1324 = vpack.c.b16 %v924, %v908
        %v1325 = vpack.c.b16 %v925, %v909
        %v1326 = vpack.c.b16 %v926, %v910
        %v1327 = vpack.c.b16 %v943, %v927
        %v1328 = vpack.c.b16 %v944, %v928
        %v1329 = vpack.c.b16 %v945, %v929
        %v1330 = vpack.c.b16 %v946, %v930
        %v1331 = vpack.c.b16 %v947, %v931
        %v1332 = vpack.c.b16 %v948, %v932
        %v1333 = vpack.c.b16 %v949, %v933
        %v1334 = vpack.c.b16 %v950, %v934
        %v1335 = vpack.c.b16 %v951, %v935
        %v1336 = vpack.c.b16 %v952, %v936
        %v1337 = vpack.c.b16 %v953, %v937
        %v1338 = vpack.c.b16 %v954, %v938
        %v1339 = vpack.c.b16 %v955, %v939
        %v1340 = vpack.c.b16 %v956, %v940
        %v1341 = vpack.c.b16 %v957, %v941
        %v1342 = vpack.c.b16 %v958, %v942
        %v1343 = vpack.c.b16 %v975, %v959
        %v1344 = vpack.c.b16 %v976, %v960
        %v1345 = vpack.c.b16 %v977, %v961
        %v1346 = vpack.c.b16 %v978, %v962
        %v1347 = vpack.c.b16 %v979, %v963
        %v1348 = vpack.c.b16 %v980, %v964
        %v1349 = vpack.c.b16 %v981, %v965
        %v1350 = vpack.c.b16 %v982, %v966
        %v1351 = vpack.c.b16 %v983, %v967
        %v1352 = vpack.c.b16 %v984, %v968
        %v1353 = vpack.c.b16 %v985, %v969
        %v1354 = vpack.c.b16 %v986, %v970
        %v1355 = vpack.c.b16 %v987, %v971
        %v1356 = vpack.c.b16 %v988, %v972
        %v1357 = vpack.c.b16 %v989, %v973
        %v1358 = vpack.c.b16 %v990, %v974
        %v1359 = vpack.c.b16 %v1007, %v991
        %v1360 = vpack.c.b16 %v1008, %v992
        %v1361 = vpack.c.b16 %v1009, %v993
        %v1362 = vpack.c.b16 %v1010, %v994
        %v1363 = vpack.c.b16 %v1011, %v995
        %v1364 = vpack.c.b16 %v1012, %v996
        %v1365 = vpack.c.b16 %v1013, %v997
        %v1366 = vpack.c.b16 %v1014, %v998
        %v1367 = vpack.c.b16 %v1015, %v999
        %v1368 = vpack.c.b16 %v1016, %v1000
        %v1369 = vpack.c.b16 %v1017, %v1001
        %v1370 = vpack.c.b16 %v1018, %v1002
        %v1371 = vpack.c.b16 %v1019, %v1003
        %v1372 = vpack.c.b16 %v1020, %v1004
        %v1373 = vpack.c.b16 %v1021, %v1005
        %v1374 = vpack.c.b16 %v1022, %v1006
        %v1375 = vpack.c.b16 %v1039, %v1023
        %v1376 = vpack.c.b16 %v1040, %v1024
        %v1377 = vpack.c.b16 %v1041, %v1025
        %v1378 = vpack.c.b16 %v1042, %v1026
        %v1379 = vpack.c.b16 %v1043, %v1027
        %v1380 = vpack.c.b16 %v1044, %v1028
        %v1381 = vpack.c.b16 %v1045, %v1029
        %v1382 = vpack.c.b16 %v1046, %v1030
        %v1383 = vpack.c.b16 %v1047, %v1031
        %v1384 = vpack.c.b16 %v1048, %v1032
        %v1385 = vpack.c.b16 %v1049, %v1033
        %v1386 = vpack.c.b16 %v1050, %v1034
        %v1387 = vpack.c.b16 %v1051, %v1035
        %v1388 = vpack.c.b16 %v1052, %v1036
        %v1389 = vpack.c.b16 %v1053, %v1037
        %v1390 = vpack.c.b16 %v1054, %v1038
        %v1391 = vpack.c.b16 %v1071, %v1055
        %v1392 = vpack.c.b16 %v1072, %v1056
        %v1393 = vpack.c.b16 %v1073, %v1057
        %v1394 = vpack.c.b16 %v1074, %v1058
        %v1395 = vpack.c.b16 %v1075, %v1059
        %v1396 = vpack.c.b16 %v1076, %v1060
        %v1397 = vpack.c.b16 %v1077, %v1061
        %v1398 = vpack.c.b16 %v1078, %v1062
        %v1399 = vpack.c.b16 %v1079, %v1063
        %v1400 = vpack.c.b16 %v1080, %v1064
        %v1401 = vpack.c.b16 %v1081, %v1065
        %v1402 = vpack.c.b16 %v1082, %v1066
        %v1403 = vpack.c.b16 %v1083, %v1067
        %v1404 = vpack.c.b16 %v1084, %v1068
        %v1405 = vpack.c.b16 %v1085, %v1069
        %v1406 = vpack.c.b16 %v1086, %v1070
        %v1407 = vpack.c.b16 %v1103, %v1087
        %v1408 = vpack.c.b16 %v1104, %v1088
        %v1409 = vpack.c.b16 %v1105, %v1089
        %v1410 = vpack.c.b16 %v1106, %v1090
        %v1411 = vpack.c.b16 %v1107, %v1091
        %v1412 = vpack.c.b16 %v1108, %v1092
        %v1413 = vpack.c.b16 %v1109, %v1093
        %v1414 = vpack.c.b16 %v1110, %v1094
        %v1415 = vpack.c.b16 %v1111, %v1095
        %v1416 = vpack.c.b16 %v1112, %v1096
        %v1417 = vpack.c.b16 %v1113, %v1097
        %v1418 = vpack.c.b16 %v1114, %v1098
        %v1419 = vpack.c.b16 %v1115, %v1099
        %v1420 = vpack.c.b16 %v1116, %v1100
        %v1421 = vpack.c.b16 %v1117, %v1101
        %v1422 = vpack.c.b16 %v1118, %v1102
        %v1423 = vpack.c.b16 %v1135, %v1119
        %v1424 = vpack.c.b16 %v1136, %v1120
        %v1425 = vpack.c.b16 %v1137, %v1121
        %v1426 = vpack.c.b16 %v1138, %v1122
        %v1427 = vpack.c.b16 %v1139, %v1123
        %v1428 = vpack.c.b16 %v1140, %v1124
        %v1429 = vpack.c.b16 %v1141, %v1125
        %v1430 = vpack.c.b16 %v1142, %v1126
        %v1431 = vpack.c.b16 %v1143, %v1127
        %v1432 = vpack.c.b16 %v1144, %v1128
        %v1433 = vpack.c.b16 %v1145, %v1129
        %v1434 = vpack.c.b16 %v1146, %v1130
        %v1435 = vpack.c.b16 %v1147, %v1131
        %v1436 = vpack.c.b16 %v1148, %v1132
        %v1437 = vpack.c.b16 %v1149, %v1133
        %v1438 = vpack.c.b16 %v1150, %v1134
        %v1439 = vpack.c.b16 %v1167, %v1151
        %v1440 = vpack.c.b16 %v1168, %v1152
        %v1441 = vpack.c.b16 %v1169, %v1153
        %v1442 = vpack.c.b16 %v1170, %v1154
        %v1443 = vpack.c.b16 %v1171, %v1155
        %v1444 = vpack.c.b16 %v1172, %v1156
        %v1445 = vpack.c.b16 %v1173, %v1157
        %v1446 = vpack.c.b16 %v1174, %v1158
        %v1447 = vpack.c.b16 %v1175, %v1159
        %v1448 = vpack.c.b16 %v1176, %v1160
        %v1449 = vpack.c.b16 %v1177, %v1161
        %v1450 = vpack.c.b16 %v1178, %v1162
        %v1451 = vpack.c.b16 %v1179, %v1163
        %v1452 = vpack.c.b16 %v1180, %v1164
        %v1453 = vpack.c.b16 %v1181, %v1165
        %v1454 = vpack.c.b16 %v1182, %v1166
        %v1455 = vpack.c.b16 %v1199, %v1183
        %v1456 = vpack.c.b16 %v1200, %v1184
        %v1457 = vpack.c.b16 %v1201, %v1185
        %v1458 = vpack.c.b16 %v1202, %v1186
        %v1459 = vpack.c.b16 %v1203, %v1187
        %v1460 = vpack.c.b16 %v1204, %v1188
        %v1461 = vpack.c.b16 %v1205, %v1189
        %v1462 = vpack.c.b16 %v1206, %v1190
        %v1463 = vpack.c.b16 %v1207, %v1191
        %v1464 = vpack.c.b16 %v1208, %v1192
        %v1465 = vpack.c.b16 %v1209, %v1193
        %v1466 = vpack.c.b16 %v1210, %v1194
        %v1467 = vpack.c.b16 %v1211, %v1195
        %v1468 = vpack.c.b16 %v1212, %v1196
        %v1469 = vpack.c.b16 %v1213, %v1197
        %v1470 = vpack.c.b16 %v1214, %v1198
        %1727 = vmatprep.subr.bf16.mxu0 %v1216
        %1728 = vmatpush1.bf16.msra.mxu0 %v1215
        %1729 = vmatprep.subr.bf16.mxu0 %v1232
        %1730 = vmatpush1.bf16.msra.mxu0 %v1231
        %1731 = vmatprep.subr.bf16.mxu0 %v1248
        %1732 = vmatpush1.bf16.msra.mxu0 %v1247
        %1733 = vmatprep.subr.bf16.mxu0 %v1264
        %1734 = vmatpush1.bf16.msra.mxu0 %v1263
        %1735 = vmatprep.subr.bf16.mxu0 %v1280
        %1736 = vmatpush1.bf16.msra.mxu0 %v1279
        %1737 = vmatprep.subr.bf16.mxu0 %v1296
        %1738 = vmatpush1.bf16.msra.mxu0 %v1295
        %1739 = vmatprep.subr.bf16.mxu0 %v1312
        %1740 = vmatpush1.bf16.msra.mxu0 %v1311
        %1741 = vmatprep.subr.bf16.mxu0 %v1328
        %1742 = vmatpush1.bf16.msra.mxu0 %v1327
        %1743 = vmatprep.subr.bf16.mxu0 %v1344
        %1744 = vmatpush1.bf16.msra.mxu0 %v1343
        %1745 = vmatprep.subr.bf16.mxu0 %v1360
        %1746 = vmatpush1.bf16.msra.mxu0 %v1359
        %1747 = vmatprep.subr.bf16.mxu0 %v1376
        %1748 = vmatpush1.bf16.msra.mxu0 %v1375
        %1749 = vmatprep.subr.bf16.mxu0 %v1392
        %1750 = vmatpush1.bf16.msra.mxu0 %v1391
        %1751 = vmatprep.subr.bf16.mxu0 %v1408
        %1752 = vmatpush1.bf16.msra.mxu0 %v1407
        %1753 = vmatprep.subr.bf16.mxu0 %v1424
        %1754 = vmatpush1.bf16.msra.mxu0 %v1423
        %1755 = vmatprep.subr.bf16.mxu0 %v1440
        %1756 = vmatpush1.bf16.msra.mxu0 %v1439
        %1757 = vmatprep.subr.bf16.mxu0 %v1456
        %1758 = vmatpush1.bf16.msra.mxu0 %v1455
        %1759 = vmatprep.mubr.bf16.mxu0 %v444
        %1760 = vmatmul.mubr.bf16.gmra.mrb[0].mxu0 %v443
        %v1761 = vpop.f32.mrb[0].mxu0
        %v1762 = vadd.f32 0.0, %v1761
        %v1763 = vpop.f32.mrb[0].mxu0
        %v1764 = vadd.f32 0.0, %v1763
        %v1765 = vpop.f32.mrb[0].mxu0
        %v1766 = vadd.f32 0.0, %v1765
        %v1767 = vpop.f32.mrb[0].mxu0
        %v1768 = vadd.f32 0.0, %v1767
        %1769 = vdwg.mxu0
        %1770 = vmatprep.subr.bf16.mxu0 %v1218
        %1771 = vmatpush1.bf16.msra.mxu0 %v1217
        %1772 = vmatprep.subr.bf16.mxu0 %v1234
        %1773 = vmatpush1.bf16.msra.mxu0 %v1233
        %1774 = vmatprep.subr.bf16.mxu0 %v1250
        %1775 = vmatpush1.bf16.msra.mxu0 %v1249
        %1776 = vmatprep.subr.bf16.mxu0 %v1266
        %1777 = vmatpush1.bf16.msra.mxu0 %v1265
        %1778 = vmatprep.subr.bf16.mxu0 %v1282
        %1779 = vmatpush1.bf16.msra.mxu0 %v1281
        %1780 = vmatprep.subr.bf16.mxu0 %v1298
        %1781 = vmatpush1.bf16.msra.mxu0 %v1297
        %1782 = vmatprep.subr.bf16.mxu0 %v1314
        %1783 = vmatpush1.bf16.msra.mxu0 %v1313
        %1784 = vmatprep.subr.bf16.mxu0 %v1330
        %1785 = vmatpush1.bf16.msra.mxu0 %v1329
        %1786 = vmatprep.subr.bf16.mxu0 %v1346
        %1787 = vmatpush1.bf16.msra.mxu0 %v1345
        %1788 = vmatprep.subr.bf16.mxu0 %v1362
        %1789 = vmatpush1.bf16.msra.mxu0 %v1361
        %1790 = vmatprep.subr.bf16.mxu0 %v1378
        %1791 = vmatpush1.bf16.msra.mxu0 %v1377
        %1792 = vmatprep.subr.bf16.mxu0 %v1394
        %1793 = vmatpush1.bf16.msra.mxu0 %v1393
        %1794 = vmatprep.subr.bf16.mxu0 %v1410
        %1795 = vmatpush1.bf16.msra.mxu0 %v1409
        %1796 = vmatprep.subr.bf16.mxu0 %v1426
        %1797 = vmatpush1.bf16.msra.mxu0 %v1425
        %1798 = vmatprep.subr.bf16.mxu0 %v1442
        %1799 = vmatpush1.bf16.msra.mxu0 %v1441
        %1800 = vmatprep.subr.bf16.mxu0 %v1458
        %1801 = vmatpush1.bf16.msra.mxu0 %v1457
        %1802 = vmatprep.mubr.bf16.mxu0 %v444
        %1803 = vmatmul.mubr.bf16.gmra.mrb[0].mxu0 %v443
        %v1804 = vpop.f32.mrb[0].mxu0
        %v1805 = vadd.f32 0.0, %v1804
        %v1806 = vpop.f32.mrb[0].mxu0
        %v1807 = vadd.f32 0.0, %v1806
        %v1808 = vpop.f32.mrb[0].mxu0
        %v1809 = vadd.f32 0.0, %v1808
        %v1810 = vpop.f32.mrb[0].mxu0
        %v1811 = vadd.f32 0.0, %v1810
        %1812 = vdwg.mxu0
        %1813 = vmatprep.subr.bf16.mxu0 %v1220
        %1814 = vmatpush1.bf16.msra.mxu0 %v1219
        %1815 = vmatprep.subr.bf16.mxu0 %v1236
        %1816 = vmatpush1.bf16.msra.mxu0 %v1235
        %1817 = vmatprep.subr.bf16.mxu0 %v1252
        %1818 = vmatpush1.bf16.msra.mxu0 %v1251
        %1819 = vmatprep.subr.bf16.mxu0 %v1268
        %1820 = vmatpush1.bf16.msra.mxu0 %v1267
        %1821 = vmatprep.subr.bf16.mxu0 %v1284
        %1822 = vmatpush1.bf16.msra.mxu0 %v1283
        %1823 = vmatprep.subr.bf16.mxu0 %v1300
        %1824 = vmatpush1.bf16.msra.mxu0 %v1299
        %1825 = vmatprep.subr.bf16.mxu0 %v1316
        %1826 = vmatpush1.bf16.msra.mxu0 %v1315
        %1827 = vmatprep.subr.bf16.mxu0 %v1332
        %1828 = vmatpush1.bf16.msra.mxu0 %v1331
        %1829 = vmatprep.subr.bf16.mxu0 %v1348
        %1830 = vmatpush1.bf16.msra.mxu0 %v1347
        %1831 = vmatprep.subr.bf16.mxu0 %v1364
        %1832 = vmatpush1.bf16.msra.mxu0 %v1363
        %1833 = vmatprep.subr.bf16.mxu0 %v1380
        %1834 = vmatpush1.bf16.msra.mxu0 %v1379
        %1835 = vmatprep.subr.bf16.mxu0 %v1396
        %1836 = vmatpush1.bf16.msra.mxu0 %v1395
        %1837 = vmatprep.subr.bf16.mxu0 %v1412
        %1838 = vmatpush1.bf16.msra.mxu0 %v1411
        %1839 = vmatprep.subr.bf16.mxu0 %v1428
        %1840 = vmatpush1.bf16.msra.mxu0 %v1427
        %1841 = vmatprep.subr.bf16.mxu0 %v1444
        %1842 = vmatpush1.bf16.msra.mxu0 %v1443
        %1843 = vmatprep.subr.bf16.mxu0 %v1460
        %1844 = vmatpush1.bf16.msra.mxu0 %v1459
        %1845 = vmatprep.mubr.bf16.mxu0 %v444
        %1846 = vmatmul.mubr.bf16.gmra.mrb[0].mxu0 %v443
        %v1847 = vpop.f32.mrb[0].mxu0
        %v1848 = vadd.f32 0.0, %v1847
        %v1849 = vpop.f32.mrb[0].mxu0
        %v1850 = vadd.f32 0.0, %v1849
        %v1851 = vpop.f32.mrb[0].mxu0
        %v1852 = vadd.f32 0.0, %v1851
        %v1853 = vpop.f32.mrb[0].mxu0
        %v1854 = vadd.f32 0.0, %v1853
        %1855 = vdwg.mxu0
        %1856 = vmatprep.subr.bf16.mxu0 %v1222
        %1857 = vmatpush1.bf16.msra.mxu0 %v1221
        %1858 = vmatprep.subr.bf16.mxu0 %v1238
        %1859 = vmatpush1.bf16.msra.mxu0 %v1237
        %1860 = vmatprep.subr.bf16.mxu0 %v1254
        %1861 = vmatpush1.bf16.msra.mxu0 %v1253
        %1862 = vmatprep.subr.bf16.mxu0 %v1270
        %1863 = vmatpush1.bf16.msra.mxu0 %v1269
        %1864 = vmatprep.subr.bf16.mxu0 %v1286
        %1865 = vmatpush1.bf16.msra.mxu0 %v1285
        %1866 = vmatprep.subr.bf16.mxu0 %v1302
        %1867 = vmatpush1.bf16.msra.mxu0 %v1301
        %1868 = vmatprep.subr.bf16.mxu0 %v1318
        %1869 = vmatpush1.bf16.msra.mxu0 %v1317
        %1870 = vmatprep.subr.bf16.mxu0 %v1334
        %1871 = vmatpush1.bf16.msra.mxu0 %v1333
        %1872 = vmatprep.subr.bf16.mxu0 %v1350
        %1873 = vmatpush1.bf16.msra.mxu0 %v1349
        %1874 = vmatprep.subr.bf16.mxu0 %v1366
        %1875 = vmatpush1.bf16.msra.mxu0 %v1365
        %1876 = vmatprep.subr.bf16.mxu0 %v1382
        %1877 = vmatpush1.bf16.msra.mxu0 %v1381
        %1878 = vmatprep.subr.bf16.mxu0 %v1398
        %1879 = vmatpush1.bf16.msra.mxu0 %v1397
        %1880 = vmatprep.subr.bf16.mxu0 %v1414
        %1881 = vmatpush1.bf16.msra.mxu0 %v1413
        %1882 = vmatprep.subr.bf16.mxu0 %v1430
        %1883 = vmatpush1.bf16.msra.mxu0 %v1429
        %1884 = vmatprep.subr.bf16.mxu0 %v1446
        %1885 = vmatpush1.bf16.msra.mxu0 %v1445
        %1886 = vmatprep.subr.bf16.mxu0 %v1462
        %1887 = vmatpush1.bf16.msra.mxu0 %v1461
        %1888 = vmatprep.mubr.bf16.mxu0 %v444
        %1889 = vmatmul.mubr.bf16.gmra.mrb[0].mxu0 %v443
        %v1890 = vpop.f32.mrb[0].mxu0
        %v1891 = vadd.f32 0.0, %v1890
        %v1892 = vpop.f32.mrb[0].mxu0
        %v1893 = vadd.f32 0.0, %v1892
        %v1894 = vpop.f32.mrb[0].mxu0
        %v1895 = vadd.f32 0.0, %v1894
        %v1896 = vpop.f32.mrb[0].mxu0
        %v1897 = vadd.f32 0.0, %v1896
        %1898 = vdwg.mxu0
        %1899 = vmatprep.subr.bf16.mxu0 %v1224
        %1900 = vmatpush1.bf16.msra.mxu0 %v1223
        %1901 = vmatprep.subr.bf16.mxu0 %v1240
        %1902 = vmatpush1.bf16.msra.mxu0 %v1239
        %1903 = vmatprep.subr.bf16.mxu0 %v1256
        %1904 = vmatpush1.bf16.msra.mxu0 %v1255
        %1905 = vmatprep.subr.bf16.mxu0 %v1272
        %1906 = vmatpush1.bf16.msra.mxu0 %v1271
        %1907 = vmatprep.subr.bf16.mxu0 %v1288
        %1908 = vmatpush1.bf16.msra.mxu0 %v1287
        %1909 = vmatprep.subr.bf16.mxu0 %v1304
        %1910 = vmatpush1.bf16.msra.mxu0 %v1303
        %1911 = vmatprep.subr.bf16.mxu0 %v1320
        %1912 = vmatpush1.bf16.msra.mxu0 %v1319
        %1913 = vmatprep.subr.bf16.mxu0 %v1336
        %1914 = vmatpush1.bf16.msra.mxu0 %v1335
        %1915 = vmatprep.subr.bf16.mxu0 %v1352
        %1916 = vmatpush1.bf16.msra.mxu0 %v1351
        %1917 = vmatprep.subr.bf16.mxu0 %v1368
        %1918 = vmatpush1.bf16.msra.mxu0 %v1367
        %1919 = vmatprep.subr.bf16.mxu0 %v1384
        %1920 = vmatpush1.bf16.msra.mxu0 %v1383
        %1921 = vmatprep.subr.bf16.mxu0 %v1400
        %1922 = vmatpush1.bf16.msra.mxu0 %v1399
        %1923 = vmatprep.subr.bf16.mxu0 %v1416
        %1924 = vmatpush1.bf16.msra.mxu0 %v1415
        %1925 = vmatprep.subr.bf16.mxu0 %v1432
        %1926 = vmatpush1.bf16.msra.mxu0 %v1431
        %1927 = vmatprep.subr.bf16.mxu0 %v1448
        %1928 = vmatpush1.bf16.msra.mxu0 %v1447
        %1929 = vmatprep.subr.bf16.mxu0 %v1464
        %1930 = vmatpush1.bf16.msra.mxu0 %v1463
        %1931 = vmatprep.mubr.bf16.mxu0 %v444
        %1932 = vmatmul.mubr.bf16.gmra.mrb[0].mxu0 %v443
        %v1933 = vpop.f32.mrb[0].mxu0
        %v1934 = vadd.f32 0.0, %v1933
        %v1935 = vpop.f32.mrb[0].mxu0
        %v1936 = vadd.f32 0.0, %v1935
        %v1937 = vpop.f32.mrb[0].mxu0
        %v1938 = vadd.f32 0.0, %v1937
        %v1939 = vpop.f32.mrb[0].mxu0
        %v1940 = vadd.f32 0.0, %v1939
        %1941 = vdwg.mxu0
        %1942 = vmatprep.subr.bf16.mxu0 %v1226
        %1943 = vmatpush1.bf16.msra.mxu0 %v1225
        %1944 = vmatprep.subr.bf16.mxu0 %v1242
        %1945 = vmatpush1.bf16.msra.mxu0 %v1241
        %1946 = vmatprep.subr.bf16.mxu0 %v1258
        %1947 = vmatpush1.bf16.msra.mxu0 %v1257
        %1948 = vmatprep.subr.bf16.mxu0 %v1274
        %1949 = vmatpush1.bf16.msra.mxu0 %v1273
        %1950 = vmatprep.subr.bf16.mxu0 %v1290
        %1951 = vmatpush1.bf16.msra.mxu0 %v1289
        %1952 = vmatprep.subr.bf16.mxu0 %v1306
        %1953 = vmatpush1.bf16.msra.mxu0 %v1305
        %1954 = vmatprep.subr.bf16.mxu0 %v1322
        %1955 = vmatpush1.bf16.msra.mxu0 %v1321
        %1956 = vmatprep.subr.bf16.mxu0 %v1338
        %1957 = vmatpush1.bf16.msra.mxu0 %v1337
        %1958 = vmatprep.subr.bf16.mxu0 %v1354
        %1959 = vmatpush1.bf16.msra.mxu0 %v1353
        %1960 = vmatprep.subr.bf16.mxu0 %v1370
        %1961 = vmatpush1.bf16.msra.mxu0 %v1369
        %1962 = vmatprep.subr.bf16.mxu0 %v1386
        %1963 = vmatpush1.bf16.msra.mxu0 %v1385
        %1964 = vmatprep.subr.bf16.mxu0 %v1402
        %1965 = vmatpush1.bf16.msra.mxu0 %v1401
        %1966 = vmatprep.subr.bf16.mxu0 %v1418
        %1967 = vmatpush1.bf16.msra.mxu0 %v1417
        %1968 = vmatprep.subr.bf16.mxu0 %v1434
        %1969 = vmatpush1.bf16.msra.mxu0 %v1433
        %1970 = vmatprep.subr.bf16.mxu0 %v1450
        %1971 = vmatpush1.bf16.msra.mxu0 %v1449
        %1972 = vmatprep.subr.bf16.mxu0 %v1466
        %1973 = vmatpush1.bf16.msra.mxu0 %v1465
        %1974 = vmatprep.mubr.bf16.mxu0 %v444
        %1975 = vmatmul.mubr.bf16.gmra.mrb[0].mxu0 %v443
        %v1976 = vpop.f32.mrb[0].mxu0
        %v1977 = vadd.f32 0.0, %v1976
        %v1978 = vpop.f32.mrb[0].mxu0
        %v1979 = vadd.f32 0.0, %v1978
        %v1980 = vpop.f32.mrb[0].mxu0
        %v1981 = vadd.f32 0.0, %v1980
        %v1982 = vpop.f32.mrb[0].mxu0
        %v1983 = vadd.f32 0.0, %v1982
        %1984 = vdwg.mxu0
        %1985 = vmatprep.subr.bf16.mxu0 %v1228
        %1986 = vmatpush1.bf16.msra.mxu0 %v1227
        %1987 = vmatprep.subr.bf16.mxu0 %v1244
        %1988 = vmatpush1.bf16.msra.mxu0 %v1243
        %1989 = vmatprep.subr.bf16.mxu0 %v1260
        %1990 = vmatpush1.bf16.msra.mxu0 %v1259
        %1991 = vmatprep.subr.bf16.mxu0 %v1276
        %1992 = vmatpush1.bf16.msra.mxu0 %v1275
        %1993 = vmatprep.subr.bf16.mxu0 %v1292
        %1994 = vmatpush1.bf16.msra.mxu0 %v1291
        %1995 = vmatprep.subr.bf16.mxu0 %v1308
        %1996 = vmatpush1.bf16.msra.mxu0 %v1307
        %1997 = vmatprep.subr.bf16.mxu0 %v1324
        %1998 = vmatpush1.bf16.msra.mxu0 %v1323
        %1999 = vmatprep.subr.bf16.mxu0 %v1340
        %2000 = vmatpush1.bf16.msra.mxu0 %v1339
        %2001 = vmatprep.subr.bf16.mxu0 %v1356
        %2002 = vmatpush1.bf16.msra.mxu0 %v1355
        %2003 = vmatprep.subr.bf16.mxu0 %v1372
        %2004 = vmatpush1.bf16.msra.mxu0 %v1371
        %2005 = vmatprep.subr.bf16.mxu0 %v1388
        %2006 = vmatpush1.bf16.msra.mxu0 %v1387
        %2007 = vmatprep.subr.bf16.mxu0 %v1404
        %2008 = vmatpush1.bf16.msra.mxu0 %v1403
        %2009 = vmatprep.subr.bf16.mxu0 %v1420
        %2010 = vmatpush1.bf16.msra.mxu0 %v1419
        %2011 = vmatprep.subr.bf16.mxu0 %v1436
        %2012 = vmatpush1.bf16.msra.mxu0 %v1435
        %2013 = vmatprep.subr.bf16.mxu0 %v1452
        %2014 = vmatpush1.bf16.msra.mxu0 %v1451
        %2015 = vmatprep.subr.bf16.mxu0 %v1468
        %2016 = vmatpush1.bf16.msra.mxu0 %v1467
        %2017 = vmatprep.mubr.bf16.mxu0 %v444
        %2018 = vmatmul.mubr.bf16.gmra.mrb[0].mxu0 %v443
        %v2019 = vpop.f32.mrb[0].mxu0
        %v2020 = vadd.f32 0.0, %v2019
        %v2021 = vpop.f32.mrb[0].mxu0
        %v2022 = vadd.f32 0.0, %v2021
        %v2023 = vpop.f32.mrb[0].mxu0
        %v2024 = vadd.f32 0.0, %v2023
        %v2025 = vpop.f32.mrb[0].mxu0
        %v2026 = vadd.f32 0.0, %v2025
        %2027 = vdwg.mxu0
        %2028 = vmatprep.subr.bf16.mxu0 %v1230
        %2029 = vmatpush1.bf16.msra.mxu0 %v1229
        %2030 = vmatprep.subr.bf16.mxu0 %v1246
        %2031 = vmatpush1.bf16.msra.mxu0 %v1245
        %2032 = vmatprep.subr.bf16.mxu0 %v1262
        %2033 = vmatpush1.bf16.msra.mxu0 %v1261
        %2034 = vmatprep.subr.bf16.mxu0 %v1278
        %2035 = vmatpush1.bf16.msra.mxu0 %v1277
        %2036 = vmatprep.subr.bf16.mxu0 %v1294
        %2037 = vmatpush1.bf16.msra.mxu0 %v1293
        %2038 = vmatprep.subr.bf16.mxu0 %v1310
        %2039 = vmatpush1.bf16.msra.mxu0 %v1309
        %2040 = vmatprep.subr.bf16.mxu0 %v1326
        %2041 = vmatpush1.bf16.msra.mxu0 %v1325
        %2042 = vmatprep.subr.bf16.mxu0 %v1342
        %2043 = vmatpush1.bf16.msra.mxu0 %v1341
        %2044 = vmatprep.subr.bf16.mxu0 %v1358
        %2045 = vmatpush1.bf16.msra.mxu0 %v1357
        %2046 = vmatprep.subr.bf16.mxu0 %v1374
        %2047 = vmatpush1.bf16.msra.mxu0 %v1373
        %2048 = vmatprep.subr.bf16.mxu0 %v1390
        %2049 = vmatpush1.bf16.msra.mxu0 %v1389
        %2050 = vmatprep.subr.bf16.mxu0 %v1406
        %2051 = vmatpush1.bf16.msra.mxu0 %v1405
        %2052 = vmatprep.subr.bf16.mxu0 %v1422
        %2053 = vmatpush1.bf16.msra.mxu0 %v1421
        %2054 = vmatprep.subr.bf16.mxu0 %v1438
        %2055 = vmatpush1.bf16.msra.mxu0 %v1437
        %2056 = vmatprep.subr.bf16.mxu0 %v1454
        %2057 = vmatpush1.bf16.msra.mxu0 %v1453
        %2058 = vmatprep.subr.bf16.mxu0 %v1470
        %2059 = vmatpush1.bf16.msra.mxu0 %v1469
        %2060 = vmatprep.mubr.bf16.mxu0 %v444
        %2061 = vmatmul.mubr.bf16.gmra.mrb[0].mxu0 %v443
        %v2062 = vpop.f32.mrb[0].mxu0
        %v2063 = vadd.f32 0.0, %v2062
        %v2064 = vpop.f32.mrb[0].mxu0
        %v2065 = vadd.f32 0.0, %v2064
        %v2066 = vpop.f32.mrb[0].mxu0
        %v2067 = vadd.f32 0.0, %v2066
        %v2068 = vpop.f32.mrb[0].mxu0
        %v2069 = vadd.f32 0.0, %v2068
        %2070 = vdwg.mxu0
        %vm2071 = vcmp.ge.f32.partialorder %v1762, 0.0
        %vm2072 = vcmp.ge.f32.partialorder %v1764, 0.0
        %vm2073 = vcmp.ge.f32.partialorder %v1805, 0.0
        %vm2074 = vcmp.ge.f32.partialorder %v1807, 0.0
        %vm2075 = vcmp.ge.f32.partialorder %v1848, 0.0
        %vm2076 = vcmp.ge.f32.partialorder %v1850, 0.0
        %vm2077 = vcmp.ge.f32.partialorder %v1891, 0.0
        %vm2078 = vcmp.ge.f32.partialorder %v1893, 0.0
        %vm2079 = vcmp.ge.f32.partialorder %v1934, 0.0
        %vm2080 = vcmp.ge.f32.partialorder %v1936, 0.0
        %vm2081 = vcmp.ge.f32.partialorder %v1977, 0.0
        %vm2082 = vcmp.ge.f32.partialorder %v1979, 0.0
        %vm2083 = vcmp.ge.f32.partialorder %v2020, 0.0
        %vm2084 = vcmp.ge.f32.partialorder %v2022, 0.0
        %vm2085 = vcmp.ge.f32.partialorder %v2063, 0.0
        %vm2086 = vcmp.ge.f32.partialorder %v2065, 0.0
        %vm2087 = vcmp.ge.f32.partialorder %v1766, 0.0
        %vm2088 = vcmp.ge.f32.partialorder %v1768, 0.0
        %vm2089 = vcmp.ge.f32.partialorder %v1809, 0.0
        %vm2090 = vcmp.ge.f32.partialorder %v1811, 0.0
        %vm2091 = vcmp.ge.f32.partialorder %v1852, 0.0
        %vm2092 = vcmp.ge.f32.partialorder %v1854, 0.0
        %vm2093 = vcmp.ge.f32.partialorder %v1895, 0.0
        %vm2094 = vcmp.ge.f32.partialorder %v1897, 0.0
        %vm2095 = vcmp.ge.f32.partialorder %v1938, 0.0
        %vm2096 = vcmp.ge.f32.partialorder %v1940, 0.0
        %vm2097 = vcmp.ge.f32.partialorder %v1981, 0.0
        %vm2098 = vcmp.ge.f32.partialorder %v1983, 0.0
        %vm2099 = vcmp.ge.f32.partialorder %v2024, 0.0
        %vm2100 = vcmp.ge.f32.partialorder %v2026, 0.0
        %vm2101 = vcmp.ge.f32.partialorder %v2067, 0.0
        %vm2102 = vcmp.ge.f32.partialorder %v2069, 0.0
        %v2103 = vmul.f32 %v1762, 0.2
        %v2104 = vmul.f32 %v1764, 0.2
        %v2105 = vmul.f32 %v1805, 0.2
        %v2106 = vmul.f32 %v1807, 0.2
        %v2107 = vmul.f32 %v1848, 0.2
        %v2108 = vmul.f32 %v1850, 0.2
        %v2109 = vmul.f32 %v1891, 0.2
        %v2110 = vmul.f32 %v1893, 0.2
        %v2111 = vmul.f32 %v1934, 0.2
        %v2112 = vmul.f32 %v1936, 0.2
        %v2113 = vmul.f32 %v1977, 0.2
        %v2114 = vmul.f32 %v1979, 0.2
        %v2115 = vmul.f32 %v2020, 0.2
        %v2116 = vmul.f32 %v2022, 0.2
        %v2117 = vmul.f32 %v2063, 0.2
        %v2118 = vmul.f32 %v2065, 0.2
        %v2119 = vmul.f32 %v1766, 0.2
        %v2120 = vmul.f32 %v1768, 0.2
        %v2121 = vmul.f32 %v1809, 0.2
        %v2122 = vmul.f32 %v1811, 0.2
        %v2123 = vmul.f32 %v1852, 0.2
        %v2124 = vmul.f32 %v1854, 0.2
        %v2125 = vmul.f32 %v1895, 0.2
        %v2126 = vmul.f32 %v1897, 0.2
        %v2127 = vmul.f32 %v1938, 0.2
        %v2128 = vmul.f32 %v1940, 0.2
        %v2129 = vmul.f32 %v1981, 0.2
        %v2130 = vmul.f32 %v1983, 0.2
        %v2131 = vmul.f32 %v2024, 0.2
        %v2132 = vmul.f32 %v2026, 0.2
        %v2133 = vmul.f32 %v2067, 0.2
        %v2134 = vmul.f32 %v2069, 0.2
        %v2135 = vsel %vm2071, %v1762, %v2103
        %v2136 = vsel %vm2072, %v1764, %v2104
        %v2137 = vsel %vm2073, %v1805, %v2105
        %v2138 = vsel %vm2074, %v1807, %v2106
        %v2139 = vsel %vm2075, %v1848, %v2107
        %v2140 = vsel %vm2076, %v1850, %v2108
        %v2141 = vsel %vm2077, %v1891, %v2109
        %v2142 = vsel %vm2078, %v1893, %v2110
        %v2143 = vsel %vm2079, %v1934, %v2111
        %v2144 = vsel %vm2080, %v1936, %v2112
        %v2145 = vsel %vm2081, %v1977, %v2113
        %v2146 = vsel %vm2082, %v1979, %v2114
        %v2147 = vsel %vm2083, %v2020, %v2115
        %v2148 = vsel %vm2084, %v2022, %v2116
        %v2149 = vsel %vm2085, %v2063, %v2117
        %v2150 = vsel %vm2086, %v2065, %v2118
        %v2151 = vsel %vm2087, %v1766, %v2119
        %v2152 = vsel %vm2088, %v1768, %v2120
        %v2153 = vsel %vm2089, %v1809, %v2121
        %v2154 = vsel %vm2090, %v1811, %v2122
        %v2155 = vsel %vm2091, %v1852, %v2123
        %v2156 = vsel %vm2092, %v1854, %v2124
        %v2157 = vsel %vm2093, %v1895, %v2125
        %v2158 = vsel %vm2094, %v1897, %v2126
        %v2159 = vsel %vm2095, %v1938, %v2127
        %v2160 = vsel %vm2096, %v1940, %v2128
        %v2161 = vsel %vm2097, %v1981, %v2129
        %v2162 = vsel %vm2098, %v1983, %v2130
        %v2163 = vsel %vm2099, %v2024, %v2131
        %v2164 = vsel %vm2100, %v2026, %v2132
        %v2165 = vsel %vm2101, %v2067, %v2133
        %v2166 = vsel %vm2102, %v2069, %v2134
        %v2167 = vpack.c.bf16 %v2151, %v2135
        %v2168 = vpack.c.bf16 %v2152, %v2136
        %v2169 = vpack.c.bf16 %v2153, %v2137
        %v2170 = vpack.c.bf16 %v2154, %v2138
        %v2171 = vpack.c.bf16 %v2155, %v2139
        %v2172 = vpack.c.bf16 %v2156, %v2140
        %v2173 = vpack.c.bf16 %v2157, %v2141
        %v2174 = vpack.c.bf16 %v2158, %v2142
        %v2175 = vpack.c.bf16 %v2159, %v2143
        %v2176 = vpack.c.bf16 %v2160, %v2144
        %v2177 = vpack.c.bf16 %v2161, %v2145
        %v2178 = vpack.c.bf16 %v2162, %v2146
        %v2179 = vpack.c.bf16 %v2163, %v2147
        %v2180 = vpack.c.bf16 %v2164, %v2148
        %v2181 = vpack.c.bf16 %v2165, %v2149
        %v2182 = vpack.c.bf16 %v2166, %v2150
        %v2199 = vunpack.c.l.b16 %v2167
        %v2200 = vunpack.c.l.b16 %v2168
        %v2201 = vunpack.c.l.b16 %v2169
        %v2202 = vunpack.c.l.b16 %v2170
        %v2203 = vunpack.c.l.b16 %v2171
        %v2204 = vunpack.c.l.b16 %v2172
        %v2205 = vunpack.c.l.b16 %v2173
        %v2206 = vunpack.c.l.b16 %v2174
        %v2207 = vunpack.c.l.b16 %v2175
        %v2208 = vunpack.c.l.b16 %v2176
        %v2209 = vunpack.c.l.b16 %v2177
        %v2210 = vunpack.c.l.b16 %v2178
        %v2211 = vunpack.c.l.b16 %v2179
        %v2212 = vunpack.c.l.b16 %v2180
        %v2213 = vunpack.c.l.b16 %v2181
        %v2214 = vunpack.c.l.b16 %v2182
        %v2215 = vunpack.c.h.b16 %v2167
        %v2216 = vunpack.c.h.b16 %v2168
        %v2217 = vunpack.c.h.b16 %v2169
        %v2218 = vunpack.c.h.b16 %v2170
        %v2219 = vunpack.c.h.b16 %v2171
        %v2220 = vunpack.c.h.b16 %v2172
        %v2221 = vunpack.c.h.b16 %v2173
        %v2222 = vunpack.c.h.b16 %v2174
        %v2223 = vunpack.c.h.b16 %v2175
        %v2224 = vunpack.c.h.b16 %v2176
        %v2225 = vunpack.c.h.b16 %v2177
        %v2226 = vunpack.c.h.b16 %v2178
        %v2227 = vunpack.c.h.b16 %v2179
        %v2228 = vunpack.c.h.b16 %v2180
        %v2229 = vunpack.c.h.b16 %v2181
        %v2230 = vunpack.c.h.b16 %v2182
        %v2231 = vpack.c.b16 %v2200, %v2199
        %v2232 = vpack.c.b16 %v2202, %v2201
        %v2233 = vpack.c.b16 %v2204, %v2203
        %v2234 = vpack.c.b16 %v2206, %v2205
        %v2235 = vpack.c.b16 %v2208, %v2207
        %v2236 = vpack.c.b16 %v2210, %v2209
        %v2237 = vpack.c.b16 %v2212, %v2211
        %v2238 = vpack.c.b16 %v2214, %v2213
        %v2239 = vpack.c.b16 %v2216, %v2215
        %v2240 = vpack.c.b16 %v2218, %v2217
        %v2241 = vpack.c.b16 %v2220, %v2219
        %v2242 = vpack.c.b16 %v2222, %v2221
        %v2243 = vpack.c.b16 %v2224, %v2223
        %v2244 = vpack.c.b16 %v2226, %v2225
        %v2245 = vpack.c.b16 %v2228, %v2227
        %v2246 = vpack.c.b16 %v2230, %v2229
        %2263 = vst [vmem:[%s176] sm:$0xff] %v2231
        %2264 = vst [vmem:[%s176 + $0x8] sm:$0xff] %v2232
        %2265 = vst [vmem:[%s176 + $0x10] sm:$0xff] %v2233
        %2266 = vst [vmem:[%s176 + $0x18] sm:$0xff] %v2234
        %2267 = vst [vmem:[%s176 + $0x20] sm:$0xff] %v2235
        %2268 = vst [vmem:[%s176 + $0x28] sm:$0xff] %v2236
        %2269 = vst [vmem:[%s176 + $0x30] sm:$0xff] %v2237
        %2270 = vst [vmem:[%s176 + $0x38] sm:$0xff] %v2238
        %2271 = vst [vmem:[%s176 + $0x40] sm:$0xff] %v2239
        %2272 = vst [vmem:[%s176 + $0x48] sm:$0xff] %v2240
        %2273 = vst [vmem:[%s176 + $0x50] sm:$0xff] %v2241
        %2274 = vst [vmem:[%s176 + $0x58] sm:$0xff] %v2242
        %2275 = vst [vmem:[%s176 + $0x60] sm:$0xff] %v2243
        %2276 = vst [vmem:[%s176 + $0x68] sm:$0xff] %v2244
        %2277 = vst [vmem:[%s176 + $0x70] sm:$0xff] %v2245
        %2278 = vst [vmem:[%s176 + $0x78] sm:$0xff] %v2246
        %s2279 = sand.u32 %s75, 1
        %s2280 = scalar_lea.sflag [#allocation4], %s2279
        %s2281 = sand.u32 %s75, 1
        %s2282 = smul.addr %s2281, 128
        %s2283 = scalar_lea.vmem [#allocation7], %s2282
        // Predicated region
        $region37: #{netD_forward.7} parent=27 // pred_check
          %p2284 = pneg %p85
        $region38: #{netD_forward.7} parent=27 // pred_check_branch
          %2286 = sbr.rel (%p2284) target = $region40
        $region39: #{netD_forward.7} parent=27 // pred_region
          %s2287 = smul.u32 16, %s20
          %s2289 = ssub.s32 2048, 2048
          %2290 = vsyncadd %s2280, %s2289
          %s2291 = smul.addr %s2287, 64
          %s2292 = scalar_lea.hbm %s2, %s2291
          %s2293 = sshll.u32 %s2283, 4
          %s2294 = int_to_ptr.vmem [resolvable:$true] %s2293
          %2299 = dma.vmem_to_hbm [thread:$0]  %s2294, 2048, %s2292, %s2280, 1024, 16384, 64
        $region40: #{netD_forward.7} parent=27 // pred_fallthru
          _
      $region28: #{netD_forward.7} parent=5 // pred_fallthru
        _
      %p2300 = scmp.le.s32.totalorder 2, %s15
      // Predicated region
      $region41: #{netD_forward.7} parent=5 // pred_check
        %p2301 = pneg %p2300
      $region42: #{netD_forward.7} parent=5 // pred_check_branch
        %2303 = sbr.rel (%p2301) target = $region44
      $region43: #{netD_forward.7} parent=5 // pred_region
        %s2304 = ssub.s32 %s15, 2
        // Predicated region
        $region45: #{netD_forward.7} parent=43 // pred_check
          %p2305 = pneg %p91
        $region46: #{netD_forward.7} parent=43 // pred_check_branch
          %2307 = sbr.rel (%p2305) target = $region48
        $region47: #{netD_forward.7} parent=43 // pred_region
          %s2308 = sand.u32 %s76, 1
          %s2309 = scalar_lea.sflag [#allocation4], %s2308
          %s2310 = sand.u32 %s76, 1
          %s2311 = smul.addr %s2310, 128
          %s2312 = scalar_lea.vmem [#allocation7], %s2311
          %2313 = dma.done %s2309, 2048
        $region48: #{netD_forward.7} parent=43 // pred_fallthru
          _
      $region44: #{netD_forward.7} parent=5 // pred_fallthru
        _
    $region6: #{netD_forward.7} parent=1 // loop_footer
      %s19 = sadd.s32 1, %s15
    $region7: #{netD_forward.7} parent=1 // loop_footer_branch
      %14 = sbr.rel target = $region3
    $region8: #{netD_forward.7} parent=1 // loop_exit
      _
    %2314 = vsyncpa [#allocation3], 1
    %s2315 = scalar_lea.sflag [#allocation3], 1
    %2316 = vsyncpa %s2315, 1
    %2317 = vsyncpa [#allocation6], 1
    %s2318 = scalar_lea.sflag [#allocation6], 1
    %2319 = vsyncpa %s2318, 1
    %2320 = vsyncpa [#allocation4], 1
    %s2321 = scalar_lea.sflag [#allocation4], 1
    %2322 = vsyncpa %s2321, 1

// kernel: netD_forward.8
$region0: #{netD_forward.8}
  #allocation0 [shape = 'u32[]', space=smem, size = 0x4, offset = 0x4, fixed_abs, tag = 'smem constant byte address 0x4 - core index']
  #allocation1 [shape = 'u32[144,128]{1,0:T(1,128)}', space=vmem, size = 0x12000, scoped, tag = 'internal scratch']
  %s0 = inlined_call_operand.hbm [shape: bf16[16,256], index: 0, kind: input, shape index: {}]
  %s1 = inlined_call_operand.hbm [shape: bf16[256,8192], index: 1, kind: input, shape index: {}]
  %s2 = inlined_call_operand.hbm [shape: bf16[16,8192], index: 2, kind: output, shape index: {}]
  %s3 = sld [smem:[#allocation0]]
  $region49: #{netD_forward.8} parent=0
    _
  %s5 = ssub.s32 1, %s3
  %s6 = scalar_select 0, %s5, %s3
  $region1: #{netD_forward.8} parent=0
    #allocation2 [shape = 'u8[8192]{0}', space=vmem, size = 0x2000, scoped, tag = 'input window, operand 0, single buffered']
    #allocation3 [shape = 's32[2]{0}', space=sflag, size = 0x8, scoped, tag = 'scoped memory for netD_forward.8']
    #allocation4 [shape = 's32[2]{0}', space=sflag, size = 0x8, scoped, tag = 'scoped memory for netD_forward.8']
    #allocation5 [shape = 'u8[2097152]{0}', space=vmem, size = 0x200000, scoped, tag = 'input window, operand 1']
    #allocation6 [shape = 's32[2]{0}', space=sflag, size = 0x8, scoped, tag = 'scoped memory for netD_forward.8']
    #allocation7 [shape = 'u8[131072]{0}', space=vmem, size = 0x20000, scoped, tag = 'output window, operand 0']
    %7 = vsyncpa [#allocation3], 0
    %8 = vsyncpa [#allocation6], 0
    %s9 = scalar_lea.sflag [#allocation6], 1
    %10 = vsyncpa %s9, 0
    %11 = vsyncpa [#allocation4], 0
    %s12 = scalar_lea.sflag [#allocation4], 1
    %13 = vsyncpa %s12, 0
    loop: start=0, step=1, limit=6
    $region2: #{netD_forward.8} parent=1 // loop_pre_header
      _
    $region3: #{netD_forward.8} parent=1 // loop_header
      %s15 = sphi 0, %s19
      %p16 = scmp.ge.s32.totalorder %s15, 6
      %s23 = sphi 0, %s23
      %s25 = sphi 0, %s23
      %s26 = sphi 0, %s25
      %s40 = sphi 0, %s26
      %s46 = sphi 0, %s48
      %s49 = sphi 0, %s46
      %s50 = sphi 0, %s49
      %s66 = sphi 0, %s50
      %s72 = sphi 0, %s74
      %s75 = sphi 0, %s72
      %s76 = sphi 0, %s75
      %s92 = sphi 0, %s76
    $region4: #{netD_forward.8} parent=1 // loop_header_branch
      %18 = sbr.rel (%p16) target = $region8
    $region5: #{netD_forward.8} parent=1 // loop_body
      %s20 = ssub.s32 %s15, 1
      %s21 = ssub.s32 %s15, 2
      %s22 = sadd.s32 %s15, 1
      %s24 = sadd.s32 %s23, 1
      %p27 = scmp.eq.s32.totalorder %s15, 3
      %p28 = scmp.ne.s32.totalorder %s23, %s25
      %p29 = scmp.eq.s32.totalorder %s15, 0
      %p30 = por %p28, %p29
      %p31 = scmp.ne.s32.totalorder %s23, %s25
      %p32 = scmp.eq.s32.totalorder %s20, 3
      %p33 = por %p31, %p32
      %p34 = scmp.ne.s32.totalorder %s25, %s26
      %p35 = scmp.eq.s32.totalorder %s20, 0
      %p36 = por %p34, %p35
      %p37 = scmp.ne.s32.totalorder %s25, %s26
      %p38 = scmp.eq.s32.totalorder %s21, 3
      %p39 = por %p37, %p38
      %p41 = scmp.ne.s32.totalorder %s26, %s40
      %p42 = scmp.eq.s32.totalorder %s21, 0
      %p43 = por %p41, %p42
      %s44 = ssub.s32 %s15, %s22
      %p45 = scmp.eq.s32.totalorder %s44, 0
      %s47 = sadd.s32 %s46, 1
      %s48 = scalar_select %p45, %s46, %s47
      %p51 = pneg %p45
      %p52 = scmp.eq.s32.totalorder %s15, 3
      %p53 = por %p51, %p52
      %p54 = scmp.ne.s32.totalorder %s46, %s49
      %p55 = scmp.eq.s32.totalorder %s15, 0
      %p56 = por %p54, %p55
      %p57 = scmp.ne.s32.totalorder %s46, %s49
      %p58 = scmp.eq.s32.totalorder %s20, 3
      %p59 = por %p57, %p58
      %p60 = scmp.ne.s32.totalorder %s49, %s50
      %p61 = scmp.eq.s32.totalorder %s20, 0
      %p62 = por %p60, %p61
      %p63 = scmp.ne.s32.totalorder %s49, %s50
      %p64 = scmp.eq.s32.totalorder %s21, 3
      %p65 = por %p63, %p64
      %p67 = scmp.ne.s32.totalorder %s50, %s66
      %p68 = scmp.eq.s32.totalorder %s21, 0
      %p69 = por %p67, %p68
      %s70 = ssub.s32 %s15, %s22
      %p71 = scmp.eq.s32.totalorder %s70, 0
      %s73 = sadd.s32 %s72, 1
      %s74 = scalar_select %p71, %s72, %s73
      %p77 = pneg %p71
      %p78 = scmp.eq.s32.totalorder %s15, 3
      %p79 = por %p77, %p78
      %p80 = scmp.ne.s32.totalorder %s72, %s75
      %p81 = scmp.eq.s32.totalorder %s15, 0
      %p82 = por %p80, %p81
      %p83 = scmp.ne.s32.totalorder %s72, %s75
      %p84 = scmp.eq.s32.totalorder %s20, 3
      %p85 = por %p83, %p84
      %p86 = scmp.ne.s32.totalorder %s75, %s76
      %p87 = scmp.eq.s32.totalorder %s20, 0
      %p88 = por %p86, %p87
      %p89 = scmp.ne.s32.totalorder %s75, %s76
      %p90 = scmp.eq.s32.totalorder %s21, 3
      %p91 = por %p89, %p90
      %p93 = scmp.ne.s32.totalorder %s76, %s92
      %p94 = scmp.eq.s32.totalorder %s21, 0
      %p95 = por %p93, %p94
      %p96 = scmp.le.s32.totalorder 1, %s15
      %p97 = scmp.lt.s32.totalorder %s15, 5
      %p98 = pnand %p96, %p97
      %p99 = pneg %p98
      // Predicated region
      $region9: #{netD_forward.8} parent=5 // pred_check
        _
      $region10: #{netD_forward.8} parent=5 // pred_check_branch
        %101 = sbr.rel (%p98) target = $region12
      $region11: #{netD_forward.8} parent=5 // pred_region
        %s102 = ssub.s32 %s15, 1
        // Predicated region
        $region13: #{netD_forward.8} parent=11 // pred_check
          %p103 = pneg %p36
        $region14: #{netD_forward.8} parent=11 // pred_check_branch
          %105 = sbr.rel (%p103) target = $region16
        $region15: #{netD_forward.8} parent=11 // pred_region
          %s107 = ssub.s32 256, 256
          %108 = vsyncadd [#allocation3], %s107
          %s109 = sshll.u32 [#allocation2], 4
          %s110 = int_to_ptr.vmem [resolvable:$true] %s109
          %115 = dma.hbm_to_vmem [thread:$0]  %s0, 256, %s110, [#allocation3], 128, 128, 8
        $region16: #{netD_forward.8} parent=11 // pred_fallthru
          _
      $region12: #{netD_forward.8} parent=5 // pred_fallthru
        _
      %p116 = scmp.lt.s32.totalorder %s15, 4
      // Predicated region
      $region17: #{netD_forward.8} parent=5 // pred_check
        %p117 = pneg %p116
      $region18: #{netD_forward.8} parent=5 // pred_check_branch
        %119 = sbr.rel (%p117) target = $region20
      $region19: #{netD_forward.8} parent=5 // pred_region
        // Predicated region
        $region21: #{netD_forward.8} parent=19 // pred_check
          %p120 = pneg %p56
        $region22: #{netD_forward.8} parent=19 // pred_check_branch
          %122 = sbr.rel (%p120) target = $region24
        $region23: #{netD_forward.8} parent=19 // pred_region
          %s123 = sand.u32 %s46, 1
          %s124 = scalar_lea.sflag [#allocation6], %s123
          %s125 = sand.u32 %s46, 1
          %s126 = smul.addr %s125, 2048
          %s127 = scalar_lea.vmem [#allocation5], %s126
          %s128 = smul.u32 16, %s15
          %s130 = ssub.s32 32768, 32768
          %131 = vsyncadd %s124, %s130
          %s132 = smul.addr %s128, 64
          %s133 = scalar_lea.hbm %s1, %s132
          %s134 = sshll.u32 %s127, 4
          %s135 = int_to_ptr.vmem [resolvable:$true] %s134
          %140 = dma.hbm_to_vmem [thread:$0]  %s133, 32768, %s135, %s124, 4096, 1024, 64
        $region24: #{netD_forward.8} parent=19 // pred_fallthru
          _
      $region20: #{netD_forward.8} parent=5 // pred_fallthru
        _
      %p141 = scmp.le.s32.totalorder 1, %s15
      %p142 = scmp.lt.s32.totalorder %s15, 5
      %p143 = pnand %p141, %p142
      %p144 = pneg %p143
      // Predicated region
      $region25: #{netD_forward.8} parent=5 // pred_check
        _
      $region26: #{netD_forward.8} parent=5 // pred_check_branch
        %146 = sbr.rel (%p143) target = $region28
      $region27: #{netD_forward.8} parent=5 // pred_region
        %s147 = ssub.s32 %s15, 1
        // Predicated region
        $region29: #{netD_forward.8} parent=27 // pred_check
          %p148 = pneg %p36
        $region30: #{netD_forward.8} parent=27 // pred_check_branch
          %150 = sbr.rel (%p148) target = $region32
        $region31: #{netD_forward.8} parent=27 // pred_region
          %151 = dma.done [#allocation3], 256
        $region32: #{netD_forward.8} parent=27 // pred_fallthru
          _
        %s152 = sand.u32 %s49, 1
        %s153 = scalar_lea.sflag [#allocation6], %s152
        %s154 = sand.u32 %s49, 1
        %s155 = smul.addr %s154, 2048
        %s156 = scalar_lea.vmem [#allocation5], %s155
        // Predicated region
        $region33: #{netD_forward.8} parent=27 // pred_check
          %p157 = pneg %p62
        $region34: #{netD_forward.8} parent=27 // pred_check_branch
          %159 = sbr.rel (%p157) target = $region36
        $region35: #{netD_forward.8} parent=27 // pred_region
          %160 = dma.done %s153, 32768
        $region36: #{netD_forward.8} parent=27 // pred_fallthru
          _
        %p161 = pneg %p36
        %p162 = pneg %p33
        %s163 = sand.u32 %s49, 1
        %s164 = scalar_lea.sflag [#allocation6], %s163
        %s165 = sand.u32 %s49, 1
        %s166 = smul.addr %s165, 2048
        %s167 = scalar_lea.vmem [#allocation5], %s166
        %p168 = pneg %p62
        %p169 = pneg %p59
        %p170 = pneg %p88
        %p171 = pneg %p85
        %s172 = sand.u32 %s75, 1
        %s173 = scalar_lea.sflag [#allocation4], %s172
        %s174 = sand.u32 %s75, 1
        %s175 = smul.addr %s174, 128
        %s176 = scalar_lea.vmem [#allocation7], %s175
        %s177 = smul.u32 16, %s20
        %s178 = smul.u32 16, %s20
        %v179 = vld [vmem:[#allocation2] sm:$0xff]
        %v180 = vld [vmem:[#allocation2 + $0x8] sm:$0xff]
        %v181 = vld [vmem:[%s156] sm:$0xff]
        %v182 = vld [vmem:[%s156 + $0x8] sm:$0xff]
        %v183 = vld [vmem:[%s156 + $0x10] sm:$0xff]
        %v184 = vld [vmem:[%s156 + $0x18] sm:$0xff]
        %v185 = vld [vmem:[%s156 + $0x20] sm:$0xff]
        %v186 = vld [vmem:[%s156 + $0x28] sm:$0xff]
        %v187 = vld [vmem:[%s156 + $0x30] sm:$0xff]
        %v188 = vld [vmem:[%s156 + $0x38] sm:$0xff]
        %v189 = vld [vmem:[%s156 + $0x40] sm:$0xff]
        %v190 = vld [vmem:[%s156 + $0x48] sm:$0xff]
        %v191 = vld [vmem:[%s156 + $0x50] sm:$0xff]
        %v192 = vld [vmem:[%s156 + $0x58] sm:$0xff]
        %v193 = vld [vmem:[%s156 + $0x60] sm:$0xff]
        %v194 = vld [vmem:[%s156 + $0x68] sm:$0xff]
        %v195 = vld [vmem:[%s156 + $0x70] sm:$0xff]
        %v196 = vld [vmem:[%s156 + $0x78] sm:$0xff]
        %v197 = vld [vmem:[%s156 + $0x80] sm:$0xff]
        %v198 = vld [vmem:[%s156 + $0x88] sm:$0xff]
        %v199 = vld [vmem:[%s156 + $0x90] sm:$0xff]
        %v200 = vld [vmem:[%s156 + $0x98] sm:$0xff]
        %v201 = vld [vmem:[%s156 + $0xa0] sm:$0xff]
        %v202 = vld [vmem:[%s156 + $0xa8] sm:$0xff]
        %v203 = vld [vmem:[%s156 + $0xb0] sm:$0xff]
        %v204 = vld [vmem:[%s156 + $0xb8] sm:$0xff]
        %v205 = vld [vmem:[%s156 + $0xc0] sm:$0xff]
        %v206 = vld [vmem:[%s156 + $0xc8] sm:$0xff]
        %v207 = vld [vmem:[%s156 + $0xd0] sm:$0xff]
        %v208 = vld [vmem:[%s156 + $0xd8] sm:$0xff]
        %v209 = vld [vmem:[%s156 + $0xe0] sm:$0xff]
        %v210 = vld [vmem:[%s156 + $0xe8] sm:$0xff]
        %v211 = vld [vmem:[%s156 + $0xf0] sm:$0xff]
        %v212 = vld [vmem:[%s156 + $0xf8] sm:$0xff]
        %v213 = vld [vmem:[%s156 + $0x100] sm:$0xff]
        %v214 = vld [vmem:[%s156 + $0x108] sm:$0xff]
        %v215 = vld [vmem:[%s156 + $0x110] sm:$0xff]
        %v216 = vld [vmem:[%s156 + $0x118] sm:$0xff]
        %v217 = vld [vmem:[%s156 + $0x120] sm:$0xff]
        %v218 = vld [vmem:[%s156 + $0x128] sm:$0xff]
        %v219 = vld [vmem:[%s156 + $0x130] sm:$0xff]
        %v220 = vld [vmem:[%s156 + $0x138] sm:$0xff]
        %v221 = vld [vmem:[%s156 + $0x140] sm:$0xff]
        %v222 = vld [vmem:[%s156 + $0x148] sm:$0xff]
        %v223 = vld [vmem:[%s156 + $0x150] sm:$0xff]
        %v224 = vld [vmem:[%s156 + $0x158] sm:$0xff]
        %v225 = vld [vmem:[%s156 + $0x160] sm:$0xff]
        %v226 = vld [vmem:[%s156 + $0x168] sm:$0xff]
        %v227 = vld [vmem:[%s156 + $0x170] sm:$0xff]
        %v228 = vld [vmem:[%s156 + $0x178] sm:$0xff]
        %v229 = vld [vmem:[%s156 + $0x180] sm:$0xff]
        %v230 = vld [vmem:[%s156 + $0x188] sm:$0xff]
        %v231 = vld [vmem:[%s156 + $0x190] sm:$0xff]
        %v232 = vld [vmem:[%s156 + $0x198] sm:$0xff]
        %v233 = vld [vmem:[%s156 + $0x1a0] sm:$0xff]
        %v234 = vld [vmem:[%s156 + $0x1a8] sm:$0xff]
        %v235 = vld [vmem:[%s156 + $0x1b0] sm:$0xff]
        %v236 = vld [vmem:[%s156 + $0x1b8] sm:$0xff]
        %v237 = vld [vmem:[%s156 + $0x1c0] sm:$0xff]
        %v238 = vld [vmem:[%s156 + $0x1c8] sm:$0xff]
        %v239 = vld [vmem:[%s156 + $0x1d0] sm:$0xff]
        %v240 = vld [vmem:[%s156 + $0x1d8] sm:$0xff]
        %v241 = vld [vmem:[%s156 + $0x1e0] sm:$0xff]
        %v242 = vld [vmem:[%s156 + $0x1e8] sm:$0xff]
        %v243 = vld [vmem:[%s156 + $0x1f0] sm:$0xff]
        %v244 = vld [vmem:[%s156 + $0x1f8] sm:$0xff]
        %v245 = vld [vmem:[%s156 + $0x200] sm:$0xff]
        %v246 = vld [vmem:[%s156 + $0x208] sm:$0xff]
        %v247 = vld [vmem:[%s156 + $0x210] sm:$0xff]
        %v248 = vld [vmem:[%s156 + $0x218] sm:$0xff]
        %v249 = vld [vmem:[%s156 + $0x220] sm:$0xff]
        %v250 = vld [vmem:[%s156 + $0x228] sm:$0xff]
        %v251 = vld [vmem:[%s156 + $0x230] sm:$0xff]
        %v252 = vld [vmem:[%s156 + $0x238] sm:$0xff]
        %v253 = vld [vmem:[%s156 + $0x240] sm:$0xff]
        %v254 = vld [vmem:[%s156 + $0x248] sm:$0xff]
        %v255 = vld [vmem:[%s156 + $0x250] sm:$0xff]
        %v256 = vld [vmem:[%s156 + $0x258] sm:$0xff]
        %v257 = vld [vmem:[%s156 + $0x260] sm:$0xff]
        %v258 = vld [vmem:[%s156 + $0x268] sm:$0xff]
        %v259 = vld [vmem:[%s156 + $0x270] sm:$0xff]
        %v260 = vld [vmem:[%s156 + $0x278] sm:$0xff]
        %v261 = vld [vmem:[%s156 + $0x280] sm:$0xff]
        %v262 = vld [vmem:[%s156 + $0x288] sm:$0xff]
        %v263 = vld [vmem:[%s156 + $0x290] sm:$0xff]
        %v264 = vld [vmem:[%s156 + $0x298] sm:$0xff]
        %v265 = vld [vmem:[%s156 + $0x2a0] sm:$0xff]
        %v266 = vld [vmem:[%s156 + $0x2a8] sm:$0xff]
        %v267 = vld [vmem:[%s156 + $0x2b0] sm:$0xff]
        %v268 = vld [vmem:[%s156 + $0x2b8] sm:$0xff]
        %v269 = vld [vmem:[%s156 + $0x2c0] sm:$0xff]
        %v270 = vld [vmem:[%s156 + $0x2c8] sm:$0xff]
        %v271 = vld [vmem:[%s156 + $0x2d0] sm:$0xff]
        %v272 = vld [vmem:[%s156 + $0x2d8] sm:$0xff]
        %v273 = vld [vmem:[%s156 + $0x2e0] sm:$0xff]
        %v274 = vld [vmem:[%s156 + $0x2e8] sm:$0xff]
        %v275 = vld [vmem:[%s156 + $0x2f0] sm:$0xff]
        %v276 = vld [vmem:[%s156 + $0x2f8] sm:$0xff]
        %v277 = vld [vmem:[%s156 + $0x300] sm:$0xff]
        %v278 = vld [vmem:[%s156 + $0x308] sm:$0xff]
        %v279 = vld [vmem:[%s156 + $0x310] sm:$0xff]
        %v280 = vld [vmem:[%s156 + $0x318] sm:$0xff]
        %v281 = vld [vmem:[%s156 + $0x320] sm:$0xff]
        %v282 = vld [vmem:[%s156 + $0x328] sm:$0xff]
        %v283 = vld [vmem:[%s156 + $0x330] sm:$0xff]
        %v284 = vld [vmem:[%s156 + $0x338] sm:$0xff]
        %v285 = vld [vmem:[%s156 + $0x340] sm:$0xff]
        %v286 = vld [vmem:[%s156 + $0x348] sm:$0xff]
        %v287 = vld [vmem:[%s156 + $0x350] sm:$0xff]
        %v288 = vld [vmem:[%s156 + $0x358] sm:$0xff]
        %v289 = vld [vmem:[%s156 + $0x360] sm:$0xff]
        %v290 = vld [vmem:[%s156 + $0x368] sm:$0xff]
        %v291 = vld [vmem:[%s156 + $0x370] sm:$0xff]
        %v292 = vld [vmem:[%s156 + $0x378] sm:$0xff]
        %v293 = vld [vmem:[%s156 + $0x380] sm:$0xff]
        %v294 = vld [vmem:[%s156 + $0x388] sm:$0xff]
        %v295 = vld [vmem:[%s156 + $0x390] sm:$0xff]
        %v296 = vld [vmem:[%s156 + $0x398] sm:$0xff]
        %v297 = vld [vmem:[%s156 + $0x3a0] sm:$0xff]
        %v298 = vld [vmem:[%s156 + $0x3a8] sm:$0xff]
        %v299 = vld [vmem:[%s156 + $0x3b0] sm:$0xff]
        %v300 = vld [vmem:[%s156 + $0x3b8] sm:$0xff]
        %v301 = vld [vmem:[%s156 + $0x3c0] sm:$0xff]
        %v302 = vld [vmem:[%s156 + $0x3c8] sm:$0xff]
        %v303 = vld [vmem:[%s156 + $0x3d0] sm:$0xff]
        %v304 = vld [vmem:[%s156 + $0x3d8] sm:$0xff]
        %v305 = vld [vmem:[%s156 + $0x3e0] sm:$0xff]
        %v306 = vld [vmem:[%s156 + $0x3e8] sm:$0xff]
        %v307 = vld [vmem:[%s156 + $0x3f0] sm:$0xff]
        %v308 = vld [vmem:[%s156 + $0x3f8] sm:$0xff]
        %v309 = vld [vmem:[%s156 + $0x400] sm:$0xff]
        %v310 = vld [vmem:[%s156 + $0x408] sm:$0xff]
        %v311 = vld [vmem:[%s156 + $0x410] sm:$0xff]
        %v312 = vld [vmem:[%s156 + $0x418] sm:$0xff]
        %v313 = vld [vmem:[%s156 + $0x420] sm:$0xff]
        %v314 = vld [vmem:[%s156 + $0x428] sm:$0xff]
        %v315 = vld [vmem:[%s156 + $0x430] sm:$0xff]
        %v316 = vld [vmem:[%s156 + $0x438] sm:$0xff]
        %v317 = vld [vmem:[%s156 + $0x440] sm:$0xff]
        %v318 = vld [vmem:[%s156 + $0x448] sm:$0xff]
        %v319 = vld [vmem:[%s156 + $0x450] sm:$0xff]
        %v320 = vld [vmem:[%s156 + $0x458] sm:$0xff]
        %v321 = vld [vmem:[%s156 + $0x460] sm:$0xff]
        %v322 = vld [vmem:[%s156 + $0x468] sm:$0xff]
        %v323 = vld [vmem:[%s156 + $0x470] sm:$0xff]
        %v324 = vld [vmem:[%s156 + $0x478] sm:$0xff]
        %v325 = vld [vmem:[%s156 + $0x480] sm:$0xff]
        %v326 = vld [vmem:[%s156 + $0x488] sm:$0xff]
        %v327 = vld [vmem:[%s156 + $0x490] sm:$0xff]
        %v328 = vld [vmem:[%s156 + $0x498] sm:$0xff]
        %v329 = vld [vmem:[%s156 + $0x4a0] sm:$0xff]
        %v330 = vld [vmem:[%s156 + $0x4a8] sm:$0xff]
        %v331 = vld [vmem:[%s156 + $0x4b0] sm:$0xff]
        %v332 = vld [vmem:[%s156 + $0x4b8] sm:$0xff]
        %v333 = vld [vmem:[%s156 + $0x4c0] sm:$0xff]
        %v334 = vld [vmem:[%s156 + $0x4c8] sm:$0xff]
        %v335 = vld [vmem:[%s156 + $0x4d0] sm:$0xff]
        %v336 = vld [vmem:[%s156 + $0x4d8] sm:$0xff]
        %v337 = vld [vmem:[%s156 + $0x4e0] sm:$0xff]
        %v338 = vld [vmem:[%s156 + $0x4e8] sm:$0xff]
        %v339 = vld [vmem:[%s156 + $0x4f0] sm:$0xff]
        %v340 = vld [vmem:[%s156 + $0x4f8] sm:$0xff]
        %v341 = vld [vmem:[%s156 + $0x500] sm:$0xff]
        %v342 = vld [vmem:[%s156 + $0x508] sm:$0xff]
        %v343 = vld [vmem:[%s156 + $0x510] sm:$0xff]
        %v344 = vld [vmem:[%s156 + $0x518] sm:$0xff]
        %v345 = vld [vmem:[%s156 + $0x520] sm:$0xff]
        %v346 = vld [vmem:[%s156 + $0x528] sm:$0xff]
        %v347 = vld [vmem:[%s156 + $0x530] sm:$0xff]
        %v348 = vld [vmem:[%s156 + $0x538] sm:$0xff]
        %v349 = vld [vmem:[%s156 + $0x540] sm:$0xff]
        %v350 = vld [vmem:[%s156 + $0x548] sm:$0xff]
        %v351 = vld [vmem:[%s156 + $0x550] sm:$0xff]
        %v352 = vld [vmem:[%s156 + $0x558] sm:$0xff]
        %v353 = vld [vmem:[%s156 + $0x560] sm:$0xff]
        %v354 = vld [vmem:[%s156 + $0x568] sm:$0xff]
        %v355 = vld [vmem:[%s156 + $0x570] sm:$0xff]
        %v356 = vld [vmem:[%s156 + $0x578] sm:$0xff]
        %v357 = vld [vmem:[%s156 + $0x580] sm:$0xff]
        %v358 = vld [vmem:[%s156 + $0x588] sm:$0xff]
        %v359 = vld [vmem:[%s156 + $0x590] sm:$0xff]
        %v360 = vld [vmem:[%s156 + $0x598] sm:$0xff]
        %v361 = vld [vmem:[%s156 + $0x5a0] sm:$0xff]
        %v362 = vld [vmem:[%s156 + $0x5a8] sm:$0xff]
        %v363 = vld [vmem:[%s156 + $0x5b0] sm:$0xff]
        %v364 = vld [vmem:[%s156 + $0x5b8] sm:$0xff]
        %v365 = vld [vmem:[%s156 + $0x5c0] sm:$0xff]
        %v366 = vld [vmem:[%s156 + $0x5c8] sm:$0xff]
        %v367 = vld [vmem:[%s156 + $0x5d0] sm:$0xff]
        %v368 = vld [vmem:[%s156 + $0x5d8] sm:$0xff]
        %v369 = vld [vmem:[%s156 + $0x5e0] sm:$0xff]
        %v370 = vld [vmem:[%s156 + $0x5e8] sm:$0xff]
        %v371 = vld [vmem:[%s156 + $0x5f0] sm:$0xff]
        %v372 = vld [vmem:[%s156 + $0x5f8] sm:$0xff]
        %v373 = vld [vmem:[%s156 + $0x600] sm:$0xff]
        %v374 = vld [vmem:[%s156 + $0x608] sm:$0xff]
        %v375 = vld [vmem:[%s156 + $0x610] sm:$0xff]
        %v376 = vld [vmem:[%s156 + $0x618] sm:$0xff]
        %v377 = vld [vmem:[%s156 + $0x620] sm:$0xff]
        %v378 = vld [vmem:[%s156 + $0x628] sm:$0xff]
        %v379 = vld [vmem:[%s156 + $0x630] sm:$0xff]
        %v380 = vld [vmem:[%s156 + $0x638] sm:$0xff]
        %v381 = vld [vmem:[%s156 + $0x640] sm:$0xff]
        %v382 = vld [vmem:[%s156 + $0x648] sm:$0xff]
        %v383 = vld [vmem:[%s156 + $0x650] sm:$0xff]
        %v384 = vld [vmem:[%s156 + $0x658] sm:$0xff]
        %v385 = vld [vmem:[%s156 + $0x660] sm:$0xff]
        %v386 = vld [vmem:[%s156 + $0x668] sm:$0xff]
        %v387 = vld [vmem:[%s156 + $0x670] sm:$0xff]
        %v388 = vld [vmem:[%s156 + $0x678] sm:$0xff]
        %v389 = vld [vmem:[%s156 + $0x680] sm:$0xff]
        %v390 = vld [vmem:[%s156 + $0x688] sm:$0xff]
        %v391 = vld [vmem:[%s156 + $0x690] sm:$0xff]
        %v392 = vld [vmem:[%s156 + $0x698] sm:$0xff]
        %v393 = vld [vmem:[%s156 + $0x6a0] sm:$0xff]
        %v394 = vld [vmem:[%s156 + $0x6a8] sm:$0xff]
        %v395 = vld [vmem:[%s156 + $0x6b0] sm:$0xff]
        %v396 = vld [vmem:[%s156 + $0x6b8] sm:$0xff]
        %v397 = vld [vmem:[%s156 + $0x6c0] sm:$0xff]
        %v398 = vld [vmem:[%s156 + $0x6c8] sm:$0xff]
        %v399 = vld [vmem:[%s156 + $0x6d0] sm:$0xff]
        %v400 = vld [vmem:[%s156 + $0x6d8] sm:$0xff]
        %v401 = vld [vmem:[%s156 + $0x6e0] sm:$0xff]
        %v402 = vld [vmem:[%s156 + $0x6e8] sm:$0xff]
        %v403 = vld [vmem:[%s156 + $0x6f0] sm:$0xff]
        %v404 = vld [vmem:[%s156 + $0x6f8] sm:$0xff]
        %v405 = vld [vmem:[%s156 + $0x700] sm:$0xff]
        %v406 = vld [vmem:[%s156 + $0x708] sm:$0xff]
        %v407 = vld [vmem:[%s156 + $0x710] sm:$0xff]
        %v408 = vld [vmem:[%s156 + $0x718] sm:$0xff]
        %v409 = vld [vmem:[%s156 + $0x720] sm:$0xff]
        %v410 = vld [vmem:[%s156 + $0x728] sm:$0xff]
        %v411 = vld [vmem:[%s156 + $0x730] sm:$0xff]
        %v412 = vld [vmem:[%s156 + $0x738] sm:$0xff]
        %v413 = vld [vmem:[%s156 + $0x740] sm:$0xff]
        %v414 = vld [vmem:[%s156 + $0x748] sm:$0xff]
        %v415 = vld [vmem:[%s156 + $0x750] sm:$0xff]
        %v416 = vld [vmem:[%s156 + $0x758] sm:$0xff]
        %v417 = vld [vmem:[%s156 + $0x760] sm:$0xff]
        %v418 = vld [vmem:[%s156 + $0x768] sm:$0xff]
        %v419 = vld [vmem:[%s156 + $0x770] sm:$0xff]
        %v420 = vld [vmem:[%s156 + $0x778] sm:$0xff]
        %v421 = vld [vmem:[%s156 + $0x780] sm:$0xff]
        %v422 = vld [vmem:[%s156 + $0x788] sm:$0xff]
        %v423 = vld [vmem:[%s156 + $0x790] sm:$0xff]
        %v424 = vld [vmem:[%s156 + $0x798] sm:$0xff]
        %v425 = vld [vmem:[%s156 + $0x7a0] sm:$0xff]
        %v426 = vld [vmem:[%s156 + $0x7a8] sm:$0xff]
        %v427 = vld [vmem:[%s156 + $0x7b0] sm:$0xff]
        %v428 = vld [vmem:[%s156 + $0x7b8] sm:$0xff]
        %v429 = vld [vmem:[%s156 + $0x7c0] sm:$0xff]
        %v430 = vld [vmem:[%s156 + $0x7c8] sm:$0xff]
        %v431 = vld [vmem:[%s156 + $0x7d0] sm:$0xff]
        %v432 = vld [vmem:[%s156 + $0x7d8] sm:$0xff]
        %v433 = vld [vmem:[%s156 + $0x7e0] sm:$0xff]
        %v434 = vld [vmem:[%s156 + $0x7e8] sm:$0xff]
        %v435 = vld [vmem:[%s156 + $0x7f0] sm:$0xff]
        %v436 = vld [vmem:[%s156 + $0x7f8] sm:$0xff]
        %v439 = vunpack.c.l.b16 %v179
        %v440 = vunpack.c.h.b16 %v179
        %v441 = vunpack.c.l.b16 %v180
        %v442 = vunpack.c.h.b16 %v180
        %v443 = vpack.c.b16 %v441, %v439
        %v444 = vpack.c.b16 %v442, %v440
        %v703 = vunpack.c.l.b16 %v181
        %v704 = vunpack.c.h.b16 %v181
        %v705 = vunpack.c.l.b16 %v182
        %v706 = vunpack.c.h.b16 %v182
        %v707 = vunpack.c.l.b16 %v183
        %v708 = vunpack.c.h.b16 %v183
        %v709 = vunpack.c.l.b16 %v184
        %v710 = vunpack.c.h.b16 %v184
        %v711 = vunpack.c.l.b16 %v185
        %v712 = vunpack.c.h.b16 %v185
        %v713 = vunpack.c.l.b16 %v186
        %v714 = vunpack.c.h.b16 %v186
        %v715 = vunpack.c.l.b16 %v187
        %v716 = vunpack.c.h.b16 %v187
        %v717 = vunpack.c.l.b16 %v188
        %v718 = vunpack.c.h.b16 %v188
        %v719 = vunpack.c.l.b16 %v189
        %v720 = vunpack.c.h.b16 %v189
        %v721 = vunpack.c.l.b16 %v190
        %v722 = vunpack.c.h.b16 %v190
        %v723 = vunpack.c.l.b16 %v191
        %v724 = vunpack.c.h.b16 %v191
        %v725 = vunpack.c.l.b16 %v192
        %v726 = vunpack.c.h.b16 %v192
        %v727 = vunpack.c.l.b16 %v193
        %v728 = vunpack.c.h.b16 %v193
        %v729 = vunpack.c.l.b16 %v194
        %v730 = vunpack.c.h.b16 %v194
        %v731 = vunpack.c.l.b16 %v195
        %v732 = vunpack.c.h.b16 %v195
        %v733 = vunpack.c.l.b16 %v196
        %v734 = vunpack.c.h.b16 %v196
        %v735 = vunpack.c.l.b16 %v197
        %v736 = vunpack.c.h.b16 %v197
        %v737 = vunpack.c.l.b16 %v198
        %v738 = vunpack.c.h.b16 %v198
        %v739 = vunpack.c.l.b16 %v199
        %v740 = vunpack.c.h.b16 %v199
        %v741 = vunpack.c.l.b16 %v200
        %v742 = vunpack.c.h.b16 %v200
        %v743 = vunpack.c.l.b16 %v201
        %v744 = vunpack.c.h.b16 %v201
        %v745 = vunpack.c.l.b16 %v202
        %v746 = vunpack.c.h.b16 %v202
        %v747 = vunpack.c.l.b16 %v203
        %v748 = vunpack.c.h.b16 %v203
        %v749 = vunpack.c.l.b16 %v204
        %v750 = vunpack.c.h.b16 %v204
        %v751 = vunpack.c.l.b16 %v205
        %v752 = vunpack.c.h.b16 %v205
        %v753 = vunpack.c.l.b16 %v206
        %v754 = vunpack.c.h.b16 %v206
        %v755 = vunpack.c.l.b16 %v207
        %v756 = vunpack.c.h.b16 %v207
        %v757 = vunpack.c.l.b16 %v208
        %v758 = vunpack.c.h.b16 %v208
        %v759 = vunpack.c.l.b16 %v209
        %v760 = vunpack.c.h.b16 %v209
        %v761 = vunpack.c.l.b16 %v210
        %v762 = vunpack.c.h.b16 %v210
        %v763 = vunpack.c.l.b16 %v211
        %v764 = vunpack.c.h.b16 %v211
        %v765 = vunpack.c.l.b16 %v212
        %v766 = vunpack.c.h.b16 %v212
        %v767 = vunpack.c.l.b16 %v213
        %v768 = vunpack.c.h.b16 %v213
        %v769 = vunpack.c.l.b16 %v214
        %v770 = vunpack.c.h.b16 %v214
        %v771 = vunpack.c.l.b16 %v215
        %v772 = vunpack.c.h.b16 %v215
        %v773 = vunpack.c.l.b16 %v216
        %v774 = vunpack.c.h.b16 %v216
        %v775 = vunpack.c.l.b16 %v217
        %v776 = vunpack.c.h.b16 %v217
        %v777 = vunpack.c.l.b16 %v218
        %v778 = vunpack.c.h.b16 %v218
        %v779 = vunpack.c.l.b16 %v219
        %v780 = vunpack.c.h.b16 %v219
        %v781 = vunpack.c.l.b16 %v220
        %v782 = vunpack.c.h.b16 %v220
        %v783 = vunpack.c.l.b16 %v221
        %v784 = vunpack.c.h.b16 %v221
        %v785 = vunpack.c.l.b16 %v222
        %v786 = vunpack.c.h.b16 %v222
        %v787 = vunpack.c.l.b16 %v223
        %v788 = vunpack.c.h.b16 %v223
        %v789 = vunpack.c.l.b16 %v224
        %v790 = vunpack.c.h.b16 %v224
        %v791 = vunpack.c.l.b16 %v225
        %v792 = vunpack.c.h.b16 %v225
        %v793 = vunpack.c.l.b16 %v226
        %v794 = vunpack.c.h.b16 %v226
        %v795 = vunpack.c.l.b16 %v227
        %v796 = vunpack.c.h.b16 %v227
        %v797 = vunpack.c.l.b16 %v228
        %v798 = vunpack.c.h.b16 %v228
        %v799 = vunpack.c.l.b16 %v229
        %v800 = vunpack.c.h.b16 %v229
        %v801 = vunpack.c.l.b16 %v230
        %v802 = vunpack.c.h.b16 %v230
        %v803 = vunpack.c.l.b16 %v231
        %v804 = vunpack.c.h.b16 %v231
        %v805 = vunpack.c.l.b16 %v232
        %v806 = vunpack.c.h.b16 %v232
        %v807 = vunpack.c.l.b16 %v233
        %v808 = vunpack.c.h.b16 %v233
        %v809 = vunpack.c.l.b16 %v234
        %v810 = vunpack.c.h.b16 %v234
        %v811 = vunpack.c.l.b16 %v235
        %v812 = vunpack.c.h.b16 %v235
        %v813 = vunpack.c.l.b16 %v236
        %v814 = vunpack.c.h.b16 %v236
        %v815 = vunpack.c.l.b16 %v237
        %v816 = vunpack.c.h.b16 %v237
        %v817 = vunpack.c.l.b16 %v238
        %v818 = vunpack.c.h.b16 %v238
        %v819 = vunpack.c.l.b16 %v239
        %v820 = vunpack.c.h.b16 %v239
        %v821 = vunpack.c.l.b16 %v240
        %v822 = vunpack.c.h.b16 %v240
        %v823 = vunpack.c.l.b16 %v241
        %v824 = vunpack.c.h.b16 %v241
        %v825 = vunpack.c.l.b16 %v242
        %v826 = vunpack.c.h.b16 %v242
        %v827 = vunpack.c.l.b16 %v243
        %v828 = vunpack.c.h.b16 %v243
        %v829 = vunpack.c.l.b16 %v244
        %v830 = vunpack.c.h.b16 %v244
        %v831 = vunpack.c.l.b16 %v245
        %v832 = vunpack.c.h.b16 %v245
        %v833 = vunpack.c.l.b16 %v246
        %v834 = vunpack.c.h.b16 %v246
        %v835 = vunpack.c.l.b16 %v247
        %v836 = vunpack.c.h.b16 %v247
        %v837 = vunpack.c.l.b16 %v248
        %v838 = vunpack.c.h.b16 %v248
        %v839 = vunpack.c.l.b16 %v249
        %v840 = vunpack.c.h.b16 %v249
        %v841 = vunpack.c.l.b16 %v250
        %v842 = vunpack.c.h.b16 %v250
        %v843 = vunpack.c.l.b16 %v251
        %v844 = vunpack.c.h.b16 %v251
        %v845 = vunpack.c.l.b16 %v252
        %v846 = vunpack.c.h.b16 %v252
        %v847 = vunpack.c.l.b16 %v253
        %v848 = vunpack.c.h.b16 %v253
        %v849 = vunpack.c.l.b16 %v254
        %v850 = vunpack.c.h.b16 %v254
        %v851 = vunpack.c.l.b16 %v255
        %v852 = vunpack.c.h.b16 %v255
        %v853 = vunpack.c.l.b16 %v256
        %v854 = vunpack.c.h.b16 %v256
        %v855 = vunpack.c.l.b16 %v257
        %v856 = vunpack.c.h.b16 %v257
        %v857 = vunpack.c.l.b16 %v258
        %v858 = vunpack.c.h.b16 %v258
        %v859 = vunpack.c.l.b16 %v259
        %v860 = vunpack.c.h.b16 %v259
        %v861 = vunpack.c.l.b16 %v260
        %v862 = vunpack.c.h.b16 %v260
        %v863 = vunpack.c.l.b16 %v261
        %v864 = vunpack.c.h.b16 %v261
        %v865 = vunpack.c.l.b16 %v262
        %v866 = vunpack.c.h.b16 %v262
        %v867 = vunpack.c.l.b16 %v263
        %v868 = vunpack.c.h.b16 %v263
        %v869 = vunpack.c.l.b16 %v264
        %v870 = vunpack.c.h.b16 %v264
        %v871 = vunpack.c.l.b16 %v265
        %v872 = vunpack.c.h.b16 %v265
        %v873 = vunpack.c.l.b16 %v266
        %v874 = vunpack.c.h.b16 %v266
        %v875 = vunpack.c.l.b16 %v267
        %v876 = vunpack.c.h.b16 %v267
        %v877 = vunpack.c.l.b16 %v268
        %v878 = vunpack.c.h.b16 %v268
        %v879 = vunpack.c.l.b16 %v269
        %v880 = vunpack.c.h.b16 %v269
        %v881 = vunpack.c.l.b16 %v270
        %v882 = vunpack.c.h.b16 %v270
        %v883 = vunpack.c.l.b16 %v271
        %v884 = vunpack.c.h.b16 %v271
        %v885 = vunpack.c.l.b16 %v272
        %v886 = vunpack.c.h.b16 %v272
        %v887 = vunpack.c.l.b16 %v273
        %v888 = vunpack.c.h.b16 %v273
        %v889 = vunpack.c.l.b16 %v274
        %v890 = vunpack.c.h.b16 %v274
        %v891 = vunpack.c.l.b16 %v275
        %v892 = vunpack.c.h.b16 %v275
        %v893 = vunpack.c.l.b16 %v276
        %v894 = vunpack.c.h.b16 %v276
        %v895 = vunpack.c.l.b16 %v277
        %v896 = vunpack.c.h.b16 %v277
        %v897 = vunpack.c.l.b16 %v278
        %v898 = vunpack.c.h.b16 %v278
        %v899 = vunpack.c.l.b16 %v279
        %v900 = vunpack.c.h.b16 %v279
        %v901 = vunpack.c.l.b16 %v280
        %v902 = vunpack.c.h.b16 %v280
        %v903 = vunpack.c.l.b16 %v281
        %v904 = vunpack.c.h.b16 %v281
        %v905 = vunpack.c.l.b16 %v282
        %v906 = vunpack.c.h.b16 %v282
        %v907 = vunpack.c.l.b16 %v283
        %v908 = vunpack.c.h.b16 %v283
        %v909 = vunpack.c.l.b16 %v284
        %v910 = vunpack.c.h.b16 %v284
        %v911 = vunpack.c.l.b16 %v285
        %v912 = vunpack.c.h.b16 %v285
        %v913 = vunpack.c.l.b16 %v286
        %v914 = vunpack.c.h.b16 %v286
        %v915 = vunpack.c.l.b16 %v287
        %v916 = vunpack.c.h.b16 %v287
        %v917 = vunpack.c.l.b16 %v288
        %v918 = vunpack.c.h.b16 %v288
        %v919 = vunpack.c.l.b16 %v289
        %v920 = vunpack.c.h.b16 %v289
        %v921 = vunpack.c.l.b16 %v290
        %v922 = vunpack.c.h.b16 %v290
        %v923 = vunpack.c.l.b16 %v291
        %v924 = vunpack.c.h.b16 %v291
        %v925 = vunpack.c.l.b16 %v292
        %v926 = vunpack.c.h.b16 %v292
        %v927 = vunpack.c.l.b16 %v293
        %v928 = vunpack.c.h.b16 %v293
        %v929 = vunpack.c.l.b16 %v294
        %v930 = vunpack.c.h.b16 %v294
        %v931 = vunpack.c.l.b16 %v295
        %v932 = vunpack.c.h.b16 %v295
        %v933 = vunpack.c.l.b16 %v296
        %v934 = vunpack.c.h.b16 %v296
        %v935 = vunpack.c.l.b16 %v297
        %v936 = vunpack.c.h.b16 %v297
        %v937 = vunpack.c.l.b16 %v298
        %v938 = vunpack.c.h.b16 %v298
        %v939 = vunpack.c.l.b16 %v299
        %v940 = vunpack.c.h.b16 %v299
        %v941 = vunpack.c.l.b16 %v300
        %v942 = vunpack.c.h.b16 %v300
        %v943 = vunpack.c.l.b16 %v301
        %v944 = vunpack.c.h.b16 %v301
        %v945 = vunpack.c.l.b16 %v302
        %v946 = vunpack.c.h.b16 %v302
        %v947 = vunpack.c.l.b16 %v303
        %v948 = vunpack.c.h.b16 %v303
        %v949 = vunpack.c.l.b16 %v304
        %v950 = vunpack.c.h.b16 %v304
        %v951 = vunpack.c.l.b16 %v305
        %v952 = vunpack.c.h.b16 %v305
        %v953 = vunpack.c.l.b16 %v306
        %v954 = vunpack.c.h.b16 %v306
        %v955 = vunpack.c.l.b16 %v307
        %v956 = vunpack.c.h.b16 %v307
        %v957 = vunpack.c.l.b16 %v308
        %v958 = vunpack.c.h.b16 %v308
        %v959 = vunpack.c.l.b16 %v309
        %v960 = vunpack.c.h.b16 %v309
        %v961 = vunpack.c.l.b16 %v310
        %v962 = vunpack.c.h.b16 %v310
        %v963 = vunpack.c.l.b16 %v311
        %v964 = vunpack.c.h.b16 %v311
        %v965 = vunpack.c.l.b16 %v312
        %v966 = vunpack.c.h.b16 %v312
        %v967 = vunpack.c.l.b16 %v313
        %v968 = vunpack.c.h.b16 %v313
        %v969 = vunpack.c.l.b16 %v314
        %v970 = vunpack.c.h.b16 %v314
        %v971 = vunpack.c.l.b16 %v315
        %v972 = vunpack.c.h.b16 %v315
        %v973 = vunpack.c.l.b16 %v316
        %v974 = vunpack.c.h.b16 %v316
        %v975 = vunpack.c.l.b16 %v317
        %v976 = vunpack.c.h.b16 %v317
        %v977 = vunpack.c.l.b16 %v318
        %v978 = vunpack.c.h.b16 %v318
        %v979 = vunpack.c.l.b16 %v319
        %v980 = vunpack.c.h.b16 %v319
        %v981 = vunpack.c.l.b16 %v320
        %v982 = vunpack.c.h.b16 %v320
        %v983 = vunpack.c.l.b16 %v321
        %v984 = vunpack.c.h.b16 %v321
        %v985 = vunpack.c.l.b16 %v322
        %v986 = vunpack.c.h.b16 %v322
        %v987 = vunpack.c.l.b16 %v323
        %v988 = vunpack.c.h.b16 %v323
        %v989 = vunpack.c.l.b16 %v324
        %v990 = vunpack.c.h.b16 %v324
        %v991 = vunpack.c.l.b16 %v325
        %v992 = vunpack.c.h.b16 %v325
        %v993 = vunpack.c.l.b16 %v326
        %v994 = vunpack.c.h.b16 %v326
        %v995 = vunpack.c.l.b16 %v327
        %v996 = vunpack.c.h.b16 %v327
        %v997 = vunpack.c.l.b16 %v328
        %v998 = vunpack.c.h.b16 %v328
        %v999 = vunpack.c.l.b16 %v329
        %v1000 = vunpack.c.h.b16 %v329
        %v1001 = vunpack.c.l.b16 %v330
        %v1002 = vunpack.c.h.b16 %v330
        %v1003 = vunpack.c.l.b16 %v331
        %v1004 = vunpack.c.h.b16 %v331
        %v1005 = vunpack.c.l.b16 %v332
        %v1006 = vunpack.c.h.b16 %v332
        %v1007 = vunpack.c.l.b16 %v333
        %v1008 = vunpack.c.h.b16 %v333
        %v1009 = vunpack.c.l.b16 %v334
        %v1010 = vunpack.c.h.b16 %v334
        %v1011 = vunpack.c.l.b16 %v335
        %v1012 = vunpack.c.h.b16 %v335
        %v1013 = vunpack.c.l.b16 %v336
        %v1014 = vunpack.c.h.b16 %v336
        %v1015 = vunpack.c.l.b16 %v337
        %v1016 = vunpack.c.h.b16 %v337
        %v1017 = vunpack.c.l.b16 %v338
        %v1018 = vunpack.c.h.b16 %v338
        %v1019 = vunpack.c.l.b16 %v339
        %v1020 = vunpack.c.h.b16 %v339
        %v1021 = vunpack.c.l.b16 %v340
        %v1022 = vunpack.c.h.b16 %v340
        %v1023 = vunpack.c.l.b16 %v341
        %v1024 = vunpack.c.h.b16 %v341
        %v1025 = vunpack.c.l.b16 %v342
        %v1026 = vunpack.c.h.b16 %v342
        %v1027 = vunpack.c.l.b16 %v343
        %v1028 = vunpack.c.h.b16 %v343
        %v1029 = vunpack.c.l.b16 %v344
        %v1030 = vunpack.c.h.b16 %v344
        %v1031 = vunpack.c.l.b16 %v345
        %v1032 = vunpack.c.h.b16 %v345
        %v1033 = vunpack.c.l.b16 %v346
        %v1034 = vunpack.c.h.b16 %v346
        %v1035 = vunpack.c.l.b16 %v347
        %v1036 = vunpack.c.h.b16 %v347
        %v1037 = vunpack.c.l.b16 %v348
        %v1038 = vunpack.c.h.b16 %v348
        %v1039 = vunpack.c.l.b16 %v349
        %v1040 = vunpack.c.h.b16 %v349
        %v1041 = vunpack.c.l.b16 %v350
        %v1042 = vunpack.c.h.b16 %v350
        %v1043 = vunpack.c.l.b16 %v351
        %v1044 = vunpack.c.h.b16 %v351
        %v1045 = vunpack.c.l.b16 %v352
        %v1046 = vunpack.c.h.b16 %v352
        %v1047 = vunpack.c.l.b16 %v353
        %v1048 = vunpack.c.h.b16 %v353
        %v1049 = vunpack.c.l.b16 %v354
        %v1050 = vunpack.c.h.b16 %v354
        %v1051 = vunpack.c.l.b16 %v355
        %v1052 = vunpack.c.h.b16 %v355
        %v1053 = vunpack.c.l.b16 %v356
        %v1054 = vunpack.c.h.b16 %v356
        %v1055 = vunpack.c.l.b16 %v357
        %v1056 = vunpack.c.h.b16 %v357
        %v1057 = vunpack.c.l.b16 %v358
        %v1058 = vunpack.c.h.b16 %v358
        %v1059 = vunpack.c.l.b16 %v359
        %v1060 = vunpack.c.h.b16 %v359
        %v1061 = vunpack.c.l.b16 %v360
        %v1062 = vunpack.c.h.b16 %v360
        %v1063 = vunpack.c.l.b16 %v361
        %v1064 = vunpack.c.h.b16 %v361
        %v1065 = vunpack.c.l.b16 %v362
        %v1066 = vunpack.c.h.b16 %v362
        %v1067 = vunpack.c.l.b16 %v363
        %v1068 = vunpack.c.h.b16 %v363
        %v1069 = vunpack.c.l.b16 %v364
        %v1070 = vunpack.c.h.b16 %v364
        %v1071 = vunpack.c.l.b16 %v365
        %v1072 = vunpack.c.h.b16 %v365
        %v1073 = vunpack.c.l.b16 %v366
        %v1074 = vunpack.c.h.b16 %v366
        %v1075 = vunpack.c.l.b16 %v367
        %v1076 = vunpack.c.h.b16 %v367
        %v1077 = vunpack.c.l.b16 %v368
        %v1078 = vunpack.c.h.b16 %v368
        %v1079 = vunpack.c.l.b16 %v369
        %v1080 = vunpack.c.h.b16 %v369
        %v1081 = vunpack.c.l.b16 %v370
        %v1082 = vunpack.c.h.b16 %v370
        %v1083 = vunpack.c.l.b16 %v371
        %v1084 = vunpack.c.h.b16 %v371
        %v1085 = vunpack.c.l.b16 %v372
        %v1086 = vunpack.c.h.b16 %v372
        %v1087 = vunpack.c.l.b16 %v373
        %v1088 = vunpack.c.h.b16 %v373
        %v1089 = vunpack.c.l.b16 %v374
        %v1090 = vunpack.c.h.b16 %v374
        %v1091 = vunpack.c.l.b16 %v375
        %v1092 = vunpack.c.h.b16 %v375
        %v1093 = vunpack.c.l.b16 %v376
        %v1094 = vunpack.c.h.b16 %v376
        %v1095 = vunpack.c.l.b16 %v377
        %v1096 = vunpack.c.h.b16 %v377
        %v1097 = vunpack.c.l.b16 %v378
        %v1098 = vunpack.c.h.b16 %v378
        %v1099 = vunpack.c.l.b16 %v379
        %v1100 = vunpack.c.h.b16 %v379
        %v1101 = vunpack.c.l.b16 %v380
        %v1102 = vunpack.c.h.b16 %v380
        %v1103 = vunpack.c.l.b16 %v381
        %v1104 = vunpack.c.h.b16 %v381
        %v1105 = vunpack.c.l.b16 %v382
        %v1106 = vunpack.c.h.b16 %v382
        %v1107 = vunpack.c.l.b16 %v383
        %v1108 = vunpack.c.h.b16 %v383
        %v1109 = vunpack.c.l.b16 %v384
        %v1110 = vunpack.c.h.b16 %v384
        %v1111 = vunpack.c.l.b16 %v385
        %v1112 = vunpack.c.h.b16 %v385
        %v1113 = vunpack.c.l.b16 %v386
        %v1114 = vunpack.c.h.b16 %v386
        %v1115 = vunpack.c.l.b16 %v387
        %v1116 = vunpack.c.h.b16 %v387
        %v1117 = vunpack.c.l.b16 %v388
        %v1118 = vunpack.c.h.b16 %v388
        %v1119 = vunpack.c.l.b16 %v389
        %v1120 = vunpack.c.h.b16 %v389
        %v1121 = vunpack.c.l.b16 %v390
        %v1122 = vunpack.c.h.b16 %v390
        %v1123 = vunpack.c.l.b16 %v391
        %v1124 = vunpack.c.h.b16 %v391
        %v1125 = vunpack.c.l.b16 %v392
        %v1126 = vunpack.c.h.b16 %v392
        %v1127 = vunpack.c.l.b16 %v393
        %v1128 = vunpack.c.h.b16 %v393
        %v1129 = vunpack.c.l.b16 %v394
        %v1130 = vunpack.c.h.b16 %v394
        %v1131 = vunpack.c.l.b16 %v395
        %v1132 = vunpack.c.h.b16 %v395
        %v1133 = vunpack.c.l.b16 %v396
        %v1134 = vunpack.c.h.b16 %v396
        %v1135 = vunpack.c.l.b16 %v397
        %v1136 = vunpack.c.h.b16 %v397
        %v1137 = vunpack.c.l.b16 %v398
        %v1138 = vunpack.c.h.b16 %v398
        %v1139 = vunpack.c.l.b16 %v399
        %v1140 = vunpack.c.h.b16 %v399
        %v1141 = vunpack.c.l.b16 %v400
        %v1142 = vunpack.c.h.b16 %v400
        %v1143 = vunpack.c.l.b16 %v401
        %v1144 = vunpack.c.h.b16 %v401
        %v1145 = vunpack.c.l.b16 %v402
        %v1146 = vunpack.c.h.b16 %v402
        %v1147 = vunpack.c.l.b16 %v403
        %v1148 = vunpack.c.h.b16 %v403
        %v1149 = vunpack.c.l.b16 %v404
        %v1150 = vunpack.c.h.b16 %v404
        %v1151 = vunpack.c.l.b16 %v405
        %v1152 = vunpack.c.h.b16 %v405
        %v1153 = vunpack.c.l.b16 %v406
        %v1154 = vunpack.c.h.b16 %v406
        %v1155 = vunpack.c.l.b16 %v407
        %v1156 = vunpack.c.h.b16 %v407
        %v1157 = vunpack.c.l.b16 %v408
        %v1158 = vunpack.c.h.b16 %v408
        %v1159 = vunpack.c.l.b16 %v409
        %v1160 = vunpack.c.h.b16 %v409
        %v1161 = vunpack.c.l.b16 %v410
        %v1162 = vunpack.c.h.b16 %v410
        %v1163 = vunpack.c.l.b16 %v411
        %v1164 = vunpack.c.h.b16 %v411
        %v1165 = vunpack.c.l.b16 %v412
        %v1166 = vunpack.c.h.b16 %v412
        %v1167 = vunpack.c.l.b16 %v413
        %v1168 = vunpack.c.h.b16 %v413
        %v1169 = vunpack.c.l.b16 %v414
        %v1170 = vunpack.c.h.b16 %v414
        %v1171 = vunpack.c.l.b16 %v415
        %v1172 = vunpack.c.h.b16 %v415
        %v1173 = vunpack.c.l.b16 %v416
        %v1174 = vunpack.c.h.b16 %v416
        %v1175 = vunpack.c.l.b16 %v417
        %v1176 = vunpack.c.h.b16 %v417
        %v1177 = vunpack.c.l.b16 %v418
        %v1178 = vunpack.c.h.b16 %v418
        %v1179 = vunpack.c.l.b16 %v419
        %v1180 = vunpack.c.h.b16 %v419
        %v1181 = vunpack.c.l.b16 %v420
        %v1182 = vunpack.c.h.b16 %v420
        %v1183 = vunpack.c.l.b16 %v421
        %v1184 = vunpack.c.h.b16 %v421
        %v1185 = vunpack.c.l.b16 %v422
        %v1186 = vunpack.c.h.b16 %v422
        %v1187 = vunpack.c.l.b16 %v423
        %v1188 = vunpack.c.h.b16 %v423
        %v1189 = vunpack.c.l.b16 %v424
        %v1190 = vunpack.c.h.b16 %v424
        %v1191 = vunpack.c.l.b16 %v425
        %v1192 = vunpack.c.h.b16 %v425
        %v1193 = vunpack.c.l.b16 %v426
        %v1194 = vunpack.c.h.b16 %v426
        %v1195 = vunpack.c.l.b16 %v427
        %v1196 = vunpack.c.h.b16 %v427
        %v1197 = vunpack.c.l.b16 %v428
        %v1198 = vunpack.c.h.b16 %v428
        %v1199 = vunpack.c.l.b16 %v429
        %v1200 = vunpack.c.h.b16 %v429
        %v1201 = vunpack.c.l.b16 %v430
        %v1202 = vunpack.c.h.b16 %v430
        %v1203 = vunpack.c.l.b16 %v431
        %v1204 = vunpack.c.h.b16 %v431
        %v1205 = vunpack.c.l.b16 %v432
        %v1206 = vunpack.c.h.b16 %v432
        %v1207 = vunpack.c.l.b16 %v433
        %v1208 = vunpack.c.h.b16 %v433
        %v1209 = vunpack.c.l.b16 %v434
        %v1210 = vunpack.c.h.b16 %v434
        %v1211 = vunpack.c.l.b16 %v435
        %v1212 = vunpack.c.h.b16 %v435
        %v1213 = vunpack.c.l.b16 %v436
        %v1214 = vunpack.c.h.b16 %v436
        %v1215 = vpack.c.b16 %v719, %v703
        %v1216 = vpack.c.b16 %v720, %v704
        %v1217 = vpack.c.b16 %v721, %v705
        %v1218 = vpack.c.b16 %v722, %v706
        %v1219 = vpack.c.b16 %v723, %v707
        %v1220 = vpack.c.b16 %v724, %v708
        %v1221 = vpack.c.b16 %v725, %v709
        %v1222 = vpack.c.b16 %v726, %v710
        %v1223 = vpack.c.b16 %v727, %v711
        %v1224 = vpack.c.b16 %v728, %v712
        %v1225 = vpack.c.b16 %v729, %v713
        %v1226 = vpack.c.b16 %v730, %v714
        %v1227 = vpack.c.b16 %v731, %v715
        %v1228 = vpack.c.b16 %v732, %v716
        %v1229 = vpack.c.b16 %v733, %v717
        %v1230 = vpack.c.b16 %v734, %v718
        %v1231 = vpack.c.b16 %v751, %v735
        %v1232 = vpack.c.b16 %v752, %v736
        %v1233 = vpack.c.b16 %v753, %v737
        %v1234 = vpack.c.b16 %v754, %v738
        %v1235 = vpack.c.b16 %v755, %v739
        %v1236 = vpack.c.b16 %v756, %v740
        %v1237 = vpack.c.b16 %v757, %v741
        %v1238 = vpack.c.b16 %v758, %v742
        %v1239 = vpack.c.b16 %v759, %v743
        %v1240 = vpack.c.b16 %v760, %v744
        %v1241 = vpack.c.b16 %v761, %v745
        %v1242 = vpack.c.b16 %v762, %v746
        %v1243 = vpack.c.b16 %v763, %v747
        %v1244 = vpack.c.b16 %v764, %v748
        %v1245 = vpack.c.b16 %v765, %v749
        %v1246 = vpack.c.b16 %v766, %v750
        %v1247 = vpack.c.b16 %v783, %v767
        %v1248 = vpack.c.b16 %v784, %v768
        %v1249 = vpack.c.b16 %v785, %v769
        %v1250 = vpack.c.b16 %v786, %v770
        %v1251 = vpack.c.b16 %v787, %v771
        %v1252 = vpack.c.b16 %v788, %v772
        %v1253 = vpack.c.b16 %v789, %v773
        %v1254 = vpack.c.b16 %v790, %v774
        %v1255 = vpack.c.b16 %v791, %v775
        %v1256 = vpack.c.b16 %v792, %v776
        %v1257 = vpack.c.b16 %v793, %v777
        %v1258 = vpack.c.b16 %v794, %v778
        %v1259 = vpack.c.b16 %v795, %v779
        %v1260 = vpack.c.b16 %v796, %v780
        %v1261 = vpack.c.b16 %v797, %v781
        %v1262 = vpack.c.b16 %v798, %v782
        %v1263 = vpack.c.b16 %v815, %v799
        %v1264 = vpack.c.b16 %v816, %v800
        %v1265 = vpack.c.b16 %v817, %v801
        %v1266 = vpack.c.b16 %v818, %v802
        %v1267 = vpack.c.b16 %v819, %v803
        %v1268 = vpack.c.b16 %v820, %v804
        %v1269 = vpack.c.b16 %v821, %v805
        %v1270 = vpack.c.b16 %v822, %v806
        %v1271 = vpack.c.b16 %v823, %v807
        %v1272 = vpack.c.b16 %v824, %v808
        %v1273 = vpack.c.b16 %v825, %v809
        %v1274 = vpack.c.b16 %v826, %v810
        %v1275 = vpack.c.b16 %v827, %v811
        %v1276 = vpack.c.b16 %v828, %v812
        %v1277 = vpack.c.b16 %v829, %v813
        %v1278 = vpack.c.b16 %v830, %v814
        %v1279 = vpack.c.b16 %v847, %v831
        %v1280 = vpack.c.b16 %v848, %v832
        %v1281 = vpack.c.b16 %v849, %v833
        %v1282 = vpack.c.b16 %v850, %v834
        %v1283 = vpack.c.b16 %v851, %v835
        %v1284 = vpack.c.b16 %v852, %v836
        %v1285 = vpack.c.b16 %v853, %v837
        %v1286 = vpack.c.b16 %v854, %v838
        %v1287 = vpack.c.b16 %v855, %v839
        %v1288 = vpack.c.b16 %v856, %v840
        %v1289 = vpack.c.b16 %v857, %v841
        %v1290 = vpack.c.b16 %v858, %v842
        %v1291 = vpack.c.b16 %v859, %v843
        %v1292 = vpack.c.b16 %v860, %v844
        %v1293 = vpack.c.b16 %v861, %v845
        %v1294 = vpack.c.b16 %v862, %v846
        %v1295 = vpack.c.b16 %v879, %v863
        %v1296 = vpack.c.b16 %v880, %v864
        %v1297 = vpack.c.b16 %v881, %v865
        %v1298 = vpack.c.b16 %v882, %v866
        %v1299 = vpack.c.b16 %v883, %v867
        %v1300 = vpack.c.b16 %v884, %v868
        %v1301 = vpack.c.b16 %v885, %v869
        %v1302 = vpack.c.b16 %v886, %v870
        %v1303 = vpack.c.b16 %v887, %v871
        %v1304 = vpack.c.b16 %v888, %v872
        %v1305 = vpack.c.b16 %v889, %v873
        %v1306 = vpack.c.b16 %v890, %v874
        %v1307 = vpack.c.b16 %v891, %v875
        %v1308 = vpack.c.b16 %v892, %v876
        %v1309 = vpack.c.b16 %v893, %v877
        %v1310 = vpack.c.b16 %v894, %v878
        %v1311 = vpack.c.b16 %v911, %v895
        %v1312 = vpack.c.b16 %v912, %v896
        %v1313 = vpack.c.b16 %v913, %v897
        %v1314 = vpack.c.b16 %v914, %v898
        %v1315 = vpack.c.b16 %v915, %v899
        %v1316 = vpack.c.b16 %v916, %v900
        %v1317 = vpack.c.b16 %v917, %v901
        %v1318 = vpack.c.b16 %v918, %v902
        %v1319 = vpack.c.b16 %v919, %v903
        %v1320 = vpack.c.b16 %v920, %v904
        %v1321 = vpack.c.b16 %v921, %v905
        %v1322 = vpack.c.b16 %v922, %v906
        %v1323 = vpack.c.b16 %v923, %v907
        %v1324 = vpack.c.b16 %v924, %v908
        %v1325 = vpack.c.b16 %v925, %v909
        %v1326 = vpack.c.b16 %v926, %v910
        %v1327 = vpack.c.b16 %v943, %v927
        %v1328 = vpack.c.b16 %v944, %v928
        %v1329 = vpack.c.b16 %v945, %v929
        %v1330 = vpack.c.b16 %v946, %v930
        %v1331 = vpack.c.b16 %v947, %v931
        %v1332 = vpack.c.b16 %v948, %v932
        %v1333 = vpack.c.b16 %v949, %v933
        %v1334 = vpack.c.b16 %v950, %v934
        %v1335 = vpack.c.b16 %v951, %v935
        %v1336 = vpack.c.b16 %v952, %v936
        %v1337 = vpack.c.b16 %v953, %v937
        %v1338 = vpack.c.b16 %v954, %v938
        %v1339 = vpack.c.b16 %v955, %v939
        %v1340 = vpack.c.b16 %v956, %v940
        %v1341 = vpack.c.b16 %v957, %v941
        %v1342 = vpack.c.b16 %v958, %v942
        %v1343 = vpack.c.b16 %v975, %v959
        %v1344 = vpack.c.b16 %v976, %v960
        %v1345 = vpack.c.b16 %v977, %v961
        %v1346 = vpack.c.b16 %v978, %v962
        %v1347 = vpack.c.b16 %v979, %v963
        %v1348 = vpack.c.b16 %v980, %v964
        %v1349 = vpack.c.b16 %v981, %v965
        %v1350 = vpack.c.b16 %v982, %v966
        %v1351 = vpack.c.b16 %v983, %v967
        %v1352 = vpack.c.b16 %v984, %v968
        %v1353 = vpack.c.b16 %v985, %v969
        %v1354 = vpack.c.b16 %v986, %v970
        %v1355 = vpack.c.b16 %v987, %v971
        %v1356 = vpack.c.b16 %v988, %v972
        %v1357 = vpack.c.b16 %v989, %v973
        %v1358 = vpack.c.b16 %v990, %v974
        %v1359 = vpack.c.b16 %v1007, %v991
        %v1360 = vpack.c.b16 %v1008, %v992
        %v1361 = vpack.c.b16 %v1009, %v993
        %v1362 = vpack.c.b16 %v1010, %v994
        %v1363 = vpack.c.b16 %v1011, %v995
        %v1364 = vpack.c.b16 %v1012, %v996
        %v1365 = vpack.c.b16 %v1013, %v997
        %v1366 = vpack.c.b16 %v1014, %v998
        %v1367 = vpack.c.b16 %v1015, %v999
        %v1368 = vpack.c.b16 %v1016, %v1000
        %v1369 = vpack.c.b16 %v1017, %v1001
        %v1370 = vpack.c.b16 %v1018, %v1002
        %v1371 = vpack.c.b16 %v1019, %v1003
        %v1372 = vpack.c.b16 %v1020, %v1004
        %v1373 = vpack.c.b16 %v1021, %v1005
        %v1374 = vpack.c.b16 %v1022, %v1006
        %v1375 = vpack.c.b16 %v1039, %v1023
        %v1376 = vpack.c.b16 %v1040, %v1024
        %v1377 = vpack.c.b16 %v1041, %v1025
        %v1378 = vpack.c.b16 %v1042, %v1026
        %v1379 = vpack.c.b16 %v1043, %v1027
        %v1380 = vpack.c.b16 %v1044, %v1028
        %v1381 = vpack.c.b16 %v1045, %v1029
        %v1382 = vpack.c.b16 %v1046, %v1030
        %v1383 = vpack.c.b16 %v1047, %v1031
        %v1384 = vpack.c.b16 %v1048, %v1032
        %v1385 = vpack.c.b16 %v1049, %v1033
        %v1386 = vpack.c.b16 %v1050, %v1034
        %v1387 = vpack.c.b16 %v1051, %v1035
        %v1388 = vpack.c.b16 %v1052, %v1036
        %v1389 = vpack.c.b16 %v1053, %v1037
        %v1390 = vpack.c.b16 %v1054, %v1038
        %v1391 = vpack.c.b16 %v1071, %v1055
        %v1392 = vpack.c.b16 %v1072, %v1056
        %v1393 = vpack.c.b16 %v1073, %v1057
        %v1394 = vpack.c.b16 %v1074, %v1058
        %v1395 = vpack.c.b16 %v1075, %v1059
        %v1396 = vpack.c.b16 %v1076, %v1060
        %v1397 = vpack.c.b16 %v1077, %v1061
        %v1398 = vpack.c.b16 %v1078, %v1062
        %v1399 = vpack.c.b16 %v1079, %v1063
        %v1400 = vpack.c.b16 %v1080, %v1064
        %v1401 = vpack.c.b16 %v1081, %v1065
        %v1402 = vpack.c.b16 %v1082, %v1066
        %v1403 = vpack.c.b16 %v1083, %v1067
        %v1404 = vpack.c.b16 %v1084, %v1068
        %v1405 = vpack.c.b16 %v1085, %v1069
        %v1406 = vpack.c.b16 %v1086, %v1070
        %v1407 = vpack.c.b16 %v1103, %v1087
        %v1408 = vpack.c.b16 %v1104, %v1088
        %v1409 = vpack.c.b16 %v1105, %v1089
        %v1410 = vpack.c.b16 %v1106, %v1090
        %v1411 = vpack.c.b16 %v1107, %v1091
        %v1412 = vpack.c.b16 %v1108, %v1092
        %v1413 = vpack.c.b16 %v1109, %v1093
        %v1414 = vpack.c.b16 %v1110, %v1094
        %v1415 = vpack.c.b16 %v1111, %v1095
        %v1416 = vpack.c.b16 %v1112, %v1096
        %v1417 = vpack.c.b16 %v1113, %v1097
        %v1418 = vpack.c.b16 %v1114, %v1098
        %v1419 = vpack.c.b16 %v1115, %v1099
        %v1420 = vpack.c.b16 %v1116, %v1100
        %v1421 = vpack.c.b16 %v1117, %v1101
        %v1422 = vpack.c.b16 %v1118, %v1102
        %v1423 = vpack.c.b16 %v1135, %v1119
        %v1424 = vpack.c.b16 %v1136, %v1120
        %v1425 = vpack.c.b16 %v1137, %v1121
        %v1426 = vpack.c.b16 %v1138, %v1122
        %v1427 = vpack.c.b16 %v1139, %v1123
        %v1428 = vpack.c.b16 %v1140, %v1124
        %v1429 = vpack.c.b16 %v1141, %v1125
        %v1430 = vpack.c.b16 %v1142, %v1126
        %v1431 = vpack.c.b16 %v1143, %v1127
        %v1432 = vpack.c.b16 %v1144, %v1128
        %v1433 = vpack.c.b16 %v1145, %v1129
        %v1434 = vpack.c.b16 %v1146, %v1130
        %v1435 = vpack.c.b16 %v1147, %v1131
        %v1436 = vpack.c.b16 %v1148, %v1132
        %v1437 = vpack.c.b16 %v1149, %v1133
        %v1438 = vpack.c.b16 %v1150, %v1134
        %v1439 = vpack.c.b16 %v1167, %v1151
        %v1440 = vpack.c.b16 %v1168, %v1152
        %v1441 = vpack.c.b16 %v1169, %v1153
        %v1442 = vpack.c.b16 %v1170, %v1154
        %v1443 = vpack.c.b16 %v1171, %v1155
        %v1444 = vpack.c.b16 %v1172, %v1156
        %v1445 = vpack.c.b16 %v1173, %v1157
        %v1446 = vpack.c.b16 %v1174, %v1158
        %v1447 = vpack.c.b16 %v1175, %v1159
        %v1448 = vpack.c.b16 %v1176, %v1160
        %v1449 = vpack.c.b16 %v1177, %v1161
        %v1450 = vpack.c.b16 %v1178, %v1162
        %v1451 = vpack.c.b16 %v1179, %v1163
        %v1452 = vpack.c.b16 %v1180, %v1164
        %v1453 = vpack.c.b16 %v1181, %v1165
        %v1454 = vpack.c.b16 %v1182, %v1166
        %v1455 = vpack.c.b16 %v1199, %v1183
        %v1456 = vpack.c.b16 %v1200, %v1184
        %v1457 = vpack.c.b16 %v1201, %v1185
        %v1458 = vpack.c.b16 %v1202, %v1186
        %v1459 = vpack.c.b16 %v1203, %v1187
        %v1460 = vpack.c.b16 %v1204, %v1188
        %v1461 = vpack.c.b16 %v1205, %v1189
        %v1462 = vpack.c.b16 %v1206, %v1190
        %v1463 = vpack.c.b16 %v1207, %v1191
        %v1464 = vpack.c.b16 %v1208, %v1192
        %v1465 = vpack.c.b16 %v1209, %v1193
        %v1466 = vpack.c.b16 %v1210, %v1194
        %v1467 = vpack.c.b16 %v1211, %v1195
        %v1468 = vpack.c.b16 %v1212, %v1196
        %v1469 = vpack.c.b16 %v1213, %v1197
        %v1470 = vpack.c.b16 %v1214, %v1198
        %1727 = vmatprep.subr.bf16.mxu0 %v1216
        %1728 = vmatpush1.bf16.msra.mxu0 %v1215
        %1729 = vmatprep.subr.bf16.mxu0 %v1232
        %1730 = vmatpush1.bf16.msra.mxu0 %v1231
        %1731 = vmatprep.subr.bf16.mxu0 %v1248
        %1732 = vmatpush1.bf16.msra.mxu0 %v1247
        %1733 = vmatprep.subr.bf16.mxu0 %v1264
        %1734 = vmatpush1.bf16.msra.mxu0 %v1263
        %1735 = vmatprep.subr.bf16.mxu0 %v1280
        %1736 = vmatpush1.bf16.msra.mxu0 %v1279
        %1737 = vmatprep.subr.bf16.mxu0 %v1296
        %1738 = vmatpush1.bf16.msra.mxu0 %v1295
        %1739 = vmatprep.subr.bf16.mxu0 %v1312
        %1740 = vmatpush1.bf16.msra.mxu0 %v1311
        %1741 = vmatprep.subr.bf16.mxu0 %v1328
        %1742 = vmatpush1.bf16.msra.mxu0 %v1327
        %1743 = vmatprep.subr.bf16.mxu0 %v1344
        %1744 = vmatpush1.bf16.msra.mxu0 %v1343
        %1745 = vmatprep.subr.bf16.mxu0 %v1360
        %1746 = vmatpush1.bf16.msra.mxu0 %v1359
        %1747 = vmatprep.subr.bf16.mxu0 %v1376
        %1748 = vmatpush1.bf16.msra.mxu0 %v1375
        %1749 = vmatprep.subr.bf16.mxu0 %v1392
        %1750 = vmatpush1.bf16.msra.mxu0 %v1391
        %1751 = vmatprep.subr.bf16.mxu0 %v1408
        %1752 = vmatpush1.bf16.msra.mxu0 %v1407
        %1753 = vmatprep.subr.bf16.mxu0 %v1424
        %1754 = vmatpush1.bf16.msra.mxu0 %v1423
        %1755 = vmatprep.subr.bf16.mxu0 %v1440
        %1756 = vmatpush1.bf16.msra.mxu0 %v1439
        %1757 = vmatprep.subr.bf16.mxu0 %v1456
        %1758 = vmatpush1.bf16.msra.mxu0 %v1455
        %1759 = vmatprep.mubr.bf16.mxu0 %v444
        %1760 = vmatmul.mubr.bf16.gmra.mrb[0].mxu0 %v443
        %v1761 = vpop.f32.mrb[0].mxu0
        %v1762 = vadd.f32 0.0, %v1761
        %v1763 = vpop.f32.mrb[0].mxu0
        %v1764 = vadd.f32 0.0, %v1763
        %v1765 = vpop.f32.mrb[0].mxu0
        %v1766 = vadd.f32 0.0, %v1765
        %v1767 = vpop.f32.mrb[0].mxu0
        %v1768 = vadd.f32 0.0, %v1767
        %1769 = vdwg.mxu0
        %1770 = vmatprep.subr.bf16.mxu0 %v1218
        %1771 = vmatpush1.bf16.msra.mxu0 %v1217
        %1772 = vmatprep.subr.bf16.mxu0 %v1234
        %1773 = vmatpush1.bf16.msra.mxu0 %v1233
        %1774 = vmatprep.subr.bf16.mxu0 %v1250
        %1775 = vmatpush1.bf16.msra.mxu0 %v1249
        %1776 = vmatprep.subr.bf16.mxu0 %v1266
        %1777 = vmatpush1.bf16.msra.mxu0 %v1265
        %1778 = vmatprep.subr.bf16.mxu0 %v1282
        %1779 = vmatpush1.bf16.msra.mxu0 %v1281
        %1780 = vmatprep.subr.bf16.mxu0 %v1298
        %1781 = vmatpush1.bf16.msra.mxu0 %v1297
        %1782 = vmatprep.subr.bf16.mxu0 %v1314
        %1783 = vmatpush1.bf16.msra.mxu0 %v1313
        %1784 = vmatprep.subr.bf16.mxu0 %v1330
        %1785 = vmatpush1.bf16.msra.mxu0 %v1329
        %1786 = vmatprep.subr.bf16.mxu0 %v1346
        %1787 = vmatpush1.bf16.msra.mxu0 %v1345
        %1788 = vmatprep.subr.bf16.mxu0 %v1362
        %1789 = vmatpush1.bf16.msra.mxu0 %v1361
        %1790 = vmatprep.subr.bf16.mxu0 %v1378
        %1791 = vmatpush1.bf16.msra.mxu0 %v1377
        %1792 = vmatprep.subr.bf16.mxu0 %v1394
        %1793 = vmatpush1.bf16.msra.mxu0 %v1393
        %1794 = vmatprep.subr.bf16.mxu0 %v1410
        %1795 = vmatpush1.bf16.msra.mxu0 %v1409
        %1796 = vmatprep.subr.bf16.mxu0 %v1426
        %1797 = vmatpush1.bf16.msra.mxu0 %v1425
        %1798 = vmatprep.subr.bf16.mxu0 %v1442
        %1799 = vmatpush1.bf16.msra.mxu0 %v1441
        %1800 = vmatprep.subr.bf16.mxu0 %v1458
        %1801 = vmatpush1.bf16.msra.mxu0 %v1457
        %1802 = vmatprep.mubr.bf16.mxu0 %v444
        %1803 = vmatmul.mubr.bf16.gmra.mrb[0].mxu0 %v443
        %v1804 = vpop.f32.mrb[0].mxu0
        %v1805 = vadd.f32 0.0, %v1804
        %v1806 = vpop.f32.mrb[0].mxu0
        %v1807 = vadd.f32 0.0, %v1806
        %v1808 = vpop.f32.mrb[0].mxu0
        %v1809 = vadd.f32 0.0, %v1808
        %v1810 = vpop.f32.mrb[0].mxu0
        %v1811 = vadd.f32 0.0, %v1810
        %1812 = vdwg.mxu0
        %1813 = vmatprep.subr.bf16.mxu0 %v1220
        %1814 = vmatpush1.bf16.msra.mxu0 %v1219
        %1815 = vmatprep.subr.bf16.mxu0 %v1236
        %1816 = vmatpush1.bf16.msra.mxu0 %v1235
        %1817 = vmatprep.subr.bf16.mxu0 %v1252
        %1818 = vmatpush1.bf16.msra.mxu0 %v1251
        %1819 = vmatprep.subr.bf16.mxu0 %v1268
        %1820 = vmatpush1.bf16.msra.mxu0 %v1267
        %1821 = vmatprep.subr.bf16.mxu0 %v1284
        %1822 = vmatpush1.bf16.msra.mxu0 %v1283
        %1823 = vmatprep.subr.bf16.mxu0 %v1300
        %1824 = vmatpush1.bf16.msra.mxu0 %v1299
        %1825 = vmatprep.subr.bf16.mxu0 %v1316
        %1826 = vmatpush1.bf16.msra.mxu0 %v1315
        %1827 = vmatprep.subr.bf16.mxu0 %v1332
        %1828 = vmatpush1.bf16.msra.mxu0 %v1331
        %1829 = vmatprep.subr.bf16.mxu0 %v1348
        %1830 = vmatpush1.bf16.msra.mxu0 %v1347
        %1831 = vmatprep.subr.bf16.mxu0 %v1364
        %1832 = vmatpush1.bf16.msra.mxu0 %v1363
        %1833 = vmatprep.subr.bf16.mxu0 %v1380
        %1834 = vmatpush1.bf16.msra.mxu0 %v1379
        %1835 = vmatprep.subr.bf16.mxu0 %v1396
        %1836 = vmatpush1.bf16.msra.mxu0 %v1395
        %1837 = vmatprep.subr.bf16.mxu0 %v1412
        %1838 = vmatpush1.bf16.msra.mxu0 %v1411
        %1839 = vmatprep.subr.bf16.mxu0 %v1428
        %1840 = vmatpush1.bf16.msra.mxu0 %v1427
        %1841 = vmatprep.subr.bf16.mxu0 %v1444
        %1842 = vmatpush1.bf16.msra.mxu0 %v1443
        %1843 = vmatprep.subr.bf16.mxu0 %v1460
        %1844 = vmatpush1.bf16.msra.mxu0 %v1459
        %1845 = vmatprep.mubr.bf16.mxu0 %v444
        %1846 = vmatmul.mubr.bf16.gmra.mrb[0].mxu0 %v443
        %v1847 = vpop.f32.mrb[0].mxu0
        %v1848 = vadd.f32 0.0, %v1847
        %v1849 = vpop.f32.mrb[0].mxu0
        %v1850 = vadd.f32 0.0, %v1849
        %v1851 = vpop.f32.mrb[0].mxu0
        %v1852 = vadd.f32 0.0, %v1851
        %v1853 = vpop.f32.mrb[0].mxu0
        %v1854 = vadd.f32 0.0, %v1853
        %1855 = vdwg.mxu0
        %1856 = vmatprep.subr.bf16.mxu0 %v1222
        %1857 = vmatpush1.bf16.msra.mxu0 %v1221
        %1858 = vmatprep.subr.bf16.mxu0 %v1238
        %1859 = vmatpush1.bf16.msra.mxu0 %v1237
        %1860 = vmatprep.subr.bf16.mxu0 %v1254
        %1861 = vmatpush1.bf16.msra.mxu0 %v1253
        %1862 = vmatprep.subr.bf16.mxu0 %v1270
        %1863 = vmatpush1.bf16.msra.mxu0 %v1269
        %1864 = vmatprep.subr.bf16.mxu0 %v1286
        %1865 = vmatpush1.bf16.msra.mxu0 %v1285
        %1866 = vmatprep.subr.bf16.mxu0 %v1302
        %1867 = vmatpush1.bf16.msra.mxu0 %v1301
        %1868 = vmatprep.subr.bf16.mxu0 %v1318
        %1869 = vmatpush1.bf16.msra.mxu0 %v1317
        %1870 = vmatprep.subr.bf16.mxu0 %v1334
        %1871 = vmatpush1.bf16.msra.mxu0 %v1333
        %1872 = vmatprep.subr.bf16.mxu0 %v1350
        %1873 = vmatpush1.bf16.msra.mxu0 %v1349
        %1874 = vmatprep.subr.bf16.mxu0 %v1366
        %1875 = vmatpush1.bf16.msra.mxu0 %v1365
        %1876 = vmatprep.subr.bf16.mxu0 %v1382
        %1877 = vmatpush1.bf16.msra.mxu0 %v1381
        %1878 = vmatprep.subr.bf16.mxu0 %v1398
        %1879 = vmatpush1.bf16.msra.mxu0 %v1397
        %1880 = vmatprep.subr.bf16.mxu0 %v1414
        %1881 = vmatpush1.bf16.msra.mxu0 %v1413
        %1882 = vmatprep.subr.bf16.mxu0 %v1430
        %1883 = vmatpush1.bf16.msra.mxu0 %v1429
        %1884 = vmatprep.subr.bf16.mxu0 %v1446
        %1885 = vmatpush1.bf16.msra.mxu0 %v1445
        %1886 = vmatprep.subr.bf16.mxu0 %v1462
        %1887 = vmatpush1.bf16.msra.mxu0 %v1461
        %1888 = vmatprep.mubr.bf16.mxu0 %v444
        %1889 = vmatmul.mubr.bf16.gmra.mrb[0].mxu0 %v443
        %v1890 = vpop.f32.mrb[0].mxu0
        %v1891 = vadd.f32 0.0, %v1890
        %v1892 = vpop.f32.mrb[0].mxu0
        %v1893 = vadd.f32 0.0, %v1892
        %v1894 = vpop.f32.mrb[0].mxu0
        %v1895 = vadd.f32 0.0, %v1894
        %v1896 = vpop.f32.mrb[0].mxu0
        %v1897 = vadd.f32 0.0, %v1896
        %1898 = vdwg.mxu0
        %1899 = vmatprep.subr.bf16.mxu0 %v1224
        %1900 = vmatpush1.bf16.msra.mxu0 %v1223
        %1901 = vmatprep.subr.bf16.mxu0 %v1240
        %1902 = vmatpush1.bf16.msra.mxu0 %v1239
        %1903 = vmatprep.subr.bf16.mxu0 %v1256
        %1904 = vmatpush1.bf16.msra.mxu0 %v1255
        %1905 = vmatprep.subr.bf16.mxu0 %v1272
        %1906 = vmatpush1.bf16.msra.mxu0 %v1271
        %1907 = vmatprep.subr.bf16.mxu0 %v1288
        %1908 = vmatpush1.bf16.msra.mxu0 %v1287
        %1909 = vmatprep.subr.bf16.mxu0 %v1304
        %1910 = vmatpush1.bf16.msra.mxu0 %v1303
        %1911 = vmatprep.subr.bf16.mxu0 %v1320
        %1912 = vmatpush1.bf16.msra.mxu0 %v1319
        %1913 = vmatprep.subr.bf16.mxu0 %v1336
        %1914 = vmatpush1.bf16.msra.mxu0 %v1335
        %1915 = vmatprep.subr.bf16.mxu0 %v1352
        %1916 = vmatpush1.bf16.msra.mxu0 %v1351
        %1917 = vmatprep.subr.bf16.mxu0 %v1368
        %1918 = vmatpush1.bf16.msra.mxu0 %v1367
        %1919 = vmatprep.subr.bf16.mxu0 %v1384
        %1920 = vmatpush1.bf16.msra.mxu0 %v1383
        %1921 = vmatprep.subr.bf16.mxu0 %v1400
        %1922 = vmatpush1.bf16.msra.mxu0 %v1399
        %1923 = vmatprep.subr.bf16.mxu0 %v1416
        %1924 = vmatpush1.bf16.msra.mxu0 %v1415
        %1925 = vmatprep.subr.bf16.mxu0 %v1432
        %1926 = vmatpush1.bf16.msra.mxu0 %v1431
        %1927 = vmatprep.subr.bf16.mxu0 %v1448
        %1928 = vmatpush1.bf16.msra.mxu0 %v1447
        %1929 = vmatprep.subr.bf16.mxu0 %v1464
        %1930 = vmatpush1.bf16.msra.mxu0 %v1463
        %1931 = vmatprep.mubr.bf16.mxu0 %v444
        %1932 = vmatmul.mubr.bf16.gmra.mrb[0].mxu0 %v443
        %v1933 = vpop.f32.mrb[0].mxu0
        %v1934 = vadd.f32 0.0, %v1933
        %v1935 = vpop.f32.mrb[0].mxu0
        %v1936 = vadd.f32 0.0, %v1935
        %v1937 = vpop.f32.mrb[0].mxu0
        %v1938 = vadd.f32 0.0, %v1937
        %v1939 = vpop.f32.mrb[0].mxu0
        %v1940 = vadd.f32 0.0, %v1939
        %1941 = vdwg.mxu0
        %1942 = vmatprep.subr.bf16.mxu0 %v1226
        %1943 = vmatpush1.bf16.msra.mxu0 %v1225
        %1944 = vmatprep.subr.bf16.mxu0 %v1242
        %1945 = vmatpush1.bf16.msra.mxu0 %v1241
        %1946 = vmatprep.subr.bf16.mxu0 %v1258
        %1947 = vmatpush1.bf16.msra.mxu0 %v1257
        %1948 = vmatprep.subr.bf16.mxu0 %v1274
        %1949 = vmatpush1.bf16.msra.mxu0 %v1273
        %1950 = vmatprep.subr.bf16.mxu0 %v1290
        %1951 = vmatpush1.bf16.msra.mxu0 %v1289
        %1952 = vmatprep.subr.bf16.mxu0 %v1306
        %1953 = vmatpush1.bf16.msra.mxu0 %v1305
        %1954 = vmatprep.subr.bf16.mxu0 %v1322
        %1955 = vmatpush1.bf16.msra.mxu0 %v1321
        %1956 = vmatprep.subr.bf16.mxu0 %v1338
        %1957 = vmatpush1.bf16.msra.mxu0 %v1337
        %1958 = vmatprep.subr.bf16.mxu0 %v1354
        %1959 = vmatpush1.bf16.msra.mxu0 %v1353
        %1960 = vmatprep.subr.bf16.mxu0 %v1370
        %1961 = vmatpush1.bf16.msra.mxu0 %v1369
        %1962 = vmatprep.subr.bf16.mxu0 %v1386
        %1963 = vmatpush1.bf16.msra.mxu0 %v1385
        %1964 = vmatprep.subr.bf16.mxu0 %v1402
        %1965 = vmatpush1.bf16.msra.mxu0 %v1401
        %1966 = vmatprep.subr.bf16.mxu0 %v1418
        %1967 = vmatpush1.bf16.msra.mxu0 %v1417
        %1968 = vmatprep.subr.bf16.mxu0 %v1434
        %1969 = vmatpush1.bf16.msra.mxu0 %v1433
        %1970 = vmatprep.subr.bf16.mxu0 %v1450
        %1971 = vmatpush1.bf16.msra.mxu0 %v1449
        %1972 = vmatprep.subr.bf16.mxu0 %v1466
        %1973 = vmatpush1.bf16.msra.mxu0 %v1465
        %1974 = vmatprep.mubr.bf16.mxu0 %v444
        %1975 = vmatmul.mubr.bf16.gmra.mrb[0].mxu0 %v443
        %v1976 = vpop.f32.mrb[0].mxu0
        %v1977 = vadd.f32 0.0, %v1976
        %v1978 = vpop.f32.mrb[0].mxu0
        %v1979 = vadd.f32 0.0, %v1978
        %v1980 = vpop.f32.mrb[0].mxu0
        %v1981 = vadd.f32 0.0, %v1980
        %v1982 = vpop.f32.mrb[0].mxu0
        %v1983 = vadd.f32 0.0, %v1982
        %1984 = vdwg.mxu0
        %1985 = vmatprep.subr.bf16.mxu0 %v1228
        %1986 = vmatpush1.bf16.msra.mxu0 %v1227
        %1987 = vmatprep.subr.bf16.mxu0 %v1244
        %1988 = vmatpush1.bf16.msra.mxu0 %v1243
        %1989 = vmatprep.subr.bf16.mxu0 %v1260
        %1990 = vmatpush1.bf16.msra.mxu0 %v1259
        %1991 = vmatprep.subr.bf16.mxu0 %v1276
        %1992 = vmatpush1.bf16.msra.mxu0 %v1275
        %1993 = vmatprep.subr.bf16.mxu0 %v1292
        %1994 = vmatpush1.bf16.msra.mxu0 %v1291
        %1995 = vmatprep.subr.bf16.mxu0 %v1308
        %1996 = vmatpush1.bf16.msra.mxu0 %v1307
        %1997 = vmatprep.subr.bf16.mxu0 %v1324
        %1998 = vmatpush1.bf16.msra.mxu0 %v1323
        %1999 = vmatprep.subr.bf16.mxu0 %v1340
        %2000 = vmatpush1.bf16.msra.mxu0 %v1339
        %2001 = vmatprep.subr.bf16.mxu0 %v1356
        %2002 = vmatpush1.bf16.msra.mxu0 %v1355
        %2003 = vmatprep.subr.bf16.mxu0 %v1372
        %2004 = vmatpush1.bf16.msra.mxu0 %v1371
        %2005 = vmatprep.subr.bf16.mxu0 %v1388
        %2006 = vmatpush1.bf16.msra.mxu0 %v1387
        %2007 = vmatprep.subr.bf16.mxu0 %v1404
        %2008 = vmatpush1.bf16.msra.mxu0 %v1403
        %2009 = vmatprep.subr.bf16.mxu0 %v1420
        %2010 = vmatpush1.bf16.msra.mxu0 %v1419
        %2011 = vmatprep.subr.bf16.mxu0 %v1436
        %2012 = vmatpush1.bf16.msra.mxu0 %v1435
        %2013 = vmatprep.subr.bf16.mxu0 %v1452
        %2014 = vmatpush1.bf16.msra.mxu0 %v1451
        %2015 = vmatprep.subr.bf16.mxu0 %v1468
        %2016 = vmatpush1.bf16.msra.mxu0 %v1467
        %2017 = vmatprep.mubr.bf16.mxu0 %v444
        %2018 = vmatmul.mubr.bf16.gmra.mrb[0].mxu0 %v443
        %v2019 = vpop.f32.mrb[0].mxu0
        %v2020 = vadd.f32 0.0, %v2019
        %v2021 = vpop.f32.mrb[0].mxu0
        %v2022 = vadd.f32 0.0, %v2021
        %v2023 = vpop.f32.mrb[0].mxu0
        %v2024 = vadd.f32 0.0, %v2023
        %v2025 = vpop.f32.mrb[0].mxu0
        %v2026 = vadd.f32 0.0, %v2025
        %2027 = vdwg.mxu0
        %2028 = vmatprep.subr.bf16.mxu0 %v1230
        %2029 = vmatpush1.bf16.msra.mxu0 %v1229
        %2030 = vmatprep.subr.bf16.mxu0 %v1246
        %2031 = vmatpush1.bf16.msra.mxu0 %v1245
        %2032 = vmatprep.subr.bf16.mxu0 %v1262
        %2033 = vmatpush1.bf16.msra.mxu0 %v1261
        %2034 = vmatprep.subr.bf16.mxu0 %v1278
        %2035 = vmatpush1.bf16.msra.mxu0 %v1277
        %2036 = vmatprep.subr.bf16.mxu0 %v1294
        %2037 = vmatpush1.bf16.msra.mxu0 %v1293
        %2038 = vmatprep.subr.bf16.mxu0 %v1310
        %2039 = vmatpush1.bf16.msra.mxu0 %v1309
        %2040 = vmatprep.subr.bf16.mxu0 %v1326
        %2041 = vmatpush1.bf16.msra.mxu0 %v1325
        %2042 = vmatprep.subr.bf16.mxu0 %v1342
        %2043 = vmatpush1.bf16.msra.mxu0 %v1341
        %2044 = vmatprep.subr.bf16.mxu0 %v1358
        %2045 = vmatpush1.bf16.msra.mxu0 %v1357
        %2046 = vmatprep.subr.bf16.mxu0 %v1374
        %2047 = vmatpush1.bf16.msra.mxu0 %v1373
        %2048 = vmatprep.subr.bf16.mxu0 %v1390
        %2049 = vmatpush1.bf16.msra.mxu0 %v1389
        %2050 = vmatprep.subr.bf16.mxu0 %v1406
        %2051 = vmatpush1.bf16.msra.mxu0 %v1405
        %2052 = vmatprep.subr.bf16.mxu0 %v1422
        %2053 = vmatpush1.bf16.msra.mxu0 %v1421
        %2054 = vmatprep.subr.bf16.mxu0 %v1438
        %2055 = vmatpush1.bf16.msra.mxu0 %v1437
        %2056 = vmatprep.subr.bf16.mxu0 %v1454
        %2057 = vmatpush1.bf16.msra.mxu0 %v1453
        %2058 = vmatprep.subr.bf16.mxu0 %v1470
        %2059 = vmatpush1.bf16.msra.mxu0 %v1469
        %2060 = vmatprep.mubr.bf16.mxu0 %v444
        %2061 = vmatmul.mubr.bf16.gmra.mrb[0].mxu0 %v443
        %v2062 = vpop.f32.mrb[0].mxu0
        %v2063 = vadd.f32 0.0, %v2062
        %v2064 = vpop.f32.mrb[0].mxu0
        %v2065 = vadd.f32 0.0, %v2064
        %v2066 = vpop.f32.mrb[0].mxu0
        %v2067 = vadd.f32 0.0, %v2066
        %v2068 = vpop.f32.mrb[0].mxu0
        %v2069 = vadd.f32 0.0, %v2068
        %2070 = vdwg.mxu0
        %vm2071 = vcmp.ge.f32.partialorder %v1762, 0.0
        %vm2072 = vcmp.ge.f32.partialorder %v1764, 0.0
        %vm2073 = vcmp.ge.f32.partialorder %v1805, 0.0
        %vm2074 = vcmp.ge.f32.partialorder %v1807, 0.0
        %vm2075 = vcmp.ge.f32.partialorder %v1848, 0.0
        %vm2076 = vcmp.ge.f32.partialorder %v1850, 0.0
        %vm2077 = vcmp.ge.f32.partialorder %v1891, 0.0
        %vm2078 = vcmp.ge.f32.partialorder %v1893, 0.0
        %vm2079 = vcmp.ge.f32.partialorder %v1934, 0.0
        %vm2080 = vcmp.ge.f32.partialorder %v1936, 0.0
        %vm2081 = vcmp.ge.f32.partialorder %v1977, 0.0
        %vm2082 = vcmp.ge.f32.partialorder %v1979, 0.0
        %vm2083 = vcmp.ge.f32.partialorder %v2020, 0.0
        %vm2084 = vcmp.ge.f32.partialorder %v2022, 0.0
        %vm2085 = vcmp.ge.f32.partialorder %v2063, 0.0
        %vm2086 = vcmp.ge.f32.partialorder %v2065, 0.0
        %vm2087 = vcmp.ge.f32.partialorder %v1766, 0.0
        %vm2088 = vcmp.ge.f32.partialorder %v1768, 0.0
        %vm2089 = vcmp.ge.f32.partialorder %v1809, 0.0
        %vm2090 = vcmp.ge.f32.partialorder %v1811, 0.0
        %vm2091 = vcmp.ge.f32.partialorder %v1852, 0.0
        %vm2092 = vcmp.ge.f32.partialorder %v1854, 0.0
        %vm2093 = vcmp.ge.f32.partialorder %v1895, 0.0
        %vm2094 = vcmp.ge.f32.partialorder %v1897, 0.0
        %vm2095 = vcmp.ge.f32.partialorder %v1938, 0.0
        %vm2096 = vcmp.ge.f32.partialorder %v1940, 0.0
        %vm2097 = vcmp.ge.f32.partialorder %v1981, 0.0
        %vm2098 = vcmp.ge.f32.partialorder %v1983, 0.0
        %vm2099 = vcmp.ge.f32.partialorder %v2024, 0.0
        %vm2100 = vcmp.ge.f32.partialorder %v2026, 0.0
        %vm2101 = vcmp.ge.f32.partialorder %v2067, 0.0
        %vm2102 = vcmp.ge.f32.partialorder %v2069, 0.0
        %v2103 = vmul.f32 %v1762, 0.2
        %v2104 = vmul.f32 %v1764, 0.2
        %v2105 = vmul.f32 %v1805, 0.2
        %v2106 = vmul.f32 %v1807, 0.2
        %v2107 = vmul.f32 %v1848, 0.2
        %v2108 = vmul.f32 %v1850, 0.2
        %v2109 = vmul.f32 %v1891, 0.2
        %v2110 = vmul.f32 %v1893, 0.2
        %v2111 = vmul.f32 %v1934, 0.2
        %v2112 = vmul.f32 %v1936, 0.2
        %v2113 = vmul.f32 %v1977, 0.2
        %v2114 = vmul.f32 %v1979, 0.2
        %v2115 = vmul.f32 %v2020, 0.2
        %v2116 = vmul.f32 %v2022, 0.2
        %v2117 = vmul.f32 %v2063, 0.2
        %v2118 = vmul.f32 %v2065, 0.2
        %v2119 = vmul.f32 %v1766, 0.2
        %v2120 = vmul.f32 %v1768, 0.2
        %v2121 = vmul.f32 %v1809, 0.2
        %v2122 = vmul.f32 %v1811, 0.2
        %v2123 = vmul.f32 %v1852, 0.2
        %v2124 = vmul.f32 %v1854, 0.2
        %v2125 = vmul.f32 %v1895, 0.2
        %v2126 = vmul.f32 %v1897, 0.2
        %v2127 = vmul.f32 %v1938, 0.2
        %v2128 = vmul.f32 %v1940, 0.2
        %v2129 = vmul.f32 %v1981, 0.2
        %v2130 = vmul.f32 %v1983, 0.2
        %v2131 = vmul.f32 %v2024, 0.2
        %v2132 = vmul.f32 %v2026, 0.2
        %v2133 = vmul.f32 %v2067, 0.2
        %v2134 = vmul.f32 %v2069, 0.2
        %v2135 = vsel %vm2071, %v1762, %v2103
        %v2136 = vsel %vm2072, %v1764, %v2104
        %v2137 = vsel %vm2073, %v1805, %v2105
        %v2138 = vsel %vm2074, %v1807, %v2106
        %v2139 = vsel %vm2075, %v1848, %v2107
        %v2140 = vsel %vm2076, %v1850, %v2108
        %v2141 = vsel %vm2077, %v1891, %v2109
        %v2142 = vsel %vm2078, %v1893, %v2110
        %v2143 = vsel %vm2079, %v1934, %v2111
        %v2144 = vsel %vm2080, %v1936, %v2112
        %v2145 = vsel %vm2081, %v1977, %v2113
        %v2146 = vsel %vm2082, %v1979, %v2114
        %v2147 = vsel %vm2083, %v2020, %v2115
        %v2148 = vsel %vm2084, %v2022, %v2116
        %v2149 = vsel %vm2085, %v2063, %v2117
        %v2150 = vsel %vm2086, %v2065, %v2118
        %v2151 = vsel %vm2087, %v1766, %v2119
        %v2152 = vsel %vm2088, %v1768, %v2120
        %v2153 = vsel %vm2089, %v1809, %v2121
        %v2154 = vsel %vm2090, %v1811, %v2122
        %v2155 = vsel %vm2091, %v1852, %v2123
        %v2156 = vsel %vm2092, %v1854, %v2124
        %v2157 = vsel %vm2093, %v1895, %v2125
        %v2158 = vsel %vm2094, %v1897, %v2126
        %v2159 = vsel %vm2095, %v1938, %v2127
        %v2160 = vsel %vm2096, %v1940, %v2128
        %v2161 = vsel %vm2097, %v1981, %v2129
        %v2162 = vsel %vm2098, %v1983, %v2130
        %v2163 = vsel %vm2099, %v2024, %v2131
        %v2164 = vsel %vm2100, %v2026, %v2132
        %v2165 = vsel %vm2101, %v2067, %v2133
        %v2166 = vsel %vm2102, %v2069, %v2134
        %v2167 = vpack.c.bf16 %v2151, %v2135
        %v2168 = vpack.c.bf16 %v2152, %v2136
        %v2169 = vpack.c.bf16 %v2153, %v2137
        %v2170 = vpack.c.bf16 %v2154, %v2138
        %v2171 = vpack.c.bf16 %v2155, %v2139
        %v2172 = vpack.c.bf16 %v2156, %v2140
        %v2173 = vpack.c.bf16 %v2157, %v2141
        %v2174 = vpack.c.bf16 %v2158, %v2142
        %v2175 = vpack.c.bf16 %v2159, %v2143
        %v2176 = vpack.c.bf16 %v2160, %v2144
        %v2177 = vpack.c.bf16 %v2161, %v2145
        %v2178 = vpack.c.bf16 %v2162, %v2146
        %v2179 = vpack.c.bf16 %v2163, %v2147
        %v2180 = vpack.c.bf16 %v2164, %v2148
        %v2181 = vpack.c.bf16 %v2165, %v2149
        %v2182 = vpack.c.bf16 %v2166, %v2150
        %v2199 = vunpack.c.l.b16 %v2167
        %v2200 = vunpack.c.l.b16 %v2168
        %v2201 = vunpack.c.l.b16 %v2169
        %v2202 = vunpack.c.l.b16 %v2170
        %v2203 = vunpack.c.l.b16 %v2171
        %v2204 = vunpack.c.l.b16 %v2172
        %v2205 = vunpack.c.l.b16 %v2173
        %v2206 = vunpack.c.l.b16 %v2174
        %v2207 = vunpack.c.l.b16 %v2175
        %v2208 = vunpack.c.l.b16 %v2176
        %v2209 = vunpack.c.l.b16 %v2177
        %v2210 = vunpack.c.l.b16 %v2178
        %v2211 = vunpack.c.l.b16 %v2179
        %v2212 = vunpack.c.l.b16 %v2180
        %v2213 = vunpack.c.l.b16 %v2181
        %v2214 = vunpack.c.l.b16 %v2182
        %v2215 = vunpack.c.h.b16 %v2167
        %v2216 = vunpack.c.h.b16 %v2168
        %v2217 = vunpack.c.h.b16 %v2169
        %v2218 = vunpack.c.h.b16 %v2170
        %v2219 = vunpack.c.h.b16 %v2171
        %v2220 = vunpack.c.h.b16 %v2172
        %v2221 = vunpack.c.h.b16 %v2173
        %v2222 = vunpack.c.h.b16 %v2174
        %v2223 = vunpack.c.h.b16 %v2175
        %v2224 = vunpack.c.h.b16 %v2176
        %v2225 = vunpack.c.h.b16 %v2177
        %v2226 = vunpack.c.h.b16 %v2178
        %v2227 = vunpack.c.h.b16 %v2179
        %v2228 = vunpack.c.h.b16 %v2180
        %v2229 = vunpack.c.h.b16 %v2181
        %v2230 = vunpack.c.h.b16 %v2182
        %v2231 = vpack.c.b16 %v2200, %v2199
        %v2232 = vpack.c.b16 %v2202, %v2201
        %v2233 = vpack.c.b16 %v2204, %v2203
        %v2234 = vpack.c.b16 %v2206, %v2205
        %v2235 = vpack.c.b16 %v2208, %v2207
        %v2236 = vpack.c.b16 %v2210, %v2209
        %v2237 = vpack.c.b16 %v2212, %v2211
        %v2238 = vpack.c.b16 %v2214, %v2213
        %v2239 = vpack.c.b16 %v2216, %v2215
        %v2240 = vpack.c.b16 %v2218, %v2217
        %v2241 = vpack.c.b16 %v2220, %v2219
        %v2242 = vpack.c.b16 %v2222, %v2221
        %v2243 = vpack.c.b16 %v2224, %v2223
        %v2244 = vpack.c.b16 %v2226, %v2225
        %v2245 = vpack.c.b16 %v2228, %v2227
        %v2246 = vpack.c.b16 %v2230, %v2229
        %2263 = vst [vmem:[%s176] sm:$0xff] %v2231
        %2264 = vst [vmem:[%s176 + $0x8] sm:$0xff] %v2232
        %2265 = vst [vmem:[%s176 + $0x10] sm:$0xff] %v2233
        %2266 = vst [vmem:[%s176 + $0x18] sm:$0xff] %v2234
        %2267 = vst [vmem:[%s176 + $0x20] sm:$0xff] %v2235
        %2268 = vst [vmem:[%s176 + $0x28] sm:$0xff] %v2236
        %2269 = vst [vmem:[%s176 + $0x30] sm:$0xff] %v2237
        %2270 = vst [vmem:[%s176 + $0x38] sm:$0xff] %v2238
        %2271 = vst [vmem:[%s176 + $0x40] sm:$0xff] %v2239
        %2272 = vst [vmem:[%s176 + $0x48] sm:$0xff] %v2240
        %2273 = vst [vmem:[%s176 + $0x50] sm:$0xff] %v2241
        %2274 = vst [vmem:[%s176 + $0x58] sm:$0xff] %v2242
        %2275 = vst [vmem:[%s176 + $0x60] sm:$0xff] %v2243
        %2276 = vst [vmem:[%s176 + $0x68] sm:$0xff] %v2244
        %2277 = vst [vmem:[%s176 + $0x70] sm:$0xff] %v2245
        %2278 = vst [vmem:[%s176 + $0x78] sm:$0xff] %v2246
        %s2279 = sand.u32 %s75, 1
        %s2280 = scalar_lea.sflag [#allocation4], %s2279
        %s2281 = sand.u32 %s75, 1
        %s2282 = smul.addr %s2281, 128
        %s2283 = scalar_lea.vmem [#allocation7], %s2282
        // Predicated region
        $region37: #{netD_forward.8} parent=27 // pred_check
          %p2284 = pneg %p85
        $region38: #{netD_forward.8} parent=27 // pred_check_branch
          %2286 = sbr.rel (%p2284) target = $region40
        $region39: #{netD_forward.8} parent=27 // pred_region
          %s2287 = smul.u32 16, %s20
          %s2289 = ssub.s32 2048, 2048
          %2290 = vsyncadd %s2280, %s2289
          %s2291 = smul.addr %s2287, 64
          %s2292 = scalar_lea.hbm %s2, %s2291
          %s2293 = sshll.u32 %s2283, 4
          %s2294 = int_to_ptr.vmem [resolvable:$true] %s2293
          %2299 = dma.vmem_to_hbm [thread:$0]  %s2294, 2048, %s2292, %s2280, 1024, 4096, 64
        $region40: #{netD_forward.8} parent=27 // pred_fallthru
          _
      $region28: #{netD_forward.8} parent=5 // pred_fallthru
        _
      %p2300 = scmp.le.s32.totalorder 2, %s15
      // Predicated region
      $region41: #{netD_forward.8} parent=5 // pred_check
        %p2301 = pneg %p2300
      $region42: #{netD_forward.8} parent=5 // pred_check_branch
        %2303 = sbr.rel (%p2301) target = $region44
      $region43: #{netD_forward.8} parent=5 // pred_region
        %s2304 = ssub.s32 %s15, 2
        // Predicated region
        $region45: #{netD_forward.8} parent=43 // pred_check
          %p2305 = pneg %p91
        $region46: #{netD_forward.8} parent=43 // pred_check_branch
          %2307 = sbr.rel (%p2305) target = $region48
        $region47: #{netD_forward.8} parent=43 // pred_region
          %s2308 = sand.u32 %s76, 1
          %s2309 = scalar_lea.sflag [#allocation4], %s2308
          %s2310 = sand.u32 %s76, 1
          %s2311 = smul.addr %s2310, 128
          %s2312 = scalar_lea.vmem [#allocation7], %s2311
          %2313 = dma.done %s2309, 2048
        $region48: #{netD_forward.8} parent=43 // pred_fallthru
          _
      $region44: #{netD_forward.8} parent=5 // pred_fallthru
        _
    $region6: #{netD_forward.8} parent=1 // loop_footer
      %s19 = sadd.s32 1, %s15
    $region7: #{netD_forward.8} parent=1 // loop_footer_branch
      %14 = sbr.rel target = $region3
    $region8: #{netD_forward.8} parent=1 // loop_exit
      _
    %2314 = vsyncpa [#allocation3], 1
    %s2315 = scalar_lea.sflag [#allocation3], 1
    %2316 = vsyncpa %s2315, 1
    %2317 = vsyncpa [#allocation6], 1
    %s2318 = scalar_lea.sflag [#allocation6], 1
    %2319 = vsyncpa %s2318, 1
    %2320 = vsyncpa [#allocation4], 1
    %s2321 = scalar_lea.sflag [#allocation4], 1
    %2322 = vsyncpa %s2321, 1

// kernel: netD_forward.9
$region0: #{netD_forward.9}
  #allocation0 [shape = 'u32[]', space=smem, size = 0x4, offset = 0x4, fixed_abs, tag = 'smem constant byte address 0x4 - core index']
  #allocation1 [shape = 'u32[144,128]{1,0:T(1,128)}', space=vmem, size = 0x12000, scoped, tag = 'internal scratch']
  %s0 = inlined_call_operand.hbm [shape: bf16[32,256], index: 0, kind: input, shape index: {}]
  %s1 = inlined_call_operand.hbm [shape: bf16[256,2048], index: 1, kind: input, shape index: {}]
  %s2 = inlined_call_operand.hbm [shape: bf16[32,2048], index: 2, kind: output, shape index: {}]
  %s3 = sld [smem:[#allocation0]]
  $region26: #{netD_forward.9} parent=0
    _
  %s5 = ssub.s32 1, %s3
  %s6 = scalar_select 0, %s5, %s3
  $region1: #{netD_forward.9} parent=0
    #allocation2 [shape = 'u8[16384]{0}', space=vmem, size = 0x4000, scoped, tag = 'input window, operand 0, single buffered']
    #allocation3 [shape = 's32[1]{0}', space=sflag, size = 0x4, scoped, tag = 'scoped memory for netD_forward.9']
    #allocation4 [shape = 's32[1]{0}', space=sflag, size = 0x4, scoped, tag = 'scoped memory for netD_forward.9']
    #allocation5 [shape = 'u8[1048576]{0}', space=vmem, size = 0x100000, scoped, tag = 'input window, operand 1, single buffered']
    #allocation6 [shape = 's32[1]{0}', space=sflag, size = 0x4, scoped, tag = 'scoped memory for netD_forward.9']
    #allocation7 [shape = 'u8[131072]{0}', space=vmem, size = 0x20000, scoped, tag = 'output window, operand 0, single buffered']
    %7 = vsyncpa [#allocation3], 0
    %8 = vsyncpa [#allocation6], 0
    %9 = vsyncpa [#allocation4], 0
    // Predicated region
    $region2: #{netD_forward.9} parent=1 // pred_check
      _
    $region3: #{netD_forward.9} parent=1 // pred_check_branch
      %11 = sbr.rel (0) target = $region5
    $region4: #{netD_forward.9} parent=1 // pred_region
      %s13 = ssub.s32 512, 512
      %14 = vsyncadd [#allocation3], %s13
      %s15 = sshll.u32 [#allocation2], 4
      %s16 = int_to_ptr.vmem [resolvable:$true] %s15
      %21 = dma.hbm_to_vmem [thread:$0]  %s0, 512, %s16, [#allocation3], 128, 128, 8
    $region5: #{netD_forward.9} parent=1 // pred_fallthru
      _
    // Predicated region
    $region6: #{netD_forward.9} parent=1 // pred_check
      _
    $region7: #{netD_forward.9} parent=1 // pred_check_branch
      %23 = sbr.rel (0) target = $region9
    $region8: #{netD_forward.9} parent=1 // pred_region
      %s25 = ssub.s32 32768, 32768
      %26 = vsyncadd [#allocation6], %s25
      %s27 = sshll.u32 [#allocation5], 4
      %s28 = int_to_ptr.vmem [resolvable:$true] %s27
      %33 = dma.hbm_to_vmem [thread:$0]  %s1, 32768, %s28, [#allocation6], 1024, 1024, 64
    $region9: #{netD_forward.9} parent=1 // pred_fallthru
      _
    // Predicated region
    $region10: #{netD_forward.9} parent=1 // pred_check
      _
    $region11: #{netD_forward.9} parent=1 // pred_check_branch
      %35 = sbr.rel (0) target = $region13
    $region12: #{netD_forward.9} parent=1 // pred_region
      %36 = dma.done [#allocation3], 512
    $region13: #{netD_forward.9} parent=1 // pred_fallthru
      _
    // Predicated region
    $region14: #{netD_forward.9} parent=1 // pred_check
      _
    $region15: #{netD_forward.9} parent=1 // pred_check_branch
      %38 = sbr.rel (0) target = $region17
    $region16: #{netD_forward.9} parent=1 // pred_region
      %39 = dma.done [#allocation6], 32768
    $region17: #{netD_forward.9} parent=1 // pred_fallthru
      _
    %v40 = vld [vmem:[#allocation2] sm:$0xff]
    %v41 = vld [vmem:[#allocation2 + $0x8] sm:$0xff]
    %v42 = vld [vmem:[#allocation2 + $0x10] sm:$0xff]
    %v43 = vld [vmem:[#allocation2 + $0x18] sm:$0xff]
    %v44 = vld [vmem:[#allocation5] sm:$0xff]
    %v45 = vld [vmem:[#allocation5 + $0x8] sm:$0xff]
    %v46 = vld [vmem:[#allocation5 + $0x10] sm:$0xff]
    %v47 = vld [vmem:[#allocation5 + $0x18] sm:$0xff]
    %v48 = vld [vmem:[#allocation5 + $0x20] sm:$0xff]
    %v49 = vld [vmem:[#allocation5 + $0x28] sm:$0xff]
    %v50 = vld [vmem:[#allocation5 + $0x30] sm:$0xff]
    %v51 = vld [vmem:[#allocation5 + $0x38] sm:$0xff]
    %v52 = vld [vmem:[#allocation5 + $0x40] sm:$0xff]
    %v53 = vld [vmem:[#allocation5 + $0x48] sm:$0xff]
    %v54 = vld [vmem:[#allocation5 + $0x50] sm:$0xff]
    %v55 = vld [vmem:[#allocation5 + $0x58] sm:$0xff]
    %v56 = vld [vmem:[#allocation5 + $0x60] sm:$0xff]
    %v57 = vld [vmem:[#allocation5 + $0x68] sm:$0xff]
    %v58 = vld [vmem:[#allocation5 + $0x70] sm:$0xff]
    %v59 = vld [vmem:[#allocation5 + $0x78] sm:$0xff]
    %v60 = vld [vmem:[#allocation5 + $0x80] sm:$0xff]
    %v61 = vld [vmem:[#allocation5 + $0x88] sm:$0xff]
    %v62 = vld [vmem:[#allocation5 + $0x90] sm:$0xff]
    %v63 = vld [vmem:[#allocation5 + $0x98] sm:$0xff]
    %v64 = vld [vmem:[#allocation5 + $0xa0] sm:$0xff]
    %v65 = vld [vmem:[#allocation5 + $0xa8] sm:$0xff]
    %v66 = vld [vmem:[#allocation5 + $0xb0] sm:$0xff]
    %v67 = vld [vmem:[#allocation5 + $0xb8] sm:$0xff]
    %v68 = vld [vmem:[#allocation5 + $0xc0] sm:$0xff]
    %v69 = vld [vmem:[#allocation5 + $0xc8] sm:$0xff]
    %v70 = vld [vmem:[#allocation5 + $0xd0] sm:$0xff]
    %v71 = vld [vmem:[#allocation5 + $0xd8] sm:$0xff]
    %v72 = vld [vmem:[#allocation5 + $0xe0] sm:$0xff]
    %v73 = vld [vmem:[#allocation5 + $0xe8] sm:$0xff]
    %v74 = vld [vmem:[#allocation5 + $0xf0] sm:$0xff]
    %v75 = vld [vmem:[#allocation5 + $0xf8] sm:$0xff]
    %v76 = vld [vmem:[#allocation5 + $0x100] sm:$0xff]
    %v77 = vld [vmem:[#allocation5 + $0x108] sm:$0xff]
    %v78 = vld [vmem:[#allocation5 + $0x110] sm:$0xff]
    %v79 = vld [vmem:[#allocation5 + $0x118] sm:$0xff]
    %v80 = vld [vmem:[#allocation5 + $0x120] sm:$0xff]
    %v81 = vld [vmem:[#allocation5 + $0x128] sm:$0xff]
    %v82 = vld [vmem:[#allocation5 + $0x130] sm:$0xff]
    %v83 = vld [vmem:[#allocation5 + $0x138] sm:$0xff]
    %v84 = vld [vmem:[#allocation5 + $0x140] sm:$0xff]
    %v85 = vld [vmem:[#allocation5 + $0x148] sm:$0xff]
    %v86 = vld [vmem:[#allocation5 + $0x150] sm:$0xff]
    %v87 = vld [vmem:[#allocation5 + $0x158] sm:$0xff]
    %v88 = vld [vmem:[#allocation5 + $0x160] sm:$0xff]
    %v89 = vld [vmem:[#allocation5 + $0x168] sm:$0xff]
    %v90 = vld [vmem:[#allocation5 + $0x170] sm:$0xff]
    %v91 = vld [vmem:[#allocation5 + $0x178] sm:$0xff]
    %v92 = vld [vmem:[#allocation5 + $0x180] sm:$0xff]
    %v93 = vld [vmem:[#allocation5 + $0x188] sm:$0xff]
    %v94 = vld [vmem:[#allocation5 + $0x190] sm:$0xff]
    %v95 = vld [vmem:[#allocation5 + $0x198] sm:$0xff]
    %v96 = vld [vmem:[#allocation5 + $0x1a0] sm:$0xff]
    %v97 = vld [vmem:[#allocation5 + $0x1a8] sm:$0xff]
    %v98 = vld [vmem:[#allocation5 + $0x1b0] sm:$0xff]
    %v99 = vld [vmem:[#allocation5 + $0x1b8] sm:$0xff]
    %v100 = vld [vmem:[#allocation5 + $0x1c0] sm:$0xff]
    %v101 = vld [vmem:[#allocation5 + $0x1c8] sm:$0xff]
    %v102 = vld [vmem:[#allocation5 + $0x1d0] sm:$0xff]
    %v103 = vld [vmem:[#allocation5 + $0x1d8] sm:$0xff]
    %v104 = vld [vmem:[#allocation5 + $0x1e0] sm:$0xff]
    %v105 = vld [vmem:[#allocation5 + $0x1e8] sm:$0xff]
    %v106 = vld [vmem:[#allocation5 + $0x1f0] sm:$0xff]
    %v107 = vld [vmem:[#allocation5 + $0x1f8] sm:$0xff]
    %v108 = vld [vmem:[#allocation5 + $0x200] sm:$0xff]
    %v109 = vld [vmem:[#allocation5 + $0x208] sm:$0xff]
    %v110 = vld [vmem:[#allocation5 + $0x210] sm:$0xff]
    %v111 = vld [vmem:[#allocation5 + $0x218] sm:$0xff]
    %v112 = vld [vmem:[#allocation5 + $0x220] sm:$0xff]
    %v113 = vld [vmem:[#allocation5 + $0x228] sm:$0xff]
    %v114 = vld [vmem:[#allocation5 + $0x230] sm:$0xff]
    %v115 = vld [vmem:[#allocation5 + $0x238] sm:$0xff]
    %v116 = vld [vmem:[#allocation5 + $0x240] sm:$0xff]
    %v117 = vld [vmem:[#allocation5 + $0x248] sm:$0xff]
    %v118 = vld [vmem:[#allocation5 + $0x250] sm:$0xff]
    %v119 = vld [vmem:[#allocation5 + $0x258] sm:$0xff]
    %v120 = vld [vmem:[#allocation5 + $0x260] sm:$0xff]
    %v121 = vld [vmem:[#allocation5 + $0x268] sm:$0xff]
    %v122 = vld [vmem:[#allocation5 + $0x270] sm:$0xff]
    %v123 = vld [vmem:[#allocation5 + $0x278] sm:$0xff]
    %v124 = vld [vmem:[#allocation5 + $0x280] sm:$0xff]
    %v125 = vld [vmem:[#allocation5 + $0x288] sm:$0xff]
    %v126 = vld [vmem:[#allocation5 + $0x290] sm:$0xff]
    %v127 = vld [vmem:[#allocation5 + $0x298] sm:$0xff]
    %v128 = vld [vmem:[#allocation5 + $0x2a0] sm:$0xff]
    %v129 = vld [vmem:[#allocation5 + $0x2a8] sm:$0xff]
    %v130 = vld [vmem:[#allocation5 + $0x2b0] sm:$0xff]
    %v131 = vld [vmem:[#allocation5 + $0x2b8] sm:$0xff]
    %v132 = vld [vmem:[#allocation5 + $0x2c0] sm:$0xff]
    %v133 = vld [vmem:[#allocation5 + $0x2c8] sm:$0xff]
    %v134 = vld [vmem:[#allocation5 + $0x2d0] sm:$0xff]
    %v135 = vld [vmem:[#allocation5 + $0x2d8] sm:$0xff]
    %v136 = vld [vmem:[#allocation5 + $0x2e0] sm:$0xff]
    %v137 = vld [vmem:[#allocation5 + $0x2e8] sm:$0xff]
    %v138 = vld [vmem:[#allocation5 + $0x2f0] sm:$0xff]
    %v139 = vld [vmem:[#allocation5 + $0x2f8] sm:$0xff]
    %v140 = vld [vmem:[#allocation5 + $0x300] sm:$0xff]
    %v141 = vld [vmem:[#allocation5 + $0x308] sm:$0xff]
    %v142 = vld [vmem:[#allocation5 + $0x310] sm:$0xff]
    %v143 = vld [vmem:[#allocation5 + $0x318] sm:$0xff]
    %v144 = vld [vmem:[#allocation5 + $0x320] sm:$0xff]
    %v145 = vld [vmem:[#allocation5 + $0x328] sm:$0xff]
    %v146 = vld [vmem:[#allocation5 + $0x330] sm:$0xff]
    %v147 = vld [vmem:[#allocation5 + $0x338] sm:$0xff]
    %v148 = vld [vmem:[#allocation5 + $0x340] sm:$0xff]
    %v149 = vld [vmem:[#allocation5 + $0x348] sm:$0xff]
    %v150 = vld [vmem:[#allocation5 + $0x350] sm:$0xff]
    %v151 = vld [vmem:[#allocation5 + $0x358] sm:$0xff]
    %v152 = vld [vmem:[#allocation5 + $0x360] sm:$0xff]
    %v153 = vld [vmem:[#allocation5 + $0x368] sm:$0xff]
    %v154 = vld [vmem:[#allocation5 + $0x370] sm:$0xff]
    %v155 = vld [vmem:[#allocation5 + $0x378] sm:$0xff]
    %v156 = vld [vmem:[#allocation5 + $0x380] sm:$0xff]
    %v157 = vld [vmem:[#allocation5 + $0x388] sm:$0xff]
    %v158 = vld [vmem:[#allocation5 + $0x390] sm:$0xff]
    %v159 = vld [vmem:[#allocation5 + $0x398] sm:$0xff]
    %v160 = vld [vmem:[#allocation5 + $0x3a0] sm:$0xff]
    %v161 = vld [vmem:[#allocation5 + $0x3a8] sm:$0xff]
    %v162 = vld [vmem:[#allocation5 + $0x3b0] sm:$0xff]
    %v163 = vld [vmem:[#allocation5 + $0x3b8] sm:$0xff]
    %v164 = vld [vmem:[#allocation5 + $0x3c0] sm:$0xff]
    %v165 = vld [vmem:[#allocation5 + $0x3c8] sm:$0xff]
    %v166 = vld [vmem:[#allocation5 + $0x3d0] sm:$0xff]
    %v167 = vld [vmem:[#allocation5 + $0x3d8] sm:$0xff]
    %v168 = vld [vmem:[#allocation5 + $0x3e0] sm:$0xff]
    %v169 = vld [vmem:[#allocation5 + $0x3e8] sm:$0xff]
    %v170 = vld [vmem:[#allocation5 + $0x3f0] sm:$0xff]
    %v171 = vld [vmem:[#allocation5 + $0x3f8] sm:$0xff]
    %v172 = vld [vmem:[#allocation5 + $0x400] sm:$0xff]
    %v173 = vld [vmem:[#allocation5 + $0x408] sm:$0xff]
    %v174 = vld [vmem:[#allocation5 + $0x410] sm:$0xff]
    %v175 = vld [vmem:[#allocation5 + $0x418] sm:$0xff]
    %v176 = vld [vmem:[#allocation5 + $0x420] sm:$0xff]
    %v177 = vld [vmem:[#allocation5 + $0x428] sm:$0xff]
    %v178 = vld [vmem:[#allocation5 + $0x430] sm:$0xff]
    %v179 = vld [vmem:[#allocation5 + $0x438] sm:$0xff]
    %v180 = vld [vmem:[#allocation5 + $0x440] sm:$0xff]
    %v181 = vld [vmem:[#allocation5 + $0x448] sm:$0xff]
    %v182 = vld [vmem:[#allocation5 + $0x450] sm:$0xff]
    %v183 = vld [vmem:[#allocation5 + $0x458] sm:$0xff]
    %v184 = vld [vmem:[#allocation5 + $0x460] sm:$0xff]
    %v185 = vld [vmem:[#allocation5 + $0x468] sm:$0xff]
    %v186 = vld [vmem:[#allocation5 + $0x470] sm:$0xff]
    %v187 = vld [vmem:[#allocation5 + $0x478] sm:$0xff]
    %v188 = vld [vmem:[#allocation5 + $0x480] sm:$0xff]
    %v189 = vld [vmem:[#allocation5 + $0x488] sm:$0xff]
    %v190 = vld [vmem:[#allocation5 + $0x490] sm:$0xff]
    %v191 = vld [vmem:[#allocation5 + $0x498] sm:$0xff]
    %v192 = vld [vmem:[#allocation5 + $0x4a0] sm:$0xff]
    %v193 = vld [vmem:[#allocation5 + $0x4a8] sm:$0xff]
    %v194 = vld [vmem:[#allocation5 + $0x4b0] sm:$0xff]
    %v195 = vld [vmem:[#allocation5 + $0x4b8] sm:$0xff]
    %v196 = vld [vmem:[#allocation5 + $0x4c0] sm:$0xff]
    %v197 = vld [vmem:[#allocation5 + $0x4c8] sm:$0xff]
    %v198 = vld [vmem:[#allocation5 + $0x4d0] sm:$0xff]
    %v199 = vld [vmem:[#allocation5 + $0x4d8] sm:$0xff]
    %v200 = vld [vmem:[#allocation5 + $0x4e0] sm:$0xff]
    %v201 = vld [vmem:[#allocation5 + $0x4e8] sm:$0xff]
    %v202 = vld [vmem:[#allocation5 + $0x4f0] sm:$0xff]
    %v203 = vld [vmem:[#allocation5 + $0x4f8] sm:$0xff]
    %v204 = vld [vmem:[#allocation5 + $0x500] sm:$0xff]
    %v205 = vld [vmem:[#allocation5 + $0x508] sm:$0xff]
    %v206 = vld [vmem:[#allocation5 + $0x510] sm:$0xff]
    %v207 = vld [vmem:[#allocation5 + $0x518] sm:$0xff]
    %v208 = vld [vmem:[#allocation5 + $0x520] sm:$0xff]
    %v209 = vld [vmem:[#allocation5 + $0x528] sm:$0xff]
    %v210 = vld [vmem:[#allocation5 + $0x530] sm:$0xff]
    %v211 = vld [vmem:[#allocation5 + $0x538] sm:$0xff]
    %v212 = vld [vmem:[#allocation5 + $0x540] sm:$0xff]
    %v213 = vld [vmem:[#allocation5 + $0x548] sm:$0xff]
    %v214 = vld [vmem:[#allocation5 + $0x550] sm:$0xff]
    %v215 = vld [vmem:[#allocation5 + $0x558] sm:$0xff]
    %v216 = vld [vmem:[#allocation5 + $0x560] sm:$0xff]
    %v217 = vld [vmem:[#allocation5 + $0x568] sm:$0xff]
    %v218 = vld [vmem:[#allocation5 + $0x570] sm:$0xff]
    %v219 = vld [vmem:[#allocation5 + $0x578] sm:$0xff]
    %v220 = vld [vmem:[#allocation5 + $0x580] sm:$0xff]
    %v221 = vld [vmem:[#allocation5 + $0x588] sm:$0xff]
    %v222 = vld [vmem:[#allocation5 + $0x590] sm:$0xff]
    %v223 = vld [vmem:[#allocation5 + $0x598] sm:$0xff]
    %v224 = vld [vmem:[#allocation5 + $0x5a0] sm:$0xff]
    %v225 = vld [vmem:[#allocation5 + $0x5a8] sm:$0xff]
    %v226 = vld [vmem:[#allocation5 + $0x5b0] sm:$0xff]
    %v227 = vld [vmem:[#allocation5 + $0x5b8] sm:$0xff]
    %v228 = vld [vmem:[#allocation5 + $0x5c0] sm:$0xff]
    %v229 = vld [vmem:[#allocation5 + $0x5c8] sm:$0xff]
    %v230 = vld [vmem:[#allocation5 + $0x5d0] sm:$0xff]
    %v231 = vld [vmem:[#allocation5 + $0x5d8] sm:$0xff]
    %v232 = vld [vmem:[#allocation5 + $0x5e0] sm:$0xff]
    %v233 = vld [vmem:[#allocation5 + $0x5e8] sm:$0xff]
    %v234 = vld [vmem:[#allocation5 + $0x5f0] sm:$0xff]
    %v235 = vld [vmem:[#allocation5 + $0x5f8] sm:$0xff]
    %v236 = vld [vmem:[#allocation5 + $0x600] sm:$0xff]
    %v237 = vld [vmem:[#allocation5 + $0x608] sm:$0xff]
    %v238 = vld [vmem:[#allocation5 + $0x610] sm:$0xff]
    %v239 = vld [vmem:[#allocation5 + $0x618] sm:$0xff]
    %v240 = vld [vmem:[#allocation5 + $0x620] sm:$0xff]
    %v241 = vld [vmem:[#allocation5 + $0x628] sm:$0xff]
    %v242 = vld [vmem:[#allocation5 + $0x630] sm:$0xff]
    %v243 = vld [vmem:[#allocation5 + $0x638] sm:$0xff]
    %v244 = vld [vmem:[#allocation5 + $0x640] sm:$0xff]
    %v245 = vld [vmem:[#allocation5 + $0x648] sm:$0xff]
    %v246 = vld [vmem:[#allocation5 + $0x650] sm:$0xff]
    %v247 = vld [vmem:[#allocation5 + $0x658] sm:$0xff]
    %v248 = vld [vmem:[#allocation5 + $0x660] sm:$0xff]
    %v249 = vld [vmem:[#allocation5 + $0x668] sm:$0xff]
    %v250 = vld [vmem:[#allocation5 + $0x670] sm:$0xff]
    %v251 = vld [vmem:[#allocation5 + $0x678] sm:$0xff]
    %v252 = vld [vmem:[#allocation5 + $0x680] sm:$0xff]
    %v253 = vld [vmem:[#allocation5 + $0x688] sm:$0xff]
    %v254 = vld [vmem:[#allocation5 + $0x690] sm:$0xff]
    %v255 = vld [vmem:[#allocation5 + $0x698] sm:$0xff]
    %v256 = vld [vmem:[#allocation5 + $0x6a0] sm:$0xff]
    %v257 = vld [vmem:[#allocation5 + $0x6a8] sm:$0xff]
    %v258 = vld [vmem:[#allocation5 + $0x6b0] sm:$0xff]
    %v259 = vld [vmem:[#allocation5 + $0x6b8] sm:$0xff]
    %v260 = vld [vmem:[#allocation5 + $0x6c0] sm:$0xff]
    %v261 = vld [vmem:[#allocation5 + $0x6c8] sm:$0xff]
    %v262 = vld [vmem:[#allocation5 + $0x6d0] sm:$0xff]
    %v263 = vld [vmem:[#allocation5 + $0x6d8] sm:$0xff]
    %v264 = vld [vmem:[#allocation5 + $0x6e0] sm:$0xff]
    %v265 = vld [vmem:[#allocation5 + $0x6e8] sm:$0xff]
    %v266 = vld [vmem:[#allocation5 + $0x6f0] sm:$0xff]
    %v267 = vld [vmem:[#allocation5 + $0x6f8] sm:$0xff]
    %v268 = vld [vmem:[#allocation5 + $0x700] sm:$0xff]
    %v269 = vld [vmem:[#allocation5 + $0x708] sm:$0xff]
    %v270 = vld [vmem:[#allocation5 + $0x710] sm:$0xff]
    %v271 = vld [vmem:[#allocation5 + $0x718] sm:$0xff]
    %v272 = vld [vmem:[#allocation5 + $0x720] sm:$0xff]
    %v273 = vld [vmem:[#allocation5 + $0x728] sm:$0xff]
    %v274 = vld [vmem:[#allocation5 + $0x730] sm:$0xff]
    %v275 = vld [vmem:[#allocation5 + $0x738] sm:$0xff]
    %v276 = vld [vmem:[#allocation5 + $0x740] sm:$0xff]
    %v277 = vld [vmem:[#allocation5 + $0x748] sm:$0xff]
    %v278 = vld [vmem:[#allocation5 + $0x750] sm:$0xff]
    %v279 = vld [vmem:[#allocation5 + $0x758] sm:$0xff]
    %v280 = vld [vmem:[#allocation5 + $0x760] sm:$0xff]
    %v281 = vld [vmem:[#allocation5 + $0x768] sm:$0xff]
    %v282 = vld [vmem:[#allocation5 + $0x770] sm:$0xff]
    %v283 = vld [vmem:[#allocation5 + $0x778] sm:$0xff]
    %v284 = vld [vmem:[#allocation5 + $0x780] sm:$0xff]
    %v285 = vld [vmem:[#allocation5 + $0x788] sm:$0xff]
    %v286 = vld [vmem:[#allocation5 + $0x790] sm:$0xff]
    %v287 = vld [vmem:[#allocation5 + $0x798] sm:$0xff]
    %v288 = vld [vmem:[#allocation5 + $0x7a0] sm:$0xff]
    %v289 = vld [vmem:[#allocation5 + $0x7a8] sm:$0xff]
    %v290 = vld [vmem:[#allocation5 + $0x7b0] sm:$0xff]
    %v291 = vld [vmem:[#allocation5 + $0x7b8] sm:$0xff]
    %v292 = vld [vmem:[#allocation5 + $0x7c0] sm:$0xff]
    %v293 = vld [vmem:[#allocation5 + $0x7c8] sm:$0xff]
    %v294 = vld [vmem:[#allocation5 + $0x7d0] sm:$0xff]
    %v295 = vld [vmem:[#allocation5 + $0x7d8] sm:$0xff]
    %v296 = vld [vmem:[#allocation5 + $0x7e0] sm:$0xff]
    %v297 = vld [vmem:[#allocation5 + $0x7e8] sm:$0xff]
    %v298 = vld [vmem:[#allocation5 + $0x7f0] sm:$0xff]
    %v299 = vld [vmem:[#allocation5 + $0x7f8] sm:$0xff]
    %v304 = vunpack.c.l.b16 %v40
    %v305 = vunpack.c.h.b16 %v40
    %v306 = vunpack.c.l.b16 %v41
    %v307 = vunpack.c.h.b16 %v41
    %v308 = vunpack.c.l.b16 %v42
    %v309 = vunpack.c.h.b16 %v42
    %v310 = vunpack.c.l.b16 %v43
    %v311 = vunpack.c.h.b16 %v43
    %v312 = vpack.c.b16 %v306, %v304
    %v313 = vpack.c.b16 %v307, %v305
    %v314 = vpack.c.b16 %v310, %v308
    %v315 = vpack.c.b16 %v311, %v309
    %v576 = vunpack.c.l.b16 %v44
    %v577 = vunpack.c.h.b16 %v44
    %v578 = vunpack.c.l.b16 %v45
    %v579 = vunpack.c.h.b16 %v45
    %v580 = vunpack.c.l.b16 %v46
    %v581 = vunpack.c.h.b16 %v46
    %v582 = vunpack.c.l.b16 %v47
    %v583 = vunpack.c.h.b16 %v47
    %v584 = vunpack.c.l.b16 %v48
    %v585 = vunpack.c.h.b16 %v48
    %v586 = vunpack.c.l.b16 %v49
    %v587 = vunpack.c.h.b16 %v49
    %v588 = vunpack.c.l.b16 %v50
    %v589 = vunpack.c.h.b16 %v50
    %v590 = vunpack.c.l.b16 %v51
    %v591 = vunpack.c.h.b16 %v51
    %v592 = vunpack.c.l.b16 %v52
    %v593 = vunpack.c.h.b16 %v52
    %v594 = vunpack.c.l.b16 %v53
    %v595 = vunpack.c.h.b16 %v53
    %v596 = vunpack.c.l.b16 %v54
    %v597 = vunpack.c.h.b16 %v54
    %v598 = vunpack.c.l.b16 %v55
    %v599 = vunpack.c.h.b16 %v55
    %v600 = vunpack.c.l.b16 %v56
    %v601 = vunpack.c.h.b16 %v56
    %v602 = vunpack.c.l.b16 %v57
    %v603 = vunpack.c.h.b16 %v57
    %v604 = vunpack.c.l.b16 %v58
    %v605 = vunpack.c.h.b16 %v58
    %v606 = vunpack.c.l.b16 %v59
    %v607 = vunpack.c.h.b16 %v59
    %v608 = vunpack.c.l.b16 %v60
    %v609 = vunpack.c.h.b16 %v60
    %v610 = vunpack.c.l.b16 %v61
    %v611 = vunpack.c.h.b16 %v61
    %v612 = vunpack.c.l.b16 %v62
    %v613 = vunpack.c.h.b16 %v62
    %v614 = vunpack.c.l.b16 %v63
    %v615 = vunpack.c.h.b16 %v63
    %v616 = vunpack.c.l.b16 %v64
    %v617 = vunpack.c.h.b16 %v64
    %v618 = vunpack.c.l.b16 %v65
    %v619 = vunpack.c.h.b16 %v65
    %v620 = vunpack.c.l.b16 %v66
    %v621 = vunpack.c.h.b16 %v66
    %v622 = vunpack.c.l.b16 %v67
    %v623 = vunpack.c.h.b16 %v67
    %v624 = vunpack.c.l.b16 %v68
    %v625 = vunpack.c.h.b16 %v68
    %v626 = vunpack.c.l.b16 %v69
    %v627 = vunpack.c.h.b16 %v69
    %v628 = vunpack.c.l.b16 %v70
    %v629 = vunpack.c.h.b16 %v70
    %v630 = vunpack.c.l.b16 %v71
    %v631 = vunpack.c.h.b16 %v71
    %v632 = vunpack.c.l.b16 %v72
    %v633 = vunpack.c.h.b16 %v72
    %v634 = vunpack.c.l.b16 %v73
    %v635 = vunpack.c.h.b16 %v73
    %v636 = vunpack.c.l.b16 %v74
    %v637 = vunpack.c.h.b16 %v74
    %v638 = vunpack.c.l.b16 %v75
    %v639 = vunpack.c.h.b16 %v75
    %v640 = vunpack.c.l.b16 %v76
    %v641 = vunpack.c.h.b16 %v76
    %v642 = vunpack.c.l.b16 %v77
    %v643 = vunpack.c.h.b16 %v77
    %v644 = vunpack.c.l.b16 %v78
    %v645 = vunpack.c.h.b16 %v78
    %v646 = vunpack.c.l.b16 %v79
    %v647 = vunpack.c.h.b16 %v79
    %v648 = vunpack.c.l.b16 %v80
    %v649 = vunpack.c.h.b16 %v80
    %v650 = vunpack.c.l.b16 %v81
    %v651 = vunpack.c.h.b16 %v81
    %v652 = vunpack.c.l.b16 %v82
    %v653 = vunpack.c.h.b16 %v82
    %v654 = vunpack.c.l.b16 %v83
    %v655 = vunpack.c.h.b16 %v83
    %v656 = vunpack.c.l.b16 %v84
    %v657 = vunpack.c.h.b16 %v84
    %v658 = vunpack.c.l.b16 %v85
    %v659 = vunpack.c.h.b16 %v85
    %v660 = vunpack.c.l.b16 %v86
    %v661 = vunpack.c.h.b16 %v86
    %v662 = vunpack.c.l.b16 %v87
    %v663 = vunpack.c.h.b16 %v87
    %v664 = vunpack.c.l.b16 %v88
    %v665 = vunpack.c.h.b16 %v88
    %v666 = vunpack.c.l.b16 %v89
    %v667 = vunpack.c.h.b16 %v89
    %v668 = vunpack.c.l.b16 %v90
    %v669 = vunpack.c.h.b16 %v90
    %v670 = vunpack.c.l.b16 %v91
    %v671 = vunpack.c.h.b16 %v91
    %v672 = vunpack.c.l.b16 %v92
    %v673 = vunpack.c.h.b16 %v92
    %v674 = vunpack.c.l.b16 %v93
    %v675 = vunpack.c.h.b16 %v93
    %v676 = vunpack.c.l.b16 %v94
    %v677 = vunpack.c.h.b16 %v94
    %v678 = vunpack.c.l.b16 %v95
    %v679 = vunpack.c.h.b16 %v95
    %v680 = vunpack.c.l.b16 %v96
    %v681 = vunpack.c.h.b16 %v96
    %v682 = vunpack.c.l.b16 %v97
    %v683 = vunpack.c.h.b16 %v97
    %v684 = vunpack.c.l.b16 %v98
    %v685 = vunpack.c.h.b16 %v98
    %v686 = vunpack.c.l.b16 %v99
    %v687 = vunpack.c.h.b16 %v99
    %v688 = vunpack.c.l.b16 %v100
    %v689 = vunpack.c.h.b16 %v100
    %v690 = vunpack.c.l.b16 %v101
    %v691 = vunpack.c.h.b16 %v101
    %v692 = vunpack.c.l.b16 %v102
    %v693 = vunpack.c.h.b16 %v102
    %v694 = vunpack.c.l.b16 %v103
    %v695 = vunpack.c.h.b16 %v103
    %v696 = vunpack.c.l.b16 %v104
    %v697 = vunpack.c.h.b16 %v104
    %v698 = vunpack.c.l.b16 %v105
    %v699 = vunpack.c.h.b16 %v105
    %v700 = vunpack.c.l.b16 %v106
    %v701 = vunpack.c.h.b16 %v106
    %v702 = vunpack.c.l.b16 %v107
    %v703 = vunpack.c.h.b16 %v107
    %v704 = vunpack.c.l.b16 %v108
    %v705 = vunpack.c.h.b16 %v108
    %v706 = vunpack.c.l.b16 %v109
    %v707 = vunpack.c.h.b16 %v109
    %v708 = vunpack.c.l.b16 %v110
    %v709 = vunpack.c.h.b16 %v110
    %v710 = vunpack.c.l.b16 %v111
    %v711 = vunpack.c.h.b16 %v111
    %v712 = vunpack.c.l.b16 %v112
    %v713 = vunpack.c.h.b16 %v112
    %v714 = vunpack.c.l.b16 %v113
    %v715 = vunpack.c.h.b16 %v113
    %v716 = vunpack.c.l.b16 %v114
    %v717 = vunpack.c.h.b16 %v114
    %v718 = vunpack.c.l.b16 %v115
    %v719 = vunpack.c.h.b16 %v115
    %v720 = vunpack.c.l.b16 %v116
    %v721 = vunpack.c.h.b16 %v116
    %v722 = vunpack.c.l.b16 %v117
    %v723 = vunpack.c.h.b16 %v117
    %v724 = vunpack.c.l.b16 %v118
    %v725 = vunpack.c.h.b16 %v118
    %v726 = vunpack.c.l.b16 %v119
    %v727 = vunpack.c.h.b16 %v119
    %v728 = vunpack.c.l.b16 %v120
    %v729 = vunpack.c.h.b16 %v120
    %v730 = vunpack.c.l.b16 %v121
    %v731 = vunpack.c.h.b16 %v121
    %v732 = vunpack.c.l.b16 %v122
    %v733 = vunpack.c.h.b16 %v122
    %v734 = vunpack.c.l.b16 %v123
    %v735 = vunpack.c.h.b16 %v123
    %v736 = vunpack.c.l.b16 %v124
    %v737 = vunpack.c.h.b16 %v124
    %v738 = vunpack.c.l.b16 %v125
    %v739 = vunpack.c.h.b16 %v125
    %v740 = vunpack.c.l.b16 %v126
    %v741 = vunpack.c.h.b16 %v126
    %v742 = vunpack.c.l.b16 %v127
    %v743 = vunpack.c.h.b16 %v127
    %v744 = vunpack.c.l.b16 %v128
    %v745 = vunpack.c.h.b16 %v128
    %v746 = vunpack.c.l.b16 %v129
    %v747 = vunpack.c.h.b16 %v129
    %v748 = vunpack.c.l.b16 %v130
    %v749 = vunpack.c.h.b16 %v130
    %v750 = vunpack.c.l.b16 %v131
    %v751 = vunpack.c.h.b16 %v131
    %v752 = vunpack.c.l.b16 %v132
    %v753 = vunpack.c.h.b16 %v132
    %v754 = vunpack.c.l.b16 %v133
    %v755 = vunpack.c.h.b16 %v133
    %v756 = vunpack.c.l.b16 %v134
    %v757 = vunpack.c.h.b16 %v134
    %v758 = vunpack.c.l.b16 %v135
    %v759 = vunpack.c.h.b16 %v135
    %v760 = vunpack.c.l.b16 %v136
    %v761 = vunpack.c.h.b16 %v136
    %v762 = vunpack.c.l.b16 %v137
    %v763 = vunpack.c.h.b16 %v137
    %v764 = vunpack.c.l.b16 %v138
    %v765 = vunpack.c.h.b16 %v138
    %v766 = vunpack.c.l.b16 %v139
    %v767 = vunpack.c.h.b16 %v139
    %v768 = vunpack.c.l.b16 %v140
    %v769 = vunpack.c.h.b16 %v140
    %v770 = vunpack.c.l.b16 %v141
    %v771 = vunpack.c.h.b16 %v141
    %v772 = vunpack.c.l.b16 %v142
    %v773 = vunpack.c.h.b16 %v142
    %v774 = vunpack.c.l.b16 %v143
    %v775 = vunpack.c.h.b16 %v143
    %v776 = vunpack.c.l.b16 %v144
    %v777 = vunpack.c.h.b16 %v144
    %v778 = vunpack.c.l.b16 %v145
    %v779 = vunpack.c.h.b16 %v145
    %v780 = vunpack.c.l.b16 %v146
    %v781 = vunpack.c.h.b16 %v146
    %v782 = vunpack.c.l.b16 %v147
    %v783 = vunpack.c.h.b16 %v147
    %v784 = vunpack.c.l.b16 %v148
    %v785 = vunpack.c.h.b16 %v148
    %v786 = vunpack.c.l.b16 %v149
    %v787 = vunpack.c.h.b16 %v149
    %v788 = vunpack.c.l.b16 %v150
    %v789 = vunpack.c.h.b16 %v150
    %v790 = vunpack.c.l.b16 %v151
    %v791 = vunpack.c.h.b16 %v151
    %v792 = vunpack.c.l.b16 %v152
    %v793 = vunpack.c.h.b16 %v152
    %v794 = vunpack.c.l.b16 %v153
    %v795 = vunpack.c.h.b16 %v153
    %v796 = vunpack.c.l.b16 %v154
    %v797 = vunpack.c.h.b16 %v154
    %v798 = vunpack.c.l.b16 %v155
    %v799 = vunpack.c.h.b16 %v155
    %v800 = vunpack.c.l.b16 %v156
    %v801 = vunpack.c.h.b16 %v156
    %v802 = vunpack.c.l.b16 %v157
    %v803 = vunpack.c.h.b16 %v157
    %v804 = vunpack.c.l.b16 %v158
    %v805 = vunpack.c.h.b16 %v158
    %v806 = vunpack.c.l.b16 %v159
    %v807 = vunpack.c.h.b16 %v159
    %v808 = vunpack.c.l.b16 %v160
    %v809 = vunpack.c.h.b16 %v160
    %v810 = vunpack.c.l.b16 %v161
    %v811 = vunpack.c.h.b16 %v161
    %v812 = vunpack.c.l.b16 %v162
    %v813 = vunpack.c.h.b16 %v162
    %v814 = vunpack.c.l.b16 %v163
    %v815 = vunpack.c.h.b16 %v163
    %v816 = vunpack.c.l.b16 %v164
    %v817 = vunpack.c.h.b16 %v164
    %v818 = vunpack.c.l.b16 %v165
    %v819 = vunpack.c.h.b16 %v165
    %v820 = vunpack.c.l.b16 %v166
    %v821 = vunpack.c.h.b16 %v166
    %v822 = vunpack.c.l.b16 %v167
    %v823 = vunpack.c.h.b16 %v167
    %v824 = vunpack.c.l.b16 %v168
    %v825 = vunpack.c.h.b16 %v168
    %v826 = vunpack.c.l.b16 %v169
    %v827 = vunpack.c.h.b16 %v169
    %v828 = vunpack.c.l.b16 %v170
    %v829 = vunpack.c.h.b16 %v170
    %v830 = vunpack.c.l.b16 %v171
    %v831 = vunpack.c.h.b16 %v171
    %v832 = vunpack.c.l.b16 %v172
    %v833 = vunpack.c.h.b16 %v172
    %v834 = vunpack.c.l.b16 %v173
    %v835 = vunpack.c.h.b16 %v173
    %v836 = vunpack.c.l.b16 %v174
    %v837 = vunpack.c.h.b16 %v174
    %v838 = vunpack.c.l.b16 %v175
    %v839 = vunpack.c.h.b16 %v175
    %v840 = vunpack.c.l.b16 %v176
    %v841 = vunpack.c.h.b16 %v176
    %v842 = vunpack.c.l.b16 %v177
    %v843 = vunpack.c.h.b16 %v177
    %v844 = vunpack.c.l.b16 %v178
    %v845 = vunpack.c.h.b16 %v178
    %v846 = vunpack.c.l.b16 %v179
    %v847 = vunpack.c.h.b16 %v179
    %v848 = vunpack.c.l.b16 %v180
    %v849 = vunpack.c.h.b16 %v180
    %v850 = vunpack.c.l.b16 %v181
    %v851 = vunpack.c.h.b16 %v181
    %v852 = vunpack.c.l.b16 %v182
    %v853 = vunpack.c.h.b16 %v182
    %v854 = vunpack.c.l.b16 %v183
    %v855 = vunpack.c.h.b16 %v183
    %v856 = vunpack.c.l.b16 %v184
    %v857 = vunpack.c.h.b16 %v184
    %v858 = vunpack.c.l.b16 %v185
    %v859 = vunpack.c.h.b16 %v185
    %v860 = vunpack.c.l.b16 %v186
    %v861 = vunpack.c.h.b16 %v186
    %v862 = vunpack.c.l.b16 %v187
    %v863 = vunpack.c.h.b16 %v187
    %v864 = vunpack.c.l.b16 %v188
    %v865 = vunpack.c.h.b16 %v188
    %v866 = vunpack.c.l.b16 %v189
    %v867 = vunpack.c.h.b16 %v189
    %v868 = vunpack.c.l.b16 %v190
    %v869 = vunpack.c.h.b16 %v190
    %v870 = vunpack.c.l.b16 %v191
    %v871 = vunpack.c.h.b16 %v191
    %v872 = vunpack.c.l.b16 %v192
    %v873 = vunpack.c.h.b16 %v192
    %v874 = vunpack.c.l.b16 %v193
    %v875 = vunpack.c.h.b16 %v193
    %v876 = vunpack.c.l.b16 %v194
    %v877 = vunpack.c.h.b16 %v194
    %v878 = vunpack.c.l.b16 %v195
    %v879 = vunpack.c.h.b16 %v195
    %v880 = vunpack.c.l.b16 %v196
    %v881 = vunpack.c.h.b16 %v196
    %v882 = vunpack.c.l.b16 %v197
    %v883 = vunpack.c.h.b16 %v197
    %v884 = vunpack.c.l.b16 %v198
    %v885 = vunpack.c.h.b16 %v198
    %v886 = vunpack.c.l.b16 %v199
    %v887 = vunpack.c.h.b16 %v199
    %v888 = vunpack.c.l.b16 %v200
    %v889 = vunpack.c.h.b16 %v200
    %v890 = vunpack.c.l.b16 %v201
    %v891 = vunpack.c.h.b16 %v201
    %v892 = vunpack.c.l.b16 %v202
    %v893 = vunpack.c.h.b16 %v202
    %v894 = vunpack.c.l.b16 %v203
    %v895 = vunpack.c.h.b16 %v203
    %v896 = vunpack.c.l.b16 %v204
    %v897 = vunpack.c.h.b16 %v204
    %v898 = vunpack.c.l.b16 %v205
    %v899 = vunpack.c.h.b16 %v205
    %v900 = vunpack.c.l.b16 %v206
    %v901 = vunpack.c.h.b16 %v206
    %v902 = vunpack.c.l.b16 %v207
    %v903 = vunpack.c.h.b16 %v207
    %v904 = vunpack.c.l.b16 %v208
    %v905 = vunpack.c.h.b16 %v208
    %v906 = vunpack.c.l.b16 %v209
    %v907 = vunpack.c.h.b16 %v209
    %v908 = vunpack.c.l.b16 %v210
    %v909 = vunpack.c.h.b16 %v210
    %v910 = vunpack.c.l.b16 %v211
    %v911 = vunpack.c.h.b16 %v211
    %v912 = vunpack.c.l.b16 %v212
    %v913 = vunpack.c.h.b16 %v212
    %v914 = vunpack.c.l.b16 %v213
    %v915 = vunpack.c.h.b16 %v213
    %v916 = vunpack.c.l.b16 %v214
    %v917 = vunpack.c.h.b16 %v214
    %v918 = vunpack.c.l.b16 %v215
    %v919 = vunpack.c.h.b16 %v215
    %v920 = vunpack.c.l.b16 %v216
    %v921 = vunpack.c.h.b16 %v216
    %v922 = vunpack.c.l.b16 %v217
    %v923 = vunpack.c.h.b16 %v217
    %v924 = vunpack.c.l.b16 %v218
    %v925 = vunpack.c.h.b16 %v218
    %v926 = vunpack.c.l.b16 %v219
    %v927 = vunpack.c.h.b16 %v219
    %v928 = vunpack.c.l.b16 %v220
    %v929 = vunpack.c.h.b16 %v220
    %v930 = vunpack.c.l.b16 %v221
    %v931 = vunpack.c.h.b16 %v221
    %v932 = vunpack.c.l.b16 %v222
    %v933 = vunpack.c.h.b16 %v222
    %v934 = vunpack.c.l.b16 %v223
    %v935 = vunpack.c.h.b16 %v223
    %v936 = vunpack.c.l.b16 %v224
    %v937 = vunpack.c.h.b16 %v224
    %v938 = vunpack.c.l.b16 %v225
    %v939 = vunpack.c.h.b16 %v225
    %v940 = vunpack.c.l.b16 %v226
    %v941 = vunpack.c.h.b16 %v226
    %v942 = vunpack.c.l.b16 %v227
    %v943 = vunpack.c.h.b16 %v227
    %v944 = vunpack.c.l.b16 %v228
    %v945 = vunpack.c.h.b16 %v228
    %v946 = vunpack.c.l.b16 %v229
    %v947 = vunpack.c.h.b16 %v229
    %v948 = vunpack.c.l.b16 %v230
    %v949 = vunpack.c.h.b16 %v230
    %v950 = vunpack.c.l.b16 %v231
    %v951 = vunpack.c.h.b16 %v231
    %v952 = vunpack.c.l.b16 %v232
    %v953 = vunpack.c.h.b16 %v232
    %v954 = vunpack.c.l.b16 %v233
    %v955 = vunpack.c.h.b16 %v233
    %v956 = vunpack.c.l.b16 %v234
    %v957 = vunpack.c.h.b16 %v234
    %v958 = vunpack.c.l.b16 %v235
    %v959 = vunpack.c.h.b16 %v235
    %v960 = vunpack.c.l.b16 %v236
    %v961 = vunpack.c.h.b16 %v236
    %v962 = vunpack.c.l.b16 %v237
    %v963 = vunpack.c.h.b16 %v237
    %v964 = vunpack.c.l.b16 %v238
    %v965 = vunpack.c.h.b16 %v238
    %v966 = vunpack.c.l.b16 %v239
    %v967 = vunpack.c.h.b16 %v239
    %v968 = vunpack.c.l.b16 %v240
    %v969 = vunpack.c.h.b16 %v240
    %v970 = vunpack.c.l.b16 %v241
    %v971 = vunpack.c.h.b16 %v241
    %v972 = vunpack.c.l.b16 %v242
    %v973 = vunpack.c.h.b16 %v242
    %v974 = vunpack.c.l.b16 %v243
    %v975 = vunpack.c.h.b16 %v243
    %v976 = vunpack.c.l.b16 %v244
    %v977 = vunpack.c.h.b16 %v244
    %v978 = vunpack.c.l.b16 %v245
    %v979 = vunpack.c.h.b16 %v245
    %v980 = vunpack.c.l.b16 %v246
    %v981 = vunpack.c.h.b16 %v246
    %v982 = vunpack.c.l.b16 %v247
    %v983 = vunpack.c.h.b16 %v247
    %v984 = vunpack.c.l.b16 %v248
    %v985 = vunpack.c.h.b16 %v248
    %v986 = vunpack.c.l.b16 %v249
    %v987 = vunpack.c.h.b16 %v249
    %v988 = vunpack.c.l.b16 %v250
    %v989 = vunpack.c.h.b16 %v250
    %v990 = vunpack.c.l.b16 %v251
    %v991 = vunpack.c.h.b16 %v251
    %v992 = vunpack.c.l.b16 %v252
    %v993 = vunpack.c.h.b16 %v252
    %v994 = vunpack.c.l.b16 %v253
    %v995 = vunpack.c.h.b16 %v253
    %v996 = vunpack.c.l.b16 %v254
    %v997 = vunpack.c.h.b16 %v254
    %v998 = vunpack.c.l.b16 %v255
    %v999 = vunpack.c.h.b16 %v255
    %v1000 = vunpack.c.l.b16 %v256
    %v1001 = vunpack.c.h.b16 %v256
    %v1002 = vunpack.c.l.b16 %v257
    %v1003 = vunpack.c.h.b16 %v257
    %v1004 = vunpack.c.l.b16 %v258
    %v1005 = vunpack.c.h.b16 %v258
    %v1006 = vunpack.c.l.b16 %v259
    %v1007 = vunpack.c.h.b16 %v259
    %v1008 = vunpack.c.l.b16 %v260
    %v1009 = vunpack.c.h.b16 %v260
    %v1010 = vunpack.c.l.b16 %v261
    %v1011 = vunpack.c.h.b16 %v261
    %v1012 = vunpack.c.l.b16 %v262
    %v1013 = vunpack.c.h.b16 %v262
    %v1014 = vunpack.c.l.b16 %v263
    %v1015 = vunpack.c.h.b16 %v263
    %v1016 = vunpack.c.l.b16 %v264
    %v1017 = vunpack.c.h.b16 %v264
    %v1018 = vunpack.c.l.b16 %v265
    %v1019 = vunpack.c.h.b16 %v265
    %v1020 = vunpack.c.l.b16 %v266
    %v1021 = vunpack.c.h.b16 %v266
    %v1022 = vunpack.c.l.b16 %v267
    %v1023 = vunpack.c.h.b16 %v267
    %v1024 = vunpack.c.l.b16 %v268
    %v1025 = vunpack.c.h.b16 %v268
    %v1026 = vunpack.c.l.b16 %v269
    %v1027 = vunpack.c.h.b16 %v269
    %v1028 = vunpack.c.l.b16 %v270
    %v1029 = vunpack.c.h.b16 %v270
    %v1030 = vunpack.c.l.b16 %v271
    %v1031 = vunpack.c.h.b16 %v271
    %v1032 = vunpack.c.l.b16 %v272
    %v1033 = vunpack.c.h.b16 %v272
    %v1034 = vunpack.c.l.b16 %v273
    %v1035 = vunpack.c.h.b16 %v273
    %v1036 = vunpack.c.l.b16 %v274
    %v1037 = vunpack.c.h.b16 %v274
    %v1038 = vunpack.c.l.b16 %v275
    %v1039 = vunpack.c.h.b16 %v275
    %v1040 = vunpack.c.l.b16 %v276
    %v1041 = vunpack.c.h.b16 %v276
    %v1042 = vunpack.c.l.b16 %v277
    %v1043 = vunpack.c.h.b16 %v277
    %v1044 = vunpack.c.l.b16 %v278
    %v1045 = vunpack.c.h.b16 %v278
    %v1046 = vunpack.c.l.b16 %v279
    %v1047 = vunpack.c.h.b16 %v279
    %v1048 = vunpack.c.l.b16 %v280
    %v1049 = vunpack.c.h.b16 %v280
    %v1050 = vunpack.c.l.b16 %v281
    %v1051 = vunpack.c.h.b16 %v281
    %v1052 = vunpack.c.l.b16 %v282
    %v1053 = vunpack.c.h.b16 %v282
    %v1054 = vunpack.c.l.b16 %v283
    %v1055 = vunpack.c.h.b16 %v283
    %v1056 = vunpack.c.l.b16 %v284
    %v1057 = vunpack.c.h.b16 %v284
    %v1058 = vunpack.c.l.b16 %v285
    %v1059 = vunpack.c.h.b16 %v285
    %v1060 = vunpack.c.l.b16 %v286
    %v1061 = vunpack.c.h.b16 %v286
    %v1062 = vunpack.c.l.b16 %v287
    %v1063 = vunpack.c.h.b16 %v287
    %v1064 = vunpack.c.l.b16 %v288
    %v1065 = vunpack.c.h.b16 %v288
    %v1066 = vunpack.c.l.b16 %v289
    %v1067 = vunpack.c.h.b16 %v289
    %v1068 = vunpack.c.l.b16 %v290
    %v1069 = vunpack.c.h.b16 %v290
    %v1070 = vunpack.c.l.b16 %v291
    %v1071 = vunpack.c.h.b16 %v291
    %v1072 = vunpack.c.l.b16 %v292
    %v1073 = vunpack.c.h.b16 %v292
    %v1074 = vunpack.c.l.b16 %v293
    %v1075 = vunpack.c.h.b16 %v293
    %v1076 = vunpack.c.l.b16 %v294
    %v1077 = vunpack.c.h.b16 %v294
    %v1078 = vunpack.c.l.b16 %v295
    %v1079 = vunpack.c.h.b16 %v295
    %v1080 = vunpack.c.l.b16 %v296
    %v1081 = vunpack.c.h.b16 %v296
    %v1082 = vunpack.c.l.b16 %v297
    %v1083 = vunpack.c.h.b16 %v297
    %v1084 = vunpack.c.l.b16 %v298
    %v1085 = vunpack.c.h.b16 %v298
    %v1086 = vunpack.c.l.b16 %v299
    %v1087 = vunpack.c.h.b16 %v299
    %v1088 = vpack.c.b16 %v592, %v576
    %v1089 = vpack.c.b16 %v593, %v577
    %v1090 = vpack.c.b16 %v594, %v578
    %v1091 = vpack.c.b16 %v595, %v579
    %v1092 = vpack.c.b16 %v596, %v580
    %v1093 = vpack.c.b16 %v597, %v581
    %v1094 = vpack.c.b16 %v598, %v582
    %v1095 = vpack.c.b16 %v599, %v583
    %v1096 = vpack.c.b16 %v600, %v584
    %v1097 = vpack.c.b16 %v601, %v585
    %v1098 = vpack.c.b16 %v602, %v586
    %v1099 = vpack.c.b16 %v603, %v587
    %v1100 = vpack.c.b16 %v604, %v588
    %v1101 = vpack.c.b16 %v605, %v589
    %v1102 = vpack.c.b16 %v606, %v590
    %v1103 = vpack.c.b16 %v607, %v591
    %v1104 = vpack.c.b16 %v624, %v608
    %v1105 = vpack.c.b16 %v625, %v609
    %v1106 = vpack.c.b16 %v626, %v610
    %v1107 = vpack.c.b16 %v627, %v611
    %v1108 = vpack.c.b16 %v628, %v612
    %v1109 = vpack.c.b16 %v629, %v613
    %v1110 = vpack.c.b16 %v630, %v614
    %v1111 = vpack.c.b16 %v631, %v615
    %v1112 = vpack.c.b16 %v632, %v616
    %v1113 = vpack.c.b16 %v633, %v617
    %v1114 = vpack.c.b16 %v634, %v618
    %v1115 = vpack.c.b16 %v635, %v619
    %v1116 = vpack.c.b16 %v636, %v620
    %v1117 = vpack.c.b16 %v637, %v621
    %v1118 = vpack.c.b16 %v638, %v622
    %v1119 = vpack.c.b16 %v639, %v623
    %v1120 = vpack.c.b16 %v656, %v640
    %v1121 = vpack.c.b16 %v657, %v641
    %v1122 = vpack.c.b16 %v658, %v642
    %v1123 = vpack.c.b16 %v659, %v643
    %v1124 = vpack.c.b16 %v660, %v644
    %v1125 = vpack.c.b16 %v661, %v645
    %v1126 = vpack.c.b16 %v662, %v646
    %v1127 = vpack.c.b16 %v663, %v647
    %v1128 = vpack.c.b16 %v664, %v648
    %v1129 = vpack.c.b16 %v665, %v649
    %v1130 = vpack.c.b16 %v666, %v650
    %v1131 = vpack.c.b16 %v667, %v651
    %v1132 = vpack.c.b16 %v668, %v652
    %v1133 = vpack.c.b16 %v669, %v653
    %v1134 = vpack.c.b16 %v670, %v654
    %v1135 = vpack.c.b16 %v671, %v655
    %v1136 = vpack.c.b16 %v688, %v672
    %v1137 = vpack.c.b16 %v689, %v673
    %v1138 = vpack.c.b16 %v690, %v674
    %v1139 = vpack.c.b16 %v691, %v675
    %v1140 = vpack.c.b16 %v692, %v676
    %v1141 = vpack.c.b16 %v693, %v677
    %v1142 = vpack.c.b16 %v694, %v678
    %v1143 = vpack.c.b16 %v695, %v679
    %v1144 = vpack.c.b16 %v696, %v680
    %v1145 = vpack.c.b16 %v697, %v681
    %v1146 = vpack.c.b16 %v698, %v682
    %v1147 = vpack.c.b16 %v699, %v683
    %v1148 = vpack.c.b16 %v700, %v684
    %v1149 = vpack.c.b16 %v701, %v685
    %v1150 = vpack.c.b16 %v702, %v686
    %v1151 = vpack.c.b16 %v703, %v687
    %v1152 = vpack.c.b16 %v720, %v704
    %v1153 = vpack.c.b16 %v721, %v705
    %v1154 = vpack.c.b16 %v722, %v706
    %v1155 = vpack.c.b16 %v723, %v707
    %v1156 = vpack.c.b16 %v724, %v708
    %v1157 = vpack.c.b16 %v725, %v709
    %v1158 = vpack.c.b16 %v726, %v710
    %v1159 = vpack.c.b16 %v727, %v711
    %v1160 = vpack.c.b16 %v728, %v712
    %v1161 = vpack.c.b16 %v729, %v713
    %v1162 = vpack.c.b16 %v730, %v714
    %v1163 = vpack.c.b16 %v731, %v715
    %v1164 = vpack.c.b16 %v732, %v716
    %v1165 = vpack.c.b16 %v733, %v717
    %v1166 = vpack.c.b16 %v734, %v718
    %v1167 = vpack.c.b16 %v735, %v719
    %v1168 = vpack.c.b16 %v752, %v736
    %v1169 = vpack.c.b16 %v753, %v737
    %v1170 = vpack.c.b16 %v754, %v738
    %v1171 = vpack.c.b16 %v755, %v739
    %v1172 = vpack.c.b16 %v756, %v740
    %v1173 = vpack.c.b16 %v757, %v741
    %v1174 = vpack.c.b16 %v758, %v742
    %v1175 = vpack.c.b16 %v759, %v743
    %v1176 = vpack.c.b16 %v760, %v744
    %v1177 = vpack.c.b16 %v761, %v745
    %v1178 = vpack.c.b16 %v762, %v746
    %v1179 = vpack.c.b16 %v763, %v747
    %v1180 = vpack.c.b16 %v764, %v748
    %v1181 = vpack.c.b16 %v765, %v749
    %v1182 = vpack.c.b16 %v766, %v750
    %v1183 = vpack.c.b16 %v767, %v751
    %v1184 = vpack.c.b16 %v784, %v768
    %v1185 = vpack.c.b16 %v785, %v769
    %v1186 = vpack.c.b16 %v786, %v770
    %v1187 = vpack.c.b16 %v787, %v771
    %v1188 = vpack.c.b16 %v788, %v772
    %v1189 = vpack.c.b16 %v789, %v773
    %v1190 = vpack.c.b16 %v790, %v774
    %v1191 = vpack.c.b16 %v791, %v775
    %v1192 = vpack.c.b16 %v792, %v776
    %v1193 = vpack.c.b16 %v793, %v777
    %v1194 = vpack.c.b16 %v794, %v778
    %v1195 = vpack.c.b16 %v795, %v779
    %v1196 = vpack.c.b16 %v796, %v780
    %v1197 = vpack.c.b16 %v797, %v781
    %v1198 = vpack.c.b16 %v798, %v782
    %v1199 = vpack.c.b16 %v799, %v783
    %v1200 = vpack.c.b16 %v816, %v800
    %v1201 = vpack.c.b16 %v817, %v801
    %v1202 = vpack.c.b16 %v818, %v802
    %v1203 = vpack.c.b16 %v819, %v803
    %v1204 = vpack.c.b16 %v820, %v804
    %v1205 = vpack.c.b16 %v821, %v805
    %v1206 = vpack.c.b16 %v822, %v806
    %v1207 = vpack.c.b16 %v823, %v807
    %v1208 = vpack.c.b16 %v824, %v808
    %v1209 = vpack.c.b16 %v825, %v809
    %v1210 = vpack.c.b16 %v826, %v810
    %v1211 = vpack.c.b16 %v827, %v811
    %v1212 = vpack.c.b16 %v828, %v812
    %v1213 = vpack.c.b16 %v829, %v813
    %v1214 = vpack.c.b16 %v830, %v814
    %v1215 = vpack.c.b16 %v831, %v815
    %v1216 = vpack.c.b16 %v848, %v832
    %v1217 = vpack.c.b16 %v849, %v833
    %v1218 = vpack.c.b16 %v850, %v834
    %v1219 = vpack.c.b16 %v851, %v835
    %v1220 = vpack.c.b16 %v852, %v836
    %v1221 = vpack.c.b16 %v853, %v837
    %v1222 = vpack.c.b16 %v854, %v838
    %v1223 = vpack.c.b16 %v855, %v839
    %v1224 = vpack.c.b16 %v856, %v840
    %v1225 = vpack.c.b16 %v857, %v841
    %v1226 = vpack.c.b16 %v858, %v842
    %v1227 = vpack.c.b16 %v859, %v843
    %v1228 = vpack.c.b16 %v860, %v844
    %v1229 = vpack.c.b16 %v861, %v845
    %v1230 = vpack.c.b16 %v862, %v846
    %v1231 = vpack.c.b16 %v863, %v847
    %v1232 = vpack.c.b16 %v880, %v864
    %v1233 = vpack.c.b16 %v881, %v865
    %v1234 = vpack.c.b16 %v882, %v866
    %v1235 = vpack.c.b16 %v883, %v867
    %v1236 = vpack.c.b16 %v884, %v868
    %v1237 = vpack.c.b16 %v885, %v869
    %v1238 = vpack.c.b16 %v886, %v870
    %v1239 = vpack.c.b16 %v887, %v871
    %v1240 = vpack.c.b16 %v888, %v872
    %v1241 = vpack.c.b16 %v889, %v873
    %v1242 = vpack.c.b16 %v890, %v874
    %v1243 = vpack.c.b16 %v891, %v875
    %v1244 = vpack.c.b16 %v892, %v876
    %v1245 = vpack.c.b16 %v893, %v877
    %v1246 = vpack.c.b16 %v894, %v878
    %v1247 = vpack.c.b16 %v895, %v879
    %v1248 = vpack.c.b16 %v912, %v896
    %v1249 = vpack.c.b16 %v913, %v897
    %v1250 = vpack.c.b16 %v914, %v898
    %v1251 = vpack.c.b16 %v915, %v899
    %v1252 = vpack.c.b16 %v916, %v900
    %v1253 = vpack.c.b16 %v917, %v901
    %v1254 = vpack.c.b16 %v918, %v902
    %v1255 = vpack.c.b16 %v919, %v903
    %v1256 = vpack.c.b16 %v920, %v904
    %v1257 = vpack.c.b16 %v921, %v905
    %v1258 = vpack.c.b16 %v922, %v906
    %v1259 = vpack.c.b16 %v923, %v907
    %v1260 = vpack.c.b16 %v924, %v908
    %v1261 = vpack.c.b16 %v925, %v909
    %v1262 = vpack.c.b16 %v926, %v910
    %v1263 = vpack.c.b16 %v927, %v911
    %v1264 = vpack.c.b16 %v944, %v928
    %v1265 = vpack.c.b16 %v945, %v929
    %v1266 = vpack.c.b16 %v946, %v930
    %v1267 = vpack.c.b16 %v947, %v931
    %v1268 = vpack.c.b16 %v948, %v932
    %v1269 = vpack.c.b16 %v949, %v933
    %v1270 = vpack.c.b16 %v950, %v934
    %v1271 = vpack.c.b16 %v951, %v935
    %v1272 = vpack.c.b16 %v952, %v936
    %v1273 = vpack.c.b16 %v953, %v937
    %v1274 = vpack.c.b16 %v954, %v938
    %v1275 = vpack.c.b16 %v955, %v939
    %v1276 = vpack.c.b16 %v956, %v940
    %v1277 = vpack.c.b16 %v957, %v941
    %v1278 = vpack.c.b16 %v958, %v942
    %v1279 = vpack.c.b16 %v959, %v943
    %v1280 = vpack.c.b16 %v976, %v960
    %v1281 = vpack.c.b16 %v977, %v961
    %v1282 = vpack.c.b16 %v978, %v962
    %v1283 = vpack.c.b16 %v979, %v963
    %v1284 = vpack.c.b16 %v980, %v964
    %v1285 = vpack.c.b16 %v981, %v965
    %v1286 = vpack.c.b16 %v982, %v966
    %v1287 = vpack.c.b16 %v983, %v967
    %v1288 = vpack.c.b16 %v984, %v968
    %v1289 = vpack.c.b16 %v985, %v969
    %v1290 = vpack.c.b16 %v986, %v970
    %v1291 = vpack.c.b16 %v987, %v971
    %v1292 = vpack.c.b16 %v988, %v972
    %v1293 = vpack.c.b16 %v989, %v973
    %v1294 = vpack.c.b16 %v990, %v974
    %v1295 = vpack.c.b16 %v991, %v975
    %v1296 = vpack.c.b16 %v1008, %v992
    %v1297 = vpack.c.b16 %v1009, %v993
    %v1298 = vpack.c.b16 %v1010, %v994
    %v1299 = vpack.c.b16 %v1011, %v995
    %v1300 = vpack.c.b16 %v1012, %v996
    %v1301 = vpack.c.b16 %v1013, %v997
    %v1302 = vpack.c.b16 %v1014, %v998
    %v1303 = vpack.c.b16 %v1015, %v999
    %v1304 = vpack.c.b16 %v1016, %v1000
    %v1305 = vpack.c.b16 %v1017, %v1001
    %v1306 = vpack.c.b16 %v1018, %v1002
    %v1307 = vpack.c.b16 %v1019, %v1003
    %v1308 = vpack.c.b16 %v1020, %v1004
    %v1309 = vpack.c.b16 %v1021, %v1005
    %v1310 = vpack.c.b16 %v1022, %v1006
    %v1311 = vpack.c.b16 %v1023, %v1007
    %v1312 = vpack.c.b16 %v1040, %v1024
    %v1313 = vpack.c.b16 %v1041, %v1025
    %v1314 = vpack.c.b16 %v1042, %v1026
    %v1315 = vpack.c.b16 %v1043, %v1027
    %v1316 = vpack.c.b16 %v1044, %v1028
    %v1317 = vpack.c.b16 %v1045, %v1029
    %v1318 = vpack.c.b16 %v1046, %v1030
    %v1319 = vpack.c.b16 %v1047, %v1031
    %v1320 = vpack.c.b16 %v1048, %v1032
    %v1321 = vpack.c.b16 %v1049, %v1033
    %v1322 = vpack.c.b16 %v1050, %v1034
    %v1323 = vpack.c.b16 %v1051, %v1035
    %v1324 = vpack.c.b16 %v1052, %v1036
    %v1325 = vpack.c.b16 %v1053, %v1037
    %v1326 = vpack.c.b16 %v1054, %v1038
    %v1327 = vpack.c.b16 %v1055, %v1039
    %v1328 = vpack.c.b16 %v1072, %v1056
    %v1329 = vpack.c.b16 %v1073, %v1057
    %v1330 = vpack.c.b16 %v1074, %v1058
    %v1331 = vpack.c.b16 %v1075, %v1059
    %v1332 = vpack.c.b16 %v1076, %v1060
    %v1333 = vpack.c.b16 %v1077, %v1061
    %v1334 = vpack.c.b16 %v1078, %v1062
    %v1335 = vpack.c.b16 %v1079, %v1063
    %v1336 = vpack.c.b16 %v1080, %v1064
    %v1337 = vpack.c.b16 %v1081, %v1065
    %v1338 = vpack.c.b16 %v1082, %v1066
    %v1339 = vpack.c.b16 %v1083, %v1067
    %v1340 = vpack.c.b16 %v1084, %v1068
    %v1341 = vpack.c.b16 %v1085, %v1069
    %v1342 = vpack.c.b16 %v1086, %v1070
    %v1343 = vpack.c.b16 %v1087, %v1071
    %1600 = vmatprep.subr.bf16.mxu0 %v1089
    %1601 = vmatpush1.bf16.msra.mxu0 %v1088
    %1602 = vmatprep.subr.bf16.mxu0 %v1105
    %1603 = vmatpush1.bf16.msra.mxu0 %v1104
    %1604 = vmatprep.subr.bf16.mxu0 %v1121
    %1605 = vmatpush1.bf16.msra.mxu0 %v1120
    %1606 = vmatprep.subr.bf16.mxu0 %v1137
    %1607 = vmatpush1.bf16.msra.mxu0 %v1136
    %1608 = vmatprep.subr.bf16.mxu0 %v1153
    %1609 = vmatpush1.bf16.msra.mxu0 %v1152
    %1610 = vmatprep.subr.bf16.mxu0 %v1169
    %1611 = vmatpush1.bf16.msra.mxu0 %v1168
    %1612 = vmatprep.subr.bf16.mxu0 %v1185
    %1613 = vmatpush1.bf16.msra.mxu0 %v1184
    %1614 = vmatprep.subr.bf16.mxu0 %v1201
    %1615 = vmatpush1.bf16.msra.mxu0 %v1200
    %1616 = vmatprep.subr.bf16.mxu0 %v1217
    %1617 = vmatpush1.bf16.msra.mxu0 %v1216
    %1618 = vmatprep.subr.bf16.mxu0 %v1233
    %1619 = vmatpush1.bf16.msra.mxu0 %v1232
    %1620 = vmatprep.subr.bf16.mxu0 %v1249
    %1621 = vmatpush1.bf16.msra.mxu0 %v1248
    %1622 = vmatprep.subr.bf16.mxu0 %v1265
    %1623 = vmatpush1.bf16.msra.mxu0 %v1264
    %1624 = vmatprep.subr.bf16.mxu0 %v1281
    %1625 = vmatpush1.bf16.msra.mxu0 %v1280
    %1626 = vmatprep.subr.bf16.mxu0 %v1297
    %1627 = vmatpush1.bf16.msra.mxu0 %v1296
    %1628 = vmatprep.subr.bf16.mxu0 %v1313
    %1629 = vmatpush1.bf16.msra.mxu0 %v1312
    %1630 = vmatprep.subr.bf16.mxu0 %v1329
    %1631 = vmatpush1.bf16.msra.mxu0 %v1328
    %1632 = vmatprep.mubr.bf16.mxu0 %v313
    %1633 = vmatmul.mubr.bf16.gmra.mrb[0].mxu0 %v312
    %v1634 = vpop.f32.mrb[0].mxu0
    %v1635 = vadd.f32 0.0, %v1634
    %v1636 = vpop.f32.mrb[0].mxu0
    %v1637 = vadd.f32 0.0, %v1636
    %v1638 = vpop.f32.mrb[0].mxu0
    %v1639 = vadd.f32 0.0, %v1638
    %v1640 = vpop.f32.mrb[0].mxu0
    %v1641 = vadd.f32 0.0, %v1640
    %1642 = vmatprep.mubr.bf16.mxu0 %v315
    %1643 = vmatmul.mubr.bf16.gmra.mrb[0].mxu0 %v314
    %v1644 = vpop.f32.mrb[0].mxu0
    %v1645 = vadd.f32 0.0, %v1644
    %v1646 = vpop.f32.mrb[0].mxu0
    %v1647 = vadd.f32 0.0, %v1646
    %v1648 = vpop.f32.mrb[0].mxu0
    %v1649 = vadd.f32 0.0, %v1648
    %v1650 = vpop.f32.mrb[0].mxu0
    %v1651 = vadd.f32 0.0, %v1650
    %1652 = vdwg.mxu0
    %1653 = vmatprep.subr.bf16.mxu0 %v1091
    %1654 = vmatpush1.bf16.msra.mxu0 %v1090
    %1655 = vmatprep.subr.bf16.mxu0 %v1107
    %1656 = vmatpush1.bf16.msra.mxu0 %v1106
    %1657 = vmatprep.subr.bf16.mxu0 %v1123
    %1658 = vmatpush1.bf16.msra.mxu0 %v1122
    %1659 = vmatprep.subr.bf16.mxu0 %v1139
    %1660 = vmatpush1.bf16.msra.mxu0 %v1138
    %1661 = vmatprep.subr.bf16.mxu0 %v1155
    %1662 = vmatpush1.bf16.msra.mxu0 %v1154
    %1663 = vmatprep.subr.bf16.mxu0 %v1171
    %1664 = vmatpush1.bf16.msra.mxu0 %v1170
    %1665 = vmatprep.subr.bf16.mxu0 %v1187
    %1666 = vmatpush1.bf16.msra.mxu0 %v1186
    %1667 = vmatprep.subr.bf16.mxu0 %v1203
    %1668 = vmatpush1.bf16.msra.mxu0 %v1202
    %1669 = vmatprep.subr.bf16.mxu0 %v1219
    %1670 = vmatpush1.bf16.msra.mxu0 %v1218
    %1671 = vmatprep.subr.bf16.mxu0 %v1235
    %1672 = vmatpush1.bf16.msra.mxu0 %v1234
    %1673 = vmatprep.subr.bf16.mxu0 %v1251
    %1674 = vmatpush1.bf16.msra.mxu0 %v1250
    %1675 = vmatprep.subr.bf16.mxu0 %v1267
    %1676 = vmatpush1.bf16.msra.mxu0 %v1266
    %1677 = vmatprep.subr.bf16.mxu0 %v1283
    %1678 = vmatpush1.bf16.msra.mxu0 %v1282
    %1679 = vmatprep.subr.bf16.mxu0 %v1299
    %1680 = vmatpush1.bf16.msra.mxu0 %v1298
    %1681 = vmatprep.subr.bf16.mxu0 %v1315
    %1682 = vmatpush1.bf16.msra.mxu0 %v1314
    %1683 = vmatprep.subr.bf16.mxu0 %v1331
    %1684 = vmatpush1.bf16.msra.mxu0 %v1330
    %1685 = vmatprep.mubr.bf16.mxu0 %v313
    %1686 = vmatmul.mubr.bf16.gmra.mrb[0].mxu0 %v312
    %v1687 = vpop.f32.mrb[0].mxu0
    %v1688 = vadd.f32 0.0, %v1687
    %v1689 = vpop.f32.mrb[0].mxu0
    %v1690 = vadd.f32 0.0, %v1689
    %v1691 = vpop.f32.mrb[0].mxu0
    %v1692 = vadd.f32 0.0, %v1691
    %v1693 = vpop.f32.mrb[0].mxu0
    %v1694 = vadd.f32 0.0, %v1693
    %1695 = vmatprep.mubr.bf16.mxu0 %v315
    %1696 = vmatmul.mubr.bf16.gmra.mrb[0].mxu0 %v314
    %v1697 = vpop.f32.mrb[0].mxu0
    %v1698 = vadd.f32 0.0, %v1697
    %v1699 = vpop.f32.mrb[0].mxu0
    %v1700 = vadd.f32 0.0, %v1699
    %v1701 = vpop.f32.mrb[0].mxu0
    %v1702 = vadd.f32 0.0, %v1701
    %v1703 = vpop.f32.mrb[0].mxu0
    %v1704 = vadd.f32 0.0, %v1703
    %1705 = vdwg.mxu0
    %1706 = vmatprep.subr.bf16.mxu0 %v1093
    %1707 = vmatpush1.bf16.msra.mxu0 %v1092
    %1708 = vmatprep.subr.bf16.mxu0 %v1109
    %1709 = vmatpush1.bf16.msra.mxu0 %v1108
    %1710 = vmatprep.subr.bf16.mxu0 %v1125
    %1711 = vmatpush1.bf16.msra.mxu0 %v1124
    %1712 = vmatprep.subr.bf16.mxu0 %v1141
    %1713 = vmatpush1.bf16.msra.mxu0 %v1140
    %1714 = vmatprep.subr.bf16.mxu0 %v1157
    %1715 = vmatpush1.bf16.msra.mxu0 %v1156
    %1716 = vmatprep.subr.bf16.mxu0 %v1173
    %1717 = vmatpush1.bf16.msra.mxu0 %v1172
    %1718 = vmatprep.subr.bf16.mxu0 %v1189
    %1719 = vmatpush1.bf16.msra.mxu0 %v1188
    %1720 = vmatprep.subr.bf16.mxu0 %v1205
    %1721 = vmatpush1.bf16.msra.mxu0 %v1204
    %1722 = vmatprep.subr.bf16.mxu0 %v1221
    %1723 = vmatpush1.bf16.msra.mxu0 %v1220
    %1724 = vmatprep.subr.bf16.mxu0 %v1237
    %1725 = vmatpush1.bf16.msra.mxu0 %v1236
    %1726 = vmatprep.subr.bf16.mxu0 %v1253
    %1727 = vmatpush1.bf16.msra.mxu0 %v1252
    %1728 = vmatprep.subr.bf16.mxu0 %v1269
    %1729 = vmatpush1.bf16.msra.mxu0 %v1268
    %1730 = vmatprep.subr.bf16.mxu0 %v1285
    %1731 = vmatpush1.bf16.msra.mxu0 %v1284
    %1732 = vmatprep.subr.bf16.mxu0 %v1301
    %1733 = vmatpush1.bf16.msra.mxu0 %v1300
    %1734 = vmatprep.subr.bf16.mxu0 %v1317
    %1735 = vmatpush1.bf16.msra.mxu0 %v1316
    %1736 = vmatprep.subr.bf16.mxu0 %v1333
    %1737 = vmatpush1.bf16.msra.mxu0 %v1332
    %1738 = vmatprep.mubr.bf16.mxu0 %v313
    %1739 = vmatmul.mubr.bf16.gmra.mrb[0].mxu0 %v312
    %v1740 = vpop.f32.mrb[0].mxu0
    %v1741 = vadd.f32 0.0, %v1740
    %v1742 = vpop.f32.mrb[0].mxu0
    %v1743 = vadd.f32 0.0, %v1742
    %v1744 = vpop.f32.mrb[0].mxu0
    %v1745 = vadd.f32 0.0, %v1744
    %v1746 = vpop.f32.mrb[0].mxu0
    %v1747 = vadd.f32 0.0, %v1746
    %1748 = vmatprep.mubr.bf16.mxu0 %v315
    %1749 = vmatmul.mubr.bf16.gmra.mrb[0].mxu0 %v314
    %v1750 = vpop.f32.mrb[0].mxu0
    %v1751 = vadd.f32 0.0, %v1750
    %v1752 = vpop.f32.mrb[0].mxu0
    %v1753 = vadd.f32 0.0, %v1752
    %v1754 = vpop.f32.mrb[0].mxu0
    %v1755 = vadd.f32 0.0, %v1754
    %v1756 = vpop.f32.mrb[0].mxu0
    %v1757 = vadd.f32 0.0, %v1756
    %1758 = vdwg.mxu0
    %1759 = vmatprep.subr.bf16.mxu0 %v1095
    %1760 = vmatpush1.bf16.msra.mxu0 %v1094
    %1761 = vmatprep.subr.bf16.mxu0 %v1111
    %1762 = vmatpush1.bf16.msra.mxu0 %v1110
    %1763 = vmatprep.subr.bf16.mxu0 %v1127
    %1764 = vmatpush1.bf16.msra.mxu0 %v1126
    %1765 = vmatprep.subr.bf16.mxu0 %v1143
    %1766 = vmatpush1.bf16.msra.mxu0 %v1142
    %1767 = vmatprep.subr.bf16.mxu0 %v1159
    %1768 = vmatpush1.bf16.msra.mxu0 %v1158
    %1769 = vmatprep.subr.bf16.mxu0 %v1175
    %1770 = vmatpush1.bf16.msra.mxu0 %v1174
    %1771 = vmatprep.subr.bf16.mxu0 %v1191
    %1772 = vmatpush1.bf16.msra.mxu0 %v1190
    %1773 = vmatprep.subr.bf16.mxu0 %v1207
    %1774 = vmatpush1.bf16.msra.mxu0 %v1206
    %1775 = vmatprep.subr.bf16.mxu0 %v1223
    %1776 = vmatpush1.bf16.msra.mxu0 %v1222
    %1777 = vmatprep.subr.bf16.mxu0 %v1239
    %1778 = vmatpush1.bf16.msra.mxu0 %v1238
    %1779 = vmatprep.subr.bf16.mxu0 %v1255
    %1780 = vmatpush1.bf16.msra.mxu0 %v1254
    %1781 = vmatprep.subr.bf16.mxu0 %v1271
    %1782 = vmatpush1.bf16.msra.mxu0 %v1270
    %1783 = vmatprep.subr.bf16.mxu0 %v1287
    %1784 = vmatpush1.bf16.msra.mxu0 %v1286
    %1785 = vmatprep.subr.bf16.mxu0 %v1303
    %1786 = vmatpush1.bf16.msra.mxu0 %v1302
    %1787 = vmatprep.subr.bf16.mxu0 %v1319
    %1788 = vmatpush1.bf16.msra.mxu0 %v1318
    %1789 = vmatprep.subr.bf16.mxu0 %v1335
    %1790 = vmatpush1.bf16.msra.mxu0 %v1334
    %1791 = vmatprep.mubr.bf16.mxu0 %v313
    %1792 = vmatmul.mubr.bf16.gmra.mrb[0].mxu0 %v312
    %v1793 = vpop.f32.mrb[0].mxu0
    %v1794 = vadd.f32 0.0, %v1793
    %v1795 = vpop.f32.mrb[0].mxu0
    %v1796 = vadd.f32 0.0, %v1795
    %v1797 = vpop.f32.mrb[0].mxu0
    %v1798 = vadd.f32 0.0, %v1797
    %v1799 = vpop.f32.mrb[0].mxu0
    %v1800 = vadd.f32 0.0, %v1799
    %1801 = vmatprep.mubr.bf16.mxu0 %v315
    %1802 = vmatmul.mubr.bf16.gmra.mrb[0].mxu0 %v314
    %v1803 = vpop.f32.mrb[0].mxu0
    %v1804 = vadd.f32 0.0, %v1803
    %v1805 = vpop.f32.mrb[0].mxu0
    %v1806 = vadd.f32 0.0, %v1805
    %v1807 = vpop.f32.mrb[0].mxu0
    %v1808 = vadd.f32 0.0, %v1807
    %v1809 = vpop.f32.mrb[0].mxu0
    %v1810 = vadd.f32 0.0, %v1809
    %1811 = vdwg.mxu0
    %1812 = vmatprep.subr.bf16.mxu0 %v1097
    %1813 = vmatpush1.bf16.msra.mxu0 %v1096
    %1814 = vmatprep.subr.bf16.mxu0 %v1113
    %1815 = vmatpush1.bf16.msra.mxu0 %v1112
    %1816 = vmatprep.subr.bf16.mxu0 %v1129
    %1817 = vmatpush1.bf16.msra.mxu0 %v1128
    %1818 = vmatprep.subr.bf16.mxu0 %v1145
    %1819 = vmatpush1.bf16.msra.mxu0 %v1144
    %1820 = vmatprep.subr.bf16.mxu0 %v1161
    %1821 = vmatpush1.bf16.msra.mxu0 %v1160
    %1822 = vmatprep.subr.bf16.mxu0 %v1177
    %1823 = vmatpush1.bf16.msra.mxu0 %v1176
    %1824 = vmatprep.subr.bf16.mxu0 %v1193
    %1825 = vmatpush1.bf16.msra.mxu0 %v1192
    %1826 = vmatprep.subr.bf16.mxu0 %v1209
    %1827 = vmatpush1.bf16.msra.mxu0 %v1208
    %1828 = vmatprep.subr.bf16.mxu0 %v1225
    %1829 = vmatpush1.bf16.msra.mxu0 %v1224
    %1830 = vmatprep.subr.bf16.mxu0 %v1241
    %1831 = vmatpush1.bf16.msra.mxu0 %v1240
    %1832 = vmatprep.subr.bf16.mxu0 %v1257
    %1833 = vmatpush1.bf16.msra.mxu0 %v1256
    %1834 = vmatprep.subr.bf16.mxu0 %v1273
    %1835 = vmatpush1.bf16.msra.mxu0 %v1272
    %1836 = vmatprep.subr.bf16.mxu0 %v1289
    %1837 = vmatpush1.bf16.msra.mxu0 %v1288
    %1838 = vmatprep.subr.bf16.mxu0 %v1305
    %1839 = vmatpush1.bf16.msra.mxu0 %v1304
    %1840 = vmatprep.subr.bf16.mxu0 %v1321
    %1841 = vmatpush1.bf16.msra.mxu0 %v1320
    %1842 = vmatprep.subr.bf16.mxu0 %v1337
    %1843 = vmatpush1.bf16.msra.mxu0 %v1336
    %1844 = vmatprep.mubr.bf16.mxu0 %v313
    %1845 = vmatmul.mubr.bf16.gmra.mrb[0].mxu0 %v312
    %v1846 = vpop.f32.mrb[0].mxu0
    %v1847 = vadd.f32 0.0, %v1846
    %v1848 = vpop.f32.mrb[0].mxu0
    %v1849 = vadd.f32 0.0, %v1848
    %v1850 = vpop.f32.mrb[0].mxu0
    %v1851 = vadd.f32 0.0, %v1850
    %v1852 = vpop.f32.mrb[0].mxu0
    %v1853 = vadd.f32 0.0, %v1852
    %1854 = vmatprep.mubr.bf16.mxu0 %v315
    %1855 = vmatmul.mubr.bf16.gmra.mrb[0].mxu0 %v314
    %v1856 = vpop.f32.mrb[0].mxu0
    %v1857 = vadd.f32 0.0, %v1856
    %v1858 = vpop.f32.mrb[0].mxu0
    %v1859 = vadd.f32 0.0, %v1858
    %v1860 = vpop.f32.mrb[0].mxu0
    %v1861 = vadd.f32 0.0, %v1860
    %v1862 = vpop.f32.mrb[0].mxu0
    %v1863 = vadd.f32 0.0, %v1862
    %1864 = vdwg.mxu0
    %1865 = vmatprep.subr.bf16.mxu0 %v1099
    %1866 = vmatpush1.bf16.msra.mxu0 %v1098
    %1867 = vmatprep.subr.bf16.mxu0 %v1115
    %1868 = vmatpush1.bf16.msra.mxu0 %v1114
    %1869 = vmatprep.subr.bf16.mxu0 %v1131
    %1870 = vmatpush1.bf16.msra.mxu0 %v1130
    %1871 = vmatprep.subr.bf16.mxu0 %v1147
    %1872 = vmatpush1.bf16.msra.mxu0 %v1146
    %1873 = vmatprep.subr.bf16.mxu0 %v1163
    %1874 = vmatpush1.bf16.msra.mxu0 %v1162
    %1875 = vmatprep.subr.bf16.mxu0 %v1179
    %1876 = vmatpush1.bf16.msra.mxu0 %v1178
    %1877 = vmatprep.subr.bf16.mxu0 %v1195
    %1878 = vmatpush1.bf16.msra.mxu0 %v1194
    %1879 = vmatprep.subr.bf16.mxu0 %v1211
    %1880 = vmatpush1.bf16.msra.mxu0 %v1210
    %1881 = vmatprep.subr.bf16.mxu0 %v1227
    %1882 = vmatpush1.bf16.msra.mxu0 %v1226
    %1883 = vmatprep.subr.bf16.mxu0 %v1243
    %1884 = vmatpush1.bf16.msra.mxu0 %v1242
    %1885 = vmatprep.subr.bf16.mxu0 %v1259
    %1886 = vmatpush1.bf16.msra.mxu0 %v1258
    %1887 = vmatprep.subr.bf16.mxu0 %v1275
    %1888 = vmatpush1.bf16.msra.mxu0 %v1274
    %1889 = vmatprep.subr.bf16.mxu0 %v1291
    %1890 = vmatpush1.bf16.msra.mxu0 %v1290
    %1891 = vmatprep.subr.bf16.mxu0 %v1307
    %1892 = vmatpush1.bf16.msra.mxu0 %v1306
    %1893 = vmatprep.subr.bf16.mxu0 %v1323
    %1894 = vmatpush1.bf16.msra.mxu0 %v1322
    %1895 = vmatprep.subr.bf16.mxu0 %v1339
    %1896 = vmatpush1.bf16.msra.mxu0 %v1338
    %1897 = vmatprep.mubr.bf16.mxu0 %v313
    %1898 = vmatmul.mubr.bf16.gmra.mrb[0].mxu0 %v312
    %v1899 = vpop.f32.mrb[0].mxu0
    %v1900 = vadd.f32 0.0, %v1899
    %v1901 = vpop.f32.mrb[0].mxu0
    %v1902 = vadd.f32 0.0, %v1901
    %v1903 = vpop.f32.mrb[0].mxu0
    %v1904 = vadd.f32 0.0, %v1903
    %v1905 = vpop.f32.mrb[0].mxu0
    %v1906 = vadd.f32 0.0, %v1905
    %1907 = vmatprep.mubr.bf16.mxu0 %v315
    %1908 = vmatmul.mubr.bf16.gmra.mrb[0].mxu0 %v314
    %v1909 = vpop.f32.mrb[0].mxu0
    %v1910 = vadd.f32 0.0, %v1909
    %v1911 = vpop.f32.mrb[0].mxu0
    %v1912 = vadd.f32 0.0, %v1911
    %v1913 = vpop.f32.mrb[0].mxu0
    %v1914 = vadd.f32 0.0, %v1913
    %v1915 = vpop.f32.mrb[0].mxu0
    %v1916 = vadd.f32 0.0, %v1915
    %1917 = vdwg.mxu0
    %1918 = vmatprep.subr.bf16.mxu0 %v1101
    %1919 = vmatpush1.bf16.msra.mxu0 %v1100
    %1920 = vmatprep.subr.bf16.mxu0 %v1117
    %1921 = vmatpush1.bf16.msra.mxu0 %v1116
    %1922 = vmatprep.subr.bf16.mxu0 %v1133
    %1923 = vmatpush1.bf16.msra.mxu0 %v1132
    %1924 = vmatprep.subr.bf16.mxu0 %v1149
    %1925 = vmatpush1.bf16.msra.mxu0 %v1148
    %1926 = vmatprep.subr.bf16.mxu0 %v1165
    %1927 = vmatpush1.bf16.msra.mxu0 %v1164
    %1928 = vmatprep.subr.bf16.mxu0 %v1181
    %1929 = vmatpush1.bf16.msra.mxu0 %v1180
    %1930 = vmatprep.subr.bf16.mxu0 %v1197
    %1931 = vmatpush1.bf16.msra.mxu0 %v1196
    %1932 = vmatprep.subr.bf16.mxu0 %v1213
    %1933 = vmatpush1.bf16.msra.mxu0 %v1212
    %1934 = vmatprep.subr.bf16.mxu0 %v1229
    %1935 = vmatpush1.bf16.msra.mxu0 %v1228
    %1936 = vmatprep.subr.bf16.mxu0 %v1245
    %1937 = vmatpush1.bf16.msra.mxu0 %v1244
    %1938 = vmatprep.subr.bf16.mxu0 %v1261
    %1939 = vmatpush1.bf16.msra.mxu0 %v1260
    %1940 = vmatprep.subr.bf16.mxu0 %v1277
    %1941 = vmatpush1.bf16.msra.mxu0 %v1276
    %1942 = vmatprep.subr.bf16.mxu0 %v1293
    %1943 = vmatpush1.bf16.msra.mxu0 %v1292
    %1944 = vmatprep.subr.bf16.mxu0 %v1309
    %1945 = vmatpush1.bf16.msra.mxu0 %v1308
    %1946 = vmatprep.subr.bf16.mxu0 %v1325
    %1947 = vmatpush1.bf16.msra.mxu0 %v1324
    %1948 = vmatprep.subr.bf16.mxu0 %v1341
    %1949 = vmatpush1.bf16.msra.mxu0 %v1340
    %1950 = vmatprep.mubr.bf16.mxu0 %v313
    %1951 = vmatmul.mubr.bf16.gmra.mrb[0].mxu0 %v312
    %v1952 = vpop.f32.mrb[0].mxu0
    %v1953 = vadd.f32 0.0, %v1952
    %v1954 = vpop.f32.mrb[0].mxu0
    %v1955 = vadd.f32 0.0, %v1954
    %v1956 = vpop.f32.mrb[0].mxu0
    %v1957 = vadd.f32 0.0, %v1956
    %v1958 = vpop.f32.mrb[0].mxu0
    %v1959 = vadd.f32 0.0, %v1958
    %1960 = vmatprep.mubr.bf16.mxu0 %v315
    %1961 = vmatmul.mubr.bf16.gmra.mrb[0].mxu0 %v314
    %v1962 = vpop.f32.mrb[0].mxu0
    %v1963 = vadd.f32 0.0, %v1962
    %v1964 = vpop.f32.mrb[0].mxu0
    %v1965 = vadd.f32 0.0, %v1964
    %v1966 = vpop.f32.mrb[0].mxu0
    %v1967 = vadd.f32 0.0, %v1966
    %v1968 = vpop.f32.mrb[0].mxu0
    %v1969 = vadd.f32 0.0, %v1968
    %1970 = vdwg.mxu0
    %1971 = vmatprep.subr.bf16.mxu0 %v1103
    %1972 = vmatpush1.bf16.msra.mxu0 %v1102
    %1973 = vmatprep.subr.bf16.mxu0 %v1119
    %1974 = vmatpush1.bf16.msra.mxu0 %v1118
    %1975 = vmatprep.subr.bf16.mxu0 %v1135
    %1976 = vmatpush1.bf16.msra.mxu0 %v1134
    %1977 = vmatprep.subr.bf16.mxu0 %v1151
    %1978 = vmatpush1.bf16.msra.mxu0 %v1150
    %1979 = vmatprep.subr.bf16.mxu0 %v1167
    %1980 = vmatpush1.bf16.msra.mxu0 %v1166
    %1981 = vmatprep.subr.bf16.mxu0 %v1183
    %1982 = vmatpush1.bf16.msra.mxu0 %v1182
    %1983 = vmatprep.subr.bf16.mxu0 %v1199
    %1984 = vmatpush1.bf16.msra.mxu0 %v1198
    %1985 = vmatprep.subr.bf16.mxu0 %v1215
    %1986 = vmatpush1.bf16.msra.mxu0 %v1214
    %1987 = vmatprep.subr.bf16.mxu0 %v1231
    %1988 = vmatpush1.bf16.msra.mxu0 %v1230
    %1989 = vmatprep.subr.bf16.mxu0 %v1247
    %1990 = vmatpush1.bf16.msra.mxu0 %v1246
    %1991 = vmatprep.subr.bf16.mxu0 %v1263
    %1992 = vmatpush1.bf16.msra.mxu0 %v1262
    %1993 = vmatprep.subr.bf16.mxu0 %v1279
    %1994 = vmatpush1.bf16.msra.mxu0 %v1278
    %1995 = vmatprep.subr.bf16.mxu0 %v1295
    %1996 = vmatpush1.bf16.msra.mxu0 %v1294
    %1997 = vmatprep.subr.bf16.mxu0 %v1311
    %1998 = vmatpush1.bf16.msra.mxu0 %v1310
    %1999 = vmatprep.subr.bf16.mxu0 %v1327
    %2000 = vmatpush1.bf16.msra.mxu0 %v1326
    %2001 = vmatprep.subr.bf16.mxu0 %v1343
    %2002 = vmatpush1.bf16.msra.mxu0 %v1342
    %2003 = vmatprep.mubr.bf16.mxu0 %v313
    %2004 = vmatmul.mubr.bf16.gmra.mrb[0].mxu0 %v312
    %v2005 = vpop.f32.mrb[0].mxu0
    %v2006 = vadd.f32 0.0, %v2005
    %v2007 = vpop.f32.mrb[0].mxu0
    %v2008 = vadd.f32 0.0, %v2007
    %v2009 = vpop.f32.mrb[0].mxu0
    %v2010 = vadd.f32 0.0, %v2009
    %v2011 = vpop.f32.mrb[0].mxu0
    %v2012 = vadd.f32 0.0, %v2011
    %2013 = vmatprep.mubr.bf16.mxu0 %v315
    %2014 = vmatmul.mubr.bf16.gmra.mrb[0].mxu0 %v314
    %v2015 = vpop.f32.mrb[0].mxu0
    %v2016 = vadd.f32 0.0, %v2015
    %v2017 = vpop.f32.mrb[0].mxu0
    %v2018 = vadd.f32 0.0, %v2017
    %v2019 = vpop.f32.mrb[0].mxu0
    %v2020 = vadd.f32 0.0, %v2019
    %v2021 = vpop.f32.mrb[0].mxu0
    %v2022 = vadd.f32 0.0, %v2021
    %2023 = vdwg.mxu0
    %vm2024 = vcmp.ge.f32.partialorder %v1635, 0.0
    %vm2025 = vcmp.ge.f32.partialorder %v1637, 0.0
    %vm2026 = vcmp.ge.f32.partialorder %v1688, 0.0
    %vm2027 = vcmp.ge.f32.partialorder %v1690, 0.0
    %vm2028 = vcmp.ge.f32.partialorder %v1741, 0.0
    %vm2029 = vcmp.ge.f32.partialorder %v1743, 0.0
    %vm2030 = vcmp.ge.f32.partialorder %v1794, 0.0
    %vm2031 = vcmp.ge.f32.partialorder %v1796, 0.0
    %vm2032 = vcmp.ge.f32.partialorder %v1847, 0.0
    %vm2033 = vcmp.ge.f32.partialorder %v1849, 0.0
    %vm2034 = vcmp.ge.f32.partialorder %v1900, 0.0
    %vm2035 = vcmp.ge.f32.partialorder %v1902, 0.0
    %vm2036 = vcmp.ge.f32.partialorder %v1953, 0.0
    %vm2037 = vcmp.ge.f32.partialorder %v1955, 0.0
    %vm2038 = vcmp.ge.f32.partialorder %v2006, 0.0
    %vm2039 = vcmp.ge.f32.partialorder %v2008, 0.0
    %vm2040 = vcmp.ge.f32.partialorder %v1639, 0.0
    %vm2041 = vcmp.ge.f32.partialorder %v1641, 0.0
    %vm2042 = vcmp.ge.f32.partialorder %v1692, 0.0
    %vm2043 = vcmp.ge.f32.partialorder %v1694, 0.0
    %vm2044 = vcmp.ge.f32.partialorder %v1745, 0.0
    %vm2045 = vcmp.ge.f32.partialorder %v1747, 0.0
    %vm2046 = vcmp.ge.f32.partialorder %v1798, 0.0
    %vm2047 = vcmp.ge.f32.partialorder %v1800, 0.0
    %vm2048 = vcmp.ge.f32.partialorder %v1851, 0.0
    %vm2049 = vcmp.ge.f32.partialorder %v1853, 0.0
    %vm2050 = vcmp.ge.f32.partialorder %v1904, 0.0
    %vm2051 = vcmp.ge.f32.partialorder %v1906, 0.0
    %vm2052 = vcmp.ge.f32.partialorder %v1957, 0.0
    %vm2053 = vcmp.ge.f32.partialorder %v1959, 0.0
    %vm2054 = vcmp.ge.f32.partialorder %v2010, 0.0
    %vm2055 = vcmp.ge.f32.partialorder %v2012, 0.0
    %vm2056 = vcmp.ge.f32.partialorder %v1645, 0.0
    %vm2057 = vcmp.ge.f32.partialorder %v1647, 0.0
    %vm2058 = vcmp.ge.f32.partialorder %v1698, 0.0
    %vm2059 = vcmp.ge.f32.partialorder %v1700, 0.0
    %vm2060 = vcmp.ge.f32.partialorder %v1751, 0.0
    %vm2061 = vcmp.ge.f32.partialorder %v1753, 0.0
    %vm2062 = vcmp.ge.f32.partialorder %v1804, 0.0
    %vm2063 = vcmp.ge.f32.partialorder %v1806, 0.0
    %vm2064 = vcmp.ge.f32.partialorder %v1857, 0.0
    %vm2065 = vcmp.ge.f32.partialorder %v1859, 0.0
    %vm2066 = vcmp.ge.f32.partialorder %v1910, 0.0
    %vm2067 = vcmp.ge.f32.partialorder %v1912, 0.0
    %vm2068 = vcmp.ge.f32.partialorder %v1963, 0.0
    %vm2069 = vcmp.ge.f32.partialorder %v1965, 0.0
    %vm2070 = vcmp.ge.f32.partialorder %v2016, 0.0
    %vm2071 = vcmp.ge.f32.partialorder %v2018, 0.0
    %vm2072 = vcmp.ge.f32.partialorder %v1649, 0.0
    %vm2073 = vcmp.ge.f32.partialorder %v1651, 0.0
    %vm2074 = vcmp.ge.f32.partialorder %v1702, 0.0
    %vm2075 = vcmp.ge.f32.partialorder %v1704, 0.0
    %vm2076 = vcmp.ge.f32.partialorder %v1755, 0.0
    %vm2077 = vcmp.ge.f32.partialorder %v1757, 0.0
    %vm2078 = vcmp.ge.f32.partialorder %v1808, 0.0
    %vm2079 = vcmp.ge.f32.partialorder %v1810, 0.0
    %vm2080 = vcmp.ge.f32.partialorder %v1861, 0.0
    %vm2081 = vcmp.ge.f32.partialorder %v1863, 0.0
    %vm2082 = vcmp.ge.f32.partialorder %v1914, 0.0
    %vm2083 = vcmp.ge.f32.partialorder %v1916, 0.0
    %vm2084 = vcmp.ge.f32.partialorder %v1967, 0.0
    %vm2085 = vcmp.ge.f32.partialorder %v1969, 0.0
    %vm2086 = vcmp.ge.f32.partialorder %v2020, 0.0
    %vm2087 = vcmp.ge.f32.partialorder %v2022, 0.0
    %v2088 = vmul.f32 %v1635, 0.2
    %v2089 = vmul.f32 %v1637, 0.2
    %v2090 = vmul.f32 %v1688, 0.2
    %v2091 = vmul.f32 %v1690, 0.2
    %v2092 = vmul.f32 %v1741, 0.2
    %v2093 = vmul.f32 %v1743, 0.2
    %v2094 = vmul.f32 %v1794, 0.2
    %v2095 = vmul.f32 %v1796, 0.2
    %v2096 = vmul.f32 %v1847, 0.2
    %v2097 = vmul.f32 %v1849, 0.2
    %v2098 = vmul.f32 %v1900, 0.2
    %v2099 = vmul.f32 %v1902, 0.2
    %v2100 = vmul.f32 %v1953, 0.2
    %v2101 = vmul.f32 %v1955, 0.2
    %v2102 = vmul.f32 %v2006, 0.2
    %v2103 = vmul.f32 %v2008, 0.2
    %v2104 = vmul.f32 %v1639, 0.2
    %v2105 = vmul.f32 %v1641, 0.2
    %v2106 = vmul.f32 %v1692, 0.2
    %v2107 = vmul.f32 %v1694, 0.2
    %v2108 = vmul.f32 %v1745, 0.2
    %v2109 = vmul.f32 %v1747, 0.2
    %v2110 = vmul.f32 %v1798, 0.2
    %v2111 = vmul.f32 %v1800, 0.2
    %v2112 = vmul.f32 %v1851, 0.2
    %v2113 = vmul.f32 %v1853, 0.2
    %v2114 = vmul.f32 %v1904, 0.2
    %v2115 = vmul.f32 %v1906, 0.2
    %v2116 = vmul.f32 %v1957, 0.2
    %v2117 = vmul.f32 %v1959, 0.2
    %v2118 = vmul.f32 %v2010, 0.2
    %v2119 = vmul.f32 %v2012, 0.2
    %v2120 = vmul.f32 %v1645, 0.2
    %v2121 = vmul.f32 %v1647, 0.2
    %v2122 = vmul.f32 %v1698, 0.2
    %v2123 = vmul.f32 %v1700, 0.2
    %v2124 = vmul.f32 %v1751, 0.2
    %v2125 = vmul.f32 %v1753, 0.2
    %v2126 = vmul.f32 %v1804, 0.2
    %v2127 = vmul.f32 %v1806, 0.2
    %v2128 = vmul.f32 %v1857, 0.2
    %v2129 = vmul.f32 %v1859, 0.2
    %v2130 = vmul.f32 %v1910, 0.2
    %v2131 = vmul.f32 %v1912, 0.2
    %v2132 = vmul.f32 %v1963, 0.2
    %v2133 = vmul.f32 %v1965, 0.2
    %v2134 = vmul.f32 %v2016, 0.2
    %v2135 = vmul.f32 %v2018, 0.2
    %v2136 = vmul.f32 %v1649, 0.2
    %v2137 = vmul.f32 %v1651, 0.2
    %v2138 = vmul.f32 %v1702, 0.2
    %v2139 = vmul.f32 %v1704, 0.2
    %v2140 = vmul.f32 %v1755, 0.2
    %v2141 = vmul.f32 %v1757, 0.2
    %v2142 = vmul.f32 %v1808, 0.2
    %v2143 = vmul.f32 %v1810, 0.2
    %v2144 = vmul.f32 %v1861, 0.2
    %v2145 = vmul.f32 %v1863, 0.2
    %v2146 = vmul.f32 %v1914, 0.2
    %v2147 = vmul.f32 %v1916, 0.2
    %v2148 = vmul.f32 %v1967, 0.2
    %v2149 = vmul.f32 %v1969, 0.2
    %v2150 = vmul.f32 %v2020, 0.2
    %v2151 = vmul.f32 %v2022, 0.2
    %v2152 = vsel %vm2024, %v1635, %v2088
    %v2153 = vsel %vm2025, %v1637, %v2089
    %v2154 = vsel %vm2026, %v1688, %v2090
    %v2155 = vsel %vm2027, %v1690, %v2091
    %v2156 = vsel %vm2028, %v1741, %v2092
    %v2157 = vsel %vm2029, %v1743, %v2093
    %v2158 = vsel %vm2030, %v1794, %v2094
    %v2159 = vsel %vm2031, %v1796, %v2095
    %v2160 = vsel %vm2032, %v1847, %v2096
    %v2161 = vsel %vm2033, %v1849, %v2097
    %v2162 = vsel %vm2034, %v1900, %v2098
    %v2163 = vsel %vm2035, %v1902, %v2099
    %v2164 = vsel %vm2036, %v1953, %v2100
    %v2165 = vsel %vm2037, %v1955, %v2101
    %v2166 = vsel %vm2038, %v2006, %v2102
    %v2167 = vsel %vm2039, %v2008, %v2103
    %v2168 = vsel %vm2040, %v1639, %v2104
    %v2169 = vsel %vm2041, %v1641, %v2105
    %v2170 = vsel %vm2042, %v1692, %v2106
    %v2171 = vsel %vm2043, %v1694, %v2107
    %v2172 = vsel %vm2044, %v1745, %v2108
    %v2173 = vsel %vm2045, %v1747, %v2109
    %v2174 = vsel %vm2046, %v1798, %v2110
    %v2175 = vsel %vm2047, %v1800, %v2111
    %v2176 = vsel %vm2048, %v1851, %v2112
    %v2177 = vsel %vm2049, %v1853, %v2113
    %v2178 = vsel %vm2050, %v1904, %v2114
    %v2179 = vsel %vm2051, %v1906, %v2115
    %v2180 = vsel %vm2052, %v1957, %v2116
    %v2181 = vsel %vm2053, %v1959, %v2117
    %v2182 = vsel %vm2054, %v2010, %v2118
    %v2183 = vsel %vm2055, %v2012, %v2119
    %v2184 = vsel %vm2056, %v1645, %v2120
    %v2185 = vsel %vm2057, %v1647, %v2121
    %v2186 = vsel %vm2058, %v1698, %v2122
    %v2187 = vsel %vm2059, %v1700, %v2123
    %v2188 = vsel %vm2060, %v1751, %v2124
    %v2189 = vsel %vm2061, %v1753, %v2125
    %v2190 = vsel %vm2062, %v1804, %v2126
    %v2191 = vsel %vm2063, %v1806, %v2127
    %v2192 = vsel %vm2064, %v1857, %v2128
    %v2193 = vsel %vm2065, %v1859, %v2129
    %v2194 = vsel %vm2066, %v1910, %v2130
    %v2195 = vsel %vm2067, %v1912, %v2131
    %v2196 = vsel %vm2068, %v1963, %v2132
    %v2197 = vsel %vm2069, %v1965, %v2133
    %v2198 = vsel %vm2070, %v2016, %v2134
    %v2199 = vsel %vm2071, %v2018, %v2135
    %v2200 = vsel %vm2072, %v1649, %v2136
    %v2201 = vsel %vm2073, %v1651, %v2137
    %v2202 = vsel %vm2074, %v1702, %v2138
    %v2203 = vsel %vm2075, %v1704, %v2139
    %v2204 = vsel %vm2076, %v1755, %v2140
    %v2205 = vsel %vm2077, %v1757, %v2141
    %v2206 = vsel %vm2078, %v1808, %v2142
    %v2207 = vsel %vm2079, %v1810, %v2143
    %v2208 = vsel %vm2080, %v1861, %v2144
    %v2209 = vsel %vm2081, %v1863, %v2145
    %v2210 = vsel %vm2082, %v1914, %v2146
    %v2211 = vsel %vm2083, %v1916, %v2147
    %v2212 = vsel %vm2084, %v1967, %v2148
    %v2213 = vsel %vm2085, %v1969, %v2149
    %v2214 = vsel %vm2086, %v2020, %v2150
    %v2215 = vsel %vm2087, %v2022, %v2151
    %v2216 = vpack.c.bf16 %v2168, %v2152
    %v2217 = vpack.c.bf16 %v2169, %v2153
    %v2218 = vpack.c.bf16 %v2170, %v2154
    %v2219 = vpack.c.bf16 %v2171, %v2155
    %v2220 = vpack.c.bf16 %v2172, %v2156
    %v2221 = vpack.c.bf16 %v2173, %v2157
    %v2222 = vpack.c.bf16 %v2174, %v2158
    %v2223 = vpack.c.bf16 %v2175, %v2159
    %v2224 = vpack.c.bf16 %v2176, %v2160
    %v2225 = vpack.c.bf16 %v2177, %v2161
    %v2226 = vpack.c.bf16 %v2178, %v2162
    %v2227 = vpack.c.bf16 %v2179, %v2163
    %v2228 = vpack.c.bf16 %v2180, %v2164
    %v2229 = vpack.c.bf16 %v2181, %v2165
    %v2230 = vpack.c.bf16 %v2182, %v2166
    %v2231 = vpack.c.bf16 %v2183, %v2167
    %v2232 = vpack.c.bf16 %v2200, %v2184
    %v2233 = vpack.c.bf16 %v2201, %v2185
    %v2234 = vpack.c.bf16 %v2202, %v2186
    %v2235 = vpack.c.bf16 %v2203, %v2187
    %v2236 = vpack.c.bf16 %v2204, %v2188
    %v2237 = vpack.c.bf16 %v2205, %v2189
    %v2238 = vpack.c.bf16 %v2206, %v2190
    %v2239 = vpack.c.bf16 %v2207, %v2191
    %v2240 = vpack.c.bf16 %v2208, %v2192
    %v2241 = vpack.c.bf16 %v2209, %v2193
    %v2242 = vpack.c.bf16 %v2210, %v2194
    %v2243 = vpack.c.bf16 %v2211, %v2195
    %v2244 = vpack.c.bf16 %v2212, %v2196
    %v2245 = vpack.c.bf16 %v2213, %v2197
    %v2246 = vpack.c.bf16 %v2214, %v2198
    %v2247 = vpack.c.bf16 %v2215, %v2199
    %v2280 = vunpack.c.l.b16 %v2216
    %v2281 = vunpack.c.l.b16 %v2217
    %v2282 = vunpack.c.l.b16 %v2218
    %v2283 = vunpack.c.l.b16 %v2219
    %v2284 = vunpack.c.l.b16 %v2220
    %v2285 = vunpack.c.l.b16 %v2221
    %v2286 = vunpack.c.l.b16 %v2222
    %v2287 = vunpack.c.l.b16 %v2223
    %v2288 = vunpack.c.l.b16 %v2224
    %v2289 = vunpack.c.l.b16 %v2225
    %v2290 = vunpack.c.l.b16 %v2226
    %v2291 = vunpack.c.l.b16 %v2227
    %v2292 = vunpack.c.l.b16 %v2228
    %v2293 = vunpack.c.l.b16 %v2229
    %v2294 = vunpack.c.l.b16 %v2230
    %v2295 = vunpack.c.l.b16 %v2231
    %v2296 = vunpack.c.h.b16 %v2216
    %v2297 = vunpack.c.h.b16 %v2217
    %v2298 = vunpack.c.h.b16 %v2218
    %v2299 = vunpack.c.h.b16 %v2219
    %v2300 = vunpack.c.h.b16 %v2220
    %v2301 = vunpack.c.h.b16 %v2221
    %v2302 = vunpack.c.h.b16 %v2222
    %v2303 = vunpack.c.h.b16 %v2223
    %v2304 = vunpack.c.h.b16 %v2224
    %v2305 = vunpack.c.h.b16 %v2225
    %v2306 = vunpack.c.h.b16 %v2226
    %v2307 = vunpack.c.h.b16 %v2227
    %v2308 = vunpack.c.h.b16 %v2228
    %v2309 = vunpack.c.h.b16 %v2229
    %v2310 = vunpack.c.h.b16 %v2230
    %v2311 = vunpack.c.h.b16 %v2231
    %v2312 = vunpack.c.l.b16 %v2232
    %v2313 = vunpack.c.l.b16 %v2233
    %v2314 = vunpack.c.l.b16 %v2234
    %v2315 = vunpack.c.l.b16 %v2235
    %v2316 = vunpack.c.l.b16 %v2236
    %v2317 = vunpack.c.l.b16 %v2237
    %v2318 = vunpack.c.l.b16 %v2238
    %v2319 = vunpack.c.l.b16 %v2239
    %v2320 = vunpack.c.l.b16 %v2240
    %v2321 = vunpack.c.l.b16 %v2241
    %v2322 = vunpack.c.l.b16 %v2242
    %v2323 = vunpack.c.l.b16 %v2243
    %v2324 = vunpack.c.l.b16 %v2244
    %v2325 = vunpack.c.l.b16 %v2245
    %v2326 = vunpack.c.l.b16 %v2246
    %v2327 = vunpack.c.l.b16 %v2247
    %v2328 = vunpack.c.h.b16 %v2232
    %v2329 = vunpack.c.h.b16 %v2233
    %v2330 = vunpack.c.h.b16 %v2234
    %v2331 = vunpack.c.h.b16 %v2235
    %v2332 = vunpack.c.h.b16 %v2236
    %v2333 = vunpack.c.h.b16 %v2237
    %v2334 = vunpack.c.h.b16 %v2238
    %v2335 = vunpack.c.h.b16 %v2239
    %v2336 = vunpack.c.h.b16 %v2240
    %v2337 = vunpack.c.h.b16 %v2241
    %v2338 = vunpack.c.h.b16 %v2242
    %v2339 = vunpack.c.h.b16 %v2243
    %v2340 = vunpack.c.h.b16 %v2244
    %v2341 = vunpack.c.h.b16 %v2245
    %v2342 = vunpack.c.h.b16 %v2246
    %v2343 = vunpack.c.h.b16 %v2247
    %v2344 = vpack.c.b16 %v2281, %v2280
    %v2345 = vpack.c.b16 %v2283, %v2282
    %v2346 = vpack.c.b16 %v2285, %v2284
    %v2347 = vpack.c.b16 %v2287, %v2286
    %v2348 = vpack.c.b16 %v2289, %v2288
    %v2349 = vpack.c.b16 %v2291, %v2290
    %v2350 = vpack.c.b16 %v2293, %v2292
    %v2351 = vpack.c.b16 %v2295, %v2294
    %v2352 = vpack.c.b16 %v2297, %v2296
    %v2353 = vpack.c.b16 %v2299, %v2298
    %v2354 = vpack.c.b16 %v2301, %v2300
    %v2355 = vpack.c.b16 %v2303, %v2302
    %v2356 = vpack.c.b16 %v2305, %v2304
    %v2357 = vpack.c.b16 %v2307, %v2306
    %v2358 = vpack.c.b16 %v2309, %v2308
    %v2359 = vpack.c.b16 %v2311, %v2310
    %v2360 = vpack.c.b16 %v2313, %v2312
    %v2361 = vpack.c.b16 %v2315, %v2314
    %v2362 = vpack.c.b16 %v2317, %v2316
    %v2363 = vpack.c.b16 %v2319, %v2318
    %v2364 = vpack.c.b16 %v2321, %v2320
    %v2365 = vpack.c.b16 %v2323, %v2322
    %v2366 = vpack.c.b16 %v2325, %v2324
    %v2367 = vpack.c.b16 %v2327, %v2326
    %v2368 = vpack.c.b16 %v2329, %v2328
    %v2369 = vpack.c.b16 %v2331, %v2330
    %v2370 = vpack.c.b16 %v2333, %v2332
    %v2371 = vpack.c.b16 %v2335, %v2334
    %v2372 = vpack.c.b16 %v2337, %v2336
    %v2373 = vpack.c.b16 %v2339, %v2338
    %v2374 = vpack.c.b16 %v2341, %v2340
    %v2375 = vpack.c.b16 %v2343, %v2342
    %2408 = vst [vmem:[#allocation7] sm:$0xff] %v2344
    %2409 = vst [vmem:[#allocation7 + $0x8] sm:$0xff] %v2345
    %2410 = vst [vmem:[#allocation7 + $0x10] sm:$0xff] %v2346
    %2411 = vst [vmem:[#allocation7 + $0x18] sm:$0xff] %v2347
    %2412 = vst [vmem:[#allocation7 + $0x20] sm:$0xff] %v2348
    %2413 = vst [vmem:[#allocation7 + $0x28] sm:$0xff] %v2349
    %2414 = vst [vmem:[#allocation7 + $0x30] sm:$0xff] %v2350
    %2415 = vst [vmem:[#allocation7 + $0x38] sm:$0xff] %v2351
    %2416 = vst [vmem:[#allocation7 + $0x40] sm:$0xff] %v2352
    %2417 = vst [vmem:[#allocation7 + $0x48] sm:$0xff] %v2353
    %2418 = vst [vmem:[#allocation7 + $0x50] sm:$0xff] %v2354
    %2419 = vst [vmem:[#allocation7 + $0x58] sm:$0xff] %v2355
    %2420 = vst [vmem:[#allocation7 + $0x60] sm:$0xff] %v2356
    %2421 = vst [vmem:[#allocation7 + $0x68] sm:$0xff] %v2357
    %2422 = vst [vmem:[#allocation7 + $0x70] sm:$0xff] %v2358
    %2423 = vst [vmem:[#allocation7 + $0x78] sm:$0xff] %v2359
    %2424 = vst [vmem:[#allocation7 + $0x80] sm:$0xff] %v2360
    %2425 = vst [vmem:[#allocation7 + $0x88] sm:$0xff] %v2361
    %2426 = vst [vmem:[#allocation7 + $0x90] sm:$0xff] %v2362
    %2427 = vst [vmem:[#allocation7 + $0x98] sm:$0xff] %v2363
    %2428 = vst [vmem:[#allocation7 + $0xa0] sm:$0xff] %v2364
    %2429 = vst [vmem:[#allocation7 + $0xa8] sm:$0xff] %v2365
    %2430 = vst [vmem:[#allocation7 + $0xb0] sm:$0xff] %v2366
    %2431 = vst [vmem:[#allocation7 + $0xb8] sm:$0xff] %v2367
    %2432 = vst [vmem:[#allocation7 + $0xc0] sm:$0xff] %v2368
    %2433 = vst [vmem:[#allocation7 + $0xc8] sm:$0xff] %v2369
    %2434 = vst [vmem:[#allocation7 + $0xd0] sm:$0xff] %v2370
    %2435 = vst [vmem:[#allocation7 + $0xd8] sm:$0xff] %v2371
    %2436 = vst [vmem:[#allocation7 + $0xe0] sm:$0xff] %v2372
    %2437 = vst [vmem:[#allocation7 + $0xe8] sm:$0xff] %v2373
    %2438 = vst [vmem:[#allocation7 + $0xf0] sm:$0xff] %v2374
    %2439 = vst [vmem:[#allocation7 + $0xf8] sm:$0xff] %v2375
    // Predicated region
    $region18: #{netD_forward.9} parent=1 // pred_check
      _
    $region19: #{netD_forward.9} parent=1 // pred_check_branch
      %2441 = sbr.rel (0) target = $region21
    $region20: #{netD_forward.9} parent=1 // pred_region
      %s2443 = ssub.s32 4096, 4096
      %2444 = vsyncadd [#allocation4], %s2443
      %s2445 = sshll.u32 [#allocation7], 4
      %s2446 = int_to_ptr.vmem [resolvable:$true] %s2445
      %2451 = dma.vmem_to_hbm [thread:$0]  %s2446, 4096, %s2, [#allocation4], 1024, 1024, 64
    $region21: #{netD_forward.9} parent=1 // pred_fallthru
      _
    // Predicated region
    $region22: #{netD_forward.9} parent=1 // pred_check
      _
    $region23: #{netD_forward.9} parent=1 // pred_check_branch
      %2453 = sbr.rel (0) target = $region25
    $region24: #{netD_forward.9} parent=1 // pred_region
      %2454 = dma.done [#allocation4], 4096
    $region25: #{netD_forward.9} parent=1 // pred_fallthru
      _
    %2455 = vsyncpa [#allocation3], 1
    %2456 = vsyncpa [#allocation6], 1
    %2457 = vsyncpa [#allocation4], 1

// kernel: netD_forward.10
$region0: #{netD_forward.10}
  #allocation0 [shape = 'u32[]', space=smem, size = 0x4, offset = 0x4, fixed_abs, tag = 'smem constant byte address 0x4 - core index']
  #allocation1 [shape = 'u32[144,128]{1,0:T(1,128)}', space=vmem, size = 0x12000, scoped, tag = 'internal scratch']
  %s0 = inlined_call_operand.hbm [shape: bf16[64,512], index: 0, kind: input, shape index: {}]
  %s1 = inlined_call_operand.hbm [shape: bf16[512,512], index: 1, kind: input, shape index: {}]
  %s2 = inlined_call_operand.hbm [shape: bf16[64,512], index: 2, kind: output, shape index: {}]
  %s3 = sld [smem:[#allocation0]]
  $region26: #{netD_forward.10} parent=0
    _
  %s5 = ssub.s32 1, %s3
  %s6 = scalar_select 0, %s5, %s3
  $region1: #{netD_forward.10} parent=0
    #allocation2 [shape = 'u8[65536]{0}', space=vmem, size = 0x10000, scoped, tag = 'input window, operand 0, single buffered']
    #allocation3 [shape = 's32[1]{0}', space=sflag, size = 0x4, scoped, tag = 'scoped memory for netD_forward.10']
    #allocation4 [shape = 's32[1]{0}', space=sflag, size = 0x4, scoped, tag = 'scoped memory for netD_forward.10']
    #allocation5 [shape = 'u8[524288]{0}', space=vmem, size = 0x80000, scoped, tag = 'input window, operand 1, single buffered']
    #allocation6 [shape = 's32[1]{0}', space=sflag, size = 0x4, scoped, tag = 'scoped memory for netD_forward.10']
    #allocation7 [shape = 'u8[65536]{0}', space=vmem, size = 0x10000, scoped, tag = 'output window, operand 0, single buffered']
    %7 = vsyncpa [#allocation3], 0
    %8 = vsyncpa [#allocation6], 0
    %9 = vsyncpa [#allocation4], 0
    // Predicated region
    $region2: #{netD_forward.10} parent=1 // pred_check
      _
    $region3: #{netD_forward.10} parent=1 // pred_check_branch
      %11 = sbr.rel (0) target = $region5
    $region4: #{netD_forward.10} parent=1 // pred_region
      %s13 = ssub.s32 2048, 2048
      %14 = vsyncadd [#allocation3], %s13
      %s15 = sshll.u32 [#allocation2], 4
      %s16 = int_to_ptr.vmem [resolvable:$true] %s15
      %21 = dma.hbm_to_vmem [thread:$0]  %s0, 2048, %s16, [#allocation3], 256, 256, 16
    $region5: #{netD_forward.10} parent=1 // pred_fallthru
      _
    // Predicated region
    $region6: #{netD_forward.10} parent=1 // pred_check
      _
    $region7: #{netD_forward.10} parent=1 // pred_check_branch
      %23 = sbr.rel (0) target = $region9
    $region8: #{netD_forward.10} parent=1 // pred_region
      %s25 = ssub.s32 16384, 16384
      %26 = vsyncadd [#allocation6], %s25
      %s27 = sshll.u32 [#allocation5], 4
      %s28 = int_to_ptr.vmem [resolvable:$true] %s27
      %33 = dma.hbm_to_vmem [thread:$0]  %s1, 16384, %s28, [#allocation6], 256, 256, 16
    $region9: #{netD_forward.10} parent=1 // pred_fallthru
      _
    // Predicated region
    $region10: #{netD_forward.10} parent=1 // pred_check
      _
    $region11: #{netD_forward.10} parent=1 // pred_check_branch
      %35 = sbr.rel (0) target = $region13
    $region12: #{netD_forward.10} parent=1 // pred_region
      %36 = dma.done [#allocation3], 2048
    $region13: #{netD_forward.10} parent=1 // pred_fallthru
      _
    // Predicated region
    $region14: #{netD_forward.10} parent=1 // pred_check
      _
    $region15: #{netD_forward.10} parent=1 // pred_check_branch
      %38 = sbr.rel (0) target = $region17
    $region16: #{netD_forward.10} parent=1 // pred_region
      %39 = dma.done [#allocation6], 16384
    $region17: #{netD_forward.10} parent=1 // pred_fallthru
      _
    %v40 = vld [vmem:[#allocation2] sm:$0xff]
    %v41 = vld [vmem:[#allocation2 + $0x8] sm:$0xff]
    %v42 = vld [vmem:[#allocation2 + $0x10] sm:$0xff]
    %v43 = vld [vmem:[#allocation2 + $0x18] sm:$0xff]
    %v44 = vld [vmem:[#allocation2 + $0x20] sm:$0xff]
    %v45 = vld [vmem:[#allocation2 + $0x28] sm:$0xff]
    %v46 = vld [vmem:[#allocation2 + $0x30] sm:$0xff]
    %v47 = vld [vmem:[#allocation2 + $0x38] sm:$0xff]
    %v48 = vld [vmem:[#allocation2 + $0x40] sm:$0xff]
    %v49 = vld [vmem:[#allocation2 + $0x48] sm:$0xff]
    %v50 = vld [vmem:[#allocation2 + $0x50] sm:$0xff]
    %v51 = vld [vmem:[#allocation2 + $0x58] sm:$0xff]
    %v52 = vld [vmem:[#allocation2 + $0x60] sm:$0xff]
    %v53 = vld [vmem:[#allocation2 + $0x68] sm:$0xff]
    %v54 = vld [vmem:[#allocation2 + $0x70] sm:$0xff]
    %v55 = vld [vmem:[#allocation2 + $0x78] sm:$0xff]
    %v56 = vld [vmem:[#allocation5] sm:$0xff]
    %v57 = vld [vmem:[#allocation5 + $0x8] sm:$0xff]
    %v58 = vld [vmem:[#allocation5 + $0x10] sm:$0xff]
    %v59 = vld [vmem:[#allocation5 + $0x18] sm:$0xff]
    %v60 = vld [vmem:[#allocation5 + $0x20] sm:$0xff]
    %v61 = vld [vmem:[#allocation5 + $0x28] sm:$0xff]
    %v62 = vld [vmem:[#allocation5 + $0x30] sm:$0xff]
    %v63 = vld [vmem:[#allocation5 + $0x38] sm:$0xff]
    %v64 = vld [vmem:[#allocation5 + $0x40] sm:$0xff]
    %v65 = vld [vmem:[#allocation5 + $0x48] sm:$0xff]
    %v66 = vld [vmem:[#allocation5 + $0x50] sm:$0xff]
    %v67 = vld [vmem:[#allocation5 + $0x58] sm:$0xff]
    %v68 = vld [vmem:[#allocation5 + $0x60] sm:$0xff]
    %v69 = vld [vmem:[#allocation5 + $0x68] sm:$0xff]
    %v70 = vld [vmem:[#allocation5 + $0x70] sm:$0xff]
    %v71 = vld [vmem:[#allocation5 + $0x78] sm:$0xff]
    %v72 = vld [vmem:[#allocation5 + $0x80] sm:$0xff]
    %v73 = vld [vmem:[#allocation5 + $0x88] sm:$0xff]
    %v74 = vld [vmem:[#allocation5 + $0x90] sm:$0xff]
    %v75 = vld [vmem:[#allocation5 + $0x98] sm:$0xff]
    %v76 = vld [vmem:[#allocation5 + $0xa0] sm:$0xff]
    %v77 = vld [vmem:[#allocation5 + $0xa8] sm:$0xff]
    %v78 = vld [vmem:[#allocation5 + $0xb0] sm:$0xff]
    %v79 = vld [vmem:[#allocation5 + $0xb8] sm:$0xff]
    %v80 = vld [vmem:[#allocation5 + $0xc0] sm:$0xff]
    %v81 = vld [vmem:[#allocation5 + $0xc8] sm:$0xff]
    %v82 = vld [vmem:[#allocation5 + $0xd0] sm:$0xff]
    %v83 = vld [vmem:[#allocation5 + $0xd8] sm:$0xff]
    %v84 = vld [vmem:[#allocation5 + $0xe0] sm:$0xff]
    %v85 = vld [vmem:[#allocation5 + $0xe8] sm:$0xff]
    %v86 = vld [vmem:[#allocation5 + $0xf0] sm:$0xff]
    %v87 = vld [vmem:[#allocation5 + $0xf8] sm:$0xff]
    %v88 = vld [vmem:[#allocation5 + $0x100] sm:$0xff]
    %v89 = vld [vmem:[#allocation5 + $0x108] sm:$0xff]
    %v90 = vld [vmem:[#allocation5 + $0x110] sm:$0xff]
    %v91 = vld [vmem:[#allocation5 + $0x118] sm:$0xff]
    %v92 = vld [vmem:[#allocation5 + $0x120] sm:$0xff]
    %v93 = vld [vmem:[#allocation5 + $0x128] sm:$0xff]
    %v94 = vld [vmem:[#allocation5 + $0x130] sm:$0xff]
    %v95 = vld [vmem:[#allocation5 + $0x138] sm:$0xff]
    %v96 = vld [vmem:[#allocation5 + $0x140] sm:$0xff]
    %v97 = vld [vmem:[#allocation5 + $0x148] sm:$0xff]
    %v98 = vld [vmem:[#allocation5 + $0x150] sm:$0xff]
    %v99 = vld [vmem:[#allocation5 + $0x158] sm:$0xff]
    %v100 = vld [vmem:[#allocation5 + $0x160] sm:$0xff]
    %v101 = vld [vmem:[#allocation5 + $0x168] sm:$0xff]
    %v102 = vld [vmem:[#allocation5 + $0x170] sm:$0xff]
    %v103 = vld [vmem:[#allocation5 + $0x178] sm:$0xff]
    %v104 = vld [vmem:[#allocation5 + $0x180] sm:$0xff]
    %v105 = vld [vmem:[#allocation5 + $0x188] sm:$0xff]
    %v106 = vld [vmem:[#allocation5 + $0x190] sm:$0xff]
    %v107 = vld [vmem:[#allocation5 + $0x198] sm:$0xff]
    %v108 = vld [vmem:[#allocation5 + $0x1a0] sm:$0xff]
    %v109 = vld [vmem:[#allocation5 + $0x1a8] sm:$0xff]
    %v110 = vld [vmem:[#allocation5 + $0x1b0] sm:$0xff]
    %v111 = vld [vmem:[#allocation5 + $0x1b8] sm:$0xff]
    %v112 = vld [vmem:[#allocation5 + $0x1c0] sm:$0xff]
    %v113 = vld [vmem:[#allocation5 + $0x1c8] sm:$0xff]
    %v114 = vld [vmem:[#allocation5 + $0x1d0] sm:$0xff]
    %v115 = vld [vmem:[#allocation5 + $0x1d8] sm:$0xff]
    %v116 = vld [vmem:[#allocation5 + $0x1e0] sm:$0xff]
    %v117 = vld [vmem:[#allocation5 + $0x1e8] sm:$0xff]
    %v118 = vld [vmem:[#allocation5 + $0x1f0] sm:$0xff]
    %v119 = vld [vmem:[#allocation5 + $0x1f8] sm:$0xff]
    %v120 = vld [vmem:[#allocation5 + $0x200] sm:$0xff]
    %v121 = vld [vmem:[#allocation5 + $0x208] sm:$0xff]
    %v122 = vld [vmem:[#allocation5 + $0x210] sm:$0xff]
    %v123 = vld [vmem:[#allocation5 + $0x218] sm:$0xff]
    %v124 = vld [vmem:[#allocation5 + $0x220] sm:$0xff]
    %v125 = vld [vmem:[#allocation5 + $0x228] sm:$0xff]
    %v126 = vld [vmem:[#allocation5 + $0x230] sm:$0xff]
    %v127 = vld [vmem:[#allocation5 + $0x238] sm:$0xff]
    %v128 = vld [vmem:[#allocation5 + $0x240] sm:$0xff]
    %v129 = vld [vmem:[#allocation5 + $0x248] sm:$0xff]
    %v130 = vld [vmem:[#allocation5 + $0x250] sm:$0xff]
    %v131 = vld [vmem:[#allocation5 + $0x258] sm:$0xff]
    %v132 = vld [vmem:[#allocation5 + $0x260] sm:$0xff]
    %v133 = vld [vmem:[#allocation5 + $0x268] sm:$0xff]
    %v134 = vld [vmem:[#allocation5 + $0x270] sm:$0xff]
    %v135 = vld [vmem:[#allocation5 + $0x278] sm:$0xff]
    %v136 = vld [vmem:[#allocation5 + $0x280] sm:$0xff]
    %v137 = vld [vmem:[#allocation5 + $0x288] sm:$0xff]
    %v138 = vld [vmem:[#allocation5 + $0x290] sm:$0xff]
    %v139 = vld [vmem:[#allocation5 + $0x298] sm:$0xff]
    %v140 = vld [vmem:[#allocation5 + $0x2a0] sm:$0xff]
    %v141 = vld [vmem:[#allocation5 + $0x2a8] sm:$0xff]
    %v142 = vld [vmem:[#allocation5 + $0x2b0] sm:$0xff]
    %v143 = vld [vmem:[#allocation5 + $0x2b8] sm:$0xff]
    %v144 = vld [vmem:[#allocation5 + $0x2c0] sm:$0xff]
    %v145 = vld [vmem:[#allocation5 + $0x2c8] sm:$0xff]
    %v146 = vld [vmem:[#allocation5 + $0x2d0] sm:$0xff]
    %v147 = vld [vmem:[#allocation5 + $0x2d8] sm:$0xff]
    %v148 = vld [vmem:[#allocation5 + $0x2e0] sm:$0xff]
    %v149 = vld [vmem:[#allocation5 + $0x2e8] sm:$0xff]
    %v150 = vld [vmem:[#allocation5 + $0x2f0] sm:$0xff]
    %v151 = vld [vmem:[#allocation5 + $0x2f8] sm:$0xff]
    %v152 = vld [vmem:[#allocation5 + $0x300] sm:$0xff]
    %v153 = vld [vmem:[#allocation5 + $0x308] sm:$0xff]
    %v154 = vld [vmem:[#allocation5 + $0x310] sm:$0xff]
    %v155 = vld [vmem:[#allocation5 + $0x318] sm:$0xff]
    %v156 = vld [vmem:[#allocation5 + $0x320] sm:$0xff]
    %v157 = vld [vmem:[#allocation5 + $0x328] sm:$0xff]
    %v158 = vld [vmem:[#allocation5 + $0x330] sm:$0xff]
    %v159 = vld [vmem:[#allocation5 + $0x338] sm:$0xff]
    %v160 = vld [vmem:[#allocation5 + $0x340] sm:$0xff]
    %v161 = vld [vmem:[#allocation5 + $0x348] sm:$0xff]
    %v162 = vld [vmem:[#allocation5 + $0x350] sm:$0xff]
    %v163 = vld [vmem:[#allocation5 + $0x358] sm:$0xff]
    %v164 = vld [vmem:[#allocation5 + $0x360] sm:$0xff]
    %v165 = vld [vmem:[#allocation5 + $0x368] sm:$0xff]
    %v166 = vld [vmem:[#allocation5 + $0x370] sm:$0xff]
    %v167 = vld [vmem:[#allocation5 + $0x378] sm:$0xff]
    %v168 = vld [vmem:[#allocation5 + $0x380] sm:$0xff]
    %v169 = vld [vmem:[#allocation5 + $0x388] sm:$0xff]
    %v170 = vld [vmem:[#allocation5 + $0x390] sm:$0xff]
    %v171 = vld [vmem:[#allocation5 + $0x398] sm:$0xff]
    %v172 = vld [vmem:[#allocation5 + $0x3a0] sm:$0xff]
    %v173 = vld [vmem:[#allocation5 + $0x3a8] sm:$0xff]
    %v174 = vld [vmem:[#allocation5 + $0x3b0] sm:$0xff]
    %v175 = vld [vmem:[#allocation5 + $0x3b8] sm:$0xff]
    %v176 = vld [vmem:[#allocation5 + $0x3c0] sm:$0xff]
    %v177 = vld [vmem:[#allocation5 + $0x3c8] sm:$0xff]
    %v178 = vld [vmem:[#allocation5 + $0x3d0] sm:$0xff]
    %v179 = vld [vmem:[#allocation5 + $0x3d8] sm:$0xff]
    %v180 = vld [vmem:[#allocation5 + $0x3e0] sm:$0xff]
    %v181 = vld [vmem:[#allocation5 + $0x3e8] sm:$0xff]
    %v182 = vld [vmem:[#allocation5 + $0x3f0] sm:$0xff]
    %v183 = vld [vmem:[#allocation5 + $0x3f8] sm:$0xff]
    %v200 = vunpack.c.l.b16 %v40
    %v201 = vunpack.c.h.b16 %v40
    %v202 = vunpack.c.l.b16 %v41
    %v203 = vunpack.c.h.b16 %v41
    %v204 = vunpack.c.l.b16 %v42
    %v205 = vunpack.c.h.b16 %v42
    %v206 = vunpack.c.l.b16 %v43
    %v207 = vunpack.c.h.b16 %v43
    %v208 = vunpack.c.l.b16 %v44
    %v209 = vunpack.c.h.b16 %v44
    %v210 = vunpack.c.l.b16 %v45
    %v211 = vunpack.c.h.b16 %v45
    %v212 = vunpack.c.l.b16 %v46
    %v213 = vunpack.c.h.b16 %v46
    %v214 = vunpack.c.l.b16 %v47
    %v215 = vunpack.c.h.b16 %v47
    %v216 = vunpack.c.l.b16 %v48
    %v217 = vunpack.c.h.b16 %v48
    %v218 = vunpack.c.l.b16 %v49
    %v219 = vunpack.c.h.b16 %v49
    %v220 = vunpack.c.l.b16 %v50
    %v221 = vunpack.c.h.b16 %v50
    %v222 = vunpack.c.l.b16 %v51
    %v223 = vunpack.c.h.b16 %v51
    %v224 = vunpack.c.l.b16 %v52
    %v225 = vunpack.c.h.b16 %v52
    %v226 = vunpack.c.l.b16 %v53
    %v227 = vunpack.c.h.b16 %v53
    %v228 = vunpack.c.l.b16 %v54
    %v229 = vunpack.c.h.b16 %v54
    %v230 = vunpack.c.l.b16 %v55
    %v231 = vunpack.c.h.b16 %v55
    %v232 = vpack.c.b16 %v204, %v200
    %v233 = vpack.c.b16 %v205, %v201
    %v234 = vpack.c.b16 %v206, %v202
    %v235 = vpack.c.b16 %v207, %v203
    %v236 = vpack.c.b16 %v212, %v208
    %v237 = vpack.c.b16 %v213, %v209
    %v238 = vpack.c.b16 %v214, %v210
    %v239 = vpack.c.b16 %v215, %v211
    %v240 = vpack.c.b16 %v220, %v216
    %v241 = vpack.c.b16 %v221, %v217
    %v242 = vpack.c.b16 %v222, %v218
    %v243 = vpack.c.b16 %v223, %v219
    %v244 = vpack.c.b16 %v228, %v224
    %v245 = vpack.c.b16 %v229, %v225
    %v246 = vpack.c.b16 %v230, %v226
    %v247 = vpack.c.b16 %v231, %v227
    %v392 = vunpack.c.l.b16 %v56
    %v393 = vunpack.c.h.b16 %v56
    %v394 = vunpack.c.l.b16 %v57
    %v395 = vunpack.c.h.b16 %v57
    %v396 = vunpack.c.l.b16 %v58
    %v397 = vunpack.c.h.b16 %v58
    %v398 = vunpack.c.l.b16 %v59
    %v399 = vunpack.c.h.b16 %v59
    %v400 = vunpack.c.l.b16 %v60
    %v401 = vunpack.c.h.b16 %v60
    %v402 = vunpack.c.l.b16 %v61
    %v403 = vunpack.c.h.b16 %v61
    %v404 = vunpack.c.l.b16 %v62
    %v405 = vunpack.c.h.b16 %v62
    %v406 = vunpack.c.l.b16 %v63
    %v407 = vunpack.c.h.b16 %v63
    %v408 = vunpack.c.l.b16 %v64
    %v409 = vunpack.c.h.b16 %v64
    %v410 = vunpack.c.l.b16 %v65
    %v411 = vunpack.c.h.b16 %v65
    %v412 = vunpack.c.l.b16 %v66
    %v413 = vunpack.c.h.b16 %v66
    %v414 = vunpack.c.l.b16 %v67
    %v415 = vunpack.c.h.b16 %v67
    %v416 = vunpack.c.l.b16 %v68
    %v417 = vunpack.c.h.b16 %v68
    %v418 = vunpack.c.l.b16 %v69
    %v419 = vunpack.c.h.b16 %v69
    %v420 = vunpack.c.l.b16 %v70
    %v421 = vunpack.c.h.b16 %v70
    %v422 = vunpack.c.l.b16 %v71
    %v423 = vunpack.c.h.b16 %v71
    %v424 = vunpack.c.l.b16 %v72
    %v425 = vunpack.c.h.b16 %v72
    %v426 = vunpack.c.l.b16 %v73
    %v427 = vunpack.c.h.b16 %v73
    %v428 = vunpack.c.l.b16 %v74
    %v429 = vunpack.c.h.b16 %v74
    %v430 = vunpack.c.l.b16 %v75
    %v431 = vunpack.c.h.b16 %v75
    %v432 = vunpack.c.l.b16 %v76
    %v433 = vunpack.c.h.b16 %v76
    %v434 = vunpack.c.l.b16 %v77
    %v435 = vunpack.c.h.b16 %v77
    %v436 = vunpack.c.l.b16 %v78
    %v437 = vunpack.c.h.b16 %v78
    %v438 = vunpack.c.l.b16 %v79
    %v439 = vunpack.c.h.b16 %v79
    %v440 = vunpack.c.l.b16 %v80
    %v441 = vunpack.c.h.b16 %v80
    %v442 = vunpack.c.l.b16 %v81
    %v443 = vunpack.c.h.b16 %v81
    %v444 = vunpack.c.l.b16 %v82
    %v445 = vunpack.c.h.b16 %v82
    %v446 = vunpack.c.l.b16 %v83
    %v447 = vunpack.c.h.b16 %v83
    %v448 = vunpack.c.l.b16 %v84
    %v449 = vunpack.c.h.b16 %v84
    %v450 = vunpack.c.l.b16 %v85
    %v451 = vunpack.c.h.b16 %v85
    %v452 = vunpack.c.l.b16 %v86
    %v453 = vunpack.c.h.b16 %v86
    %v454 = vunpack.c.l.b16 %v87
    %v455 = vunpack.c.h.b16 %v87
    %v456 = vunpack.c.l.b16 %v88
    %v457 = vunpack.c.h.b16 %v88
    %v458 = vunpack.c.l.b16 %v89
    %v459 = vunpack.c.h.b16 %v89
    %v460 = vunpack.c.l.b16 %v90
    %v461 = vunpack.c.h.b16 %v90
    %v462 = vunpack.c.l.b16 %v91
    %v463 = vunpack.c.h.b16 %v91
    %v464 = vunpack.c.l.b16 %v92
    %v465 = vunpack.c.h.b16 %v92
    %v466 = vunpack.c.l.b16 %v93
    %v467 = vunpack.c.h.b16 %v93
    %v468 = vunpack.c.l.b16 %v94
    %v469 = vunpack.c.h.b16 %v94
    %v470 = vunpack.c.l.b16 %v95
    %v471 = vunpack.c.h.b16 %v95
    %v472 = vunpack.c.l.b16 %v96
    %v473 = vunpack.c.h.b16 %v96
    %v474 = vunpack.c.l.b16 %v97
    %v475 = vunpack.c.h.b16 %v97
    %v476 = vunpack.c.l.b16 %v98
    %v477 = vunpack.c.h.b16 %v98
    %v478 = vunpack.c.l.b16 %v99
    %v479 = vunpack.c.h.b16 %v99
    %v480 = vunpack.c.l.b16 %v100
    %v481 = vunpack.c.h.b16 %v100
    %v482 = vunpack.c.l.b16 %v101
    %v483 = vunpack.c.h.b16 %v101
    %v484 = vunpack.c.l.b16 %v102
    %v485 = vunpack.c.h.b16 %v102
    %v486 = vunpack.c.l.b16 %v103
    %v487 = vunpack.c.h.b16 %v103
    %v488 = vunpack.c.l.b16 %v104
    %v489 = vunpack.c.h.b16 %v104
    %v490 = vunpack.c.l.b16 %v105
    %v491 = vunpack.c.h.b16 %v105
    %v492 = vunpack.c.l.b16 %v106
    %v493 = vunpack.c.h.b16 %v106
    %v494 = vunpack.c.l.b16 %v107
    %v495 = vunpack.c.h.b16 %v107
    %v496 = vunpack.c.l.b16 %v108
    %v497 = vunpack.c.h.b16 %v108
    %v498 = vunpack.c.l.b16 %v109
    %v499 = vunpack.c.h.b16 %v109
    %v500 = vunpack.c.l.b16 %v110
    %v501 = vunpack.c.h.b16 %v110
    %v502 = vunpack.c.l.b16 %v111
    %v503 = vunpack.c.h.b16 %v111
    %v504 = vunpack.c.l.b16 %v112
    %v505 = vunpack.c.h.b16 %v112
    %v506 = vunpack.c.l.b16 %v113
    %v507 = vunpack.c.h.b16 %v113
    %v508 = vunpack.c.l.b16 %v114
    %v509 = vunpack.c.h.b16 %v114
    %v510 = vunpack.c.l.b16 %v115
    %v511 = vunpack.c.h.b16 %v115
    %v512 = vunpack.c.l.b16 %v116
    %v513 = vunpack.c.h.b16 %v116
    %v514 = vunpack.c.l.b16 %v117
    %v515 = vunpack.c.h.b16 %v117
    %v516 = vunpack.c.l.b16 %v118
    %v517 = vunpack.c.h.b16 %v118
    %v518 = vunpack.c.l.b16 %v119
    %v519 = vunpack.c.h.b16 %v119
    %v520 = vunpack.c.l.b16 %v120
    %v521 = vunpack.c.h.b16 %v120
    %v522 = vunpack.c.l.b16 %v121
    %v523 = vunpack.c.h.b16 %v121
    %v524 = vunpack.c.l.b16 %v122
    %v525 = vunpack.c.h.b16 %v122
    %v526 = vunpack.c.l.b16 %v123
    %v527 = vunpack.c.h.b16 %v123
    %v528 = vunpack.c.l.b16 %v124
    %v529 = vunpack.c.h.b16 %v124
    %v530 = vunpack.c.l.b16 %v125
    %v531 = vunpack.c.h.b16 %v125
    %v532 = vunpack.c.l.b16 %v126
    %v533 = vunpack.c.h.b16 %v126
    %v534 = vunpack.c.l.b16 %v127
    %v535 = vunpack.c.h.b16 %v127
    %v536 = vunpack.c.l.b16 %v128
    %v537 = vunpack.c.h.b16 %v128
    %v538 = vunpack.c.l.b16 %v129
    %v539 = vunpack.c.h.b16 %v129
    %v540 = vunpack.c.l.b16 %v130
    %v541 = vunpack.c.h.b16 %v130
    %v542 = vunpack.c.l.b16 %v131
    %v543 = vunpack.c.h.b16 %v131
    %v544 = vunpack.c.l.b16 %v132
    %v545 = vunpack.c.h.b16 %v132
    %v546 = vunpack.c.l.b16 %v133
    %v547 = vunpack.c.h.b16 %v133
    %v548 = vunpack.c.l.b16 %v134
    %v549 = vunpack.c.h.b16 %v134
    %v550 = vunpack.c.l.b16 %v135
    %v551 = vunpack.c.h.b16 %v135
    %v552 = vunpack.c.l.b16 %v136
    %v553 = vunpack.c.h.b16 %v136
    %v554 = vunpack.c.l.b16 %v137
    %v555 = vunpack.c.h.b16 %v137
    %v556 = vunpack.c.l.b16 %v138
    %v557 = vunpack.c.h.b16 %v138
    %v558 = vunpack.c.l.b16 %v139
    %v559 = vunpack.c.h.b16 %v139
    %v560 = vunpack.c.l.b16 %v140
    %v561 = vunpack.c.h.b16 %v140
    %v562 = vunpack.c.l.b16 %v141
    %v563 = vunpack.c.h.b16 %v141
    %v564 = vunpack.c.l.b16 %v142
    %v565 = vunpack.c.h.b16 %v142
    %v566 = vunpack.c.l.b16 %v143
    %v567 = vunpack.c.h.b16 %v143
    %v568 = vunpack.c.l.b16 %v144
    %v569 = vunpack.c.h.b16 %v144
    %v570 = vunpack.c.l.b16 %v145
    %v571 = vunpack.c.h.b16 %v145
    %v572 = vunpack.c.l.b16 %v146
    %v573 = vunpack.c.h.b16 %v146
    %v574 = vunpack.c.l.b16 %v147
    %v575 = vunpack.c.h.b16 %v147
    %v576 = vunpack.c.l.b16 %v148
    %v577 = vunpack.c.h.b16 %v148
    %v578 = vunpack.c.l.b16 %v149
    %v579 = vunpack.c.h.b16 %v149
    %v580 = vunpack.c.l.b16 %v150
    %v581 = vunpack.c.h.b16 %v150
    %v582 = vunpack.c.l.b16 %v151
    %v583 = vunpack.c.h.b16 %v151
    %v584 = vunpack.c.l.b16 %v152
    %v585 = vunpack.c.h.b16 %v152
    %v586 = vunpack.c.l.b16 %v153
    %v587 = vunpack.c.h.b16 %v153
    %v588 = vunpack.c.l.b16 %v154
    %v589 = vunpack.c.h.b16 %v154
    %v590 = vunpack.c.l.b16 %v155
    %v591 = vunpack.c.h.b16 %v155
    %v592 = vunpack.c.l.b16 %v156
    %v593 = vunpack.c.h.b16 %v156
    %v594 = vunpack.c.l.b16 %v157
    %v595 = vunpack.c.h.b16 %v157
    %v596 = vunpack.c.l.b16 %v158
    %v597 = vunpack.c.h.b16 %v158
    %v598 = vunpack.c.l.b16 %v159
    %v599 = vunpack.c.h.b16 %v159
    %v600 = vunpack.c.l.b16 %v160
    %v601 = vunpack.c.h.b16 %v160
    %v602 = vunpack.c.l.b16 %v161
    %v603 = vunpack.c.h.b16 %v161
    %v604 = vunpack.c.l.b16 %v162
    %v605 = vunpack.c.h.b16 %v162
    %v606 = vunpack.c.l.b16 %v163
    %v607 = vunpack.c.h.b16 %v163
    %v608 = vunpack.c.l.b16 %v164
    %v609 = vunpack.c.h.b16 %v164
    %v610 = vunpack.c.l.b16 %v165
    %v611 = vunpack.c.h.b16 %v165
    %v612 = vunpack.c.l.b16 %v166
    %v613 = vunpack.c.h.b16 %v166
    %v614 = vunpack.c.l.b16 %v167
    %v615 = vunpack.c.h.b16 %v167
    %v616 = vunpack.c.l.b16 %v168
    %v617 = vunpack.c.h.b16 %v168
    %v618 = vunpack.c.l.b16 %v169
    %v619 = vunpack.c.h.b16 %v169
    %v620 = vunpack.c.l.b16 %v170
    %v621 = vunpack.c.h.b16 %v170
    %v622 = vunpack.c.l.b16 %v171
    %v623 = vunpack.c.h.b16 %v171
    %v624 = vunpack.c.l.b16 %v172
    %v625 = vunpack.c.h.b16 %v172
    %v626 = vunpack.c.l.b16 %v173
    %v627 = vunpack.c.h.b16 %v173
    %v628 = vunpack.c.l.b16 %v174
    %v629 = vunpack.c.h.b16 %v174
    %v630 = vunpack.c.l.b16 %v175
    %v631 = vunpack.c.h.b16 %v175
    %v632 = vunpack.c.l.b16 %v176
    %v633 = vunpack.c.h.b16 %v176
    %v634 = vunpack.c.l.b16 %v177
    %v635 = vunpack.c.h.b16 %v177
    %v636 = vunpack.c.l.b16 %v178
    %v637 = vunpack.c.h.b16 %v178
    %v638 = vunpack.c.l.b16 %v179
    %v639 = vunpack.c.h.b16 %v179
    %v640 = vunpack.c.l.b16 %v180
    %v641 = vunpack.c.h.b16 %v180
    %v642 = vunpack.c.l.b16 %v181
    %v643 = vunpack.c.h.b16 %v181
    %v644 = vunpack.c.l.b16 %v182
    %v645 = vunpack.c.h.b16 %v182
    %v646 = vunpack.c.l.b16 %v183
    %v647 = vunpack.c.h.b16 %v183
    %v648 = vpack.c.b16 %v396, %v392
    %v649 = vpack.c.b16 %v397, %v393
    %v650 = vpack.c.b16 %v398, %v394
    %v651 = vpack.c.b16 %v399, %v395
    %v652 = vpack.c.b16 %v404, %v400
    %v653 = vpack.c.b16 %v405, %v401
    %v654 = vpack.c.b16 %v406, %v402
    %v655 = vpack.c.b16 %v407, %v403
    %v656 = vpack.c.b16 %v412, %v408
    %v657 = vpack.c.b16 %v413, %v409
    %v658 = vpack.c.b16 %v414, %v410
    %v659 = vpack.c.b16 %v415, %v411
    %v660 = vpack.c.b16 %v420, %v416
    %v661 = vpack.c.b16 %v421, %v417
    %v662 = vpack.c.b16 %v422, %v418
    %v663 = vpack.c.b16 %v423, %v419
    %v664 = vpack.c.b16 %v428, %v424
    %v665 = vpack.c.b16 %v429, %v425
    %v666 = vpack.c.b16 %v430, %v426
    %v667 = vpack.c.b16 %v431, %v427
    %v668 = vpack.c.b16 %v436, %v432
    %v669 = vpack.c.b16 %v437, %v433
    %v670 = vpack.c.b16 %v438, %v434
    %v671 = vpack.c.b16 %v439, %v435
    %v672 = vpack.c.b16 %v444, %v440
    %v673 = vpack.c.b16 %v445, %v441
    %v674 = vpack.c.b16 %v446, %v442
    %v675 = vpack.c.b16 %v447, %v443
    %v676 = vpack.c.b16 %v452, %v448
    %v677 = vpack.c.b16 %v453, %v449
    %v678 = vpack.c.b16 %v454, %v450
    %v679 = vpack.c.b16 %v455, %v451
    %v680 = vpack.c.b16 %v460, %v456
    %v681 = vpack.c.b16 %v461, %v457
    %v682 = vpack.c.b16 %v462, %v458
    %v683 = vpack.c.b16 %v463, %v459
    %v684 = vpack.c.b16 %v468, %v464
    %v685 = vpack.c.b16 %v469, %v465
    %v686 = vpack.c.b16 %v470, %v466
    %v687 = vpack.c.b16 %v471, %v467
    %v688 = vpack.c.b16 %v476, %v472
    %v689 = vpack.c.b16 %v477, %v473
    %v690 = vpack.c.b16 %v478, %v474
    %v691 = vpack.c.b16 %v479, %v475
    %v692 = vpack.c.b16 %v484, %v480
    %v693 = vpack.c.b16 %v485, %v481
    %v694 = vpack.c.b16 %v486, %v482
    %v695 = vpack.c.b16 %v487, %v483
    %v696 = vpack.c.b16 %v492, %v488
    %v697 = vpack.c.b16 %v493, %v489
    %v698 = vpack.c.b16 %v494, %v490
    %v699 = vpack.c.b16 %v495, %v491
    %v700 = vpack.c.b16 %v500, %v496
    %v701 = vpack.c.b16 %v501, %v497
    %v702 = vpack.c.b16 %v502, %v498
    %v703 = vpack.c.b16 %v503, %v499
    %v704 = vpack.c.b16 %v508, %v504
    %v705 = vpack.c.b16 %v509, %v505
    %v706 = vpack.c.b16 %v510, %v506
    %v707 = vpack.c.b16 %v511, %v507
    %v708 = vpack.c.b16 %v516, %v512
    %v709 = vpack.c.b16 %v517, %v513
    %v710 = vpack.c.b16 %v518, %v514
    %v711 = vpack.c.b16 %v519, %v515
    %v712 = vpack.c.b16 %v524, %v520
    %v713 = vpack.c.b16 %v525, %v521
    %v714 = vpack.c.b16 %v526, %v522
    %v715 = vpack.c.b16 %v527, %v523
    %v716 = vpack.c.b16 %v532, %v528
    %v717 = vpack.c.b16 %v533, %v529
    %v718 = vpack.c.b16 %v534, %v530
    %v719 = vpack.c.b16 %v535, %v531
    %v720 = vpack.c.b16 %v540, %v536
    %v721 = vpack.c.b16 %v541, %v537
    %v722 = vpack.c.b16 %v542, %v538
    %v723 = vpack.c.b16 %v543, %v539
    %v724 = vpack.c.b16 %v548, %v544
    %v725 = vpack.c.b16 %v549, %v545
    %v726 = vpack.c.b16 %v550, %v546
    %v727 = vpack.c.b16 %v551, %v547
    %v728 = vpack.c.b16 %v556, %v552
    %v729 = vpack.c.b16 %v557, %v553
    %v730 = vpack.c.b16 %v558, %v554
    %v731 = vpack.c.b16 %v559, %v555
    %v732 = vpack.c.b16 %v564, %v560
    %v733 = vpack.c.b16 %v565, %v561
    %v734 = vpack.c.b16 %v566, %v562
    %v735 = vpack.c.b16 %v567, %v563
    %v736 = vpack.c.b16 %v572, %v568
    %v737 = vpack.c.b16 %v573, %v569
    %v738 = vpack.c.b16 %v574, %v570
    %v739 = vpack.c.b16 %v575, %v571
    %v740 = vpack.c.b16 %v580, %v576
    %v741 = vpack.c.b16 %v581, %v577
    %v742 = vpack.c.b16 %v582, %v578
    %v743 = vpack.c.b16 %v583, %v579
    %v744 = vpack.c.b16 %v588, %v584
    %v745 = vpack.c.b16 %v589, %v585
    %v746 = vpack.c.b16 %v590, %v586
    %v747 = vpack.c.b16 %v591, %v587
    %v748 = vpack.c.b16 %v596, %v592
    %v749 = vpack.c.b16 %v597, %v593
    %v750 = vpack.c.b16 %v598, %v594
    %v751 = vpack.c.b16 %v599, %v595
    %v752 = vpack.c.b16 %v604, %v600
    %v753 = vpack.c.b16 %v605, %v601
    %v754 = vpack.c.b16 %v606, %v602
    %v755 = vpack.c.b16 %v607, %v603
    %v756 = vpack.c.b16 %v612, %v608
    %v757 = vpack.c.b16 %v613, %v609
    %v758 = vpack.c.b16 %v614, %v610
    %v759 = vpack.c.b16 %v615, %v611
    %v760 = vpack.c.b16 %v620, %v616
    %v761 = vpack.c.b16 %v621, %v617
    %v762 = vpack.c.b16 %v622, %v618
    %v763 = vpack.c.b16 %v623, %v619
    %v764 = vpack.c.b16 %v628, %v624
    %v765 = vpack.c.b16 %v629, %v625
    %v766 = vpack.c.b16 %v630, %v626
    %v767 = vpack.c.b16 %v631, %v627
    %v768 = vpack.c.b16 %v636, %v632
    %v769 = vpack.c.b16 %v637, %v633
    %v770 = vpack.c.b16 %v638, %v634
    %v771 = vpack.c.b16 %v639, %v635
    %v772 = vpack.c.b16 %v644, %v640
    %v773 = vpack.c.b16 %v645, %v641
    %v774 = vpack.c.b16 %v646, %v642
    %v775 = vpack.c.b16 %v647, %v643
    %904 = vmatprep.subr.bf16.mxu0 %v649
    %905 = vmatpush1.bf16.msra.mxu0 %v648
    %906 = vmatprep.subr.bf16.mxu0 %v653
    %907 = vmatpush1.bf16.msra.mxu0 %v652
    %908 = vmatprep.subr.bf16.mxu0 %v657
    %909 = vmatpush1.bf16.msra.mxu0 %v656
    %910 = vmatprep.subr.bf16.mxu0 %v661
    %911 = vmatpush1.bf16.msra.mxu0 %v660
    %912 = vmatprep.subr.bf16.mxu0 %v665
    %913 = vmatpush1.bf16.msra.mxu0 %v664
    %914 = vmatprep.subr.bf16.mxu0 %v669
    %915 = vmatpush1.bf16.msra.mxu0 %v668
    %916 = vmatprep.subr.bf16.mxu0 %v673
    %917 = vmatpush1.bf16.msra.mxu0 %v672
    %918 = vmatprep.subr.bf16.mxu0 %v677
    %919 = vmatpush1.bf16.msra.mxu0 %v676
    %920 = vmatprep.subr.bf16.mxu0 %v681
    %921 = vmatpush1.bf16.msra.mxu0 %v680
    %922 = vmatprep.subr.bf16.mxu0 %v685
    %923 = vmatpush1.bf16.msra.mxu0 %v684
    %924 = vmatprep.subr.bf16.mxu0 %v689
    %925 = vmatpush1.bf16.msra.mxu0 %v688
    %926 = vmatprep.subr.bf16.mxu0 %v693
    %927 = vmatpush1.bf16.msra.mxu0 %v692
    %928 = vmatprep.subr.bf16.mxu0 %v697
    %929 = vmatpush1.bf16.msra.mxu0 %v696
    %930 = vmatprep.subr.bf16.mxu0 %v701
    %931 = vmatpush1.bf16.msra.mxu0 %v700
    %932 = vmatprep.subr.bf16.mxu0 %v705
    %933 = vmatpush1.bf16.msra.mxu0 %v704
    %934 = vmatprep.subr.bf16.mxu0 %v709
    %935 = vmatpush1.bf16.msra.mxu0 %v708
    %936 = vmatprep.mubr.bf16.mxu0 %v233
    %937 = vmatmul.mubr.bf16.gmra.mrb[0].mxu0 %v232
    %v938 = vpop.f32.mrb[0].mxu0
    %v939 = vadd.f32 0.0, %v938
    %v940 = vpop.f32.mrb[0].mxu0
    %v941 = vadd.f32 0.0, %v940
    %v942 = vpop.f32.mrb[0].mxu0
    %v943 = vadd.f32 0.0, %v942
    %v944 = vpop.f32.mrb[0].mxu0
    %v945 = vadd.f32 0.0, %v944
    %946 = vmatprep.mubr.bf16.mxu0 %v237
    %947 = vmatmul.mubr.bf16.gmra.mrb[0].mxu0 %v236
    %v948 = vpop.f32.mrb[0].mxu0
    %v949 = vadd.f32 0.0, %v948
    %v950 = vpop.f32.mrb[0].mxu0
    %v951 = vadd.f32 0.0, %v950
    %v952 = vpop.f32.mrb[0].mxu0
    %v953 = vadd.f32 0.0, %v952
    %v954 = vpop.f32.mrb[0].mxu0
    %v955 = vadd.f32 0.0, %v954
    %956 = vmatprep.mubr.bf16.mxu0 %v241
    %957 = vmatmul.mubr.bf16.gmra.mrb[0].mxu0 %v240
    %v958 = vpop.f32.mrb[0].mxu0
    %v959 = vadd.f32 0.0, %v958
    %v960 = vpop.f32.mrb[0].mxu0
    %v961 = vadd.f32 0.0, %v960
    %v962 = vpop.f32.mrb[0].mxu0
    %v963 = vadd.f32 0.0, %v962
    %v964 = vpop.f32.mrb[0].mxu0
    %v965 = vadd.f32 0.0, %v964
    %966 = vmatprep.mubr.bf16.mxu0 %v245
    %967 = vmatmul.mubr.bf16.gmra.mrb[0].mxu0 %v244
    %v968 = vpop.f32.mrb[0].mxu0
    %v969 = vadd.f32 0.0, %v968
    %v970 = vpop.f32.mrb[0].mxu0
    %v971 = vadd.f32 0.0, %v970
    %v972 = vpop.f32.mrb[0].mxu0
    %v973 = vadd.f32 0.0, %v972
    %v974 = vpop.f32.mrb[0].mxu0
    %v975 = vadd.f32 0.0, %v974
    %976 = vdwg.mxu0
    %977 = vmatprep.subr.bf16.mxu0 %v713
    %978 = vmatpush1.bf16.msra.mxu0 %v712
    %979 = vmatprep.subr.bf16.mxu0 %v717
    %980 = vmatpush1.bf16.msra.mxu0 %v716
    %981 = vmatprep.subr.bf16.mxu0 %v721
    %982 = vmatpush1.bf16.msra.mxu0 %v720
    %983 = vmatprep.subr.bf16.mxu0 %v725
    %984 = vmatpush1.bf16.msra.mxu0 %v724
    %985 = vmatprep.subr.bf16.mxu0 %v729
    %986 = vmatpush1.bf16.msra.mxu0 %v728
    %987 = vmatprep.subr.bf16.mxu0 %v733
    %988 = vmatpush1.bf16.msra.mxu0 %v732
    %989 = vmatprep.subr.bf16.mxu0 %v737
    %990 = vmatpush1.bf16.msra.mxu0 %v736
    %991 = vmatprep.subr.bf16.mxu0 %v741
    %992 = vmatpush1.bf16.msra.mxu0 %v740
    %993 = vmatprep.subr.bf16.mxu0 %v745
    %994 = vmatpush1.bf16.msra.mxu0 %v744
    %995 = vmatprep.subr.bf16.mxu0 %v749
    %996 = vmatpush1.bf16.msra.mxu0 %v748
    %997 = vmatprep.subr.bf16.mxu0 %v753
    %998 = vmatpush1.bf16.msra.mxu0 %v752
    %999 = vmatprep.subr.bf16.mxu0 %v757
    %1000 = vmatpush1.bf16.msra.mxu0 %v756
    %1001 = vmatprep.subr.bf16.mxu0 %v761
    %1002 = vmatpush1.bf16.msra.mxu0 %v760
    %1003 = vmatprep.subr.bf16.mxu0 %v765
    %1004 = vmatpush1.bf16.msra.mxu0 %v764
    %1005 = vmatprep.subr.bf16.mxu0 %v769
    %1006 = vmatpush1.bf16.msra.mxu0 %v768
    %1007 = vmatprep.subr.bf16.mxu0 %v773
    %1008 = vmatpush1.bf16.msra.mxu0 %v772
    %1009 = vmatprep.mubr.bf16.mxu0 %v235
    %1010 = vmatmul.mubr.bf16.gmra.mrb[0].mxu0 %v234
    %v1011 = vpop.f32.mrb[0].mxu0
    %v1012 = vadd.f32 %v939, %v1011
    %v1013 = vpop.f32.mrb[0].mxu0
    %v1014 = vadd.f32 %v941, %v1013
    %v1015 = vpop.f32.mrb[0].mxu0
    %v1016 = vadd.f32 %v943, %v1015
    %v1017 = vpop.f32.mrb[0].mxu0
    %v1018 = vadd.f32 %v945, %v1017
    %1019 = vmatprep.mubr.bf16.mxu0 %v239
    %1020 = vmatmul.mubr.bf16.gmra.mrb[0].mxu0 %v238
    %v1021 = vpop.f32.mrb[0].mxu0
    %v1022 = vadd.f32 %v949, %v1021
    %v1023 = vpop.f32.mrb[0].mxu0
    %v1024 = vadd.f32 %v951, %v1023
    %v1025 = vpop.f32.mrb[0].mxu0
    %v1026 = vadd.f32 %v953, %v1025
    %v1027 = vpop.f32.mrb[0].mxu0
    %v1028 = vadd.f32 %v955, %v1027
    %1029 = vmatprep.mubr.bf16.mxu0 %v243
    %1030 = vmatmul.mubr.bf16.gmra.mrb[0].mxu0 %v242
    %v1031 = vpop.f32.mrb[0].mxu0
    %v1032 = vadd.f32 %v959, %v1031
    %v1033 = vpop.f32.mrb[0].mxu0
    %v1034 = vadd.f32 %v961, %v1033
    %v1035 = vpop.f32.mrb[0].mxu0
    %v1036 = vadd.f32 %v963, %v1035
    %v1037 = vpop.f32.mrb[0].mxu0
    %v1038 = vadd.f32 %v965, %v1037
    %1039 = vmatprep.mubr.bf16.mxu0 %v247
    %1040 = vmatmul.mubr.bf16.gmra.mrb[0].mxu0 %v246
    %v1041 = vpop.f32.mrb[0].mxu0
    %v1042 = vadd.f32 %v969, %v1041
    %v1043 = vpop.f32.mrb[0].mxu0
    %v1044 = vadd.f32 %v971, %v1043
    %v1045 = vpop.f32.mrb[0].mxu0
    %v1046 = vadd.f32 %v973, %v1045
    %v1047 = vpop.f32.mrb[0].mxu0
    %v1048 = vadd.f32 %v975, %v1047
    %1049 = vdwg.mxu0
    %1050 = vmatprep.subr.bf16.mxu0 %v651
    %1051 = vmatpush1.bf16.msra.mxu0 %v650
    %1052 = vmatprep.subr.bf16.mxu0 %v655
    %1053 = vmatpush1.bf16.msra.mxu0 %v654
    %1054 = vmatprep.subr.bf16.mxu0 %v659
    %1055 = vmatpush1.bf16.msra.mxu0 %v658
    %1056 = vmatprep.subr.bf16.mxu0 %v663
    %1057 = vmatpush1.bf16.msra.mxu0 %v662
    %1058 = vmatprep.subr.bf16.mxu0 %v667
    %1059 = vmatpush1.bf16.msra.mxu0 %v666
    %1060 = vmatprep.subr.bf16.mxu0 %v671
    %1061 = vmatpush1.bf16.msra.mxu0 %v670
    %1062 = vmatprep.subr.bf16.mxu0 %v675
    %1063 = vmatpush1.bf16.msra.mxu0 %v674
    %1064 = vmatprep.subr.bf16.mxu0 %v679
    %1065 = vmatpush1.bf16.msra.mxu0 %v678
    %1066 = vmatprep.subr.bf16.mxu0 %v683
    %1067 = vmatpush1.bf16.msra.mxu0 %v682
    %1068 = vmatprep.subr.bf16.mxu0 %v687
    %1069 = vmatpush1.bf16.msra.mxu0 %v686
    %1070 = vmatprep.subr.bf16.mxu0 %v691
    %1071 = vmatpush1.bf16.msra.mxu0 %v690
    %1072 = vmatprep.subr.bf16.mxu0 %v695
    %1073 = vmatpush1.bf16.msra.mxu0 %v694
    %1074 = vmatprep.subr.bf16.mxu0 %v699
    %1075 = vmatpush1.bf16.msra.mxu0 %v698
    %1076 = vmatprep.subr.bf16.mxu0 %v703
    %1077 = vmatpush1.bf16.msra.mxu0 %v702
    %1078 = vmatprep.subr.bf16.mxu0 %v707
    %1079 = vmatpush1.bf16.msra.mxu0 %v706
    %1080 = vmatprep.subr.bf16.mxu0 %v711
    %1081 = vmatpush1.bf16.msra.mxu0 %v710
    %1082 = vmatprep.mubr.bf16.mxu0 %v233
    %1083 = vmatmul.mubr.bf16.gmra.mrb[0].mxu0 %v232
    %v1084 = vpop.f32.mrb[0].mxu0
    %v1085 = vadd.f32 0.0, %v1084
    %v1086 = vpop.f32.mrb[0].mxu0
    %v1087 = vadd.f32 0.0, %v1086
    %v1088 = vpop.f32.mrb[0].mxu0
    %v1089 = vadd.f32 0.0, %v1088
    %v1090 = vpop.f32.mrb[0].mxu0
    %v1091 = vadd.f32 0.0, %v1090
    %1092 = vmatprep.mubr.bf16.mxu0 %v237
    %1093 = vmatmul.mubr.bf16.gmra.mrb[0].mxu0 %v236
    %v1094 = vpop.f32.mrb[0].mxu0
    %v1095 = vadd.f32 0.0, %v1094
    %v1096 = vpop.f32.mrb[0].mxu0
    %v1097 = vadd.f32 0.0, %v1096
    %v1098 = vpop.f32.mrb[0].mxu0
    %v1099 = vadd.f32 0.0, %v1098
    %v1100 = vpop.f32.mrb[0].mxu0
    %v1101 = vadd.f32 0.0, %v1100
    %1102 = vmatprep.mubr.bf16.mxu0 %v241
    %1103 = vmatmul.mubr.bf16.gmra.mrb[0].mxu0 %v240
    %v1104 = vpop.f32.mrb[0].mxu0
    %v1105 = vadd.f32 0.0, %v1104
    %v1106 = vpop.f32.mrb[0].mxu0
    %v1107 = vadd.f32 0.0, %v1106
    %v1108 = vpop.f32.mrb[0].mxu0
    %v1109 = vadd.f32 0.0, %v1108
    %v1110 = vpop.f32.mrb[0].mxu0
    %v1111 = vadd.f32 0.0, %v1110
    %1112 = vmatprep.mubr.bf16.mxu0 %v245
    %1113 = vmatmul.mubr.bf16.gmra.mrb[0].mxu0 %v244
    %v1114 = vpop.f32.mrb[0].mxu0
    %v1115 = vadd.f32 0.0, %v1114
    %v1116 = vpop.f32.mrb[0].mxu0
    %v1117 = vadd.f32 0.0, %v1116
    %v1118 = vpop.f32.mrb[0].mxu0
    %v1119 = vadd.f32 0.0, %v1118
    %v1120 = vpop.f32.mrb[0].mxu0
    %v1121 = vadd.f32 0.0, %v1120
    %1122 = vdwg.mxu0
    %1123 = vmatprep.subr.bf16.mxu0 %v715
    %1124 = vmatpush1.bf16.msra.mxu0 %v714
    %1125 = vmatprep.subr.bf16.mxu0 %v719
    %1126 = vmatpush1.bf16.msra.mxu0 %v718
    %1127 = vmatprep.subr.bf16.mxu0 %v723
    %1128 = vmatpush1.bf16.msra.mxu0 %v722
    %1129 = vmatprep.subr.bf16.mxu0 %v727
    %1130 = vmatpush1.bf16.msra.mxu0 %v726
    %1131 = vmatprep.subr.bf16.mxu0 %v731
    %1132 = vmatpush1.bf16.msra.mxu0 %v730
    %1133 = vmatprep.subr.bf16.mxu0 %v735
    %1134 = vmatpush1.bf16.msra.mxu0 %v734
    %1135 = vmatprep.subr.bf16.mxu0 %v739
    %1136 = vmatpush1.bf16.msra.mxu0 %v738
    %1137 = vmatprep.subr.bf16.mxu0 %v743
    %1138 = vmatpush1.bf16.msra.mxu0 %v742
    %1139 = vmatprep.subr.bf16.mxu0 %v747
    %1140 = vmatpush1.bf16.msra.mxu0 %v746
    %1141 = vmatprep.subr.bf16.mxu0 %v751
    %1142 = vmatpush1.bf16.msra.mxu0 %v750
    %1143 = vmatprep.subr.bf16.mxu0 %v755
    %1144 = vmatpush1.bf16.msra.mxu0 %v754
    %1145 = vmatprep.subr.bf16.mxu0 %v759
    %1146 = vmatpush1.bf16.msra.mxu0 %v758
    %1147 = vmatprep.subr.bf16.mxu0 %v763
    %1148 = vmatpush1.bf16.msra.mxu0 %v762
    %1149 = vmatprep.subr.bf16.mxu0 %v767
    %1150 = vmatpush1.bf16.msra.mxu0 %v766
    %1151 = vmatprep.subr.bf16.mxu0 %v771
    %1152 = vmatpush1.bf16.msra.mxu0 %v770
    %1153 = vmatprep.subr.bf16.mxu0 %v775
    %1154 = vmatpush1.bf16.msra.mxu0 %v774
    %1155 = vmatprep.mubr.bf16.mxu0 %v235
    %1156 = vmatmul.mubr.bf16.gmra.mrb[0].mxu0 %v234
    %v1157 = vpop.f32.mrb[0].mxu0
    %v1158 = vadd.f32 %v1085, %v1157
    %v1159 = vpop.f32.mrb[0].mxu0
    %v1160 = vadd.f32 %v1087, %v1159
    %v1161 = vpop.f32.mrb[0].mxu0
    %v1162 = vadd.f32 %v1089, %v1161
    %v1163 = vpop.f32.mrb[0].mxu0
    %v1164 = vadd.f32 %v1091, %v1163
    %1165 = vmatprep.mubr.bf16.mxu0 %v239
    %1166 = vmatmul.mubr.bf16.gmra.mrb[0].mxu0 %v238
    %v1167 = vpop.f32.mrb[0].mxu0
    %v1168 = vadd.f32 %v1095, %v1167
    %v1169 = vpop.f32.mrb[0].mxu0
    %v1170 = vadd.f32 %v1097, %v1169
    %v1171 = vpop.f32.mrb[0].mxu0
    %v1172 = vadd.f32 %v1099, %v1171
    %v1173 = vpop.f32.mrb[0].mxu0
    %v1174 = vadd.f32 %v1101, %v1173
    %1175 = vmatprep.mubr.bf16.mxu0 %v243
    %1176 = vmatmul.mubr.bf16.gmra.mrb[0].mxu0 %v242
    %v1177 = vpop.f32.mrb[0].mxu0
    %v1178 = vadd.f32 %v1105, %v1177
    %v1179 = vpop.f32.mrb[0].mxu0
    %v1180 = vadd.f32 %v1107, %v1179
    %v1181 = vpop.f32.mrb[0].mxu0
    %v1182 = vadd.f32 %v1109, %v1181
    %v1183 = vpop.f32.mrb[0].mxu0
    %v1184 = vadd.f32 %v1111, %v1183
    %1185 = vmatprep.mubr.bf16.mxu0 %v247
    %1186 = vmatmul.mubr.bf16.gmra.mrb[0].mxu0 %v246
    %v1187 = vpop.f32.mrb[0].mxu0
    %v1188 = vadd.f32 %v1115, %v1187
    %v1189 = vpop.f32.mrb[0].mxu0
    %v1190 = vadd.f32 %v1117, %v1189
    %v1191 = vpop.f32.mrb[0].mxu0
    %v1192 = vadd.f32 %v1119, %v1191
    %v1193 = vpop.f32.mrb[0].mxu0
    %v1194 = vadd.f32 %v1121, %v1193
    %1195 = vdwg.mxu0
    %vm1196 = vcmp.ge.f32.partialorder %v1012, 0.0
    %vm1197 = vcmp.ge.f32.partialorder %v1014, 0.0
    %vm1198 = vcmp.ge.f32.partialorder %v1158, 0.0
    %vm1199 = vcmp.ge.f32.partialorder %v1160, 0.0
    %vm1200 = vcmp.ge.f32.partialorder %v1016, 0.0
    %vm1201 = vcmp.ge.f32.partialorder %v1018, 0.0
    %vm1202 = vcmp.ge.f32.partialorder %v1162, 0.0
    %vm1203 = vcmp.ge.f32.partialorder %v1164, 0.0
    %vm1204 = vcmp.ge.f32.partialorder %v1022, 0.0
    %vm1205 = vcmp.ge.f32.partialorder %v1024, 0.0
    %vm1206 = vcmp.ge.f32.partialorder %v1168, 0.0
    %vm1207 = vcmp.ge.f32.partialorder %v1170, 0.0
    %vm1208 = vcmp.ge.f32.partialorder %v1026, 0.0
    %vm1209 = vcmp.ge.f32.partialorder %v1028, 0.0
    %vm1210 = vcmp.ge.f32.partialorder %v1172, 0.0
    %vm1211 = vcmp.ge.f32.partialorder %v1174, 0.0
    %vm1212 = vcmp.ge.f32.partialorder %v1032, 0.0
    %vm1213 = vcmp.ge.f32.partialorder %v1034, 0.0
    %vm1214 = vcmp.ge.f32.partialorder %v1178, 0.0
    %vm1215 = vcmp.ge.f32.partialorder %v1180, 0.0
    %vm1216 = vcmp.ge.f32.partialorder %v1036, 0.0
    %vm1217 = vcmp.ge.f32.partialorder %v1038, 0.0
    %vm1218 = vcmp.ge.f32.partialorder %v1182, 0.0
    %vm1219 = vcmp.ge.f32.partialorder %v1184, 0.0
    %vm1220 = vcmp.ge.f32.partialorder %v1042, 0.0
    %vm1221 = vcmp.ge.f32.partialorder %v1044, 0.0
    %vm1222 = vcmp.ge.f32.partialorder %v1188, 0.0
    %vm1223 = vcmp.ge.f32.partialorder %v1190, 0.0
    %vm1224 = vcmp.ge.f32.partialorder %v1046, 0.0
    %vm1225 = vcmp.ge.f32.partialorder %v1048, 0.0
    %vm1226 = vcmp.ge.f32.partialorder %v1192, 0.0
    %vm1227 = vcmp.ge.f32.partialorder %v1194, 0.0
    %v1228 = vmul.f32 %v1012, 0.2
    %v1229 = vmul.f32 %v1014, 0.2
    %v1230 = vmul.f32 %v1158, 0.2
    %v1231 = vmul.f32 %v1160, 0.2
    %v1232 = vmul.f32 %v1016, 0.2
    %v1233 = vmul.f32 %v1018, 0.2
    %v1234 = vmul.f32 %v1162, 0.2
    %v1235 = vmul.f32 %v1164, 0.2
    %v1236 = vmul.f32 %v1022, 0.2
    %v1237 = vmul.f32 %v1024, 0.2
    %v1238 = vmul.f32 %v1168, 0.2
    %v1239 = vmul.f32 %v1170, 0.2
    %v1240 = vmul.f32 %v1026, 0.2
    %v1241 = vmul.f32 %v1028, 0.2
    %v1242 = vmul.f32 %v1172, 0.2
    %v1243 = vmul.f32 %v1174, 0.2
    %v1244 = vmul.f32 %v1032, 0.2
    %v1245 = vmul.f32 %v1034, 0.2
    %v1246 = vmul.f32 %v1178, 0.2
    %v1247 = vmul.f32 %v1180, 0.2
    %v1248 = vmul.f32 %v1036, 0.2
    %v1249 = vmul.f32 %v1038, 0.2
    %v1250 = vmul.f32 %v1182, 0.2
    %v1251 = vmul.f32 %v1184, 0.2
    %v1252 = vmul.f32 %v1042, 0.2
    %v1253 = vmul.f32 %v1044, 0.2
    %v1254 = vmul.f32 %v1188, 0.2
    %v1255 = vmul.f32 %v1190, 0.2
    %v1256 = vmul.f32 %v1046, 0.2
    %v1257 = vmul.f32 %v1048, 0.2
    %v1258 = vmul.f32 %v1192, 0.2
    %v1259 = vmul.f32 %v1194, 0.2
    %v1260 = vsel %vm1196, %v1012, %v1228
    %v1261 = vsel %vm1197, %v1014, %v1229
    %v1262 = vsel %vm1198, %v1158, %v1230
    %v1263 = vsel %vm1199, %v1160, %v1231
    %v1264 = vsel %vm1200, %v1016, %v1232
    %v1265 = vsel %vm1201, %v1018, %v1233
    %v1266 = vsel %vm1202, %v1162, %v1234
    %v1267 = vsel %vm1203, %v1164, %v1235
    %v1268 = vsel %vm1204, %v1022, %v1236
    %v1269 = vsel %vm1205, %v1024, %v1237
    %v1270 = vsel %vm1206, %v1168, %v1238
    %v1271 = vsel %vm1207, %v1170, %v1239
    %v1272 = vsel %vm1208, %v1026, %v1240
    %v1273 = vsel %vm1209, %v1028, %v1241
    %v1274 = vsel %vm1210, %v1172, %v1242
    %v1275 = vsel %vm1211, %v1174, %v1243
    %v1276 = vsel %vm1212, %v1032, %v1244
    %v1277 = vsel %vm1213, %v1034, %v1245
    %v1278 = vsel %vm1214, %v1178, %v1246
    %v1279 = vsel %vm1215, %v1180, %v1247
    %v1280 = vsel %vm1216, %v1036, %v1248
    %v1281 = vsel %vm1217, %v1038, %v1249
    %v1282 = vsel %vm1218, %v1182, %v1250
    %v1283 = vsel %vm1219, %v1184, %v1251
    %v1284 = vsel %vm1220, %v1042, %v1252
    %v1285 = vsel %vm1221, %v1044, %v1253
    %v1286 = vsel %vm1222, %v1188, %v1254
    %v1287 = vsel %vm1223, %v1190, %v1255
    %v1288 = vsel %vm1224, %v1046, %v1256
    %v1289 = vsel %vm1225, %v1048, %v1257
    %v1290 = vsel %vm1226, %v1192, %v1258
    %v1291 = vsel %vm1227, %v1194, %v1259
    %v1292 = vpack.c.bf16 %v1264, %v1260
    %v1293 = vpack.c.bf16 %v1265, %v1261
    %v1294 = vpack.c.bf16 %v1266, %v1262
    %v1295 = vpack.c.bf16 %v1267, %v1263
    %v1296 = vpack.c.bf16 %v1272, %v1268
    %v1297 = vpack.c.bf16 %v1273, %v1269
    %v1298 = vpack.c.bf16 %v1274, %v1270
    %v1299 = vpack.c.bf16 %v1275, %v1271
    %v1300 = vpack.c.bf16 %v1280, %v1276
    %v1301 = vpack.c.bf16 %v1281, %v1277
    %v1302 = vpack.c.bf16 %v1282, %v1278
    %v1303 = vpack.c.bf16 %v1283, %v1279
    %v1304 = vpack.c.bf16 %v1288, %v1284
    %v1305 = vpack.c.bf16 %v1289, %v1285
    %v1306 = vpack.c.bf16 %v1290, %v1286
    %v1307 = vpack.c.bf16 %v1291, %v1287
    %v1324 = vunpack.c.l.b16 %v1292
    %v1325 = vunpack.c.l.b16 %v1293
    %v1326 = vunpack.c.l.b16 %v1294
    %v1327 = vunpack.c.l.b16 %v1295
    %v1328 = vunpack.c.h.b16 %v1292
    %v1329 = vunpack.c.h.b16 %v1293
    %v1330 = vunpack.c.h.b16 %v1294
    %v1331 = vunpack.c.h.b16 %v1295
    %v1332 = vunpack.c.l.b16 %v1296
    %v1333 = vunpack.c.l.b16 %v1297
    %v1334 = vunpack.c.l.b16 %v1298
    %v1335 = vunpack.c.l.b16 %v1299
    %v1336 = vunpack.c.h.b16 %v1296
    %v1337 = vunpack.c.h.b16 %v1297
    %v1338 = vunpack.c.h.b16 %v1298
    %v1339 = vunpack.c.h.b16 %v1299
    %v1340 = vunpack.c.l.b16 %v1300
    %v1341 = vunpack.c.l.b16 %v1301
    %v1342 = vunpack.c.l.b16 %v1302
    %v1343 = vunpack.c.l.b16 %v1303
    %v1344 = vunpack.c.h.b16 %v1300
    %v1345 = vunpack.c.h.b16 %v1301
    %v1346 = vunpack.c.h.b16 %v1302
    %v1347 = vunpack.c.h.b16 %v1303
    %v1348 = vunpack.c.l.b16 %v1304
    %v1349 = vunpack.c.l.b16 %v1305
    %v1350 = vunpack.c.l.b16 %v1306
    %v1351 = vunpack.c.l.b16 %v1307
    %v1352 = vunpack.c.h.b16 %v1304
    %v1353 = vunpack.c.h.b16 %v1305
    %v1354 = vunpack.c.h.b16 %v1306
    %v1355 = vunpack.c.h.b16 %v1307
    %v1356 = vpack.c.b16 %v1325, %v1324
    %v1357 = vpack.c.b16 %v1327, %v1326
    %v1358 = vpack.c.b16 %v1329, %v1328
    %v1359 = vpack.c.b16 %v1331, %v1330
    %v1360 = vpack.c.b16 %v1333, %v1332
    %v1361 = vpack.c.b16 %v1335, %v1334
    %v1362 = vpack.c.b16 %v1337, %v1336
    %v1363 = vpack.c.b16 %v1339, %v1338
    %v1364 = vpack.c.b16 %v1341, %v1340
    %v1365 = vpack.c.b16 %v1343, %v1342
    %v1366 = vpack.c.b16 %v1345, %v1344
    %v1367 = vpack.c.b16 %v1347, %v1346
    %v1368 = vpack.c.b16 %v1349, %v1348
    %v1369 = vpack.c.b16 %v1351, %v1350
    %v1370 = vpack.c.b16 %v1353, %v1352
    %v1371 = vpack.c.b16 %v1355, %v1354
    %1388 = vst [vmem:[#allocation7] sm:$0xff] %v1356
    %1389 = vst [vmem:[#allocation7 + $0x8] sm:$0xff] %v1357
    %1390 = vst [vmem:[#allocation7 + $0x10] sm:$0xff] %v1358
    %1391 = vst [vmem:[#allocation7 + $0x18] sm:$0xff] %v1359
    %1392 = vst [vmem:[#allocation7 + $0x20] sm:$0xff] %v1360
    %1393 = vst [vmem:[#allocation7 + $0x28] sm:$0xff] %v1361
    %1394 = vst [vmem:[#allocation7 + $0x30] sm:$0xff] %v1362
    %1395 = vst [vmem:[#allocation7 + $0x38] sm:$0xff] %v1363
    %1396 = vst [vmem:[#allocation7 + $0x40] sm:$0xff] %v1364
    %1397 = vst [vmem:[#allocation7 + $0x48] sm:$0xff] %v1365
    %1398 = vst [vmem:[#allocation7 + $0x50] sm:$0xff] %v1366
    %1399 = vst [vmem:[#allocation7 + $0x58] sm:$0xff] %v1367
    %1400 = vst [vmem:[#allocation7 + $0x60] sm:$0xff] %v1368
    %1401 = vst [vmem:[#allocation7 + $0x68] sm:$0xff] %v1369
    %1402 = vst [vmem:[#allocation7 + $0x70] sm:$0xff] %v1370
    %1403 = vst [vmem:[#allocation7 + $0x78] sm:$0xff] %v1371
    // Predicated region
    $region18: #{netD_forward.10} parent=1 // pred_check
      _
    $region19: #{netD_forward.10} parent=1 // pred_check_branch
      %1405 = sbr.rel (0) target = $region21
    $region20: #{netD_forward.10} parent=1 // pred_region
      %s1407 = ssub.s32 2048, 2048
      %1408 = vsyncadd [#allocation4], %s1407
      %s1409 = sshll.u32 [#allocation7], 4
      %s1410 = int_to_ptr.vmem [resolvable:$true] %s1409
      %1415 = dma.vmem_to_hbm [thread:$0]  %s1410, 2048, %s2, [#allocation4], 256, 256, 16
    $region21: #{netD_forward.10} parent=1 // pred_fallthru
      _
    // Predicated region
    $region22: #{netD_forward.10} parent=1 // pred_check
      _
    $region23: #{netD_forward.10} parent=1 // pred_check_branch
      %1417 = sbr.rel (0) target = $region25
    $region24: #{netD_forward.10} parent=1 // pred_region
      %1418 = dma.done [#allocation4], 2048
    $region25: #{netD_forward.10} parent=1 // pred_fallthru
      _
    %1419 = vsyncpa [#allocation3], 1
    %1420 = vsyncpa [#allocation6], 1
    %1421 = vsyncpa [#allocation4], 1

// kernel: netD_forward.11
$region0: #{netD_forward.11}
  #allocation0 [shape = 'u32[]', space=smem, size = 0x4, offset = 0x4, fixed_abs, tag = 'smem constant byte address 0x4 - core index']
  #allocation1 [shape = 'u32[144,128]{1,0:T(1,128)}', space=vmem, size = 0x12000, scoped, tag = 'internal scratch']
  %s0 = inlined_call_operand.hbm [shape: bf16[64,1024], index: 0, kind: input, shape index: {}]
  %s1 = inlined_call_operand.hbm [shape: bf16[1024,128], index: 1, kind: input, shape index: {}]
  %s2 = inlined_call_operand.hbm [shape: bf16[64,128], index: 2, kind: output, shape index: {}]
  %s3 = sld [smem:[#allocation0]]
  $region26: #{netD_forward.11} parent=0
    _
  %s5 = ssub.s32 1, %s3
  %s6 = scalar_select 0, %s5, %s3
  $region1: #{netD_forward.11} parent=0
    #allocation2 [shape = 'u8[131072]{0}', space=vmem, size = 0x20000, scoped, tag = 'input window, operand 0, single buffered']
    #allocation3 [shape = 's32[1]{0}', space=sflag, size = 0x4, scoped, tag = 'scoped memory for netD_forward.11']
    #allocation4 [shape = 's32[1]{0}', space=sflag, size = 0x4, scoped, tag = 'scoped memory for netD_forward.11']
    #allocation5 [shape = 'u8[262144]{0}', space=vmem, size = 0x40000, scoped, tag = 'input window, operand 1, single buffered']
    #allocation6 [shape = 's32[1]{0}', space=sflag, size = 0x4, scoped, tag = 'scoped memory for netD_forward.11']
    #allocation7 [shape = 'u8[16384]{0}', space=vmem, size = 0x4000, scoped, tag = 'output window, operand 0, single buffered']
    %7 = vsyncpa [#allocation3], 0
    %8 = vsyncpa [#allocation6], 0
    %9 = vsyncpa [#allocation4], 0
    // Predicated region
    $region2: #{netD_forward.11} parent=1 // pred_check
      _
    $region3: #{netD_forward.11} parent=1 // pred_check_branch
      %11 = sbr.rel (0) target = $region5
    $region4: #{netD_forward.11} parent=1 // pred_region
      %s13 = ssub.s32 4096, 4096
      %14 = vsyncadd [#allocation3], %s13
      %s15 = sshll.u32 [#allocation2], 4
      %s16 = int_to_ptr.vmem [resolvable:$true] %s15
      %21 = dma.hbm_to_vmem [thread:$0]  %s0, 4096, %s16, [#allocation3], 512, 512, 32
    $region5: #{netD_forward.11} parent=1 // pred_fallthru
      _
    // Predicated region
    $region6: #{netD_forward.11} parent=1 // pred_check
      _
    $region7: #{netD_forward.11} parent=1 // pred_check_branch
      %23 = sbr.rel (0) target = $region9
    $region8: #{netD_forward.11} parent=1 // pred_region
      %s25 = ssub.s32 8192, 8192
      %26 = vsyncadd [#allocation6], %s25
      %s27 = sshll.u32 [#allocation5], 4
      %s28 = int_to_ptr.vmem [resolvable:$true] %s27
      %33 = dma.hbm_to_vmem [thread:$0]  %s1, 8192, %s28, [#allocation6], 64, 64, 4
    $region9: #{netD_forward.11} parent=1 // pred_fallthru
      _
    // Predicated region
    $region10: #{netD_forward.11} parent=1 // pred_check
      _
    $region11: #{netD_forward.11} parent=1 // pred_check_branch
      %35 = sbr.rel (0) target = $region13
    $region12: #{netD_forward.11} parent=1 // pred_region
      %36 = dma.done [#allocation3], 4096
    $region13: #{netD_forward.11} parent=1 // pred_fallthru
      _
    // Predicated region
    $region14: #{netD_forward.11} parent=1 // pred_check
      _
    $region15: #{netD_forward.11} parent=1 // pred_check_branch
      %38 = sbr.rel (0) target = $region17
    $region16: #{netD_forward.11} parent=1 // pred_region
      %39 = dma.done [#allocation6], 8192
    $region17: #{netD_forward.11} parent=1 // pred_fallthru
      _
    %v41 = vld [vmem:[#allocation2] sm:$0xff]
    %v42 = vld [vmem:[#allocation2 + $0x8] sm:$0xff]
    %v43 = vld [vmem:[#allocation2 + $0x10] sm:$0xff]
    %v44 = vld [vmem:[#allocation2 + $0x18] sm:$0xff]
    %v45 = vld [vmem:[#allocation2 + $0x20] sm:$0xff]
    %v46 = vld [vmem:[#allocation2 + $0x28] sm:$0xff]
    %v47 = vld [vmem:[#allocation2 + $0x30] sm:$0xff]
    %v48 = vld [vmem:[#allocation2 + $0x38] sm:$0xff]
    %v49 = vld [vmem:[#allocation2 + $0x40] sm:$0xff]
    %v50 = vld [vmem:[#allocation2 + $0x48] sm:$0xff]
    %v51 = vld [vmem:[#allocation2 + $0x50] sm:$0xff]
    %v52 = vld [vmem:[#allocation2 + $0x58] sm:$0xff]
    %v53 = vld [vmem:[#allocation2 + $0x60] sm:$0xff]
    %v54 = vld [vmem:[#allocation2 + $0x68] sm:$0xff]
    %v55 = vld [vmem:[#allocation2 + $0x70] sm:$0xff]
    %v56 = vld [vmem:[#allocation2 + $0x78] sm:$0xff]
    %v57 = vld [vmem:[#allocation2 + $0x80] sm:$0xff]
    %v58 = vld [vmem:[#allocation2 + $0x88] sm:$0xff]
    %v59 = vld [vmem:[#allocation2 + $0x90] sm:$0xff]
    %v60 = vld [vmem:[#allocation2 + $0x98] sm:$0xff]
    %v61 = vld [vmem:[#allocation2 + $0xa0] sm:$0xff]
    %v62 = vld [vmem:[#allocation2 + $0xa8] sm:$0xff]
    %v63 = vld [vmem:[#allocation2 + $0xb0] sm:$0xff]
    %v64 = vld [vmem:[#allocation2 + $0xb8] sm:$0xff]
    %v65 = vld [vmem:[#allocation2 + $0xc0] sm:$0xff]
    %v66 = vld [vmem:[#allocation2 + $0xc8] sm:$0xff]
    %v67 = vld [vmem:[#allocation2 + $0xd0] sm:$0xff]
    %v68 = vld [vmem:[#allocation2 + $0xd8] sm:$0xff]
    %v69 = vld [vmem:[#allocation2 + $0xe0] sm:$0xff]
    %v70 = vld [vmem:[#allocation2 + $0xe8] sm:$0xff]
    %v71 = vld [vmem:[#allocation2 + $0xf0] sm:$0xff]
    %v72 = vld [vmem:[#allocation2 + $0xf8] sm:$0xff]
    %v73 = vld [vmem:[#allocation5] sm:$0xf]
    %v74 = vld [vmem:[#allocation5 + $0x4] sm:$0xf]
    %v75 = vld [vmem:[#allocation5 + $0x8] sm:$0xf]
    %v76 = vld [vmem:[#allocation5 + $0xc] sm:$0xf]
    %v77 = vld [vmem:[#allocation5 + $0x10] sm:$0xf]
    %v78 = vld [vmem:[#allocation5 + $0x14] sm:$0xf]
    %v79 = vld [vmem:[#allocation5 + $0x18] sm:$0xf]
    %v80 = vld [vmem:[#allocation5 + $0x1c] sm:$0xf]
    %v81 = vld [vmem:[#allocation5 + $0x20] sm:$0xf]
    %v82 = vld [vmem:[#allocation5 + $0x24] sm:$0xf]
    %v83 = vld [vmem:[#allocation5 + $0x28] sm:$0xf]
    %v84 = vld [vmem:[#allocation5 + $0x2c] sm:$0xf]
    %v85 = vld [vmem:[#allocation5 + $0x30] sm:$0xf]
    %v86 = vld [vmem:[#allocation5 + $0x34] sm:$0xf]
    %v87 = vld [vmem:[#allocation5 + $0x38] sm:$0xf]
    %v88 = vld [vmem:[#allocation5 + $0x3c] sm:$0xf]
    %v89 = vld [vmem:[#allocation5 + $0x40] sm:$0xf]
    %v90 = vld [vmem:[#allocation5 + $0x44] sm:$0xf]
    %v91 = vld [vmem:[#allocation5 + $0x48] sm:$0xf]
    %v92 = vld [vmem:[#allocation5 + $0x4c] sm:$0xf]
    %v93 = vld [vmem:[#allocation5 + $0x50] sm:$0xf]
    %v94 = vld [vmem:[#allocation5 + $0x54] sm:$0xf]
    %v95 = vld [vmem:[#allocation5 + $0x58] sm:$0xf]
    %v96 = vld [vmem:[#allocation5 + $0x5c] sm:$0xf]
    %v97 = vld [vmem:[#allocation5 + $0x60] sm:$0xf]
    %v98 = vld [vmem:[#allocation5 + $0x64] sm:$0xf]
    %v99 = vld [vmem:[#allocation5 + $0x68] sm:$0xf]
    %v100 = vld [vmem:[#allocation5 + $0x6c] sm:$0xf]
    %v101 = vld [vmem:[#allocation5 + $0x70] sm:$0xf]
    %v102 = vld [vmem:[#allocation5 + $0x74] sm:$0xf]
    %v103 = vld [vmem:[#allocation5 + $0x78] sm:$0xf]
    %v104 = vld [vmem:[#allocation5 + $0x7c] sm:$0xf]
    %v105 = vld [vmem:[#allocation5 + $0x80] sm:$0xf]
    %v106 = vld [vmem:[#allocation5 + $0x84] sm:$0xf]
    %v107 = vld [vmem:[#allocation5 + $0x88] sm:$0xf]
    %v108 = vld [vmem:[#allocation5 + $0x8c] sm:$0xf]
    %v109 = vld [vmem:[#allocation5 + $0x90] sm:$0xf]
    %v110 = vld [vmem:[#allocation5 + $0x94] sm:$0xf]
    %v111 = vld [vmem:[#allocation5 + $0x98] sm:$0xf]
    %v112 = vld [vmem:[#allocation5 + $0x9c] sm:$0xf]
    %v113 = vld [vmem:[#allocation5 + $0xa0] sm:$0xf]
    %v114 = vld [vmem:[#allocation5 + $0xa4] sm:$0xf]
    %v115 = vld [vmem:[#allocation5 + $0xa8] sm:$0xf]
    %v116 = vld [vmem:[#allocation5 + $0xac] sm:$0xf]
    %v117 = vld [vmem:[#allocation5 + $0xb0] sm:$0xf]
    %v118 = vld [vmem:[#allocation5 + $0xb4] sm:$0xf]
    %v119 = vld [vmem:[#allocation5 + $0xb8] sm:$0xf]
    %v120 = vld [vmem:[#allocation5 + $0xbc] sm:$0xf]
    %v121 = vld [vmem:[#allocation5 + $0xc0] sm:$0xf]
    %v122 = vld [vmem:[#allocation5 + $0xc4] sm:$0xf]
    %v123 = vld [vmem:[#allocation5 + $0xc8] sm:$0xf]
    %v124 = vld [vmem:[#allocation5 + $0xcc] sm:$0xf]
    %v125 = vld [vmem:[#allocation5 + $0xd0] sm:$0xf]
    %v126 = vld [vmem:[#allocation5 + $0xd4] sm:$0xf]
    %v127 = vld [vmem:[#allocation5 + $0xd8] sm:$0xf]
    %v128 = vld [vmem:[#allocation5 + $0xdc] sm:$0xf]
    %v129 = vld [vmem:[#allocation5 + $0xe0] sm:$0xf]
    %v130 = vld [vmem:[#allocation5 + $0xe4] sm:$0xf]
    %v131 = vld [vmem:[#allocation5 + $0xe8] sm:$0xf]
    %v132 = vld [vmem:[#allocation5 + $0xec] sm:$0xf]
    %v133 = vld [vmem:[#allocation5 + $0xf0] sm:$0xf]
    %v134 = vld [vmem:[#allocation5 + $0xf4] sm:$0xf]
    %v135 = vld [vmem:[#allocation5 + $0xf8] sm:$0xf]
    %v136 = vld [vmem:[#allocation5 + $0xfc] sm:$0xf]
    %v137 = vld [vmem:[#allocation5 + $0x100] sm:$0xf]
    %v138 = vld [vmem:[#allocation5 + $0x104] sm:$0xf]
    %v139 = vld [vmem:[#allocation5 + $0x108] sm:$0xf]
    %v140 = vld [vmem:[#allocation5 + $0x10c] sm:$0xf]
    %v141 = vld [vmem:[#allocation5 + $0x110] sm:$0xf]
    %v142 = vld [vmem:[#allocation5 + $0x114] sm:$0xf]
    %v143 = vld [vmem:[#allocation5 + $0x118] sm:$0xf]
    %v144 = vld [vmem:[#allocation5 + $0x11c] sm:$0xf]
    %v145 = vld [vmem:[#allocation5 + $0x120] sm:$0xf]
    %v146 = vld [vmem:[#allocation5 + $0x124] sm:$0xf]
    %v147 = vld [vmem:[#allocation5 + $0x128] sm:$0xf]
    %v148 = vld [vmem:[#allocation5 + $0x12c] sm:$0xf]
    %v149 = vld [vmem:[#allocation5 + $0x130] sm:$0xf]
    %v150 = vld [vmem:[#allocation5 + $0x134] sm:$0xf]
    %v151 = vld [vmem:[#allocation5 + $0x138] sm:$0xf]
    %v152 = vld [vmem:[#allocation5 + $0x13c] sm:$0xf]
    %v153 = vld [vmem:[#allocation5 + $0x140] sm:$0xf]
    %v154 = vld [vmem:[#allocation5 + $0x144] sm:$0xf]
    %v155 = vld [vmem:[#allocation5 + $0x148] sm:$0xf]
    %v156 = vld [vmem:[#allocation5 + $0x14c] sm:$0xf]
    %v157 = vld [vmem:[#allocation5 + $0x150] sm:$0xf]
    %v158 = vld [vmem:[#allocation5 + $0x154] sm:$0xf]
    %v159 = vld [vmem:[#allocation5 + $0x158] sm:$0xf]
    %v160 = vld [vmem:[#allocation5 + $0x15c] sm:$0xf]
    %v161 = vld [vmem:[#allocation5 + $0x160] sm:$0xf]
    %v162 = vld [vmem:[#allocation5 + $0x164] sm:$0xf]
    %v163 = vld [vmem:[#allocation5 + $0x168] sm:$0xf]
    %v164 = vld [vmem:[#allocation5 + $0x16c] sm:$0xf]
    %v165 = vld [vmem:[#allocation5 + $0x170] sm:$0xf]
    %v166 = vld [vmem:[#allocation5 + $0x174] sm:$0xf]
    %v167 = vld [vmem:[#allocation5 + $0x178] sm:$0xf]
    %v168 = vld [vmem:[#allocation5 + $0x17c] sm:$0xf]
    %v169 = vld [vmem:[#allocation5 + $0x180] sm:$0xf]
    %v170 = vld [vmem:[#allocation5 + $0x184] sm:$0xf]
    %v171 = vld [vmem:[#allocation5 + $0x188] sm:$0xf]
    %v172 = vld [vmem:[#allocation5 + $0x18c] sm:$0xf]
    %v173 = vld [vmem:[#allocation5 + $0x190] sm:$0xf]
    %v174 = vld [vmem:[#allocation5 + $0x194] sm:$0xf]
    %v175 = vld [vmem:[#allocation5 + $0x198] sm:$0xf]
    %v176 = vld [vmem:[#allocation5 + $0x19c] sm:$0xf]
    %v177 = vld [vmem:[#allocation5 + $0x1a0] sm:$0xf]
    %v178 = vld [vmem:[#allocation5 + $0x1a4] sm:$0xf]
    %v179 = vld [vmem:[#allocation5 + $0x1a8] sm:$0xf]
    %v180 = vld [vmem:[#allocation5 + $0x1ac] sm:$0xf]
    %v181 = vld [vmem:[#allocation5 + $0x1b0] sm:$0xf]
    %v182 = vld [vmem:[#allocation5 + $0x1b4] sm:$0xf]
    %v183 = vld [vmem:[#allocation5 + $0x1b8] sm:$0xf]
    %v184 = vld [vmem:[#allocation5 + $0x1bc] sm:$0xf]
    %v185 = vld [vmem:[#allocation5 + $0x1c0] sm:$0xf]
    %v186 = vld [vmem:[#allocation5 + $0x1c4] sm:$0xf]
    %v187 = vld [vmem:[#allocation5 + $0x1c8] sm:$0xf]
    %v188 = vld [vmem:[#allocation5 + $0x1cc] sm:$0xf]
    %v189 = vld [vmem:[#allocation5 + $0x1d0] sm:$0xf]
    %v190 = vld [vmem:[#allocation5 + $0x1d4] sm:$0xf]
    %v191 = vld [vmem:[#allocation5 + $0x1d8] sm:$0xf]
    %v192 = vld [vmem:[#allocation5 + $0x1dc] sm:$0xf]
    %v193 = vld [vmem:[#allocation5 + $0x1e0] sm:$0xf]
    %v194 = vld [vmem:[#allocation5 + $0x1e4] sm:$0xf]
    %v195 = vld [vmem:[#allocation5 + $0x1e8] sm:$0xf]
    %v196 = vld [vmem:[#allocation5 + $0x1ec] sm:$0xf]
    %v197 = vld [vmem:[#allocation5 + $0x1f0] sm:$0xf]
    %v198 = vld [vmem:[#allocation5 + $0x1f4] sm:$0xf]
    %v199 = vld [vmem:[#allocation5 + $0x1f8] sm:$0xf]
    %v200 = vld [vmem:[#allocation5 + $0x1fc] sm:$0xf]
    %v233 = vunpack.c.l.b16 %v41
    %v234 = vunpack.c.h.b16 %v41
    %v235 = vunpack.c.l.b16 %v42
    %v236 = vunpack.c.h.b16 %v42
    %v237 = vunpack.c.l.b16 %v43
    %v238 = vunpack.c.h.b16 %v43
    %v239 = vunpack.c.l.b16 %v44
    %v240 = vunpack.c.h.b16 %v44
    %v241 = vunpack.c.l.b16 %v45
    %v242 = vunpack.c.h.b16 %v45
    %v243 = vunpack.c.l.b16 %v46
    %v244 = vunpack.c.h.b16 %v46
    %v245 = vunpack.c.l.b16 %v47
    %v246 = vunpack.c.h.b16 %v47
    %v247 = vunpack.c.l.b16 %v48
    %v248 = vunpack.c.h.b16 %v48
    %v249 = vunpack.c.l.b16 %v49
    %v250 = vunpack.c.h.b16 %v49
    %v251 = vunpack.c.l.b16 %v50
    %v252 = vunpack.c.h.b16 %v50
    %v253 = vunpack.c.l.b16 %v51
    %v254 = vunpack.c.h.b16 %v51
    %v255 = vunpack.c.l.b16 %v52
    %v256 = vunpack.c.h.b16 %v52
    %v257 = vunpack.c.l.b16 %v53
    %v258 = vunpack.c.h.b16 %v53
    %v259 = vunpack.c.l.b16 %v54
    %v260 = vunpack.c.h.b16 %v54
    %v261 = vunpack.c.l.b16 %v55
    %v262 = vunpack.c.h.b16 %v55
    %v263 = vunpack.c.l.b16 %v56
    %v264 = vunpack.c.h.b16 %v56
    %v265 = vunpack.c.l.b16 %v57
    %v266 = vunpack.c.h.b16 %v57
    %v267 = vunpack.c.l.b16 %v58
    %v268 = vunpack.c.h.b16 %v58
    %v269 = vunpack.c.l.b16 %v59
    %v270 = vunpack.c.h.b16 %v59
    %v271 = vunpack.c.l.b16 %v60
    %v272 = vunpack.c.h.b16 %v60
    %v273 = vunpack.c.l.b16 %v61
    %v274 = vunpack.c.h.b16 %v61
    %v275 = vunpack.c.l.b16 %v62
    %v276 = vunpack.c.h.b16 %v62
    %v277 = vunpack.c.l.b16 %v63
    %v278 = vunpack.c.h.b16 %v63
    %v279 = vunpack.c.l.b16 %v64
    %v280 = vunpack.c.h.b16 %v64
    %v281 = vunpack.c.l.b16 %v65
    %v282 = vunpack.c.h.b16 %v65
    %v283 = vunpack.c.l.b16 %v66
    %v284 = vunpack.c.h.b16 %v66
    %v285 = vunpack.c.l.b16 %v67
    %v286 = vunpack.c.h.b16 %v67
    %v287 = vunpack.c.l.b16 %v68
    %v288 = vunpack.c.h.b16 %v68
    %v289 = vunpack.c.l.b16 %v69
    %v290 = vunpack.c.h.b16 %v69
    %v291 = vunpack.c.l.b16 %v70
    %v292 = vunpack.c.h.b16 %v70
    %v293 = vunpack.c.l.b16 %v71
    %v294 = vunpack.c.h.b16 %v71
    %v295 = vunpack.c.l.b16 %v72
    %v296 = vunpack.c.h.b16 %v72
    %v297 = vpack.c.b16 %v241, %v233
    %v298 = vpack.c.b16 %v242, %v234
    %v299 = vpack.c.b16 %v243, %v235
    %v300 = vpack.c.b16 %v244, %v236
    %v301 = vpack.c.b16 %v245, %v237
    %v302 = vpack.c.b16 %v246, %v238
    %v303 = vpack.c.b16 %v247, %v239
    %v304 = vpack.c.b16 %v248, %v240
    %v305 = vpack.c.b16 %v257, %v249
    %v306 = vpack.c.b16 %v258, %v250
    %v307 = vpack.c.b16 %v259, %v251
    %v308 = vpack.c.b16 %v260, %v252
    %v309 = vpack.c.b16 %v261, %v253
    %v310 = vpack.c.b16 %v262, %v254
    %v311 = vpack.c.b16 %v263, %v255
    %v312 = vpack.c.b16 %v264, %v256
    %v313 = vpack.c.b16 %v273, %v265
    %v314 = vpack.c.b16 %v274, %v266
    %v315 = vpack.c.b16 %v275, %v267
    %v316 = vpack.c.b16 %v276, %v268
    %v317 = vpack.c.b16 %v277, %v269
    %v318 = vpack.c.b16 %v278, %v270
    %v319 = vpack.c.b16 %v279, %v271
    %v320 = vpack.c.b16 %v280, %v272
    %v321 = vpack.c.b16 %v289, %v281
    %v322 = vpack.c.b16 %v290, %v282
    %v323 = vpack.c.b16 %v291, %v283
    %v324 = vpack.c.b16 %v292, %v284
    %v325 = vpack.c.b16 %v293, %v285
    %v326 = vpack.c.b16 %v294, %v286
    %v327 = vpack.c.b16 %v295, %v287
    %v328 = vpack.c.b16 %v296, %v288
    %v489 = vunpack.c.l.b16 %v73
    %v490 = vunpack.c.l.b16 %v74
    %v491 = vunpack.c.l.b16 %v75
    %v492 = vunpack.c.l.b16 %v76
    %v493 = vunpack.c.l.b16 %v77
    %v494 = vunpack.c.l.b16 %v78
    %v495 = vunpack.c.l.b16 %v79
    %v496 = vunpack.c.l.b16 %v80
    %v497 = vunpack.c.l.b16 %v81
    %v498 = vunpack.c.l.b16 %v82
    %v499 = vunpack.c.l.b16 %v83
    %v500 = vunpack.c.l.b16 %v84
    %v501 = vunpack.c.l.b16 %v85
    %v502 = vunpack.c.l.b16 %v86
    %v503 = vunpack.c.l.b16 %v87
    %v504 = vunpack.c.l.b16 %v88
    %v505 = vunpack.c.l.b16 %v89
    %v506 = vunpack.c.l.b16 %v90
    %v507 = vunpack.c.l.b16 %v91
    %v508 = vunpack.c.l.b16 %v92
    %v509 = vunpack.c.l.b16 %v93
    %v510 = vunpack.c.l.b16 %v94
    %v511 = vunpack.c.l.b16 %v95
    %v512 = vunpack.c.l.b16 %v96
    %v513 = vunpack.c.l.b16 %v97
    %v514 = vunpack.c.l.b16 %v98
    %v515 = vunpack.c.l.b16 %v99
    %v516 = vunpack.c.l.b16 %v100
    %v517 = vunpack.c.l.b16 %v101
    %v518 = vunpack.c.l.b16 %v102
    %v519 = vunpack.c.l.b16 %v103
    %v520 = vunpack.c.l.b16 %v104
    %v521 = vunpack.c.l.b16 %v105
    %v522 = vunpack.c.l.b16 %v106
    %v523 = vunpack.c.l.b16 %v107
    %v524 = vunpack.c.l.b16 %v108
    %v525 = vunpack.c.l.b16 %v109
    %v526 = vunpack.c.l.b16 %v110
    %v527 = vunpack.c.l.b16 %v111
    %v528 = vunpack.c.l.b16 %v112
    %v529 = vunpack.c.l.b16 %v113
    %v530 = vunpack.c.l.b16 %v114
    %v531 = vunpack.c.l.b16 %v115
    %v532 = vunpack.c.l.b16 %v116
    %v533 = vunpack.c.l.b16 %v117
    %v534 = vunpack.c.l.b16 %v118
    %v535 = vunpack.c.l.b16 %v119
    %v536 = vunpack.c.l.b16 %v120
    %v537 = vunpack.c.l.b16 %v121
    %v538 = vunpack.c.l.b16 %v122
    %v539 = vunpack.c.l.b16 %v123
    %v540 = vunpack.c.l.b16 %v124
    %v541 = vunpack.c.l.b16 %v125
    %v542 = vunpack.c.l.b16 %v126
    %v543 = vunpack.c.l.b16 %v127
    %v544 = vunpack.c.l.b16 %v128
    %v545 = vunpack.c.l.b16 %v129
    %v546 = vunpack.c.l.b16 %v130
    %v547 = vunpack.c.l.b16 %v131
    %v548 = vunpack.c.l.b16 %v132
    %v549 = vunpack.c.l.b16 %v133
    %v550 = vunpack.c.l.b16 %v134
    %v551 = vunpack.c.l.b16 %v135
    %v552 = vunpack.c.l.b16 %v136
    %v553 = vunpack.c.l.b16 %v137
    %v554 = vunpack.c.l.b16 %v138
    %v555 = vunpack.c.l.b16 %v139
    %v556 = vunpack.c.l.b16 %v140
    %v557 = vunpack.c.l.b16 %v141
    %v558 = vunpack.c.l.b16 %v142
    %v559 = vunpack.c.l.b16 %v143
    %v560 = vunpack.c.l.b16 %v144
    %v561 = vunpack.c.l.b16 %v145
    %v562 = vunpack.c.l.b16 %v146
    %v563 = vunpack.c.l.b16 %v147
    %v564 = vunpack.c.l.b16 %v148
    %v565 = vunpack.c.l.b16 %v149
    %v566 = vunpack.c.l.b16 %v150
    %v567 = vunpack.c.l.b16 %v151
    %v568 = vunpack.c.l.b16 %v152
    %v569 = vunpack.c.l.b16 %v153
    %v570 = vunpack.c.l.b16 %v154
    %v571 = vunpack.c.l.b16 %v155
    %v572 = vunpack.c.l.b16 %v156
    %v573 = vunpack.c.l.b16 %v157
    %v574 = vunpack.c.l.b16 %v158
    %v575 = vunpack.c.l.b16 %v159
    %v576 = vunpack.c.l.b16 %v160
    %v577 = vunpack.c.l.b16 %v161
    %v578 = vunpack.c.l.b16 %v162
    %v579 = vunpack.c.l.b16 %v163
    %v580 = vunpack.c.l.b16 %v164
    %v581 = vunpack.c.l.b16 %v165
    %v582 = vunpack.c.l.b16 %v166
    %v583 = vunpack.c.l.b16 %v167
    %v584 = vunpack.c.l.b16 %v168
    %v585 = vunpack.c.l.b16 %v169
    %v586 = vunpack.c.l.b16 %v170
    %v587 = vunpack.c.l.b16 %v171
    %v588 = vunpack.c.l.b16 %v172
    %v589 = vunpack.c.l.b16 %v173
    %v590 = vunpack.c.l.b16 %v174
    %v591 = vunpack.c.l.b16 %v175
    %v592 = vunpack.c.l.b16 %v176
    %v593 = vunpack.c.l.b16 %v177
    %v594 = vunpack.c.l.b16 %v178
    %v595 = vunpack.c.l.b16 %v179
    %v596 = vunpack.c.l.b16 %v180
    %v597 = vunpack.c.l.b16 %v181
    %v598 = vunpack.c.l.b16 %v182
    %v599 = vunpack.c.l.b16 %v183
    %v600 = vunpack.c.l.b16 %v184
    %v601 = vunpack.c.l.b16 %v185
    %v602 = vunpack.c.l.b16 %v186
    %v603 = vunpack.c.l.b16 %v187
    %v604 = vunpack.c.l.b16 %v188
    %v605 = vunpack.c.l.b16 %v189
    %v606 = vunpack.c.l.b16 %v190
    %v607 = vunpack.c.l.b16 %v191
    %v608 = vunpack.c.l.b16 %v192
    %v609 = vunpack.c.l.b16 %v193
    %v610 = vunpack.c.l.b16 %v194
    %v611 = vunpack.c.l.b16 %v195
    %v612 = vunpack.c.l.b16 %v196
    %v613 = vunpack.c.l.b16 %v197
    %v614 = vunpack.c.l.b16 %v198
    %v615 = vunpack.c.l.b16 %v199
    %v616 = vunpack.c.l.b16 %v200
    %v617 = vpack.c.b16 %v490, %v489
    %v618 = vpack.c.b16 %v492, %v491
    %v619 = vpack.c.b16 %v494, %v493
    %v620 = vpack.c.b16 %v496, %v495
    %v621 = vpack.c.b16 %v498, %v497
    %v622 = vpack.c.b16 %v500, %v499
    %v623 = vpack.c.b16 %v502, %v501
    %v624 = vpack.c.b16 %v504, %v503
    %v625 = vpack.c.b16 %v506, %v505
    %v626 = vpack.c.b16 %v508, %v507
    %v627 = vpack.c.b16 %v510, %v509
    %v628 = vpack.c.b16 %v512, %v511
    %v629 = vpack.c.b16 %v514, %v513
    %v630 = vpack.c.b16 %v516, %v515
    %v631 = vpack.c.b16 %v518, %v517
    %v632 = vpack.c.b16 %v520, %v519
    %v633 = vpack.c.b16 %v522, %v521
    %v634 = vpack.c.b16 %v524, %v523
    %v635 = vpack.c.b16 %v526, %v525
    %v636 = vpack.c.b16 %v528, %v527
    %v637 = vpack.c.b16 %v530, %v529
    %v638 = vpack.c.b16 %v532, %v531
    %v639 = vpack.c.b16 %v534, %v533
    %v640 = vpack.c.b16 %v536, %v535
    %v641 = vpack.c.b16 %v538, %v537
    %v642 = vpack.c.b16 %v540, %v539
    %v643 = vpack.c.b16 %v542, %v541
    %v644 = vpack.c.b16 %v544, %v543
    %v645 = vpack.c.b16 %v546, %v545
    %v646 = vpack.c.b16 %v548, %v547
    %v647 = vpack.c.b16 %v550, %v549
    %v648 = vpack.c.b16 %v552, %v551
    %v649 = vpack.c.b16 %v554, %v553
    %v650 = vpack.c.b16 %v556, %v555
    %v651 = vpack.c.b16 %v558, %v557
    %v652 = vpack.c.b16 %v560, %v559
    %v653 = vpack.c.b16 %v562, %v561
    %v654 = vpack.c.b16 %v564, %v563
    %v655 = vpack.c.b16 %v566, %v565
    %v656 = vpack.c.b16 %v568, %v567
    %v657 = vpack.c.b16 %v570, %v569
    %v658 = vpack.c.b16 %v572, %v571
    %v659 = vpack.c.b16 %v574, %v573
    %v660 = vpack.c.b16 %v576, %v575
    %v661 = vpack.c.b16 %v578, %v577
    %v662 = vpack.c.b16 %v580, %v579
    %v663 = vpack.c.b16 %v582, %v581
    %v664 = vpack.c.b16 %v584, %v583
    %v665 = vpack.c.b16 %v586, %v585
    %v666 = vpack.c.b16 %v588, %v587
    %v667 = vpack.c.b16 %v590, %v589
    %v668 = vpack.c.b16 %v592, %v591
    %v669 = vpack.c.b16 %v594, %v593
    %v670 = vpack.c.b16 %v596, %v595
    %v671 = vpack.c.b16 %v598, %v597
    %v672 = vpack.c.b16 %v600, %v599
    %v673 = vpack.c.b16 %v602, %v601
    %v674 = vpack.c.b16 %v604, %v603
    %v675 = vpack.c.b16 %v606, %v605
    %v676 = vpack.c.b16 %v608, %v607
    %v677 = vpack.c.b16 %v610, %v609
    %v678 = vpack.c.b16 %v612, %v611
    %v679 = vpack.c.b16 %v614, %v613
    %v680 = vpack.c.b16 %v616, %v615
    %745 = vmatprep.subr.bf16.mxu0 0
    %746 = vmatpush1.bf16.msra.mxu0 %v617
    %747 = vmatprep.subr.bf16.mxu0 0
    %748 = vmatpush1.bf16.msra.mxu0 %v618
    %749 = vmatprep.subr.bf16.mxu0 0
    %750 = vmatpush1.bf16.msra.mxu0 %v619
    %751 = vmatprep.subr.bf16.mxu0 0
    %752 = vmatpush1.bf16.msra.mxu0 %v620
    %753 = vmatprep.subr.bf16.mxu0 0
    %754 = vmatpush1.bf16.msra.mxu0 %v621
    %755 = vmatprep.subr.bf16.mxu0 0
    %756 = vmatpush1.bf16.msra.mxu0 %v622
    %757 = vmatprep.subr.bf16.mxu0 0
    %758 = vmatpush1.bf16.msra.mxu0 %v623
    %759 = vmatprep.subr.bf16.mxu0 0
    %760 = vmatpush1.bf16.msra.mxu0 %v624
    %761 = vmatprep.subr.bf16.mxu0 0
    %762 = vmatpush1.bf16.msra.mxu0 %v625
    %763 = vmatprep.subr.bf16.mxu0 0
    %764 = vmatpush1.bf16.msra.mxu0 %v626
    %765 = vmatprep.subr.bf16.mxu0 0
    %766 = vmatpush1.bf16.msra.mxu0 %v627
    %767 = vmatprep.subr.bf16.mxu0 0
    %768 = vmatpush1.bf16.msra.mxu0 %v628
    %769 = vmatprep.subr.bf16.mxu0 0
    %770 = vmatpush1.bf16.msra.mxu0 %v629
    %771 = vmatprep.subr.bf16.mxu0 0
    %772 = vmatpush1.bf16.msra.mxu0 %v630
    %773 = vmatprep.subr.bf16.mxu0 0
    %774 = vmatpush1.bf16.msra.mxu0 %v631
    %775 = vmatprep.subr.bf16.mxu0 0
    %776 = vmatpush1.bf16.msra.mxu0 %v632
    %777 = vmatprep.mubr.bf16.mxu0 %v298
    %778 = vmatmul.mubr.bf16.gmra.mrb[0].mxu0 %v297
    %v779 = vpop.f32.mrb[0].mxu0
    %v780 = vadd.f32 0.0, %v779
    %v781 = vpop.f32.mrb[0].mxu0
    %v782 = vpop.f32.mrb[0].mxu0
    %v783 = vadd.f32 0.0, %v782
    %v784 = vpop.f32.mrb[0].mxu0
    %785 = vmatprep.mubr.bf16.mxu0 %v306
    %786 = vmatmul.mubr.bf16.gmra.mrb[0].mxu0 %v305
    %v787 = vpop.f32.mrb[0].mxu0
    %v788 = vadd.f32 0.0, %v787
    %v789 = vpop.f32.mrb[0].mxu0
    %v790 = vpop.f32.mrb[0].mxu0
    %v791 = vadd.f32 0.0, %v790
    %v792 = vpop.f32.mrb[0].mxu0
    %793 = vmatprep.mubr.bf16.mxu0 %v314
    %794 = vmatmul.mubr.bf16.gmra.mrb[0].mxu0 %v313
    %v795 = vpop.f32.mrb[0].mxu0
    %v796 = vadd.f32 0.0, %v795
    %v797 = vpop.f32.mrb[0].mxu0
    %v798 = vpop.f32.mrb[0].mxu0
    %v799 = vadd.f32 0.0, %v798
    %v800 = vpop.f32.mrb[0].mxu0
    %801 = vmatprep.mubr.bf16.mxu0 %v322
    %802 = vmatmul.mubr.bf16.gmra.mrb[0].mxu0 %v321
    %v803 = vpop.f32.mrb[0].mxu0
    %v804 = vadd.f32 0.0, %v803
    %v805 = vpop.f32.mrb[0].mxu0
    %v806 = vpop.f32.mrb[0].mxu0
    %v807 = vadd.f32 0.0, %v806
    %v808 = vpop.f32.mrb[0].mxu0
    %809 = vdwg.mxu0
    %810 = vmatprep.subr.bf16.mxu0 0
    %811 = vmatpush1.bf16.msra.mxu0 %v633
    %812 = vmatprep.subr.bf16.mxu0 0
    %813 = vmatpush1.bf16.msra.mxu0 %v634
    %814 = vmatprep.subr.bf16.mxu0 0
    %815 = vmatpush1.bf16.msra.mxu0 %v635
    %816 = vmatprep.subr.bf16.mxu0 0
    %817 = vmatpush1.bf16.msra.mxu0 %v636
    %818 = vmatprep.subr.bf16.mxu0 0
    %819 = vmatpush1.bf16.msra.mxu0 %v637
    %820 = vmatprep.subr.bf16.mxu0 0
    %821 = vmatpush1.bf16.msra.mxu0 %v638
    %822 = vmatprep.subr.bf16.mxu0 0
    %823 = vmatpush1.bf16.msra.mxu0 %v639
    %824 = vmatprep.subr.bf16.mxu0 0
    %825 = vmatpush1.bf16.msra.mxu0 %v640
    %826 = vmatprep.subr.bf16.mxu0 0
    %827 = vmatpush1.bf16.msra.mxu0 %v641
    %828 = vmatprep.subr.bf16.mxu0 0
    %829 = vmatpush1.bf16.msra.mxu0 %v642
    %830 = vmatprep.subr.bf16.mxu0 0
    %831 = vmatpush1.bf16.msra.mxu0 %v643
    %832 = vmatprep.subr.bf16.mxu0 0
    %833 = vmatpush1.bf16.msra.mxu0 %v644
    %834 = vmatprep.subr.bf16.mxu0 0
    %835 = vmatpush1.bf16.msra.mxu0 %v645
    %836 = vmatprep.subr.bf16.mxu0 0
    %837 = vmatpush1.bf16.msra.mxu0 %v646
    %838 = vmatprep.subr.bf16.mxu0 0
    %839 = vmatpush1.bf16.msra.mxu0 %v647
    %840 = vmatprep.subr.bf16.mxu0 0
    %841 = vmatpush1.bf16.msra.mxu0 %v648
    %842 = vmatprep.mubr.bf16.mxu0 %v300
    %843 = vmatmul.mubr.bf16.gmra.mrb[0].mxu0 %v299
    %v844 = vpop.f32.mrb[0].mxu0
    %v845 = vadd.f32 %v780, %v844
    %v846 = vpop.f32.mrb[0].mxu0
    %v847 = vpop.f32.mrb[0].mxu0
    %v848 = vadd.f32 %v783, %v847
    %v849 = vpop.f32.mrb[0].mxu0
    %850 = vmatprep.mubr.bf16.mxu0 %v308
    %851 = vmatmul.mubr.bf16.gmra.mrb[0].mxu0 %v307
    %v852 = vpop.f32.mrb[0].mxu0
    %v853 = vadd.f32 %v788, %v852
    %v854 = vpop.f32.mrb[0].mxu0
    %v855 = vpop.f32.mrb[0].mxu0
    %v856 = vadd.f32 %v791, %v855
    %v857 = vpop.f32.mrb[0].mxu0
    %858 = vmatprep.mubr.bf16.mxu0 %v316
    %859 = vmatmul.mubr.bf16.gmra.mrb[0].mxu0 %v315
    %v860 = vpop.f32.mrb[0].mxu0
    %v861 = vadd.f32 %v796, %v860
    %v862 = vpop.f32.mrb[0].mxu0
    %v863 = vpop.f32.mrb[0].mxu0
    %v864 = vadd.f32 %v799, %v863
    %v865 = vpop.f32.mrb[0].mxu0
    %866 = vmatprep.mubr.bf16.mxu0 %v324
    %867 = vmatmul.mubr.bf16.gmra.mrb[0].mxu0 %v323
    %v868 = vpop.f32.mrb[0].mxu0
    %v869 = vadd.f32 %v804, %v868
    %v870 = vpop.f32.mrb[0].mxu0
    %v871 = vpop.f32.mrb[0].mxu0
    %v872 = vadd.f32 %v807, %v871
    %v873 = vpop.f32.mrb[0].mxu0
    %874 = vdwg.mxu0
    %875 = vmatprep.subr.bf16.mxu0 0
    %876 = vmatpush1.bf16.msra.mxu0 %v649
    %877 = vmatprep.subr.bf16.mxu0 0
    %878 = vmatpush1.bf16.msra.mxu0 %v650
    %879 = vmatprep.subr.bf16.mxu0 0
    %880 = vmatpush1.bf16.msra.mxu0 %v651
    %881 = vmatprep.subr.bf16.mxu0 0
    %882 = vmatpush1.bf16.msra.mxu0 %v652
    %883 = vmatprep.subr.bf16.mxu0 0
    %884 = vmatpush1.bf16.msra.mxu0 %v653
    %885 = vmatprep.subr.bf16.mxu0 0
    %886 = vmatpush1.bf16.msra.mxu0 %v654
    %887 = vmatprep.subr.bf16.mxu0 0
    %888 = vmatpush1.bf16.msra.mxu0 %v655
    %889 = vmatprep.subr.bf16.mxu0 0
    %890 = vmatpush1.bf16.msra.mxu0 %v656
    %891 = vmatprep.subr.bf16.mxu0 0
    %892 = vmatpush1.bf16.msra.mxu0 %v657
    %893 = vmatprep.subr.bf16.mxu0 0
    %894 = vmatpush1.bf16.msra.mxu0 %v658
    %895 = vmatprep.subr.bf16.mxu0 0
    %896 = vmatpush1.bf16.msra.mxu0 %v659
    %897 = vmatprep.subr.bf16.mxu0 0
    %898 = vmatpush1.bf16.msra.mxu0 %v660
    %899 = vmatprep.subr.bf16.mxu0 0
    %900 = vmatpush1.bf16.msra.mxu0 %v661
    %901 = vmatprep.subr.bf16.mxu0 0
    %902 = vmatpush1.bf16.msra.mxu0 %v662
    %903 = vmatprep.subr.bf16.mxu0 0
    %904 = vmatpush1.bf16.msra.mxu0 %v663
    %905 = vmatprep.subr.bf16.mxu0 0
    %906 = vmatpush1.bf16.msra.mxu0 %v664
    %907 = vmatprep.mubr.bf16.mxu0 %v302
    %908 = vmatmul.mubr.bf16.gmra.mrb[0].mxu0 %v301
    %v909 = vpop.f32.mrb[0].mxu0
    %v910 = vadd.f32 %v845, %v909
    %v911 = vpop.f32.mrb[0].mxu0
    %v912 = vpop.f32.mrb[0].mxu0
    %v913 = vadd.f32 %v848, %v912
    %v914 = vpop.f32.mrb[0].mxu0
    %915 = vmatprep.mubr.bf16.mxu0 %v310
    %916 = vmatmul.mubr.bf16.gmra.mrb[0].mxu0 %v309
    %v917 = vpop.f32.mrb[0].mxu0
    %v918 = vadd.f32 %v853, %v917
    %v919 = vpop.f32.mrb[0].mxu0
    %v920 = vpop.f32.mrb[0].mxu0
    %v921 = vadd.f32 %v856, %v920
    %v922 = vpop.f32.mrb[0].mxu0
    %923 = vmatprep.mubr.bf16.mxu0 %v318
    %924 = vmatmul.mubr.bf16.gmra.mrb[0].mxu0 %v317
    %v925 = vpop.f32.mrb[0].mxu0
    %v926 = vadd.f32 %v861, %v925
    %v927 = vpop.f32.mrb[0].mxu0
    %v928 = vpop.f32.mrb[0].mxu0
    %v929 = vadd.f32 %v864, %v928
    %v930 = vpop.f32.mrb[0].mxu0
    %931 = vmatprep.mubr.bf16.mxu0 %v326
    %932 = vmatmul.mubr.bf16.gmra.mrb[0].mxu0 %v325
    %v933 = vpop.f32.mrb[0].mxu0
    %v934 = vadd.f32 %v869, %v933
    %v935 = vpop.f32.mrb[0].mxu0
    %v936 = vpop.f32.mrb[0].mxu0
    %v937 = vadd.f32 %v872, %v936
    %v938 = vpop.f32.mrb[0].mxu0
    %939 = vdwg.mxu0
    %940 = vmatprep.subr.bf16.mxu0 0
    %941 = vmatpush1.bf16.msra.mxu0 %v665
    %942 = vmatprep.subr.bf16.mxu0 0
    %943 = vmatpush1.bf16.msra.mxu0 %v666
    %944 = vmatprep.subr.bf16.mxu0 0
    %945 = vmatpush1.bf16.msra.mxu0 %v667
    %946 = vmatprep.subr.bf16.mxu0 0
    %947 = vmatpush1.bf16.msra.mxu0 %v668
    %948 = vmatprep.subr.bf16.mxu0 0
    %949 = vmatpush1.bf16.msra.mxu0 %v669
    %950 = vmatprep.subr.bf16.mxu0 0
    %951 = vmatpush1.bf16.msra.mxu0 %v670
    %952 = vmatprep.subr.bf16.mxu0 0
    %953 = vmatpush1.bf16.msra.mxu0 %v671
    %954 = vmatprep.subr.bf16.mxu0 0
    %955 = vmatpush1.bf16.msra.mxu0 %v672
    %956 = vmatprep.subr.bf16.mxu0 0
    %957 = vmatpush1.bf16.msra.mxu0 %v673
    %958 = vmatprep.subr.bf16.mxu0 0
    %959 = vmatpush1.bf16.msra.mxu0 %v674
    %960 = vmatprep.subr.bf16.mxu0 0
    %961 = vmatpush1.bf16.msra.mxu0 %v675
    %962 = vmatprep.subr.bf16.mxu0 0
    %963 = vmatpush1.bf16.msra.mxu0 %v676
    %964 = vmatprep.subr.bf16.mxu0 0
    %965 = vmatpush1.bf16.msra.mxu0 %v677
    %966 = vmatprep.subr.bf16.mxu0 0
    %967 = vmatpush1.bf16.msra.mxu0 %v678
    %968 = vmatprep.subr.bf16.mxu0 0
    %969 = vmatpush1.bf16.msra.mxu0 %v679
    %970 = vmatprep.subr.bf16.mxu0 0
    %971 = vmatpush1.bf16.msra.mxu0 %v680
    %972 = vmatprep.mubr.bf16.mxu0 %v304
    %973 = vmatmul.mubr.bf16.gmra.mrb[0].mxu0 %v303
    %v974 = vpop.f32.mrb[0].mxu0
    %v975 = vadd.f32 %v910, %v974
    %v976 = vpop.f32.mrb[0].mxu0
    %v977 = vpop.f32.mrb[0].mxu0
    %v978 = vadd.f32 %v913, %v977
    %v979 = vpop.f32.mrb[0].mxu0
    %980 = vmatprep.mubr.bf16.mxu0 %v312
    %981 = vmatmul.mubr.bf16.gmra.mrb[0].mxu0 %v311
    %v982 = vpop.f32.mrb[0].mxu0
    %v983 = vadd.f32 %v918, %v982
    %v984 = vpop.f32.mrb[0].mxu0
    %v985 = vpop.f32.mrb[0].mxu0
    %v986 = vadd.f32 %v921, %v985
    %v987 = vpop.f32.mrb[0].mxu0
    %988 = vmatprep.mubr.bf16.mxu0 %v320
    %989 = vmatmul.mubr.bf16.gmra.mrb[0].mxu0 %v319
    %v990 = vpop.f32.mrb[0].mxu0
    %v991 = vadd.f32 %v926, %v990
    %v992 = vpop.f32.mrb[0].mxu0
    %v993 = vpop.f32.mrb[0].mxu0
    %v994 = vadd.f32 %v929, %v993
    %v995 = vpop.f32.mrb[0].mxu0
    %996 = vmatprep.mubr.bf16.mxu0 %v328
    %997 = vmatmul.mubr.bf16.gmra.mrb[0].mxu0 %v327
    %v998 = vpop.f32.mrb[0].mxu0
    %v999 = vadd.f32 %v934, %v998
    %v1000 = vpop.f32.mrb[0].mxu0
    %v1001 = vpop.f32.mrb[0].mxu0
    %v1002 = vadd.f32 %v937, %v1001
    %v1003 = vpop.f32.mrb[0].mxu0
    %1004 = vdwg.mxu0
    %vm1005 = vcmp.ge.f32.partialorder %v975, 0.0
    %vm1006 = vcmp.ge.f32.partialorder %v978, 0.0
    %vm1007 = vcmp.ge.f32.partialorder %v983, 0.0
    %vm1008 = vcmp.ge.f32.partialorder %v986, 0.0
    %vm1009 = vcmp.ge.f32.partialorder %v991, 0.0
    %vm1010 = vcmp.ge.f32.partialorder %v994, 0.0
    %vm1011 = vcmp.ge.f32.partialorder %v999, 0.0
    %vm1012 = vcmp.ge.f32.partialorder %v1002, 0.0
    %v1013 = vmul.f32 %v975, 0.2
    %v1014 = vmul.f32 %v978, 0.2
    %v1015 = vmul.f32 %v983, 0.2
    %v1016 = vmul.f32 %v986, 0.2
    %v1017 = vmul.f32 %v991, 0.2
    %v1018 = vmul.f32 %v994, 0.2
    %v1019 = vmul.f32 %v999, 0.2
    %v1020 = vmul.f32 %v1002, 0.2
    %v1021 = vsel %vm1005, %v975, %v1013
    %v1022 = vsel %vm1006, %v978, %v1014
    %v1023 = vsel %vm1007, %v983, %v1015
    %v1024 = vsel %vm1008, %v986, %v1016
    %v1025 = vsel %vm1009, %v991, %v1017
    %v1026 = vsel %vm1010, %v994, %v1018
    %v1027 = vsel %vm1011, %v999, %v1019
    %v1028 = vsel %vm1012, %v1002, %v1020
    %v1029 = vpack.c.bf16 %v1022, %v1021
    %v1030 = vpack.c.bf16 %v1024, %v1023
    %v1031 = vpack.c.bf16 %v1026, %v1025
    %v1032 = vpack.c.bf16 %v1028, %v1027
    %v1037 = vunpack.c.l.b16 %v1029
    %v1038 = vunpack.c.h.b16 %v1029
    %v1039 = vunpack.c.l.b16 %v1030
    %v1040 = vunpack.c.h.b16 %v1030
    %v1041 = vunpack.c.l.b16 %v1031
    %v1042 = vunpack.c.h.b16 %v1031
    %v1043 = vunpack.c.l.b16 %v1032
    %v1044 = vunpack.c.h.b16 %v1032
    %v1045 = vpack.c.b16 %v1037, %v1037
    %v1046 = vpack.c.b16 %v1038, %v1038
    %v1047 = vpack.c.b16 %v1039, %v1039
    %v1048 = vpack.c.b16 %v1040, %v1040
    %v1049 = vpack.c.b16 %v1041, %v1041
    %v1050 = vpack.c.b16 %v1042, %v1042
    %v1051 = vpack.c.b16 %v1043, %v1043
    %v1052 = vpack.c.b16 %v1044, %v1044
    %1061 = vst [vmem:[#allocation7] sm:$0xf] %v1045
    %1062 = vst [vmem:[#allocation7 + $0x4] sm:$0xf] %v1046
    %1063 = vst [vmem:[#allocation7 + $0x8] sm:$0xf] %v1047
    %1064 = vst [vmem:[#allocation7 + $0xc] sm:$0xf] %v1048
    %1065 = vst [vmem:[#allocation7 + $0x10] sm:$0xf] %v1049
    %1066 = vst [vmem:[#allocation7 + $0x14] sm:$0xf] %v1050
    %1067 = vst [vmem:[#allocation7 + $0x18] sm:$0xf] %v1051
    %1068 = vst [vmem:[#allocation7 + $0x1c] sm:$0xf] %v1052
    // Predicated region
    $region18: #{netD_forward.11} parent=1 // pred_check
      _
    $region19: #{netD_forward.11} parent=1 // pred_check_branch
      %1070 = sbr.rel (0) target = $region21
    $region20: #{netD_forward.11} parent=1 // pred_region
      %s1072 = ssub.s32 512, 512
      %1073 = vsyncadd [#allocation4], %s1072
      %s1074 = sshll.u32 [#allocation7], 4
      %s1075 = int_to_ptr.vmem [resolvable:$true] %s1074
      %1080 = dma.vmem_to_hbm [thread:$0]  %s1075, 512, %s2, [#allocation4], 64, 64, 4
    $region21: #{netD_forward.11} parent=1 // pred_fallthru
      _
    // Predicated region
    $region22: #{netD_forward.11} parent=1 // pred_check
      _
    $region23: #{netD_forward.11} parent=1 // pred_check_branch
      %1082 = sbr.rel (0) target = $region25
    $region24: #{netD_forward.11} parent=1 // pred_region
      %1083 = dma.done [#allocation4], 512
    $region25: #{netD_forward.11} parent=1 // pred_fallthru
      _
    %1084 = vsyncpa [#allocation3], 1
    %1085 = vsyncpa [#allocation6], 1
    %1086 = vsyncpa [#allocation4], 1

// kernel: netD_forward.12
$region0: #{netD_forward.12}
  #allocation0 [shape = 'u32[]', space=smem, size = 0x4, offset = 0x4, fixed_abs, tag = 'smem constant byte address 0x4 - core index']
  #allocation1 [shape = 'u32[144,128]{1,0:T(1,128)}', space=vmem, size = 0x12000, scoped, tag = 'internal scratch']
  %s0 = inlined_call_operand.hbm [shape: bf16[32,1024], index: 0, kind: input, shape index: {}]
  %s1 = inlined_call_operand.hbm [shape: bf16[1024,64], index: 1, kind: input, shape index: {}]
  %s2 = inlined_call_operand.hbm [shape: bf16[32,64], index: 2, kind: output, shape index: {}]
  %s3 = sld [smem:[#allocation0]]
  $region26: #{netD_forward.12} parent=0
    _
  %s5 = ssub.s32 1, %s3
  %s6 = scalar_select 0, %s5, %s3
  $region1: #{netD_forward.12} parent=0
    #allocation2 [shape = 'u8[65536]{0}', space=vmem, size = 0x10000, scoped, tag = 'input window, operand 0, single buffered']
    #allocation3 [shape = 's32[1]{0}', space=sflag, size = 0x4, scoped, tag = 'scoped memory for netD_forward.12']
    #allocation4 [shape = 's32[1]{0}', space=sflag, size = 0x4, scoped, tag = 'scoped memory for netD_forward.12']
    #allocation5 [shape = 'u8[262144]{0}', space=vmem, size = 0x40000, scoped, tag = 'input window, operand 1, single buffered']
    #allocation6 [shape = 's32[1]{0}', space=sflag, size = 0x4, scoped, tag = 'scoped memory for netD_forward.12']
    #allocation7 [shape = 'u8[8192]{0}', space=vmem, size = 0x2000, scoped, tag = 'output window, operand 0, single buffered']
    %7 = vsyncpa [#allocation3], 0
    %8 = vsyncpa [#allocation6], 0
    %9 = vsyncpa [#allocation4], 0
    // Predicated region
    $region2: #{netD_forward.12} parent=1 // pred_check
      _
    $region3: #{netD_forward.12} parent=1 // pred_check_branch
      %11 = sbr.rel (0) target = $region5
    $region4: #{netD_forward.12} parent=1 // pred_region
      %s13 = ssub.s32 2048, 2048
      %14 = vsyncadd [#allocation3], %s13
      %s15 = sshll.u32 [#allocation2], 4
      %s16 = int_to_ptr.vmem [resolvable:$true] %s15
      %21 = dma.hbm_to_vmem [thread:$0]  %s0, 2048, %s16, [#allocation3], 512, 512, 32
    $region5: #{netD_forward.12} parent=1 // pred_fallthru
      _
    // Predicated region
    $region6: #{netD_forward.12} parent=1 // pred_check
      _
    $region7: #{netD_forward.12} parent=1 // pred_check_branch
      %23 = sbr.rel (0) target = $region9
    $region8: #{netD_forward.12} parent=1 // pred_region
      %s25 = ssub.s32 8192, 8192
      %26 = vsyncadd [#allocation6], %s25
      %s27 = sshll.u32 [#allocation5], 4
      %s28 = int_to_ptr.vmem [resolvable:$true] %s27
      %33 = dma.hbm_to_vmem [thread:$0]  %s1, 8192, %s28, [#allocation6], 64, 64, 4
    $region9: #{netD_forward.12} parent=1 // pred_fallthru
      _
    // Predicated region
    $region10: #{netD_forward.12} parent=1 // pred_check
      _
    $region11: #{netD_forward.12} parent=1 // pred_check_branch
      %35 = sbr.rel (0) target = $region13
    $region12: #{netD_forward.12} parent=1 // pred_region
      %36 = dma.done [#allocation3], 2048
    $region13: #{netD_forward.12} parent=1 // pred_fallthru
      _
    // Predicated region
    $region14: #{netD_forward.12} parent=1 // pred_check
      _
    $region15: #{netD_forward.12} parent=1 // pred_check_branch
      %38 = sbr.rel (0) target = $region17
    $region16: #{netD_forward.12} parent=1 // pred_region
      %39 = dma.done [#allocation6], 8192
    $region17: #{netD_forward.12} parent=1 // pred_fallthru
      _
    %v41 = vld [vmem:[#allocation2] sm:$0xff]
    %v42 = vld [vmem:[#allocation2 + $0x8] sm:$0xff]
    %v43 = vld [vmem:[#allocation2 + $0x10] sm:$0xff]
    %v44 = vld [vmem:[#allocation2 + $0x18] sm:$0xff]
    %v45 = vld [vmem:[#allocation2 + $0x20] sm:$0xff]
    %v46 = vld [vmem:[#allocation2 + $0x28] sm:$0xff]
    %v47 = vld [vmem:[#allocation2 + $0x30] sm:$0xff]
    %v48 = vld [vmem:[#allocation2 + $0x38] sm:$0xff]
    %v49 = vld [vmem:[#allocation2 + $0x40] sm:$0xff]
    %v50 = vld [vmem:[#allocation2 + $0x48] sm:$0xff]
    %v51 = vld [vmem:[#allocation2 + $0x50] sm:$0xff]
    %v52 = vld [vmem:[#allocation2 + $0x58] sm:$0xff]
    %v53 = vld [vmem:[#allocation2 + $0x60] sm:$0xff]
    %v54 = vld [vmem:[#allocation2 + $0x68] sm:$0xff]
    %v55 = vld [vmem:[#allocation2 + $0x70] sm:$0xff]
    %v56 = vld [vmem:[#allocation2 + $0x78] sm:$0xff]
    %v57 = vld [vmem:[#allocation5] sm:$0xf]
    %v58 = vld [vmem:[#allocation5 + $0x4] sm:$0xf]
    %v59 = vld [vmem:[#allocation5 + $0x8] sm:$0xf]
    %v60 = vld [vmem:[#allocation5 + $0xc] sm:$0xf]
    %v61 = vld [vmem:[#allocation5 + $0x10] sm:$0xf]
    %v62 = vld [vmem:[#allocation5 + $0x14] sm:$0xf]
    %v63 = vld [vmem:[#allocation5 + $0x18] sm:$0xf]
    %v64 = vld [vmem:[#allocation5 + $0x1c] sm:$0xf]
    %v65 = vld [vmem:[#allocation5 + $0x20] sm:$0xf]
    %v66 = vld [vmem:[#allocation5 + $0x24] sm:$0xf]
    %v67 = vld [vmem:[#allocation5 + $0x28] sm:$0xf]
    %v68 = vld [vmem:[#allocation5 + $0x2c] sm:$0xf]
    %v69 = vld [vmem:[#allocation5 + $0x30] sm:$0xf]
    %v70 = vld [vmem:[#allocation5 + $0x34] sm:$0xf]
    %v71 = vld [vmem:[#allocation5 + $0x38] sm:$0xf]
    %v72 = vld [vmem:[#allocation5 + $0x3c] sm:$0xf]
    %v73 = vld [vmem:[#allocation5 + $0x40] sm:$0xf]
    %v74 = vld [vmem:[#allocation5 + $0x44] sm:$0xf]
    %v75 = vld [vmem:[#allocation5 + $0x48] sm:$0xf]
    %v76 = vld [vmem:[#allocation5 + $0x4c] sm:$0xf]
    %v77 = vld [vmem:[#allocation5 + $0x50] sm:$0xf]
    %v78 = vld [vmem:[#allocation5 + $0x54] sm:$0xf]
    %v79 = vld [vmem:[#allocation5 + $0x58] sm:$0xf]
    %v80 = vld [vmem:[#allocation5 + $0x5c] sm:$0xf]
    %v81 = vld [vmem:[#allocation5 + $0x60] sm:$0xf]
    %v82 = vld [vmem:[#allocation5 + $0x64] sm:$0xf]
    %v83 = vld [vmem:[#allocation5 + $0x68] sm:$0xf]
    %v84 = vld [vmem:[#allocation5 + $0x6c] sm:$0xf]
    %v85 = vld [vmem:[#allocation5 + $0x70] sm:$0xf]
    %v86 = vld [vmem:[#allocation5 + $0x74] sm:$0xf]
    %v87 = vld [vmem:[#allocation5 + $0x78] sm:$0xf]
    %v88 = vld [vmem:[#allocation5 + $0x7c] sm:$0xf]
    %v89 = vld [vmem:[#allocation5 + $0x80] sm:$0xf]
    %v90 = vld [vmem:[#allocation5 + $0x84] sm:$0xf]
    %v91 = vld [vmem:[#allocation5 + $0x88] sm:$0xf]
    %v92 = vld [vmem:[#allocation5 + $0x8c] sm:$0xf]
    %v93 = vld [vmem:[#allocation5 + $0x90] sm:$0xf]
    %v94 = vld [vmem:[#allocation5 + $0x94] sm:$0xf]
    %v95 = vld [vmem:[#allocation5 + $0x98] sm:$0xf]
    %v96 = vld [vmem:[#allocation5 + $0x9c] sm:$0xf]
    %v97 = vld [vmem:[#allocation5 + $0xa0] sm:$0xf]
    %v98 = vld [vmem:[#allocation5 + $0xa4] sm:$0xf]
    %v99 = vld [vmem:[#allocation5 + $0xa8] sm:$0xf]
    %v100 = vld [vmem:[#allocation5 + $0xac] sm:$0xf]
    %v101 = vld [vmem:[#allocation5 + $0xb0] sm:$0xf]
    %v102 = vld [vmem:[#allocation5 + $0xb4] sm:$0xf]
    %v103 = vld [vmem:[#allocation5 + $0xb8] sm:$0xf]
    %v104 = vld [vmem:[#allocation5 + $0xbc] sm:$0xf]
    %v105 = vld [vmem:[#allocation5 + $0xc0] sm:$0xf]
    %v106 = vld [vmem:[#allocation5 + $0xc4] sm:$0xf]
    %v107 = vld [vmem:[#allocation5 + $0xc8] sm:$0xf]
    %v108 = vld [vmem:[#allocation5 + $0xcc] sm:$0xf]
    %v109 = vld [vmem:[#allocation5 + $0xd0] sm:$0xf]
    %v110 = vld [vmem:[#allocation5 + $0xd4] sm:$0xf]
    %v111 = vld [vmem:[#allocation5 + $0xd8] sm:$0xf]
    %v112 = vld [vmem:[#allocation5 + $0xdc] sm:$0xf]
    %v113 = vld [vmem:[#allocation5 + $0xe0] sm:$0xf]
    %v114 = vld [vmem:[#allocation5 + $0xe4] sm:$0xf]
    %v115 = vld [vmem:[#allocation5 + $0xe8] sm:$0xf]
    %v116 = vld [vmem:[#allocation5 + $0xec] sm:$0xf]
    %v117 = vld [vmem:[#allocation5 + $0xf0] sm:$0xf]
    %v118 = vld [vmem:[#allocation5 + $0xf4] sm:$0xf]
    %v119 = vld [vmem:[#allocation5 + $0xf8] sm:$0xf]
    %v120 = vld [vmem:[#allocation5 + $0xfc] sm:$0xf]
    %v121 = vld [vmem:[#allocation5 + $0x100] sm:$0xf]
    %v122 = vld [vmem:[#allocation5 + $0x104] sm:$0xf]
    %v123 = vld [vmem:[#allocation5 + $0x108] sm:$0xf]
    %v124 = vld [vmem:[#allocation5 + $0x10c] sm:$0xf]
    %v125 = vld [vmem:[#allocation5 + $0x110] sm:$0xf]
    %v126 = vld [vmem:[#allocation5 + $0x114] sm:$0xf]
    %v127 = vld [vmem:[#allocation5 + $0x118] sm:$0xf]
    %v128 = vld [vmem:[#allocation5 + $0x11c] sm:$0xf]
    %v129 = vld [vmem:[#allocation5 + $0x120] sm:$0xf]
    %v130 = vld [vmem:[#allocation5 + $0x124] sm:$0xf]
    %v131 = vld [vmem:[#allocation5 + $0x128] sm:$0xf]
    %v132 = vld [vmem:[#allocation5 + $0x12c] sm:$0xf]
    %v133 = vld [vmem:[#allocation5 + $0x130] sm:$0xf]
    %v134 = vld [vmem:[#allocation5 + $0x134] sm:$0xf]
    %v135 = vld [vmem:[#allocation5 + $0x138] sm:$0xf]
    %v136 = vld [vmem:[#allocation5 + $0x13c] sm:$0xf]
    %v137 = vld [vmem:[#allocation5 + $0x140] sm:$0xf]
    %v138 = vld [vmem:[#allocation5 + $0x144] sm:$0xf]
    %v139 = vld [vmem:[#allocation5 + $0x148] sm:$0xf]
    %v140 = vld [vmem:[#allocation5 + $0x14c] sm:$0xf]
    %v141 = vld [vmem:[#allocation5 + $0x150] sm:$0xf]
    %v142 = vld [vmem:[#allocation5 + $0x154] sm:$0xf]
    %v143 = vld [vmem:[#allocation5 + $0x158] sm:$0xf]
    %v144 = vld [vmem:[#allocation5 + $0x15c] sm:$0xf]
    %v145 = vld [vmem:[#allocation5 + $0x160] sm:$0xf]
    %v146 = vld [vmem:[#allocation5 + $0x164] sm:$0xf]
    %v147 = vld [vmem:[#allocation5 + $0x168] sm:$0xf]
    %v148 = vld [vmem:[#allocation5 + $0x16c] sm:$0xf]
    %v149 = vld [vmem:[#allocation5 + $0x170] sm:$0xf]
    %v150 = vld [vmem:[#allocation5 + $0x174] sm:$0xf]
    %v151 = vld [vmem:[#allocation5 + $0x178] sm:$0xf]
    %v152 = vld [vmem:[#allocation5 + $0x17c] sm:$0xf]
    %v153 = vld [vmem:[#allocation5 + $0x180] sm:$0xf]
    %v154 = vld [vmem:[#allocation5 + $0x184] sm:$0xf]
    %v155 = vld [vmem:[#allocation5 + $0x188] sm:$0xf]
    %v156 = vld [vmem:[#allocation5 + $0x18c] sm:$0xf]
    %v157 = vld [vmem:[#allocation5 + $0x190] sm:$0xf]
    %v158 = vld [vmem:[#allocation5 + $0x194] sm:$0xf]
    %v159 = vld [vmem:[#allocation5 + $0x198] sm:$0xf]
    %v160 = vld [vmem:[#allocation5 + $0x19c] sm:$0xf]
    %v161 = vld [vmem:[#allocation5 + $0x1a0] sm:$0xf]
    %v162 = vld [vmem:[#allocation5 + $0x1a4] sm:$0xf]
    %v163 = vld [vmem:[#allocation5 + $0x1a8] sm:$0xf]
    %v164 = vld [vmem:[#allocation5 + $0x1ac] sm:$0xf]
    %v165 = vld [vmem:[#allocation5 + $0x1b0] sm:$0xf]
    %v166 = vld [vmem:[#allocation5 + $0x1b4] sm:$0xf]
    %v167 = vld [vmem:[#allocation5 + $0x1b8] sm:$0xf]
    %v168 = vld [vmem:[#allocation5 + $0x1bc] sm:$0xf]
    %v169 = vld [vmem:[#allocation5 + $0x1c0] sm:$0xf]
    %v170 = vld [vmem:[#allocation5 + $0x1c4] sm:$0xf]
    %v171 = vld [vmem:[#allocation5 + $0x1c8] sm:$0xf]
    %v172 = vld [vmem:[#allocation5 + $0x1cc] sm:$0xf]
    %v173 = vld [vmem:[#allocation5 + $0x1d0] sm:$0xf]
    %v174 = vld [vmem:[#allocation5 + $0x1d4] sm:$0xf]
    %v175 = vld [vmem:[#allocation5 + $0x1d8] sm:$0xf]
    %v176 = vld [vmem:[#allocation5 + $0x1dc] sm:$0xf]
    %v177 = vld [vmem:[#allocation5 + $0x1e0] sm:$0xf]
    %v178 = vld [vmem:[#allocation5 + $0x1e4] sm:$0xf]
    %v179 = vld [vmem:[#allocation5 + $0x1e8] sm:$0xf]
    %v180 = vld [vmem:[#allocation5 + $0x1ec] sm:$0xf]
    %v181 = vld [vmem:[#allocation5 + $0x1f0] sm:$0xf]
    %v182 = vld [vmem:[#allocation5 + $0x1f4] sm:$0xf]
    %v183 = vld [vmem:[#allocation5 + $0x1f8] sm:$0xf]
    %v184 = vld [vmem:[#allocation5 + $0x1fc] sm:$0xf]
    %v201 = vunpack.c.l.b16 %v41
    %v202 = vunpack.c.h.b16 %v41
    %v203 = vunpack.c.l.b16 %v42
    %v204 = vunpack.c.h.b16 %v42
    %v205 = vunpack.c.l.b16 %v43
    %v206 = vunpack.c.h.b16 %v43
    %v207 = vunpack.c.l.b16 %v44
    %v208 = vunpack.c.h.b16 %v44
    %v209 = vunpack.c.l.b16 %v45
    %v210 = vunpack.c.h.b16 %v45
    %v211 = vunpack.c.l.b16 %v46
    %v212 = vunpack.c.h.b16 %v46
    %v213 = vunpack.c.l.b16 %v47
    %v214 = vunpack.c.h.b16 %v47
    %v215 = vunpack.c.l.b16 %v48
    %v216 = vunpack.c.h.b16 %v48
    %v217 = vunpack.c.l.b16 %v49
    %v218 = vunpack.c.h.b16 %v49
    %v219 = vunpack.c.l.b16 %v50
    %v220 = vunpack.c.h.b16 %v50
    %v221 = vunpack.c.l.b16 %v51
    %v222 = vunpack.c.h.b16 %v51
    %v223 = vunpack.c.l.b16 %v52
    %v224 = vunpack.c.h.b16 %v52
    %v225 = vunpack.c.l.b16 %v53
    %v226 = vunpack.c.h.b16 %v53
    %v227 = vunpack.c.l.b16 %v54
    %v228 = vunpack.c.h.b16 %v54
    %v229 = vunpack.c.l.b16 %v55
    %v230 = vunpack.c.h.b16 %v55
    %v231 = vunpack.c.l.b16 %v56
    %v232 = vunpack.c.h.b16 %v56
    %v233 = vpack.c.b16 %v209, %v201
    %v234 = vpack.c.b16 %v210, %v202
    %v235 = vpack.c.b16 %v211, %v203
    %v236 = vpack.c.b16 %v212, %v204
    %v237 = vpack.c.b16 %v213, %v205
    %v238 = vpack.c.b16 %v214, %v206
    %v239 = vpack.c.b16 %v215, %v207
    %v240 = vpack.c.b16 %v216, %v208
    %v241 = vpack.c.b16 %v225, %v217
    %v242 = vpack.c.b16 %v226, %v218
    %v243 = vpack.c.b16 %v227, %v219
    %v244 = vpack.c.b16 %v228, %v220
    %v245 = vpack.c.b16 %v229, %v221
    %v246 = vpack.c.b16 %v230, %v222
    %v247 = vpack.c.b16 %v231, %v223
    %v248 = vpack.c.b16 %v232, %v224
    %v393 = vunpack.c.l.b16 %v57
    %v394 = vunpack.c.l.b16 %v58
    %v395 = vunpack.c.l.b16 %v59
    %v396 = vunpack.c.l.b16 %v60
    %v397 = vunpack.c.l.b16 %v61
    %v398 = vunpack.c.l.b16 %v62
    %v399 = vunpack.c.l.b16 %v63
    %v400 = vunpack.c.l.b16 %v64
    %v401 = vunpack.c.l.b16 %v65
    %v402 = vunpack.c.l.b16 %v66
    %v403 = vunpack.c.l.b16 %v67
    %v404 = vunpack.c.l.b16 %v68
    %v405 = vunpack.c.l.b16 %v69
    %v406 = vunpack.c.l.b16 %v70
    %v407 = vunpack.c.l.b16 %v71
    %v408 = vunpack.c.l.b16 %v72
    %v409 = vunpack.c.l.b16 %v73
    %v410 = vunpack.c.l.b16 %v74
    %v411 = vunpack.c.l.b16 %v75
    %v412 = vunpack.c.l.b16 %v76
    %v413 = vunpack.c.l.b16 %v77
    %v414 = vunpack.c.l.b16 %v78
    %v415 = vunpack.c.l.b16 %v79
    %v416 = vunpack.c.l.b16 %v80
    %v417 = vunpack.c.l.b16 %v81
    %v418 = vunpack.c.l.b16 %v82
    %v419 = vunpack.c.l.b16 %v83
    %v420 = vunpack.c.l.b16 %v84
    %v421 = vunpack.c.l.b16 %v85
    %v422 = vunpack.c.l.b16 %v86
    %v423 = vunpack.c.l.b16 %v87
    %v424 = vunpack.c.l.b16 %v88
    %v425 = vunpack.c.l.b16 %v89
    %v426 = vunpack.c.l.b16 %v90
    %v427 = vunpack.c.l.b16 %v91
    %v428 = vunpack.c.l.b16 %v92
    %v429 = vunpack.c.l.b16 %v93
    %v430 = vunpack.c.l.b16 %v94
    %v431 = vunpack.c.l.b16 %v95
    %v432 = vunpack.c.l.b16 %v96
    %v433 = vunpack.c.l.b16 %v97
    %v434 = vunpack.c.l.b16 %v98
    %v435 = vunpack.c.l.b16 %v99
    %v436 = vunpack.c.l.b16 %v100
    %v437 = vunpack.c.l.b16 %v101
    %v438 = vunpack.c.l.b16 %v102
    %v439 = vunpack.c.l.b16 %v103
    %v440 = vunpack.c.l.b16 %v104
    %v441 = vunpack.c.l.b16 %v105
    %v442 = vunpack.c.l.b16 %v106
    %v443 = vunpack.c.l.b16 %v107
    %v444 = vunpack.c.l.b16 %v108
    %v445 = vunpack.c.l.b16 %v109
    %v446 = vunpack.c.l.b16 %v110
    %v447 = vunpack.c.l.b16 %v111
    %v448 = vunpack.c.l.b16 %v112
    %v449 = vunpack.c.l.b16 %v113
    %v450 = vunpack.c.l.b16 %v114
    %v451 = vunpack.c.l.b16 %v115
    %v452 = vunpack.c.l.b16 %v116
    %v453 = vunpack.c.l.b16 %v117
    %v454 = vunpack.c.l.b16 %v118
    %v455 = vunpack.c.l.b16 %v119
    %v456 = vunpack.c.l.b16 %v120
    %v457 = vunpack.c.l.b16 %v121
    %v458 = vunpack.c.l.b16 %v122
    %v459 = vunpack.c.l.b16 %v123
    %v460 = vunpack.c.l.b16 %v124
    %v461 = vunpack.c.l.b16 %v125
    %v462 = vunpack.c.l.b16 %v126
    %v463 = vunpack.c.l.b16 %v127
    %v464 = vunpack.c.l.b16 %v128
    %v465 = vunpack.c.l.b16 %v129
    %v466 = vunpack.c.l.b16 %v130
    %v467 = vunpack.c.l.b16 %v131
    %v468 = vunpack.c.l.b16 %v132
    %v469 = vunpack.c.l.b16 %v133
    %v470 = vunpack.c.l.b16 %v134
    %v471 = vunpack.c.l.b16 %v135
    %v472 = vunpack.c.l.b16 %v136
    %v473 = vunpack.c.l.b16 %v137
    %v474 = vunpack.c.l.b16 %v138
    %v475 = vunpack.c.l.b16 %v139
    %v476 = vunpack.c.l.b16 %v140
    %v477 = vunpack.c.l.b16 %v141
    %v478 = vunpack.c.l.b16 %v142
    %v479 = vunpack.c.l.b16 %v143
    %v480 = vunpack.c.l.b16 %v144
    %v481 = vunpack.c.l.b16 %v145
    %v482 = vunpack.c.l.b16 %v146
    %v483 = vunpack.c.l.b16 %v147
    %v484 = vunpack.c.l.b16 %v148
    %v485 = vunpack.c.l.b16 %v149
    %v486 = vunpack.c.l.b16 %v150
    %v487 = vunpack.c.l.b16 %v151
    %v488 = vunpack.c.l.b16 %v152
    %v489 = vunpack.c.l.b16 %v153
    %v490 = vunpack.c.l.b16 %v154
    %v491 = vunpack.c.l.b16 %v155
    %v492 = vunpack.c.l.b16 %v156
    %v493 = vunpack.c.l.b16 %v157
    %v494 = vunpack.c.l.b16 %v158
    %v495 = vunpack.c.l.b16 %v159
    %v496 = vunpack.c.l.b16 %v160
    %v497 = vunpack.c.l.b16 %v161
    %v498 = vunpack.c.l.b16 %v162
    %v499 = vunpack.c.l.b16 %v163
    %v500 = vunpack.c.l.b16 %v164
    %v501 = vunpack.c.l.b16 %v165
    %v502 = vunpack.c.l.b16 %v166
    %v503 = vunpack.c.l.b16 %v167
    %v504 = vunpack.c.l.b16 %v168
    %v505 = vunpack.c.l.b16 %v169
    %v506 = vunpack.c.l.b16 %v170
    %v507 = vunpack.c.l.b16 %v171
    %v508 = vunpack.c.l.b16 %v172
    %v509 = vunpack.c.l.b16 %v173
    %v510 = vunpack.c.l.b16 %v174
    %v511 = vunpack.c.l.b16 %v175
    %v512 = vunpack.c.l.b16 %v176
    %v513 = vunpack.c.l.b16 %v177
    %v514 = vunpack.c.l.b16 %v178
    %v515 = vunpack.c.l.b16 %v179
    %v516 = vunpack.c.l.b16 %v180
    %v517 = vunpack.c.l.b16 %v181
    %v518 = vunpack.c.l.b16 %v182
    %v519 = vunpack.c.l.b16 %v183
    %v520 = vunpack.c.l.b16 %v184
    %v521 = vpack.c.b16 %v394, %v393
    %v522 = vpack.c.b16 %v396, %v395
    %v523 = vpack.c.b16 %v398, %v397
    %v524 = vpack.c.b16 %v400, %v399
    %v525 = vpack.c.b16 %v402, %v401
    %v526 = vpack.c.b16 %v404, %v403
    %v527 = vpack.c.b16 %v406, %v405
    %v528 = vpack.c.b16 %v408, %v407
    %v529 = vpack.c.b16 %v410, %v409
    %v530 = vpack.c.b16 %v412, %v411
    %v531 = vpack.c.b16 %v414, %v413
    %v532 = vpack.c.b16 %v416, %v415
    %v533 = vpack.c.b16 %v418, %v417
    %v534 = vpack.c.b16 %v420, %v419
    %v535 = vpack.c.b16 %v422, %v421
    %v536 = vpack.c.b16 %v424, %v423
    %v537 = vpack.c.b16 %v426, %v425
    %v538 = vpack.c.b16 %v428, %v427
    %v539 = vpack.c.b16 %v430, %v429
    %v540 = vpack.c.b16 %v432, %v431
    %v541 = vpack.c.b16 %v434, %v433
    %v542 = vpack.c.b16 %v436, %v435
    %v543 = vpack.c.b16 %v438, %v437
    %v544 = vpack.c.b16 %v440, %v439
    %v545 = vpack.c.b16 %v442, %v441
    %v546 = vpack.c.b16 %v444, %v443
    %v547 = vpack.c.b16 %v446, %v445
    %v548 = vpack.c.b16 %v448, %v447
    %v549 = vpack.c.b16 %v450, %v449
    %v550 = vpack.c.b16 %v452, %v451
    %v551 = vpack.c.b16 %v454, %v453
    %v552 = vpack.c.b16 %v456, %v455
    %v553 = vpack.c.b16 %v458, %v457
    %v554 = vpack.c.b16 %v460, %v459
    %v555 = vpack.c.b16 %v462, %v461
    %v556 = vpack.c.b16 %v464, %v463
    %v557 = vpack.c.b16 %v466, %v465
    %v558 = vpack.c.b16 %v468, %v467
    %v559 = vpack.c.b16 %v470, %v469
    %v560 = vpack.c.b16 %v472, %v471
    %v561 = vpack.c.b16 %v474, %v473
    %v562 = vpack.c.b16 %v476, %v475
    %v563 = vpack.c.b16 %v478, %v477
    %v564 = vpack.c.b16 %v480, %v479
    %v565 = vpack.c.b16 %v482, %v481
    %v566 = vpack.c.b16 %v484, %v483
    %v567 = vpack.c.b16 %v486, %v485
    %v568 = vpack.c.b16 %v488, %v487
    %v569 = vpack.c.b16 %v490, %v489
    %v570 = vpack.c.b16 %v492, %v491
    %v571 = vpack.c.b16 %v494, %v493
    %v572 = vpack.c.b16 %v496, %v495
    %v573 = vpack.c.b16 %v498, %v497
    %v574 = vpack.c.b16 %v500, %v499
    %v575 = vpack.c.b16 %v502, %v501
    %v576 = vpack.c.b16 %v504, %v503
    %v577 = vpack.c.b16 %v506, %v505
    %v578 = vpack.c.b16 %v508, %v507
    %v579 = vpack.c.b16 %v510, %v509
    %v580 = vpack.c.b16 %v512, %v511
    %v581 = vpack.c.b16 %v514, %v513
    %v582 = vpack.c.b16 %v516, %v515
    %v583 = vpack.c.b16 %v518, %v517
    %v584 = vpack.c.b16 %v520, %v519
    %649 = vmatprep.subr.bf16.mxu0 0
    %650 = vmatpush1.bf16.msra.mxu0 %v521
    %651 = vmatprep.subr.bf16.mxu0 0
    %652 = vmatpush1.bf16.msra.mxu0 %v522
    %653 = vmatprep.subr.bf16.mxu0 0
    %654 = vmatpush1.bf16.msra.mxu0 %v523
    %655 = vmatprep.subr.bf16.mxu0 0
    %656 = vmatpush1.bf16.msra.mxu0 %v524
    %657 = vmatprep.subr.bf16.mxu0 0
    %658 = vmatpush1.bf16.msra.mxu0 %v525
    %659 = vmatprep.subr.bf16.mxu0 0
    %660 = vmatpush1.bf16.msra.mxu0 %v526
    %661 = vmatprep.subr.bf16.mxu0 0
    %662 = vmatpush1.bf16.msra.mxu0 %v527
    %663 = vmatprep.subr.bf16.mxu0 0
    %664 = vmatpush1.bf16.msra.mxu0 %v528
    %665 = vmatprep.subr.bf16.mxu0 0
    %666 = vmatpush1.bf16.msra.mxu0 %v529
    %667 = vmatprep.subr.bf16.mxu0 0
    %668 = vmatpush1.bf16.msra.mxu0 %v530
    %669 = vmatprep.subr.bf16.mxu0 0
    %670 = vmatpush1.bf16.msra.mxu0 %v531
    %671 = vmatprep.subr.bf16.mxu0 0
    %672 = vmatpush1.bf16.msra.mxu0 %v532
    %673 = vmatprep.subr.bf16.mxu0 0
    %674 = vmatpush1.bf16.msra.mxu0 %v533
    %675 = vmatprep.subr.bf16.mxu0 0
    %676 = vmatpush1.bf16.msra.mxu0 %v534
    %677 = vmatprep.subr.bf16.mxu0 0
    %678 = vmatpush1.bf16.msra.mxu0 %v535
    %679 = vmatprep.subr.bf16.mxu0 0
    %680 = vmatpush1.bf16.msra.mxu0 %v536
    %681 = vmatprep.mubr.bf16.mxu0 %v234
    %682 = vmatmul.mubr.bf16.gmra.mrb[0].mxu0 %v233
    %v683 = vpop.f32.mrb[0].mxu0
    %v684 = vadd.f32 0.0, %v683
    %v685 = vpop.f32.mrb[0].mxu0
    %v686 = vpop.f32.mrb[0].mxu0
    %v687 = vadd.f32 0.0, %v686
    %v688 = vpop.f32.mrb[0].mxu0
    %689 = vmatprep.mubr.bf16.mxu0 %v242
    %690 = vmatmul.mubr.bf16.gmra.mrb[0].mxu0 %v241
    %v691 = vpop.f32.mrb[0].mxu0
    %v692 = vadd.f32 0.0, %v691
    %v693 = vpop.f32.mrb[0].mxu0
    %v694 = vpop.f32.mrb[0].mxu0
    %v695 = vadd.f32 0.0, %v694
    %v696 = vpop.f32.mrb[0].mxu0
    %697 = vdwg.mxu0
    %698 = vmatprep.subr.bf16.mxu0 0
    %699 = vmatpush1.bf16.msra.mxu0 %v537
    %700 = vmatprep.subr.bf16.mxu0 0
    %701 = vmatpush1.bf16.msra.mxu0 %v538
    %702 = vmatprep.subr.bf16.mxu0 0
    %703 = vmatpush1.bf16.msra.mxu0 %v539
    %704 = vmatprep.subr.bf16.mxu0 0
    %705 = vmatpush1.bf16.msra.mxu0 %v540
    %706 = vmatprep.subr.bf16.mxu0 0
    %707 = vmatpush1.bf16.msra.mxu0 %v541
    %708 = vmatprep.subr.bf16.mxu0 0
    %709 = vmatpush1.bf16.msra.mxu0 %v542
    %710 = vmatprep.subr.bf16.mxu0 0
    %711 = vmatpush1.bf16.msra.mxu0 %v543
    %712 = vmatprep.subr.bf16.mxu0 0
    %713 = vmatpush1.bf16.msra.mxu0 %v544
    %714 = vmatprep.subr.bf16.mxu0 0
    %715 = vmatpush1.bf16.msra.mxu0 %v545
    %716 = vmatprep.subr.bf16.mxu0 0
    %717 = vmatpush1.bf16.msra.mxu0 %v546
    %718 = vmatprep.subr.bf16.mxu0 0
    %719 = vmatpush1.bf16.msra.mxu0 %v547
    %720 = vmatprep.subr.bf16.mxu0 0
    %721 = vmatpush1.bf16.msra.mxu0 %v548
    %722 = vmatprep.subr.bf16.mxu0 0
    %723 = vmatpush1.bf16.msra.mxu0 %v549
    %724 = vmatprep.subr.bf16.mxu0 0
    %725 = vmatpush1.bf16.msra.mxu0 %v550
    %726 = vmatprep.subr.bf16.mxu0 0
    %727 = vmatpush1.bf16.msra.mxu0 %v551
    %728 = vmatprep.subr.bf16.mxu0 0
    %729 = vmatpush1.bf16.msra.mxu0 %v552
    %730 = vmatprep.mubr.bf16.mxu0 %v236
    %731 = vmatmul.mubr.bf16.gmra.mrb[0].mxu0 %v235
    %v732 = vpop.f32.mrb[0].mxu0
    %v733 = vadd.f32 %v684, %v732
    %v734 = vpop.f32.mrb[0].mxu0
    %v735 = vpop.f32.mrb[0].mxu0
    %v736 = vadd.f32 %v687, %v735
    %v737 = vpop.f32.mrb[0].mxu0
    %738 = vmatprep.mubr.bf16.mxu0 %v244
    %739 = vmatmul.mubr.bf16.gmra.mrb[0].mxu0 %v243
    %v740 = vpop.f32.mrb[0].mxu0
    %v741 = vadd.f32 %v692, %v740
    %v742 = vpop.f32.mrb[0].mxu0
    %v743 = vpop.f32.mrb[0].mxu0
    %v744 = vadd.f32 %v695, %v743
    %v745 = vpop.f32.mrb[0].mxu0
    %746 = vdwg.mxu0
    %747 = vmatprep.subr.bf16.mxu0 0
    %748 = vmatpush1.bf16.msra.mxu0 %v553
    %749 = vmatprep.subr.bf16.mxu0 0
    %750 = vmatpush1.bf16.msra.mxu0 %v554
    %751 = vmatprep.subr.bf16.mxu0 0
    %752 = vmatpush1.bf16.msra.mxu0 %v555
    %753 = vmatprep.subr.bf16.mxu0 0
    %754 = vmatpush1.bf16.msra.mxu0 %v556
    %755 = vmatprep.subr.bf16.mxu0 0
    %756 = vmatpush1.bf16.msra.mxu0 %v557
    %757 = vmatprep.subr.bf16.mxu0 0
    %758 = vmatpush1.bf16.msra.mxu0 %v558
    %759 = vmatprep.subr.bf16.mxu0 0
    %760 = vmatpush1.bf16.msra.mxu0 %v559
    %761 = vmatprep.subr.bf16.mxu0 0
    %762 = vmatpush1.bf16.msra.mxu0 %v560
    %763 = vmatprep.subr.bf16.mxu0 0
    %764 = vmatpush1.bf16.msra.mxu0 %v561
    %765 = vmatprep.subr.bf16.mxu0 0
    %766 = vmatpush1.bf16.msra.mxu0 %v562
    %767 = vmatprep.subr.bf16.mxu0 0
    %768 = vmatpush1.bf16.msra.mxu0 %v563
    %769 = vmatprep.subr.bf16.mxu0 0
    %770 = vmatpush1.bf16.msra.mxu0 %v564
    %771 = vmatprep.subr.bf16.mxu0 0
    %772 = vmatpush1.bf16.msra.mxu0 %v565
    %773 = vmatprep.subr.bf16.mxu0 0
    %774 = vmatpush1.bf16.msra.mxu0 %v566
    %775 = vmatprep.subr.bf16.mxu0 0
    %776 = vmatpush1.bf16.msra.mxu0 %v567
    %777 = vmatprep.subr.bf16.mxu0 0
    %778 = vmatpush1.bf16.msra.mxu0 %v568
    %779 = vmatprep.mubr.bf16.mxu0 %v238
    %780 = vmatmul.mubr.bf16.gmra.mrb[0].mxu0 %v237
    %v781 = vpop.f32.mrb[0].mxu0
    %v782 = vadd.f32 %v733, %v781
    %v783 = vpop.f32.mrb[0].mxu0
    %v784 = vpop.f32.mrb[0].mxu0
    %v785 = vadd.f32 %v736, %v784
    %v786 = vpop.f32.mrb[0].mxu0
    %787 = vmatprep.mubr.bf16.mxu0 %v246
    %788 = vmatmul.mubr.bf16.gmra.mrb[0].mxu0 %v245
    %v789 = vpop.f32.mrb[0].mxu0
    %v790 = vadd.f32 %v741, %v789
    %v791 = vpop.f32.mrb[0].mxu0
    %v792 = vpop.f32.mrb[0].mxu0
    %v793 = vadd.f32 %v744, %v792
    %v794 = vpop.f32.mrb[0].mxu0
    %795 = vdwg.mxu0
    %796 = vmatprep.subr.bf16.mxu0 0
    %797 = vmatpush1.bf16.msra.mxu0 %v569
    %798 = vmatprep.subr.bf16.mxu0 0
    %799 = vmatpush1.bf16.msra.mxu0 %v570
    %800 = vmatprep.subr.bf16.mxu0 0
    %801 = vmatpush1.bf16.msra.mxu0 %v571
    %802 = vmatprep.subr.bf16.mxu0 0
    %803 = vmatpush1.bf16.msra.mxu0 %v572
    %804 = vmatprep.subr.bf16.mxu0 0
    %805 = vmatpush1.bf16.msra.mxu0 %v573
    %806 = vmatprep.subr.bf16.mxu0 0
    %807 = vmatpush1.bf16.msra.mxu0 %v574
    %808 = vmatprep.subr.bf16.mxu0 0
    %809 = vmatpush1.bf16.msra.mxu0 %v575
    %810 = vmatprep.subr.bf16.mxu0 0
    %811 = vmatpush1.bf16.msra.mxu0 %v576
    %812 = vmatprep.subr.bf16.mxu0 0
    %813 = vmatpush1.bf16.msra.mxu0 %v577
    %814 = vmatprep.subr.bf16.mxu0 0
    %815 = vmatpush1.bf16.msra.mxu0 %v578
    %816 = vmatprep.subr.bf16.mxu0 0
    %817 = vmatpush1.bf16.msra.mxu0 %v579
    %818 = vmatprep.subr.bf16.mxu0 0
    %819 = vmatpush1.bf16.msra.mxu0 %v580
    %820 = vmatprep.subr.bf16.mxu0 0
    %821 = vmatpush1.bf16.msra.mxu0 %v581
    %822 = vmatprep.subr.bf16.mxu0 0
    %823 = vmatpush1.bf16.msra.mxu0 %v582
    %824 = vmatprep.subr.bf16.mxu0 0
    %825 = vmatpush1.bf16.msra.mxu0 %v583
    %826 = vmatprep.subr.bf16.mxu0 0
    %827 = vmatpush1.bf16.msra.mxu0 %v584
    %828 = vmatprep.mubr.bf16.mxu0 %v240
    %829 = vmatmul.mubr.bf16.gmra.mrb[0].mxu0 %v239
    %v830 = vpop.f32.mrb[0].mxu0
    %v831 = vadd.f32 %v782, %v830
    %v832 = vpop.f32.mrb[0].mxu0
    %v833 = vpop.f32.mrb[0].mxu0
    %v834 = vadd.f32 %v785, %v833
    %v835 = vpop.f32.mrb[0].mxu0
    %836 = vmatprep.mubr.bf16.mxu0 %v248
    %837 = vmatmul.mubr.bf16.gmra.mrb[0].mxu0 %v247
    %v838 = vpop.f32.mrb[0].mxu0
    %v839 = vadd.f32 %v790, %v838
    %v840 = vpop.f32.mrb[0].mxu0
    %v841 = vpop.f32.mrb[0].mxu0
    %v842 = vadd.f32 %v793, %v841
    %v843 = vpop.f32.mrb[0].mxu0
    %844 = vdwg.mxu0
    %vm845 = vcmp.ge.f32.partialorder %v831, 0.0
    %vm846 = vcmp.ge.f32.partialorder %v834, 0.0
    %vm847 = vcmp.ge.f32.partialorder %v839, 0.0
    %vm848 = vcmp.ge.f32.partialorder %v842, 0.0
    %v849 = vmul.f32 %v831, 0.2
    %v850 = vmul.f32 %v834, 0.2
    %v851 = vmul.f32 %v839, 0.2
    %v852 = vmul.f32 %v842, 0.2
    %v853 = vsel %vm845, %v831, %v849
    %v854 = vsel %vm846, %v834, %v850
    %v855 = vsel %vm847, %v839, %v851
    %v856 = vsel %vm848, %v842, %v852
    %v857 = vpack.c.bf16 %v854, %v853
    %v858 = vpack.c.bf16 %v856, %v855
    %v861 = vunpack.c.l.b16 %v857
    %v862 = vunpack.c.h.b16 %v857
    %v863 = vunpack.c.l.b16 %v858
    %v864 = vunpack.c.h.b16 %v858
    %v865 = vpack.c.b16 %v861, %v861
    %v866 = vpack.c.b16 %v862, %v862
    %v867 = vpack.c.b16 %v863, %v863
    %v868 = vpack.c.b16 %v864, %v864
    %vm873 = vcmask 519168
    %874 = vst.msk [vmem:[#allocation7] sm:$0xf] %vm873, %v865
    %875 = vst.msk [vmem:[#allocation7 + $0x4] sm:$0xf] %vm873, %v866
    %876 = vst.msk [vmem:[#allocation7 + $0x8] sm:$0xf] %vm873, %v867
    %877 = vst.msk [vmem:[#allocation7 + $0xc] sm:$0xf] %vm873, %v868
    // Predicated region
    $region18: #{netD_forward.12} parent=1 // pred_check
      _
    $region19: #{netD_forward.12} parent=1 // pred_check_branch
      %879 = sbr.rel (0) target = $region21
    $region20: #{netD_forward.12} parent=1 // pred_region
      %s881 = ssub.s32 256, 256
      %882 = vsyncadd [#allocation4], %s881
      %s883 = sshll.u32 [#allocation7], 4
      %s884 = int_to_ptr.vmem [resolvable:$true] %s883
      %889 = dma.vmem_to_hbm [thread:$0]  %s884, 256, %s2, [#allocation4], 64, 64, 4
    $region21: #{netD_forward.12} parent=1 // pred_fallthru
      _
    // Predicated region
    $region22: #{netD_forward.12} parent=1 // pred_check
      _
    $region23: #{netD_forward.12} parent=1 // pred_check_branch
      %891 = sbr.rel (0) target = $region25
    $region24: #{netD_forward.12} parent=1 // pred_region
      %892 = dma.done [#allocation4], 256
    $region25: #{netD_forward.12} parent=1 // pred_fallthru
      _
    %893 = vsyncpa [#allocation3], 1
    %894 = vsyncpa [#allocation6], 1
    %895 = vsyncpa [#allocation4], 1

// kernel: netD_forward.13
$region0: #{netD_forward.13}
  #allocation0 [shape = 'u32[]', space=smem, size = 0x4, offset = 0x4, fixed_abs, tag = 'smem constant byte address 0x4 - core index']
  #allocation1 [shape = 'u32[144,128]{1,0:T(1,128)}', space=vmem, size = 0x12000, scoped, tag = 'internal scratch']
  %s0 = inlined_call_operand.hbm [shape: bf16[2,1024], index: 0, kind: input, shape index: {}]
  %s1 = inlined_call_operand.hbm [shape: bf16[1024,16], index: 1, kind: input, shape index: {}]
  %s2 = inlined_call_operand.hbm [shape: f32[16,128], index: 2, kind: input, shape index: {}]
  %s3 = inlined_call_operand.hbm [shape: f32[1,128], index: 3, kind: input, shape index: {}]
  %s4 = inlined_call_operand.hbm [shape: f32[2,128], index: 4, kind: output, shape index: {}]
  %s5 = sld [smem:[#allocation0]]
  $region42: #{netD_forward.13} parent=0
    _
  %s7 = ssub.s32 1, %s5
  %s8 = scalar_select 0, %s7, %s5
  $region1: #{netD_forward.13} parent=0
    #allocation2 [shape = 'u8[4096]{0}', space=vmem, size = 0x1000, scoped, tag = 'input window, operand 0, single buffered']
    #allocation3 [shape = 's32[1]{0}', space=sflag, size = 0x4, scoped, tag = 'scoped memory for netD_forward.13']
    #allocation4 [shape = 's32[1]{0}', space=sflag, size = 0x4, scoped, tag = 'scoped memory for netD_forward.13']
    #allocation5 [shape = 'u8[262144]{0}', space=vmem, size = 0x40000, scoped, tag = 'input window, operand 1, single buffered']
    #allocation6 [shape = 's32[1]{0}', space=sflag, size = 0x4, scoped, tag = 'scoped memory for netD_forward.13']
    #allocation7 [shape = 'u8[8192]{0}', space=vmem, size = 0x2000, scoped, tag = 'input window, operand 2, single buffered']
    #allocation8 [shape = 'u8[512]{0}', space=vmem, size = 0x400, scoped, tag = 'input window, operand 3, single buffered']
    #allocation9 [shape = 's32[1]{0}', space=sflag, size = 0x4, scoped, tag = 'scoped memory for netD_forward.13']
    #allocation10 [shape = 'u8[1024]{0}', space=vmem, size = 0x400, scoped, tag = 'output window, operand 0, single buffered']
    %9 = vsyncpa [#allocation3], 0
    %10 = vsyncpa [#allocation6], 0
    %11 = vsyncpa [#allocation9], 0
    %12 = vsyncpa [#allocation4], 0
    // Predicated region
    $region2: #{netD_forward.13} parent=1 // pred_check
      _
    $region3: #{netD_forward.13} parent=1 // pred_check_branch
      %14 = sbr.rel (0) target = $region5
    $region4: #{netD_forward.13} parent=1 // pred_region
      %s16 = ssub.s32 128, 128
      %17 = vsyncadd [#allocation3], %s16
      %s19 = sshll.u32 [#allocation2], 4
      %s20 = int_to_ptr.vmem [resolvable:$true] %s19
      %22 = dma.hbm_to_vmem [thread:$0]  %s0, 128, %s20, [#allocation3]
    $region5: #{netD_forward.13} parent=1 // pred_fallthru
      _
    // Predicated region
    $region6: #{netD_forward.13} parent=1 // pred_check
      _
    $region7: #{netD_forward.13} parent=1 // pred_check_branch
      %24 = sbr.rel (0) target = $region9
    $region8: #{netD_forward.13} parent=1 // pred_region
      %s26 = ssub.s32 8192, 8192
      %27 = vsyncadd [#allocation6], %s26
      %s28 = sshll.u32 [#allocation5], 4
      %s29 = int_to_ptr.vmem [resolvable:$true] %s28
      %34 = dma.hbm_to_vmem [thread:$0]  %s1, 8192, %s29, [#allocation6], 64, 64, 4
    $region9: #{netD_forward.13} parent=1 // pred_fallthru
      _
    // Predicated region
    $region10: #{netD_forward.13} parent=1 // pred_check
      _
    $region11: #{netD_forward.13} parent=1 // pred_check_branch
      %36 = sbr.rel (0) target = $region13
    $region12: #{netD_forward.13} parent=1 // pred_region
      %s38 = ssub.s32 256, 256
      %39 = vsyncadd [#allocation6], %s38
      %s40 = sshll.u32 [#allocation7], 4
      %s41 = int_to_ptr.vmem [resolvable:$true] %s40
      %46 = dma.hbm_to_vmem [thread:$0]  %s2, 256, %s41, [#allocation6], 128, 128, 8
    $region13: #{netD_forward.13} parent=1 // pred_fallthru
      _
    // Predicated region
    $region14: #{netD_forward.13} parent=1 // pred_check
      _
    $region15: #{netD_forward.13} parent=1 // pred_check_branch
      %48 = sbr.rel (0) target = $region17
    $region16: #{netD_forward.13} parent=1 // pred_region
      %s50 = ssub.s32 16, 16
      %51 = vsyncadd [#allocation9], %s50
      %s53 = sshll.u32 [#allocation8], 4
      %s54 = int_to_ptr.vmem [resolvable:$true] %s53
      %56 = dma.hbm_to_vmem [thread:$0]  %s3, 16, %s54, [#allocation9]
    $region17: #{netD_forward.13} parent=1 // pred_fallthru
      _
    // Predicated region
    $region18: #{netD_forward.13} parent=1 // pred_check
      _
    $region19: #{netD_forward.13} parent=1 // pred_check_branch
      %58 = sbr.rel (0) target = $region21
    $region20: #{netD_forward.13} parent=1 // pred_region
      %59 = dma.done [#allocation3], 128
    $region21: #{netD_forward.13} parent=1 // pred_fallthru
      _
    // Predicated region
    $region22: #{netD_forward.13} parent=1 // pred_check
      _
    $region23: #{netD_forward.13} parent=1 // pred_check_branch
      %61 = sbr.rel (0) target = $region25
    $region24: #{netD_forward.13} parent=1 // pred_region
      %62 = dma.done [#allocation6], 8192
    $region25: #{netD_forward.13} parent=1 // pred_fallthru
      _
    // Predicated region
    $region26: #{netD_forward.13} parent=1 // pred_check
      _
    $region27: #{netD_forward.13} parent=1 // pred_check_branch
      %64 = sbr.rel (0) target = $region29
    $region28: #{netD_forward.13} parent=1 // pred_region
      %65 = dma.done [#allocation6], 256
    $region29: #{netD_forward.13} parent=1 // pred_fallthru
      _
    // Predicated region
    $region30: #{netD_forward.13} parent=1 // pred_check
      _
    $region31: #{netD_forward.13} parent=1 // pred_check_branch
      %67 = sbr.rel (0) target = $region33
    $region32: #{netD_forward.13} parent=1 // pred_region
      %68 = dma.done [#allocation9], 16
    $region33: #{netD_forward.13} parent=1 // pred_fallthru
      _
    %v70 = vld [vmem:[#allocation2] sm:$0xff]
    %v71 = vld [vmem:[#allocation5] sm:$0xf]
    %v72 = vld [vmem:[#allocation5 + $0x4] sm:$0xf]
    %v73 = vld [vmem:[#allocation5 + $0x8] sm:$0xf]
    %v74 = vld [vmem:[#allocation5 + $0xc] sm:$0xf]
    %v75 = vld [vmem:[#allocation5 + $0x10] sm:$0xf]
    %v76 = vld [vmem:[#allocation5 + $0x14] sm:$0xf]
    %v77 = vld [vmem:[#allocation5 + $0x18] sm:$0xf]
    %v78 = vld [vmem:[#allocation5 + $0x1c] sm:$0xf]
    %v79 = vld [vmem:[#allocation5 + $0x20] sm:$0xf]
    %v80 = vld [vmem:[#allocation5 + $0x24] sm:$0xf]
    %v81 = vld [vmem:[#allocation5 + $0x28] sm:$0xf]
    %v82 = vld [vmem:[#allocation5 + $0x2c] sm:$0xf]
    %v83 = vld [vmem:[#allocation5 + $0x30] sm:$0xf]
    %v84 = vld [vmem:[#allocation5 + $0x34] sm:$0xf]
    %v85 = vld [vmem:[#allocation5 + $0x38] sm:$0xf]
    %v86 = vld [vmem:[#allocation5 + $0x3c] sm:$0xf]
    %v87 = vld [vmem:[#allocation5 + $0x40] sm:$0xf]
    %v88 = vld [vmem:[#allocation5 + $0x44] sm:$0xf]
    %v89 = vld [vmem:[#allocation5 + $0x48] sm:$0xf]
    %v90 = vld [vmem:[#allocation5 + $0x4c] sm:$0xf]
    %v91 = vld [vmem:[#allocation5 + $0x50] sm:$0xf]
    %v92 = vld [vmem:[#allocation5 + $0x54] sm:$0xf]
    %v93 = vld [vmem:[#allocation5 + $0x58] sm:$0xf]
    %v94 = vld [vmem:[#allocation5 + $0x5c] sm:$0xf]
    %v95 = vld [vmem:[#allocation5 + $0x60] sm:$0xf]
    %v96 = vld [vmem:[#allocation5 + $0x64] sm:$0xf]
    %v97 = vld [vmem:[#allocation5 + $0x68] sm:$0xf]
    %v98 = vld [vmem:[#allocation5 + $0x6c] sm:$0xf]
    %v99 = vld [vmem:[#allocation5 + $0x70] sm:$0xf]
    %v100 = vld [vmem:[#allocation5 + $0x74] sm:$0xf]
    %v101 = vld [vmem:[#allocation5 + $0x78] sm:$0xf]
    %v102 = vld [vmem:[#allocation5 + $0x7c] sm:$0xf]
    %v103 = vld [vmem:[#allocation5 + $0x80] sm:$0xf]
    %v104 = vld [vmem:[#allocation5 + $0x84] sm:$0xf]
    %v105 = vld [vmem:[#allocation5 + $0x88] sm:$0xf]
    %v106 = vld [vmem:[#allocation5 + $0x8c] sm:$0xf]
    %v107 = vld [vmem:[#allocation5 + $0x90] sm:$0xf]
    %v108 = vld [vmem:[#allocation5 + $0x94] sm:$0xf]
    %v109 = vld [vmem:[#allocation5 + $0x98] sm:$0xf]
    %v110 = vld [vmem:[#allocation5 + $0x9c] sm:$0xf]
    %v111 = vld [vmem:[#allocation5 + $0xa0] sm:$0xf]
    %v112 = vld [vmem:[#allocation5 + $0xa4] sm:$0xf]
    %v113 = vld [vmem:[#allocation5 + $0xa8] sm:$0xf]
    %v114 = vld [vmem:[#allocation5 + $0xac] sm:$0xf]
    %v115 = vld [vmem:[#allocation5 + $0xb0] sm:$0xf]
    %v116 = vld [vmem:[#allocation5 + $0xb4] sm:$0xf]
    %v117 = vld [vmem:[#allocation5 + $0xb8] sm:$0xf]
    %v118 = vld [vmem:[#allocation5 + $0xbc] sm:$0xf]
    %v119 = vld [vmem:[#allocation5 + $0xc0] sm:$0xf]
    %v120 = vld [vmem:[#allocation5 + $0xc4] sm:$0xf]
    %v121 = vld [vmem:[#allocation5 + $0xc8] sm:$0xf]
    %v122 = vld [vmem:[#allocation5 + $0xcc] sm:$0xf]
    %v123 = vld [vmem:[#allocation5 + $0xd0] sm:$0xf]
    %v124 = vld [vmem:[#allocation5 + $0xd4] sm:$0xf]
    %v125 = vld [vmem:[#allocation5 + $0xd8] sm:$0xf]
    %v126 = vld [vmem:[#allocation5 + $0xdc] sm:$0xf]
    %v127 = vld [vmem:[#allocation5 + $0xe0] sm:$0xf]
    %v128 = vld [vmem:[#allocation5 + $0xe4] sm:$0xf]
    %v129 = vld [vmem:[#allocation5 + $0xe8] sm:$0xf]
    %v130 = vld [vmem:[#allocation5 + $0xec] sm:$0xf]
    %v131 = vld [vmem:[#allocation5 + $0xf0] sm:$0xf]
    %v132 = vld [vmem:[#allocation5 + $0xf4] sm:$0xf]
    %v133 = vld [vmem:[#allocation5 + $0xf8] sm:$0xf]
    %v134 = vld [vmem:[#allocation5 + $0xfc] sm:$0xf]
    %v135 = vld [vmem:[#allocation5 + $0x100] sm:$0xf]
    %v136 = vld [vmem:[#allocation5 + $0x104] sm:$0xf]
    %v137 = vld [vmem:[#allocation5 + $0x108] sm:$0xf]
    %v138 = vld [vmem:[#allocation5 + $0x10c] sm:$0xf]
    %v139 = vld [vmem:[#allocation5 + $0x110] sm:$0xf]
    %v140 = vld [vmem:[#allocation5 + $0x114] sm:$0xf]
    %v141 = vld [vmem:[#allocation5 + $0x118] sm:$0xf]
    %v142 = vld [vmem:[#allocation5 + $0x11c] sm:$0xf]
    %v143 = vld [vmem:[#allocation5 + $0x120] sm:$0xf]
    %v144 = vld [vmem:[#allocation5 + $0x124] sm:$0xf]
    %v145 = vld [vmem:[#allocation5 + $0x128] sm:$0xf]
    %v146 = vld [vmem:[#allocation5 + $0x12c] sm:$0xf]
    %v147 = vld [vmem:[#allocation5 + $0x130] sm:$0xf]
    %v148 = vld [vmem:[#allocation5 + $0x134] sm:$0xf]
    %v149 = vld [vmem:[#allocation5 + $0x138] sm:$0xf]
    %v150 = vld [vmem:[#allocation5 + $0x13c] sm:$0xf]
    %v151 = vld [vmem:[#allocation5 + $0x140] sm:$0xf]
    %v152 = vld [vmem:[#allocation5 + $0x144] sm:$0xf]
    %v153 = vld [vmem:[#allocation5 + $0x148] sm:$0xf]
    %v154 = vld [vmem:[#allocation5 + $0x14c] sm:$0xf]
    %v155 = vld [vmem:[#allocation5 + $0x150] sm:$0xf]
    %v156 = vld [vmem:[#allocation5 + $0x154] sm:$0xf]
    %v157 = vld [vmem:[#allocation5 + $0x158] sm:$0xf]
    %v158 = vld [vmem:[#allocation5 + $0x15c] sm:$0xf]
    %v159 = vld [vmem:[#allocation5 + $0x160] sm:$0xf]
    %v160 = vld [vmem:[#allocation5 + $0x164] sm:$0xf]
    %v161 = vld [vmem:[#allocation5 + $0x168] sm:$0xf]
    %v162 = vld [vmem:[#allocation5 + $0x16c] sm:$0xf]
    %v163 = vld [vmem:[#allocation5 + $0x170] sm:$0xf]
    %v164 = vld [vmem:[#allocation5 + $0x174] sm:$0xf]
    %v165 = vld [vmem:[#allocation5 + $0x178] sm:$0xf]
    %v166 = vld [vmem:[#allocation5 + $0x17c] sm:$0xf]
    %v167 = vld [vmem:[#allocation5 + $0x180] sm:$0xf]
    %v168 = vld [vmem:[#allocation5 + $0x184] sm:$0xf]
    %v169 = vld [vmem:[#allocation5 + $0x188] sm:$0xf]
    %v170 = vld [vmem:[#allocation5 + $0x18c] sm:$0xf]
    %v171 = vld [vmem:[#allocation5 + $0x190] sm:$0xf]
    %v172 = vld [vmem:[#allocation5 + $0x194] sm:$0xf]
    %v173 = vld [vmem:[#allocation5 + $0x198] sm:$0xf]
    %v174 = vld [vmem:[#allocation5 + $0x19c] sm:$0xf]
    %v175 = vld [vmem:[#allocation5 + $0x1a0] sm:$0xf]
    %v176 = vld [vmem:[#allocation5 + $0x1a4] sm:$0xf]
    %v177 = vld [vmem:[#allocation5 + $0x1a8] sm:$0xf]
    %v178 = vld [vmem:[#allocation5 + $0x1ac] sm:$0xf]
    %v179 = vld [vmem:[#allocation5 + $0x1b0] sm:$0xf]
    %v180 = vld [vmem:[#allocation5 + $0x1b4] sm:$0xf]
    %v181 = vld [vmem:[#allocation5 + $0x1b8] sm:$0xf]
    %v182 = vld [vmem:[#allocation5 + $0x1bc] sm:$0xf]
    %v183 = vld [vmem:[#allocation5 + $0x1c0] sm:$0xf]
    %v184 = vld [vmem:[#allocation5 + $0x1c4] sm:$0xf]
    %v185 = vld [vmem:[#allocation5 + $0x1c8] sm:$0xf]
    %v186 = vld [vmem:[#allocation5 + $0x1cc] sm:$0xf]
    %v187 = vld [vmem:[#allocation5 + $0x1d0] sm:$0xf]
    %v188 = vld [vmem:[#allocation5 + $0x1d4] sm:$0xf]
    %v189 = vld [vmem:[#allocation5 + $0x1d8] sm:$0xf]
    %v190 = vld [vmem:[#allocation5 + $0x1dc] sm:$0xf]
    %v191 = vld [vmem:[#allocation5 + $0x1e0] sm:$0xf]
    %v192 = vld [vmem:[#allocation5 + $0x1e4] sm:$0xf]
    %v193 = vld [vmem:[#allocation5 + $0x1e8] sm:$0xf]
    %v194 = vld [vmem:[#allocation5 + $0x1ec] sm:$0xf]
    %v195 = vld [vmem:[#allocation5 + $0x1f0] sm:$0xf]
    %v196 = vld [vmem:[#allocation5 + $0x1f4] sm:$0xf]
    %v197 = vld [vmem:[#allocation5 + $0x1f8] sm:$0xf]
    %v198 = vld [vmem:[#allocation5 + $0x1fc] sm:$0xf]
    %v200 = vcombine.high %v70, %v70
    %v202 = vunpack.c.l.s4 1966171168
    %v203 = vunpack.c.0.s8 %v202
    %v204 = vlaneseq
    %v205 = vshrl.u32 %v204, 7
    %v206 = vsub.s32 %v203, %v205
    %v207 = vrot.slane %v70, %v206
    %v209 = vunpack.c.l.s4 1966171168
    %v210 = vunpack.c.0.s8 %v209
    %v211 = vlaneseq
    %v212 = vshrl.u32 %v211, 7
    %v213 = vsub.s32 %v210, %v212
    %v214 = vrot.slane %v200, %v213
    %v215 = vcombine.high %v207, %v207
    %v216 = vcombine.high %v214, %v214
    %v218 = vunpack.c.l.s4 1966171168
    %v219 = vunpack.c.0.s8 %v218
    %v220 = vlaneseq
    %v221 = vshrl.u32 %v220, 7
    %v222 = vsub.s32 %v219, %v221
    %v223 = vrot.slane %v207, %v222
    %v225 = vunpack.c.l.s4 1966171168
    %v226 = vunpack.c.0.s8 %v225
    %v227 = vlaneseq
    %v228 = vshrl.u32 %v227, 7
    %v229 = vsub.s32 %v226, %v228
    %v230 = vrot.slane %v214, %v229
    %v232 = vunpack.c.l.s4 1966171168
    %v233 = vunpack.c.0.s8 %v232
    %v234 = vlaneseq
    %v235 = vshrl.u32 %v234, 7
    %v236 = vsub.s32 %v233, %v235
    %v237 = vrot.slane %v215, %v236
    %v239 = vunpack.c.l.s4 1966171168
    %v240 = vunpack.c.0.s8 %v239
    %v241 = vlaneseq
    %v242 = vshrl.u32 %v241, 7
    %v243 = vsub.s32 %v240, %v242
    %v244 = vrot.slane %v216, %v243
    %v245 = vcombine.high %v223, %v223
    %v246 = vcombine.high %v230, %v230
    %v247 = vcombine.high %v237, %v237
    %v248 = vcombine.high %v244, %v244
    %v385 = vunpack.c.l.b16 %v71
    %v386 = vunpack.c.l.b16 %v72
    %v387 = vunpack.c.l.b16 %v73
    %v388 = vunpack.c.l.b16 %v74
    %v389 = vunpack.c.l.b16 %v75
    %v390 = vunpack.c.l.b16 %v76
    %v391 = vunpack.c.l.b16 %v77
    %v392 = vunpack.c.l.b16 %v78
    %v393 = vunpack.c.l.b16 %v79
    %v394 = vunpack.c.l.b16 %v80
    %v395 = vunpack.c.l.b16 %v81
    %v396 = vunpack.c.l.b16 %v82
    %v397 = vunpack.c.l.b16 %v83
    %v398 = vunpack.c.l.b16 %v84
    %v399 = vunpack.c.l.b16 %v85
    %v400 = vunpack.c.l.b16 %v86
    %v401 = vunpack.c.l.b16 %v87
    %v402 = vunpack.c.l.b16 %v88
    %v403 = vunpack.c.l.b16 %v89
    %v404 = vunpack.c.l.b16 %v90
    %v405 = vunpack.c.l.b16 %v91
    %v406 = vunpack.c.l.b16 %v92
    %v407 = vunpack.c.l.b16 %v93
    %v408 = vunpack.c.l.b16 %v94
    %v409 = vunpack.c.l.b16 %v95
    %v410 = vunpack.c.l.b16 %v96
    %v411 = vunpack.c.l.b16 %v97
    %v412 = vunpack.c.l.b16 %v98
    %v413 = vunpack.c.l.b16 %v99
    %v414 = vunpack.c.l.b16 %v100
    %v415 = vunpack.c.l.b16 %v101
    %v416 = vunpack.c.l.b16 %v102
    %v417 = vunpack.c.l.b16 %v103
    %v418 = vunpack.c.l.b16 %v104
    %v419 = vunpack.c.l.b16 %v105
    %v420 = vunpack.c.l.b16 %v106
    %v421 = vunpack.c.l.b16 %v107
    %v422 = vunpack.c.l.b16 %v108
    %v423 = vunpack.c.l.b16 %v109
    %v424 = vunpack.c.l.b16 %v110
    %v425 = vunpack.c.l.b16 %v111
    %v426 = vunpack.c.l.b16 %v112
    %v427 = vunpack.c.l.b16 %v113
    %v428 = vunpack.c.l.b16 %v114
    %v429 = vunpack.c.l.b16 %v115
    %v430 = vunpack.c.l.b16 %v116
    %v431 = vunpack.c.l.b16 %v117
    %v432 = vunpack.c.l.b16 %v118
    %v433 = vunpack.c.l.b16 %v119
    %v434 = vunpack.c.l.b16 %v120
    %v435 = vunpack.c.l.b16 %v121
    %v436 = vunpack.c.l.b16 %v122
    %v437 = vunpack.c.l.b16 %v123
    %v438 = vunpack.c.l.b16 %v124
    %v439 = vunpack.c.l.b16 %v125
    %v440 = vunpack.c.l.b16 %v126
    %v441 = vunpack.c.l.b16 %v127
    %v442 = vunpack.c.l.b16 %v128
    %v443 = vunpack.c.l.b16 %v129
    %v444 = vunpack.c.l.b16 %v130
    %v445 = vunpack.c.l.b16 %v131
    %v446 = vunpack.c.l.b16 %v132
    %v447 = vunpack.c.l.b16 %v133
    %v448 = vunpack.c.l.b16 %v134
    %v449 = vunpack.c.l.b16 %v135
    %v450 = vunpack.c.l.b16 %v136
    %v451 = vunpack.c.l.b16 %v137
    %v452 = vunpack.c.l.b16 %v138
    %v453 = vunpack.c.l.b16 %v139
    %v454 = vunpack.c.l.b16 %v140
    %v455 = vunpack.c.l.b16 %v141
    %v456 = vunpack.c.l.b16 %v142
    %v457 = vunpack.c.l.b16 %v143
    %v458 = vunpack.c.l.b16 %v144
    %v459 = vunpack.c.l.b16 %v145
    %v460 = vunpack.c.l.b16 %v146
    %v461 = vunpack.c.l.b16 %v147
    %v462 = vunpack.c.l.b16 %v148
    %v463 = vunpack.c.l.b16 %v149
    %v464 = vunpack.c.l.b16 %v150
    %v465 = vunpack.c.l.b16 %v151
    %v466 = vunpack.c.l.b16 %v152
    %v467 = vunpack.c.l.b16 %v153
    %v468 = vunpack.c.l.b16 %v154
    %v469 = vunpack.c.l.b16 %v155
    %v470 = vunpack.c.l.b16 %v156
    %v471 = vunpack.c.l.b16 %v157
    %v472 = vunpack.c.l.b16 %v158
    %v473 = vunpack.c.l.b16 %v159
    %v474 = vunpack.c.l.b16 %v160
    %v475 = vunpack.c.l.b16 %v161
    %v476 = vunpack.c.l.b16 %v162
    %v477 = vunpack.c.l.b16 %v163
    %v478 = vunpack.c.l.b16 %v164
    %v479 = vunpack.c.l.b16 %v165
    %v480 = vunpack.c.l.b16 %v166
    %v481 = vunpack.c.l.b16 %v167
    %v482 = vunpack.c.l.b16 %v168
    %v483 = vunpack.c.l.b16 %v169
    %v484 = vunpack.c.l.b16 %v170
    %v485 = vunpack.c.l.b16 %v171
    %v486 = vunpack.c.l.b16 %v172
    %v487 = vunpack.c.l.b16 %v173
    %v488 = vunpack.c.l.b16 %v174
    %v489 = vunpack.c.l.b16 %v175
    %v490 = vunpack.c.l.b16 %v176
    %v491 = vunpack.c.l.b16 %v177
    %v492 = vunpack.c.l.b16 %v178
    %v493 = vunpack.c.l.b16 %v179
    %v494 = vunpack.c.l.b16 %v180
    %v495 = vunpack.c.l.b16 %v181
    %v496 = vunpack.c.l.b16 %v182
    %v497 = vunpack.c.l.b16 %v183
    %v498 = vunpack.c.l.b16 %v184
    %v499 = vunpack.c.l.b16 %v185
    %v500 = vunpack.c.l.b16 %v186
    %v501 = vunpack.c.l.b16 %v187
    %v502 = vunpack.c.l.b16 %v188
    %v503 = vunpack.c.l.b16 %v189
    %v504 = vunpack.c.l.b16 %v190
    %v505 = vunpack.c.l.b16 %v191
    %v506 = vunpack.c.l.b16 %v192
    %v507 = vunpack.c.l.b16 %v193
    %v508 = vunpack.c.l.b16 %v194
    %v509 = vunpack.c.l.b16 %v195
    %v510 = vunpack.c.l.b16 %v196
    %v511 = vunpack.c.l.b16 %v197
    %v512 = vunpack.c.l.b16 %v198
    %v513 = vpack.c.b16 %v386, %v385
    %v514 = vpack.c.b16 %v388, %v387
    %v515 = vpack.c.b16 %v390, %v389
    %v516 = vpack.c.b16 %v392, %v391
    %v517 = vpack.c.b16 %v394, %v393
    %v518 = vpack.c.b16 %v396, %v395
    %v519 = vpack.c.b16 %v398, %v397
    %v520 = vpack.c.b16 %v400, %v399
    %v521 = vpack.c.b16 %v402, %v401
    %v522 = vpack.c.b16 %v404, %v403
    %v523 = vpack.c.b16 %v406, %v405
    %v524 = vpack.c.b16 %v408, %v407
    %v525 = vpack.c.b16 %v410, %v409
    %v526 = vpack.c.b16 %v412, %v411
    %v527 = vpack.c.b16 %v414, %v413
    %v528 = vpack.c.b16 %v416, %v415
    %v529 = vpack.c.b16 %v418, %v417
    %v530 = vpack.c.b16 %v420, %v419
    %v531 = vpack.c.b16 %v422, %v421
    %v532 = vpack.c.b16 %v424, %v423
    %v533 = vpack.c.b16 %v426, %v425
    %v534 = vpack.c.b16 %v428, %v427
    %v535 = vpack.c.b16 %v430, %v429
    %v536 = vpack.c.b16 %v432, %v431
    %v537 = vpack.c.b16 %v434, %v433
    %v538 = vpack.c.b16 %v436, %v435
    %v539 = vpack.c.b16 %v438, %v437
    %v540 = vpack.c.b16 %v440, %v439
    %v541 = vpack.c.b16 %v442, %v441
    %v542 = vpack.c.b16 %v444, %v443
    %v543 = vpack.c.b16 %v446, %v445
    %v544 = vpack.c.b16 %v448, %v447
    %v545 = vpack.c.b16 %v450, %v449
    %v546 = vpack.c.b16 %v452, %v451
    %v547 = vpack.c.b16 %v454, %v453
    %v548 = vpack.c.b16 %v456, %v455
    %v549 = vpack.c.b16 %v458, %v457
    %v550 = vpack.c.b16 %v460, %v459
    %v551 = vpack.c.b16 %v462, %v461
    %v552 = vpack.c.b16 %v464, %v463
    %v553 = vpack.c.b16 %v466, %v465
    %v554 = vpack.c.b16 %v468, %v467
    %v555 = vpack.c.b16 %v470, %v469
    %v556 = vpack.c.b16 %v472, %v471
    %v557 = vpack.c.b16 %v474, %v473
    %v558 = vpack.c.b16 %v476, %v475
    %v559 = vpack.c.b16 %v478, %v477
    %v560 = vpack.c.b16 %v480, %v479
    %v561 = vpack.c.b16 %v482, %v481
    %v562 = vpack.c.b16 %v484, %v483
    %v563 = vpack.c.b16 %v486, %v485
    %v564 = vpack.c.b16 %v488, %v487
    %v565 = vpack.c.b16 %v490, %v489
    %v566 = vpack.c.b16 %v492, %v491
    %v567 = vpack.c.b16 %v494, %v493
    %v568 = vpack.c.b16 %v496, %v495
    %v569 = vpack.c.b16 %v498, %v497
    %v570 = vpack.c.b16 %v500, %v499
    %v571 = vpack.c.b16 %v502, %v501
    %v572 = vpack.c.b16 %v504, %v503
    %v573 = vpack.c.b16 %v506, %v505
    %v574 = vpack.c.b16 %v508, %v507
    %v575 = vpack.c.b16 %v510, %v509
    %v576 = vpack.c.b16 %v512, %v511
    %641 = vmatprep.subr.bf16.mxu0 0
    %642 = vmatpush1.bf16.msra.mxu0 %v513
    %643 = vmatprep.subr.bf16.mxu0 0
    %644 = vmatpush1.bf16.msra.mxu0 %v514
    %645 = vmatprep.subr.bf16.mxu0 0
    %646 = vmatpush1.bf16.msra.mxu0 %v515
    %647 = vmatprep.subr.bf16.mxu0 0
    %648 = vmatpush1.bf16.msra.mxu0 %v516
    %649 = vmatprep.subr.bf16.mxu0 0
    %650 = vmatpush1.bf16.msra.mxu0 %v517
    %651 = vmatprep.subr.bf16.mxu0 0
    %652 = vmatpush1.bf16.msra.mxu0 %v518
    %653 = vmatprep.subr.bf16.mxu0 0
    %654 = vmatpush1.bf16.msra.mxu0 %v519
    %655 = vmatprep.subr.bf16.mxu0 0
    %656 = vmatpush1.bf16.msra.mxu0 %v520
    %657 = vmatprep.subr.bf16.mxu0 0
    %658 = vmatpush1.bf16.msra.mxu0 %v521
    %659 = vmatprep.subr.bf16.mxu0 0
    %660 = vmatpush1.bf16.msra.mxu0 %v522
    %661 = vmatprep.subr.bf16.mxu0 0
    %662 = vmatpush1.bf16.msra.mxu0 %v523
    %663 = vmatprep.subr.bf16.mxu0 0
    %664 = vmatpush1.bf16.msra.mxu0 %v524
    %665 = vmatprep.subr.bf16.mxu0 0
    %666 = vmatpush1.bf16.msra.mxu0 %v525
    %667 = vmatprep.subr.bf16.mxu0 0
    %668 = vmatpush1.bf16.msra.mxu0 %v526
    %669 = vmatprep.subr.bf16.mxu0 0
    %670 = vmatpush1.bf16.msra.mxu0 %v527
    %671 = vmatprep.subr.bf16.mxu0 0
    %672 = vmatpush1.bf16.msra.mxu0 %v528
    %673 = vmatprep.mubr.bf16.mxu0 %v237
    %674 = vmatmul.mubr.bf16.gmra.mrb[0].mxu0 %v223
    %v675 = vpop.f32.mrb[0].mxu0
    %v676 = vadd.f32 0.0, %v675
    %v677 = vpop.f32.mrb[0].mxu0
    %v678 = vpop.f32.mrb[0].mxu0
    %v679 = vpop.f32.mrb[0].mxu0
    %680 = vdwg.mxu0
    %681 = vmatprep.subr.bf16.mxu0 0
    %682 = vmatpush1.bf16.msra.mxu0 %v529
    %683 = vmatprep.subr.bf16.mxu0 0
    %684 = vmatpush1.bf16.msra.mxu0 %v530
    %685 = vmatprep.subr.bf16.mxu0 0
    %686 = vmatpush1.bf16.msra.mxu0 %v531
    %687 = vmatprep.subr.bf16.mxu0 0
    %688 = vmatpush1.bf16.msra.mxu0 %v532
    %689 = vmatprep.subr.bf16.mxu0 0
    %690 = vmatpush1.bf16.msra.mxu0 %v533
    %691 = vmatprep.subr.bf16.mxu0 0
    %692 = vmatpush1.bf16.msra.mxu0 %v534
    %693 = vmatprep.subr.bf16.mxu0 0
    %694 = vmatpush1.bf16.msra.mxu0 %v535
    %695 = vmatprep.subr.bf16.mxu0 0
    %696 = vmatpush1.bf16.msra.mxu0 %v536
    %697 = vmatprep.subr.bf16.mxu0 0
    %698 = vmatpush1.bf16.msra.mxu0 %v537
    %699 = vmatprep.subr.bf16.mxu0 0
    %700 = vmatpush1.bf16.msra.mxu0 %v538
    %701 = vmatprep.subr.bf16.mxu0 0
    %702 = vmatpush1.bf16.msra.mxu0 %v539
    %703 = vmatprep.subr.bf16.mxu0 0
    %704 = vmatpush1.bf16.msra.mxu0 %v540
    %705 = vmatprep.subr.bf16.mxu0 0
    %706 = vmatpush1.bf16.msra.mxu0 %v541
    %707 = vmatprep.subr.bf16.mxu0 0
    %708 = vmatpush1.bf16.msra.mxu0 %v542
    %709 = vmatprep.subr.bf16.mxu0 0
    %710 = vmatpush1.bf16.msra.mxu0 %v543
    %711 = vmatprep.subr.bf16.mxu0 0
    %712 = vmatpush1.bf16.msra.mxu0 %v544
    %713 = vmatprep.mubr.bf16.mxu0 %v247
    %714 = vmatmul.mubr.bf16.gmra.mrb[0].mxu0 %v245
    %v715 = vpop.f32.mrb[0].mxu0
    %v716 = vadd.f32 %v676, %v715
    %v717 = vpop.f32.mrb[0].mxu0
    %v718 = vpop.f32.mrb[0].mxu0
    %v719 = vpop.f32.mrb[0].mxu0
    %720 = vdwg.mxu0
    %721 = vmatprep.subr.bf16.mxu0 0
    %722 = vmatpush1.bf16.msra.mxu0 %v545
    %723 = vmatprep.subr.bf16.mxu0 0
    %724 = vmatpush1.bf16.msra.mxu0 %v546
    %725 = vmatprep.subr.bf16.mxu0 0
    %726 = vmatpush1.bf16.msra.mxu0 %v547
    %727 = vmatprep.subr.bf16.mxu0 0
    %728 = vmatpush1.bf16.msra.mxu0 %v548
    %729 = vmatprep.subr.bf16.mxu0 0
    %730 = vmatpush1.bf16.msra.mxu0 %v549
    %731 = vmatprep.subr.bf16.mxu0 0
    %732 = vmatpush1.bf16.msra.mxu0 %v550
    %733 = vmatprep.subr.bf16.mxu0 0
    %734 = vmatpush1.bf16.msra.mxu0 %v551
    %735 = vmatprep.subr.bf16.mxu0 0
    %736 = vmatpush1.bf16.msra.mxu0 %v552
    %737 = vmatprep.subr.bf16.mxu0 0
    %738 = vmatpush1.bf16.msra.mxu0 %v553
    %739 = vmatprep.subr.bf16.mxu0 0
    %740 = vmatpush1.bf16.msra.mxu0 %v554
    %741 = vmatprep.subr.bf16.mxu0 0
    %742 = vmatpush1.bf16.msra.mxu0 %v555
    %743 = vmatprep.subr.bf16.mxu0 0
    %744 = vmatpush1.bf16.msra.mxu0 %v556
    %745 = vmatprep.subr.bf16.mxu0 0
    %746 = vmatpush1.bf16.msra.mxu0 %v557
    %747 = vmatprep.subr.bf16.mxu0 0
    %748 = vmatpush1.bf16.msra.mxu0 %v558
    %749 = vmatprep.subr.bf16.mxu0 0
    %750 = vmatpush1.bf16.msra.mxu0 %v559
    %751 = vmatprep.subr.bf16.mxu0 0
    %752 = vmatpush1.bf16.msra.mxu0 %v560
    %753 = vmatprep.mubr.bf16.mxu0 %v244
    %754 = vmatmul.mubr.bf16.gmra.mrb[0].mxu0 %v230
    %v755 = vpop.f32.mrb[0].mxu0
    %v756 = vadd.f32 %v716, %v755
    %v757 = vpop.f32.mrb[0].mxu0
    %v758 = vpop.f32.mrb[0].mxu0
    %v759 = vpop.f32.mrb[0].mxu0
    %760 = vdwg.mxu0
    %761 = vmatprep.subr.bf16.mxu0 0
    %762 = vmatpush1.bf16.msra.mxu0 %v561
    %763 = vmatprep.subr.bf16.mxu0 0
    %764 = vmatpush1.bf16.msra.mxu0 %v562
    %765 = vmatprep.subr.bf16.mxu0 0
    %766 = vmatpush1.bf16.msra.mxu0 %v563
    %767 = vmatprep.subr.bf16.mxu0 0
    %768 = vmatpush1.bf16.msra.mxu0 %v564
    %769 = vmatprep.subr.bf16.mxu0 0
    %770 = vmatpush1.bf16.msra.mxu0 %v565
    %771 = vmatprep.subr.bf16.mxu0 0
    %772 = vmatpush1.bf16.msra.mxu0 %v566
    %773 = vmatprep.subr.bf16.mxu0 0
    %774 = vmatpush1.bf16.msra.mxu0 %v567
    %775 = vmatprep.subr.bf16.mxu0 0
    %776 = vmatpush1.bf16.msra.mxu0 %v568
    %777 = vmatprep.subr.bf16.mxu0 0
    %778 = vmatpush1.bf16.msra.mxu0 %v569
    %779 = vmatprep.subr.bf16.mxu0 0
    %780 = vmatpush1.bf16.msra.mxu0 %v570
    %781 = vmatprep.subr.bf16.mxu0 0
    %782 = vmatpush1.bf16.msra.mxu0 %v571
    %783 = vmatprep.subr.bf16.mxu0 0
    %784 = vmatpush1.bf16.msra.mxu0 %v572
    %785 = vmatprep.subr.bf16.mxu0 0
    %786 = vmatpush1.bf16.msra.mxu0 %v573
    %787 = vmatprep.subr.bf16.mxu0 0
    %788 = vmatpush1.bf16.msra.mxu0 %v574
    %789 = vmatprep.subr.bf16.mxu0 0
    %790 = vmatpush1.bf16.msra.mxu0 %v575
    %791 = vmatprep.subr.bf16.mxu0 0
    %792 = vmatpush1.bf16.msra.mxu0 %v576
    %793 = vmatprep.mubr.bf16.mxu0 %v248
    %794 = vmatmul.mubr.bf16.gmra.mrb[0].mxu0 %v246
    %v795 = vpop.f32.mrb[0].mxu0
    %v796 = vadd.f32 %v756, %v795
    %v797 = vpop.f32.mrb[0].mxu0
    %v798 = vpop.f32.mrb[0].mxu0
    %v799 = vpop.f32.mrb[0].mxu0
    %800 = vdwg.mxu0
    %v801 = vld [vmem:[#allocation7] sm:$0xff]
    %v802 = vld [vmem:[#allocation7 + $0x8] sm:$0xff]
    %v803 = vld [vmem:[#allocation8] sm:$0x1]
    %v805 = vlaneseq
    %v806 = vshrl.u32 %v805, 7
    %v807 = vsub.s32 0, %v806
    %v808 = vrot.slane %v803, %v807
    %vm810 = vcmask 130048
    %v812 = vsel %vm810, %v796, 0
    %814 = vmatprep.subr.mxu0 0.0
    %815 = vmatpush1.msra.mxu0 %v801
    %816 = vmatprep.subr.mxu0 0.0
    %817 = vmatpush1.msra.mxu0 %v802
    %818 = vmatprep.subr.mxu0 0.0
    %819 = vmatpush1.msra.mxu0 0.0
    %820 = vmatprep.subr.mxu0 0.0
    %821 = vmatpush1.msra.mxu0 0.0
    %822 = vmatprep.subr.mxu0 0.0
    %823 = vmatpush1.msra.mxu0 0.0
    %824 = vmatprep.subr.mxu0 0.0
    %825 = vmatpush1.msra.mxu0 0.0
    %826 = vmatprep.subr.mxu0 0.0
    %827 = vmatpush1.msra.mxu0 0.0
    %828 = vmatprep.subr.mxu0 0.0
    %829 = vmatpush1.msra.mxu0 0.0
    %830 = vmatprep.subr.mxu0 0.0
    %831 = vmatpush1.msra.mxu0 0.0
    %832 = vmatprep.subr.mxu0 0.0
    %833 = vmatpush1.msra.mxu0 0.0
    %834 = vmatprep.subr.mxu0 0.0
    %835 = vmatpush1.msra.mxu0 0.0
    %836 = vmatprep.subr.mxu0 0.0
    %837 = vmatpush1.msra.mxu0 0.0
    %838 = vmatprep.subr.mxu0 0.0
    %839 = vmatpush1.msra.mxu0 0.0
    %840 = vmatprep.subr.mxu0 0.0
    %841 = vmatpush1.msra.mxu0 0.0
    %842 = vmatprep.subr.mxu0 0.0
    %843 = vmatpush1.msra.mxu0 0.0
    %844 = vmatprep.subr.mxu0 0.0
    %845 = vmatpush1.msra.mxu0 0.0
    %846 = vmatprep.subr.mxu0 0.0
    %847 = vmatpush1.msra.mxu0 0.0
    %848 = vmatprep.subr.mxu0 0.0
    %849 = vmatpush1.msra.mxu0 0.0
    %850 = vmatprep.subr.mxu0 0.0
    %851 = vmatpush1.msra.mxu0 0.0
    %852 = vmatprep.subr.mxu0 0.0
    %853 = vmatpush1.msra.mxu0 0.0
    %854 = vmatprep.subr.mxu0 0.0
    %855 = vmatpush1.msra.mxu0 0.0
    %856 = vmatprep.subr.mxu0 0.0
    %857 = vmatpush1.msra.mxu0 0.0
    %858 = vmatprep.subr.mxu0 0.0
    %859 = vmatpush1.msra.mxu0 0.0
    %860 = vmatprep.subr.mxu0 0.0
    %861 = vmatpush1.msra.mxu0 0.0
    %862 = vmatprep.subr.mxu0 0.0
    %863 = vmatpush1.msra.mxu0 0.0
    %864 = vmatprep.subr.mxu0 0.0
    %865 = vmatpush1.msra.mxu0 0.0
    %866 = vmatprep.subr.mxu0 0.0
    %867 = vmatpush1.msra.mxu0 0.0
    %868 = vmatprep.subr.mxu0 0.0
    %869 = vmatpush1.msra.mxu0 0.0
    %870 = vmatprep.subr.mxu0 0.0
    %871 = vmatpush1.msra.mxu0 0.0
    %872 = vmatprep.subr.mxu0 0.0
    %873 = vmatpush1.msra.mxu0 0.0
    %874 = vmatprep.subr.mxu0 0.0
    %875 = vmatpush1.msra.mxu0 0.0
    %876 = vmatprep.subr.mxu0 0.0
    %877 = vmatpush1.msra.mxu0 0.0
    %878 = vmatprep.mubr.f32.mxu0 0.0
    %879 = vmatmul.mubr.f32.gmra.mrb[0].mxu0 %v812
    %v880 = vpop.f32.mrb[0].mxu0
    %v881 = vadd.f32 %v808, %v880
    %v882 = vpop.f32.mrb[0].mxu0
    %883 = vdwg.mxu0
    %v884 = vlaneseq
    %v885 = vand.u32 %v884, 127
    %vm886 = vcmp.lt.s32.totalorder %v885, 10
    %v887 = vsel %vm886, %v881, -1e+30
    %vm888 = vcmask 1041408
    %v889 = vsel %vm888, %v887, -inf
    %890 = vmax.xlane.f32.xlu0 %v889
    %v891 = vpop.xlane.xlu0 %890
    %v892 = vsub.f32 %v887, %v891
    %v893 = vmul.f32 %v892, 1.442695
    %v894 = vpow.pop %v893
    %v895 = vsel %vm888, %v894, 0.0
    %896 = vadd.xlane.f32.xlu0 %v895
    %v897 = vpop.xlane.xlu0 %896
    %v898 = vrcp.pop %v897
    %v899 = vmul.f32 %v894, %v898
    %v900 = vsub.f32 0.0, %v881
    %v901 = vmul.f32 %v900, 1.442695
    %v902 = vpow.pop %v901
    %v903 = vadd.f32 %v902, 1.0
    %v904 = vrcp.pop %v903
    %v905 = vmul.f32 1.0, %v904
    %vm906 = vcmp.eq.s32.totalorder %v885, 10
    %v907 = vsel %vm906, %v905, %v899
    %908 = vst [vmem:[#allocation10] sm:$0x3] %v907
    // Predicated region
    $region34: #{netD_forward.13} parent=1 // pred_check
      _
    $region35: #{netD_forward.13} parent=1 // pred_check_branch
      %910 = sbr.rel (0) target = $region37
    $region36: #{netD_forward.13} parent=1 // pred_region
      %s912 = ssub.s32 32, 32
      %913 = vsyncadd [#allocation4], %s912
      %s915 = sshll.u32 [#allocation10], 4
      %s916 = int_to_ptr.vmem [resolvable:$true] %s915
      %918 = dma.vmem_to_hbm [thread:$0]  %s916, 32, %s4, [#allocation4]
    $region37: #{netD_forward.13} parent=1 // pred_fallthru
      _
    // Predicated region
    $region38: #{netD_forward.13} parent=1 // pred_check
      _
    $region39: #{netD_forward.13} parent=1 // pred_check_branch
      %920 = sbr.rel (0) target = $region41
    $region40: #{netD_forward.13} parent=1 // pred_region
      %921 = dma.done [#allocation4], 32
    $region41: #{netD_forward.13} parent=1 // pred_fallthru
      _
    %922 = vsyncpa [#allocation3], 1
    %923 = vsyncpa [#allocation6], 1
    %924 = vsyncpa [#allocation9], 1
    %925 = vsyncpa [#allocation4], 1

</llo_original>
